<compile_context>
chip_gen: v7x
topology: tpu7x:2x2x1
jax: 0.10.0
libtpu: 0.0.40
codegen_flags: <defaults>
</compile_context>

<pallas_src>
import functools

import jax
import jax.numpy as jnp
from jax.experimental import pallas as pl
from jax.experimental.pallas import tpu as pltpu


# ----------------------------------------------------------------------------
# Helpers
# ----------------------------------------------------------------------------
_BN_EPS = 1e-5
_MAX_TM = 512   # max row tile (review: 256-512; big tiles amortize grid-step cost)
_LANES = 128


def _round_up(x, m):
    return ((x + m - 1) // m) * m


def _row_tiling(m):
    """Row tile and padded row count.  Single tile for small M, 512-row tiles
    for large M (multiple of 8 always, multiple of 128 when tiled)."""
    if m <= _MAX_TM:
        tm = _round_up(m, 8)
        return tm, tm
    return _MAX_TM, _round_up(m, _MAX_TM)


# ----------------------------------------------------------------------------
# Pallas kernels
# ----------------------------------------------------------------------------
def _mlp_chain_kernel(x_ref, w_ref, b_ref, o_ref, *, num_layers):
    """Fused chain of (Conv1d k=1 + folded-BN + ReLU) layers.

    x_ref: (TM, Cpad) bf16     w_ref: (L, Cpad, Cpad) bf16 (scale pre-folded)
    b_ref: (L, 1, Cpad) f32    o_ref: (TM, Cpad) bf16
    Padded channels carry zero weights / zero bias -> stay exactly zero.
    """
    x = x_ref[...]
    for l in range(num_layers):                      # static unroll
        y = jnp.dot(x, w_ref[l], preferred_element_type=jnp.float32)
        y = y + b_ref[l]                             # f32 epilogue (v5e-safe)
        x = jnp.maximum(y, 0.0).astype(jnp.bfloat16)
    o_ref[...] = x


def _gather_max_kernel(f_ref, idx_ref, o_ref, *, nsample):
    """Fused neighbor gather + max-pool for one (batch, query-tile) block.

    f_ref:   (1, N, Cpad) bf16   full support features (VMEM resident)
    idx_ref: (1, TM, K)   int32  neighbor indices per query row
    o_ref:   (1, TM, Cpad) bf16  max over the K gathered neighbors
    Gather is a one-hot select matmul (MXU); max accumulates on the VPU, so
    the (TM, K, Cpad) grouped tensor never exists.
    """
    fv = f_ref[...][0].astype(jnp.float32)           # (N, Cpad)
    idx = idx_ref[...][0]                            # (TM, K)
    n = fv.shape[0]
    tm = idx.shape[0]
    iota_n = jax.lax.broadcasted_iota(jnp.int32, (tm, n), 1)

    def gathered(k):
        sel = (iota_n == idx[:, k:k + 1]).astype(jnp.float32)     # (TM, N)
        return jnp.dot(sel, fv, preferred_element_type=jnp.float32)

    acc = gathered(0)                                # exact: every row hits once
    for k in range(1, nsample):
        acc = jnp.maximum(acc, gathered(k))
    o_ref[...] = acc.astype(o_ref.dtype)[None]


# ----------------------------------------------------------------------------
# Pallas wrappers
# ----------------------------------------------------------------------------
def mlp_chain(x, chain):
    """Apply a packed MLP chain.  x: (M, C) any float width <= cpad.
    Returns (M, cpad) bf16 (channels stay padded; extra channels are zero)."""
    m, cin = x.shape
    cpad = chain["cpad"]
    assert cin <= cpad
    tm, m_pad = _row_tiling(m)
    xp = jnp.zeros((m_pad, cpad), jnp.bfloat16).at[:m, :cin].set(
        x.astype(jnp.bfloat16))
    num_layers = int(chain["w"].shape[0])

    out = pl.pallas_call(
        functools.partial(_mlp_chain_kernel, num_layers=num_layers),
        out_shape=jax.ShapeDtypeStruct((m_pad, cpad), jnp.bfloat16),
        grid=(m_pad // tm,),
        in_specs=[
            pl.BlockSpec((tm, cpad), lambda i: (i, 0)),
            pl.BlockSpec((num_layers, cpad, cpad), lambda i: (0, 0, 0)),
            pl.BlockSpec((num_layers, 1, cpad), lambda i: (0, 0, 0)),
        ],
        out_specs=pl.BlockSpec((tm, cpad), lambda i: (i, 0)),
        compiler_params=pltpu.CompilerParams(
            dimension_semantics=("parallel",)),
    )(xp, chain["w"], chain["b"])
    return out[:m]


def gather_max(feats, idx):
    """Fused kNN gather + max-pool.
    feats: (B, N, Cpad) bf16, idx: (B, M, K) int32 -> (B, M_pad, Cpad) bf16.
    Padded query rows (idx 0) produce finite garbage that callers slice off."""
    b, n, cpad = feats.shape
    _, m, k = idx.shape
    tm, m_pad = _row_tiling(m)
    idx_p = jnp.zeros((b, m_pad, k), jnp.int32).at[:, :m, :].set(idx)

    out = pl.pallas_call(
        functools.partial(_gather_max_kernel, nsample=k),
        out_shape=jax.ShapeDtypeStruct((b, m_pad, cpad), jnp.bfloat16),
        grid=(b, m_pad // tm),
        in_specs=[
            pl.BlockSpec((1, n, cpad), lambda bi, i: (bi, 0, 0)),
            pl.BlockSpec((1, tm, k), lambda bi, i: (bi, i, 0)),
        ],
        out_specs=pl.BlockSpec((1, tm, cpad), lambda bi, i: (bi, i, 0)),
        compiler_params=pltpu.CompilerParams(
            dimension_semantics=("parallel", "parallel")),
    )(feats, idx_p)
    return out


# ----------------------------------------------------------------------------
# JAX glue (neighbor selection, subsampling, module composition)
# ----------------------------------------------------------------------------
def knn_indices(query_xyz, support_xyz, k):
    # ||q-s||^2 = ||q||^2 + ||s||^2 - 2 q.s  (no (M,N,3) intermediate)
    qq = jnp.sum(query_xyz * query_xyz, axis=-1, keepdims=True)     # (M,1)
    ss = jnp.sum(support_xyz * support_xyz, axis=-1)                # (N,)
    d2 = qq + ss[None, :] - 2.0 * (query_xyz @ support_xyz.T)
    _, idx = jax.lax.top_k(-d2, k)
    return idx


def _fit_channels(x, c_true, cpad_target):
    """Adjust a (rows, Cpad_src) padded activation to Cpad_dst lanes."""
    c = x.shape[-1]
    if c == cpad_target:
        return x
    x = x[..., :c_true]
    return jnp.pad(x, ((0, 0), (0, cpad_target - c_true)))


def local_aggregation(query_xyz, support_xyz, feats, layers, nsample):
    """ASSA-style separable local aggregation.

    query_xyz (B,M,3), support_xyz (B,N,3), feats (B,N,C) -> (B,M,Cout) bf16.
    """
    b, n, _ = feats.shape
    m = query_xyz.shape[1]
    pre, post = layers["pre"], layers["post"]

    # pre-conv chain at full support resolution (single fused kernel)
    x = mlp_chain(feats.reshape(b * n, feats.shape[-1]), pre)
    x = x.reshape(b, n, pre["cpad"])

    # fused grouping (kNN gather) + max reduction
    idx = jax.vmap(knn_indices, in_axes=(0, 0, None))(
        query_xyz, support_xyz, nsample)                 # (B, M, K)
    pooled = gather_max(x, idx)                          # (B, M_pad, Cpad_pre)
    m_pad = pooled.shape[1]

    # post-conv chain (padded rows flow through and are sliced at the end)
    y = _fit_channels(pooled.reshape(b * m_pad, pre["cpad"]),
                      pre["cout"], post["cpad"])
    y = mlp_chain(y, post)
    y = y.reshape(b, m_pad, post["cpad"])[:, :m, :post["cout"]]
    return y


def stride_subsample(xyz, npoint):
    # TODO(synk): deterministic stride subsample stands in for FPS.
    n = xyz.shape[1]
    stride = max(n // npoint, 1)
    return xyz[:, ::stride, :][:, :npoint, :]


# ----------------------------------------------------------------------------
# Parameter construction (mirrors __init__ shapes, then packs fused chains)
# ----------------------------------------------------------------------------
def _make_raw_layer(key, cin, cout):
    # Conv1d(cin, cout, k=1, bias=False) kaiming-normal + BatchNorm1d defaults.
    w = jax.random.normal(key, (cin, cout), jnp.float32) * jnp.sqrt(2.0 / cin)
    return {"w": w,
            "gamma": jnp.ones((cout,), jnp.float32),
            "beta": jnp.zeros((cout,), jnp.float32),
            "mean": jnp.zeros((cout,), jnp.float32),
            "var": jnp.ones((cout,), jnp.float32)}


def _pack_chain(raw_layers):
    """Fold BN into the conv weights and pack a layer chain into stacked,
    lane-padded (cpad multiple of 128) bf16 weights + f32 biases."""
    cpad = _LANES
    for lay in raw_layers:
        cin, cout = lay["w"].shape
        cpad = max(cpad, _round_up(cin, _LANES), _round_up(cout, _LANES))
    ws, bs = [], []
    for lay in raw_layers:
        cin, cout = lay["w"].shape
        # General BN fold (correct for arbitrary gamma/beta/mean/var).
        scale = lay["gamma"] / jnp.sqrt(lay["var"] + _BN_EPS)
        bias = lay["beta"] - lay["mean"] * scale
        wf = lay["w"] * scale[None, :]
        wp = jnp.zeros((cpad, cpad), jnp.float32).at[:cin, :cout].set(wf)
        bp = jnp.zeros((1, cpad), jnp.float32).at[0, :cout].set(bias)
        ws.append(wp.astype(jnp.bfloat16))
        bs.append(bp)
    return {"w": jnp.stack(ws), "b": jnp.stack(bs),
            "cin": raw_layers[0]["w"].shape[0],
            "cout": raw_layers[-1]["w"].shape[1],
            "cpad": cpad}


def build_params(key, cfg, in_channels=3):
    width = cfg["width"]
    depth = cfg["depth"]
    layers = cfg["layers"]
    npoints = cfg["npoints"]

    # mlps construction as in ASSANetEncoder.__init__
    mlps = [[[width * (depth ** k)] * layers] * depth
            for k in range(len(npoints))]

    keys = iter(jax.random.split(key, 256))
    params = {}

    # conv1 (Conv1d+BN+ReLU) is fused into la1's pre chain: it is applied
    # pointwise at the same support resolution, so semantics are identical.
    conv1 = _make_raw_layer(next(keys), in_channels, width)
    la1_pre = [_make_raw_layer(next(keys), width, width) for _ in range(2)]
    la1_post = [_make_raw_layer(next(keys), width, width)]   # post_layers = 1
    params["la1"] = {"pre": _pack_chain([conv1] + la1_pre),
                     "post": _pack_chain(la1_post)}

    # SA modules (channel_list construction mirrors __init__)
    cur_width = width
    sa_params = []
    for k in range(len(npoints)):
        channel_list = [list(c) for c in mlps[k]]
        channel_out = 0
        branches = []
        for idx in range(len(channel_list)):
            channels = [cur_width] + channel_list[idx]
            channel_out += channels[-1]
            cur_width = channels[-1]
            n_trans = len(channels) - 1
            post = 1                    # post_layers = layers // 2 -> 1
            pre = n_trans - post
            pre_raw = [_make_raw_layer(next(keys), channels[i], channels[i + 1])
                       for i in range(pre)]
            post_raw = [_make_raw_layer(next(keys), channels[pre + i],
                                        channels[pre + i + 1])
                        for i in range(post)]
            branches.append({"pre": _pack_chain(pre_raw),
                             "post": _pack_chain(post_raw)})
        cur_width = channel_out
        sa_params.append({"branches": branches})
    params["sa"] = sa_params
    return params


# ----------------------------------------------------------------------------
# Forward pass (mirrors ASSANetEncoder.forward)
# ----------------------------------------------------------------------------
def assanet_encoder_forward(xyz, features, params, cfg):
    """xyz: (B, N, 3); features: (B, Cin, N) (PyTorch Conv1d NCW layout).
    Returns (l_xyz, l_features) with features channels-last (B, M, C) f32."""
    f = jnp.transpose(features, (0, 2, 1))                 # (B, N, Cin)

    # la1(xyz, xyz, conv1(features))  -- conv1 folded into la1 pre chain
    f0 = local_aggregation(xyz, xyz, f, params["la1"], cfg["nsample"][0][0])

    l_xyz = [xyz]
    l_features = [f0]
    cur_xyz, cur_f = xyz, f0

    for k, sa in enumerate(params["sa"]):
        npoint = cfg["npoints"][k]
        new_xyz = stride_subsample(cur_xyz, npoint)
        branch_outs = []
        for i, branch in enumerate(sa["branches"]):
            if i == 0:
                support_xyz, feats_in = cur_xyz, cur_f
            else:
                support_xyz, feats_in = new_xyz, branch_outs[-1]
            out = local_aggregation(new_xyz, support_xyz, feats_in, branch,
                                    cfg["nsample"][k][i])
            branch_outs.append(out)
        new_f = jnp.concatenate(branch_outs, axis=-1)
        l_xyz.append(new_xyz)
        l_features.append(new_f)
        cur_xyz, cur_f = new_xyz, new_f

    return l_xyz, [ff.astype(jnp.float32) for ff in l_features]


# ----------------------------------------------------------------------------
if __name__ == "__main__":
    cfg = {
        "width": 32,
        "depth": 2,
        "layers": 2,
        "npoints": [16, 8],
        "nsample": [[8, 8], [8, 8]],
        "radius": [[0.2, 0.4], [0.4, 0.8]],   # unused (kNN grouping)
    }

    key = jax.random.PRNGKey(0)
    k_xyz, k_feat, k_par = jax.random.split(key, 3)

    B, N, CIN = 2, 32, 3
    xyz = jax.random.normal(k_xyz, (B, N, 3), jnp.float32)
    features = jax.random.normal(k_feat, (B, CIN, N), jnp.float32)  # NCW

    params = build_params(k_par, cfg, in_channels=CIN)

    fwd = jax.jit(functools.partial(assanet_encoder_forward,
                                    params=params, cfg=cfg))
    l_xyz, l_features = fwd(xyz, features)
    jax.block_until_ready(l_features)

    # sanity: expected channel growth 32 -> 64 -> 128
    assert l_features[0].shape == (B, N, 32)
    assert l_features[1].shape == (B, 16, 64)
    assert l_features[2].shape == (B, 8, 128)
    assert l_xyz[1].shape == (B, 16, 3) and l_xyz[2].shape == (B, 8, 3)
    assert all(ff.dtype == jnp.float32 for ff in l_features)
    assert all(bool(jnp.all(jnp.isfinite(ff))) for ff in l_features)

    print("KERNEL_OK")
</pallas_src>

<mosaic_0001>
module attributes {stable_mosaic.version = 11 : i64} {
  func.func @_mlp_chain_kernel(%arg0: i32, %arg1: memref<64x128xbf16, #tpu.memory_space<vmem>>, %arg2: memref<1x128x128xbf16, #tpu.memory_space<vmem>>, %arg3: memref<1x1x128xf32, #tpu.memory_space<vmem>>, %arg4: memref<64x128xbf16, #tpu.memory_space<vmem>>) attributes {dimension_semantics = [#tpu.dimension_semantics<parallel>], iteration_bounds = array<i64: 1>, scalar_prefetch = 0 : i64, scratch_operands = 0 : i64, tpu.core_type = #tpu.core_type<tc>, window_params = [{transform_indices = @transform_0, window_bounds = array<i64: 64, 128>}, {pipeline_mode = #tpu.pipeline_mode<synchronous>, transform_indices = @transform_1, window_bounds = array<i64: 1, 128, 128>}, {pipeline_mode = #tpu.pipeline_mode<synchronous>, transform_indices = @transform_2, window_bounds = array<i64: 1, 1, 128>}, {transform_indices = @transform_3, window_bounds = array<i64: 64, 128>}]} {
    %c0 = arith.constant 0 : index
    %c0_0 = arith.constant 0 : index
    %0 = vector.load %arg1[%c0, %c0_0] : memref<64x128xbf16, #tpu.memory_space<vmem>>, vector<64x128xbf16>
    %c0_1 = arith.constant 0 : index
    %c0_2 = arith.constant 0 : index
    %c0_3 = arith.constant 0 : index
    %1 = vector.load %arg2[%c0_1, %c0_2, %c0_3] : memref<1x128x128xbf16, #tpu.memory_space<vmem>>, vector<1x128x128xbf16>
    %2 = vector.shape_cast %1 : vector<1x128x128xbf16> to vector<128x128xbf16>
    %cst = arith.constant dense<0.000000e+00> : vector<64x128xf32>
    %3 = tpu.matmul %0, %2, %cst {dimension_numbers = #tpu.dot_dimension_numbers<[1], [0], [0], [1], [0, 0, 1, 1], [], []>} : vector<64x128xbf16>, vector<128x128xbf16>, vector<64x128xf32> -> vector<64x128xf32>
    %c0_4 = arith.constant 0 : index
    %c0_5 = arith.constant 0 : index
    %c0_6 = arith.constant 0 : index
    %4 = vector.load %arg3[%c0_4, %c0_5, %c0_6] : memref<1x1x128xf32, #tpu.memory_space<vmem>>, vector<1x1x128xf32>
    %5 = vector.shape_cast %4 : vector<1x1x128xf32> to vector<1x128xf32>
    %6 = vector.broadcast %5 : vector<1x128xf32> to vector<64x128xf32>
    %7 = arith.addf %3, %6 : vector<64x128xf32>
    %cst_7 = arith.constant 0.000000e+00 : f32
    %8 = vector.broadcast %cst_7 : f32 to vector<64x128xf32>
    %9 = arith.maximumf %7, %8 : vector<64x128xf32>
    %10 = arith.truncf %9 : vector<64x128xf32> to vector<64x128xbf16>
    %c0_8 = arith.constant 0 : index
    %c0_9 = arith.constant 0 : index
    %11 = vector.load %arg4[%c0_8, %c0_9] : memref<64x128xbf16, #tpu.memory_space<vmem>>, vector<64x128xbf16>
    tpu.vector_store %arg4[%c0_8, %c0_9], %10 {strides = array<i32>} : memref<64x128xbf16, #tpu.memory_space<vmem>>, vector<64x128xbf16>,
    return
  }
  func.func @transform_0(%arg0: i32) -> (i32, i32) {
    %c0_i32 = arith.constant 0 : i32
    %c0_i32_0 = arith.constant 0 : i32
    return %arg0, %c0_i32 : i32, i32
  }
  func.func @transform_1(%arg0: i32) -> (i32, i32, i32) {
    %c0_i32 = arith.constant 0 : i32
    %c0_i32_0 = arith.constant 0 : i32
    %c0_i32_1 = arith.constant 0 : i32
    %c0_i32_2 = arith.constant 0 : i32
    return %c0_i32, %c0_i32_0, %c0_i32_1 : i32, i32, i32
  }
  func.func @transform_2(%arg0: i32) -> (i32, i32, i32) {
    %c0_i32 = arith.constant 0 : i32
    %c0_i32_0 = arith.constant 0 : i32
    %c0_i32_1 = arith.constant 0 : i32
    %c0_i32_2 = arith.constant 0 : i32
    return %c0_i32, %c0_i32_0, %c0_i32_1 : i32, i32, i32
  }
  func.func @transform_3(%arg0: i32) -> (i32, i32) {
    %c0_i32 = arith.constant 0 : i32
    %c0_i32_0 = arith.constant 0 : i32
    return %arg0, %c0_i32 : i32, i32
  }
}

module attributes {stable_mosaic.version = 11 : i64} {
  func.func @_gather_max_kernel(%arg0: i32, %arg1: i32, %arg2: memref<1x32x128xbf16, #tpu.memory_space<vmem>>, %arg3: memref<1x32x8xi32, #tpu.memory_space<vmem>>, %arg4: memref<1x32x128xbf16, #tpu.memory_space<vmem>>) attributes {dimension_semantics = [#tpu.dimension_semantics<parallel>, #tpu.dimension_semantics<parallel>], iteration_bounds = array<i64: 2, 1>, scalar_prefetch = 0 : i64, scratch_operands = 0 : i64, tpu.core_type = #tpu.core_type<tc>, window_params = [{transform_indices = @transform_0, window_bounds = array<i64: 1, 32, 128>}, {transform_indices = @transform_1, window_bounds = array<i64: 1, 32, 8>}, {transform_indices = @transform_2, window_bounds = array<i64: 1, 32, 128>}]} {
    %c0 = arith.constant 0 : index
    %c0_0 = arith.constant 0 : index
    %c0_1 = arith.constant 0 : index
    %0 = vector.load %arg2[%c0, %c0_0, %c0_1] : memref<1x32x128xbf16, #tpu.memory_space<vmem>>, vector<1x32x128xbf16>
    %1 = vector.shape_cast %0 : vector<1x32x128xbf16> to vector<32x128xbf16>
    %2 = arith.extf %1 : vector<32x128xbf16> to vector<32x128xf32>
    %c0_2 = arith.constant 0 : index
    %c0_3 = arith.constant 0 : index
    %c0_4 = arith.constant 0 : index
    %3 = vector.load %arg3[%c0_2, %c0_3, %c0_4] : memref<1x32x8xi32, #tpu.memory_space<vmem>>, vector<1x32x8xi32>
    %4 = vector.shape_cast %3 : vector<1x32x8xi32> to vector<32x8xi32>
    %5 = tpu.iota {dimensions = array<i32: 1>} : vector<32x32xi32>
    %6 = vector.extract_strided_slice %4 {offsets = [0, 0], sizes = [32, 1], strides = [1, 1]} : vector<32x8xi32> to vector<32x1xi32>
    %7 = vector.broadcast %6 : vector<32x1xi32> to vector<32x32xi32>
    %8 = arith.cmpi eq, %5, %7 : vector<32x32xi32>
    %9 = arith.extui %8 : vector<32x32xi1> to vector<32x32xi32>
    %10 = arith.sitofp %9 : vector<32x32xi32> to vector<32x32xf32>
    %cst = arith.constant dense<0.000000e+00> : vector<32x128xf32>
    %11 = tpu.matmul %10, %2, %cst {dimension_numbers = #tpu.dot_dimension_numbers<[1], [0], [0], [1], [0, 0, 1, 1], [], []>} : vector<32x32xf32>, vector<32x128xf32>, vector<32x128xf32> -> vector<32x128xf32>
    %12 = vector.extract_strided_slice %4 {offsets = [0, 1], sizes = [32, 1], strides = [1, 1]} : vector<32x8xi32> to vector<32x1xi32>
    %13 = vector.broadcast %12 : vector<32x1xi32> to vector<32x32xi32>
    %14 = arith.cmpi eq, %5, %13 : vector<32x32xi32>
    %15 = arith.extui %14 : vector<32x32xi1> to vector<32x32xi32>
    %16 = arith.sitofp %15 : vector<32x32xi32> to vector<32x32xf32>
    %cst_5 = arith.constant dense<0.000000e+00> : vector<32x128xf32>
    %17 = tpu.matmul %16, %2, %cst_5 {dimension_numbers = #tpu.dot_dimension_numbers<[1], [0], [0], [1], [0, 0, 1, 1], [], []>} : vector<32x32xf32>, vector<32x128xf32>, vector<32x128xf32> -> vector<32x128xf32>
    %18 = arith.maximumf %11, %17 : vector<32x128xf32>
    %19 = vector.extract_strided_slice %4 {offsets = [0, 2], sizes = [32, 1], strides = [1, 1]} : vector<32x8xi32> to vector<32x1xi32>
    %20 = vector.broadcast %19 : vector<32x1xi32> to vector<32x32xi32>
    %21 = arith.cmpi eq, %5, %20 : vector<32x32xi32>
    %22 = arith.extui %21 : vector<32x32xi1> to vector<32x32xi32>
    %23 = arith.sitofp %22 : vector<32x32xi32> to vector<32x32xf32>
    %cst_6 = arith.constant dense<0.000000e+00> : vector<32x128xf32>
    %24 = tpu.matmul %23, %2, %cst_6 {dimension_numbers = #tpu.dot_dimension_numbers<[1], [0], [0], [1], [0, 0, 1, 1], [], []>} : vector<32x32xf32>, vector<32x128xf32>, vector<32x128xf32> -> vector<32x128xf32>
    %25 = arith.maximumf %18, %24 : vector<32x128xf32>
    %26 = vector.extract_strided_slice %4 {offsets = [0, 3], sizes = [32, 1], strides = [1, 1]} : vector<32x8xi32> to vector<32x1xi32>
    %27 = vector.broadcast %26 : vector<32x1xi32> to vector<32x32xi32>
    %28 = arith.cmpi eq, %5, %27 : vector<32x32xi32>
    %29 = arith.extui %28 : vector<32x32xi1> to vector<32x32xi32>
    %30 = arith.sitofp %29 : vector<32x32xi32> to vector<32x32xf32>
    %cst_7 = arith.constant dense<0.000000e+00> : vector<32x128xf32>
    %31 = tpu.matmul %30, %2, %cst_7 {dimension_numbers = #tpu.dot_dimension_numbers<[1], [0], [0], [1], [0, 0, 1, 1], [], []>} : vector<32x32xf32>, vector<32x128xf32>, vector<32x128xf32> -> vector<32x128xf32>
    %32 = arith.maximumf %25, %31 : vector<32x128xf32>
    %33 = vector.extract_strided_slice %4 {offsets = [0, 4], sizes = [32, 1], strides = [1, 1]} : vector<32x8xi32> to vector<32x1xi32>
    %34 = vector.broadcast %33 : vector<32x1xi32> to vector<32x32xi32>
    %35 = arith.cmpi eq, %5, %34 : vector<32x32xi32>
    %36 = arith.extui %35 : vector<32x32xi1> to vector<32x32xi32>
    %37 = arith.sitofp %36 : vector<32x32xi32> to vector<32x32xf32>
    %cst_8 = arith.constant dense<0.000000e+00> : vector<32x128xf32>
    %38 = tpu.matmul %37, %2, %cst_8 {dimension_numbers = #tpu.dot_dimension_numbers<[1], [0], [0], [1], [0, 0, 1, 1], [], []>} : vector<32x32xf32>, vector<32x128xf32>, vector<32x128xf32> -> vector<32x128xf32>
    %39 = arith.maximumf %32, %38 : vector<32x128xf32>
    %40 = vector.extract_strided_slice %4 {offsets = [0, 5], sizes = [32, 1], strides = [1, 1]} : vector<32x8xi32> to vector<32x1xi32>
    %41 = vector.broadcast %40 : vector<32x1xi32> to vector<32x32xi32>
    %42 = arith.cmpi eq, %5, %41 : vector<32x32xi32>
    %43 = arith.extui %42 : vector<32x32xi1> to vector<32x32xi32>
    %44 = arith.sitofp %43 : vector<32x32xi32> to vector<32x32xf32>
    %cst_9 = arith.constant dense<0.000000e+00> : vector<32x128xf32>
    %45 = tpu.matmul %44, %2, %cst_9 {dimension_numbers = #tpu.dot_dimension_numbers<[1], [0], [0], [1], [0, 0, 1, 1], [], []>} : vector<32x32xf32>, vector<32x128xf32>, vector<32x128xf32> -> vector<32x128xf32>
    %46 = arith.maximumf %39, %45 : vector<32x128xf32>
    %47 = vector.extract_strided_slice %4 {offsets = [0, 6], sizes = [32, 1], strides = [1, 1]} : vector<32x8xi32> to vector<32x1xi32>
    %48 = vector.broadcast %47 : vector<32x1xi32> to vector<32x32xi32>
    %49 = arith.cmpi eq, %5, %48 : vector<32x32xi32>
    %50 = arith.extui %49 : vector<32x32xi1> to vector<32x32xi32>
    %51 = arith.sitofp %50 : vector<32x32xi32> to vector<32x32xf32>
    %cst_10 = arith.constant dense<0.000000e+00> : vector<32x128xf32>
    %52 = tpu.matmul %51, %2, %cst_10 {dimension_numbers = #tpu.dot_dimension_numbers<[1], [0], [0], [1], [0, 0, 1, 1], [], []>} : vector<32x32xf32>, vector<32x128xf32>, vector<32x128xf32> -> vector<32x128xf32>
    %53 = arith.maximumf %46, %52 : vector<32x128xf32>
    %54 = vector.extract_strided_slice %4 {offsets = [0, 7], sizes = [32, 1], strides = [1, 1]} : vector<32x8xi32> to vector<32x1xi32>
    %55 = vector.broadcast %54 : vector<32x1xi32> to vector<32x32xi32>
    %56 = arith.cmpi eq, %5, %55 : vector<32x32xi32>
    %57 = arith.extui %56 : vector<32x32xi1> to vector<32x32xi32>
    %58 = arith.sitofp %57 : vector<32x32xi32> to vector<32x32xf32>
    %cst_11 = arith.constant dense<0.000000e+00> : vector<32x128xf32>
    %59 = tpu.matmul %58, %2, %cst_11 {dimension_numbers = #tpu.dot_dimension_numbers<[1], [0], [0], [1], [0, 0, 1, 1], [], []>} : vector<32x32xf32>, vector<32x128xf32>, vector<32x128xf32> -> vector<32x128xf32>
    %60 = arith.maximumf %53, %59 : vector<32x128xf32>
    %61 = arith.truncf %60 : vector<32x128xf32> to vector<32x128xbf16>
    %62 = vector.shape_cast %61 : vector<32x128xbf16> to vector<1x32x128xbf16>
    %c0_12 = arith.constant 0 : index
    %c0_13 = arith.constant 0 : index
    %c0_14 = arith.constant 0 : index
    %63 = vector.load %arg4[%c0_12, %c0_13, %c0_14] : memref<1x32x128xbf16, #tpu.memory_space<vmem>>, vector<1x32x128xbf16>
    tpu.vector_store %arg4[%c0_12, %c0_13, %c0_14], %62 {strides = array<i32>} : memref<1x32x128xbf16, #tpu.memory_space<vmem>>, vector<1x32x128xbf16>,
    return
  }
  func.func @transform_0(%arg0: i32, %arg1: i32) -> (i32, i32, i32) {
    %c0_i32 = arith.constant 0 : i32
    %c0_i32_0 = arith.constant 0 : i32
    %c0_i32_1 = arith.constant 0 : i32
    return %arg0, %c0_i32, %c0_i32_0 : i32, i32, i32
  }
  func.func @transform_1(%arg0: i32, %arg1: i32) -> (i32, i32, i32) {
    %c0_i32 = arith.constant 0 : i32
    %c0_i32_0 = arith.constant 0 : i32
    return %arg0, %arg1, %c0_i32 : i32, i32, i32
  }
  func.func @transform_2(%arg0: i32, %arg1: i32) -> (i32, i32, i32) {
    %c0_i32 = arith.constant 0 : i32
    %c0_i32_0 = arith.constant 0 : i32
    return %arg0, %arg1, %c0_i32 : i32, i32, i32
  }
}

module attributes {stable_mosaic.version = 11 : i64} {
  func.func @_mlp_chain_kernel(%arg0: i32, %arg1: memref<64x128xbf16, #tpu.memory_space<vmem>>, %arg2: memref<3x128x128xbf16, #tpu.memory_space<vmem>>, %arg3: memref<3x1x128xf32, #tpu.memory_space<vmem>>, %arg4: memref<64x128xbf16, #tpu.memory_space<vmem>>) attributes {dimension_semantics = [#tpu.dimension_semantics<parallel>], iteration_bounds = array<i64: 1>, scalar_prefetch = 0 : i64, scratch_operands = 0 : i64, tpu.core_type = #tpu.core_type<tc>, window_params = [{transform_indices = @transform_0, window_bounds = array<i64: 64, 128>}, {pipeline_mode = #tpu.pipeline_mode<synchronous>, transform_indices = @transform_1, window_bounds = array<i64: 3, 128, 128>}, {pipeline_mode = #tpu.pipeline_mode<synchronous>, transform_indices = @transform_2, window_bounds = array<i64: 3, 1, 128>}, {transform_indices = @transform_3, window_bounds = array<i64: 64, 128>}]} {
    %c0 = arith.constant 0 : index
    %c0_0 = arith.constant 0 : index
    %0 = vector.load %arg1[%c0, %c0_0] : memref<64x128xbf16, #tpu.memory_space<vmem>>, vector<64x128xbf16>
    %c0_1 = arith.constant 0 : index
    %c0_2 = arith.constant 0 : index
    %c0_3 = arith.constant 0 : index
    %1 = vector.load %arg2[%c0_1, %c0_2, %c0_3] : memref<3x128x128xbf16, #tpu.memory_space<vmem>>, vector<1x128x128xbf16>
    %2 = vector.shape_cast %1 : vector<1x128x128xbf16> to vector<128x128xbf16>
    %cst = arith.constant dense<0.000000e+00> : vector<64x128xf32>
    %3 = tpu.matmul %0, %2, %cst {dimension_numbers = #tpu.dot_dimension_numbers<[1], [0], [0], [1], [0, 0, 1, 1], [], []>} : vector<64x128xbf16>, vector<128x128xbf16>, vector<64x128xf32> -> vector<64x128xf32>
    %c0_4 = arith.constant 0 : index
    %c0_5 = arith.constant 0 : index
    %c0_6 = arith.constant 0 : index
    %4 = vector.load %arg3[%c0_4, %c0_5, %c0_6] : memref<3x1x128xf32, #tpu.memory_space<vmem>>, vector<1x1x128xf32>
    %5 = vector.shape_cast %4 : vector<1x1x128xf32> to vector<1x128xf32>
    %6 = vector.broadcast %5 : vector<1x128xf32> to vector<64x128xf32>
    %7 = arith.addf %3, %6 : vector<64x128xf32>
    %cst_7 = arith.constant 0.000000e+00 : f32
    %8 = vector.broadcast %cst_7 : f32 to vector<64x128xf32>
    %9 = arith.maximumf %7, %8 : vector<64x128xf32>
    %10 = arith.truncf %9 : vector<64x128xf32> to vector<64x128xbf16>
    %c1 = arith.constant 1 : index
    %c0_8 = arith.constant 0 : index
    %c0_9 = arith.constant 0 : index
    %11 = vector.load %arg2[%c1, %c0_8, %c0_9] : memref<3x128x128xbf16, #tpu.memory_space<vmem>>, vector<1x128x128xbf16>
    %12 = vector.shape_cast %11 : vector<1x128x128xbf16> to vector<128x128xbf16>
    %cst_10 = arith.constant dense<0.000000e+00> : vector<64x128xf32>
    %13 = tpu.matmul %10, %12, %cst_10 {dimension_numbers = #tpu.dot_dimension_numbers<[1], [0], [0], [1], [0, 0, 1, 1], [], []>} : vector<64x128xbf16>, vector<128x128xbf16>, vector<64x128xf32> -> vector<64x128xf32>
    %c1_11 = arith.constant 1 : index
    %c0_12 = arith.constant 0 : index
    %c0_13 = arith.constant 0 : index
    %14 = vector.load %arg3[%c1_11, %c0_12, %c0_13] : memref<3x1x128xf32, #tpu.memory_space<vmem>>, vector<1x1x128xf32>
    %15 = vector.shape_cast %14 : vector<1x1x128xf32> to vector<1x128xf32>
    %16 = vector.broadcast %15 : vector<1x128xf32> to vector<64x128xf32>
    %17 = arith.addf %13, %16 : vector<64x128xf32>
    %cst_14 = arith.constant 0.000000e+00 : f32
    %18 = vector.broadcast %cst_14 : f32 to vector<64x128xf32>
    %19 = arith.maximumf %17, %18 : vector<64x128xf32>
    %20 = arith.truncf %19 : vector<64x128xf32> to vector<64x128xbf16>
    %c2 = arith.constant 2 : index
    %c0_15 = arith.constant 0 : index
    %c0_16 = arith.constant 0 : index
    %21 = vector.load %arg2[%c2, %c0_15, %c0_16] : memref<3x128x128xbf16, #tpu.memory_space<vmem>>, vector<1x128x128xbf16>
    %22 = vector.shape_cast %21 : vector<1x128x128xbf16> to vector<128x128xbf16>
    %cst_17 = arith.constant dense<0.000000e+00> : vector<64x128xf32>
    %23 = tpu.matmul %20, %22, %cst_17 {dimension_numbers = #tpu.dot_dimension_numbers<[1], [0], [0], [1], [0, 0, 1, 1], [], []>} : vector<64x128xbf16>, vector<128x128xbf16>, vector<64x128xf32> -> vector<64x128xf32>
    %c2_18 = arith.constant 2 : index
    %c0_19 = arith.constant 0 : index
    %c0_20 = arith.constant 0 : index
    %24 = vector.load %arg3[%c2_18, %c0_19, %c0_20] : memref<3x1x128xf32, #tpu.memory_space<vmem>>, vector<1x1x128xf32>
    %25 = vector.shape_cast %24 : vector<1x1x128xf32> to vector<1x128xf32>
    %26 = vector.broadcast %25 : vector<1x128xf32> to vector<64x128xf32>
    %27 = arith.addf %23, %26 : vector<64x128xf32>
    %cst_21 = arith.constant 0.000000e+00 : f32
    %28 = vector.broadcast %cst_21 : f32 to vector<64x128xf32>
    %29 = arith.maximumf %27, %28 : vector<64x128xf32>
    %30 = arith.truncf %29 : vector<64x128xf32> to vector<64x128xbf16>
    %c0_22 = arith.constant 0 : index
    %c0_23 = arith.constant 0 : index
    %31 = vector.load %arg4[%c0_22, %c0_23] : memref<64x128xbf16, #tpu.memory_space<vmem>>, vector<64x128xbf16>
    tpu.vector_store %arg4[%c0_22, %c0_23], %30 {strides = array<i32>} : memref<64x128xbf16, #tpu.memory_space<vmem>>, vector<64x128xbf16>,
    return
  }
  func.func @transform_0(%arg0: i32) -> (i32, i32) {
    %c0_i32 = arith.constant 0 : i32
    %c0_i32_0 = arith.constant 0 : i32
    return %arg0, %c0_i32 : i32, i32
  }
  func.func @transform_1(%arg0: i32) -> (i32, i32, i32) {
    %c0_i32 = arith.constant 0 : i32
    %c0_i32_0 = arith.constant 0 : i32
    %c0_i32_1 = arith.constant 0 : i32
    %c0_i32_2 = arith.constant 0 : i32
    return %c0_i32, %c0_i32_0, %c0_i32_1 : i32, i32, i32
  }
  func.func @transform_2(%arg0: i32) -> (i32, i32, i32) {
    %c0_i32 = arith.constant 0 : i32
    %c0_i32_0 = arith.constant 0 : i32
    %c0_i32_1 = arith.constant 0 : i32
    %c0_i32_2 = arith.constant 0 : i32
    return %c0_i32, %c0_i32_0, %c0_i32_1 : i32, i32, i32
  }
  func.func @transform_3(%arg0: i32) -> (i32, i32) {
    %c0_i32 = arith.constant 0 : i32
    %c0_i32_0 = arith.constant 0 : i32
    return %arg0, %c0_i32 : i32, i32
  }
}

module attributes {stable_mosaic.version = 11 : i64} {
  func.func @_gather_max_kernel(%arg0: i32, %arg1: i32, %arg2: memref<1x32x128xbf16, #tpu.memory_space<vmem>>, %arg3: memref<1x16x8xi32, #tpu.memory_space<vmem>>, %arg4: memref<1x16x128xbf16, #tpu.memory_space<vmem>>) attributes {dimension_semantics = [#tpu.dimension_semantics<parallel>, #tpu.dimension_semantics<parallel>], iteration_bounds = array<i64: 2, 1>, scalar_prefetch = 0 : i64, scratch_operands = 0 : i64, tpu.core_type = #tpu.core_type<tc>, window_params = [{transform_indices = @transform_0, window_bounds = array<i64: 1, 32, 128>}, {transform_indices = @transform_1, window_bounds = array<i64: 1, 16, 8>}, {transform_indices = @transform_2, window_bounds = array<i64: 1, 16, 128>}]} {
    %c0 = arith.constant 0 : index
    %c0_0 = arith.constant 0 : index
    %c0_1 = arith.constant 0 : index
    %0 = vector.load %arg2[%c0, %c0_0, %c0_1] : memref<1x32x128xbf16, #tpu.memory_space<vmem>>, vector<1x32x128xbf16>
    %1 = vector.shape_cast %0 : vector<1x32x128xbf16> to vector<32x128xbf16>
    %2 = arith.extf %1 : vector<32x128xbf16> to vector<32x128xf32>
    %c0_2 = arith.constant 0 : index
    %c0_3 = arith.constant 0 : index
    %c0_4 = arith.constant 0 : index
    %3 = vector.load %arg3[%c0_2, %c0_3, %c0_4] : memref<1x16x8xi32, #tpu.memory_space<vmem>>, vector<1x16x8xi32>
    %4 = vector.shape_cast %3 : vector<1x16x8xi32> to vector<16x8xi32>
    %5 = tpu.iota {dimensions = array<i32: 1>} : vector<16x32xi32>
    %6 = vector.extract_strided_slice %4 {offsets = [0, 0], sizes = [16, 1], strides = [1, 1]} : vector<16x8xi32> to vector<16x1xi32>
    %7 = vector.broadcast %6 : vector<16x1xi32> to vector<16x32xi32>
    %8 = arith.cmpi eq, %5, %7 : vector<16x32xi32>
    %9 = arith.extui %8 : vector<16x32xi1> to vector<16x32xi32>
    %10 = arith.sitofp %9 : vector<16x32xi32> to vector<16x32xf32>
    %cst = arith.constant dense<0.000000e+00> : vector<16x128xf32>
    %11 = tpu.matmul %10, %2, %cst {dimension_numbers = #tpu.dot_dimension_numbers<[1], [0], [0], [1], [0, 0, 1, 1], [], []>} : vector<16x32xf32>, vector<32x128xf32>, vector<16x128xf32> -> vector<16x128xf32>
    %12 = vector.extract_strided_slice %4 {offsets = [0, 1], sizes = [16, 1], strides = [1, 1]} : vector<16x8xi32> to vector<16x1xi32>
    %13 = vector.broadcast %12 : vector<16x1xi32> to vector<16x32xi32>
    %14 = arith.cmpi eq, %5, %13 : vector<16x32xi32>
    %15 = arith.extui %14 : vector<16x32xi1> to vector<16x32xi32>
    %16 = arith.sitofp %15 : vector<16x32xi32> to vector<16x32xf32>
    %cst_5 = arith.constant dense<0.000000e+00> : vector<16x128xf32>
    %17 = tpu.matmul %16, %2, %cst_5 {dimension_numbers = #tpu.dot_dimension_numbers<[1], [0], [0], [1], [0, 0, 1, 1], [], []>} : vector<16x32xf32>, vector<32x128xf32>, vector<16x128xf32> -> vector<16x128xf32>
    %18 = arith.maximumf %11, %17 : vector<16x128xf32>
    %19 = vector.extract_strided_slice %4 {offsets = [0, 2], sizes = [16, 1], strides = [1, 1]} : vector<16x8xi32> to vector<16x1xi32>
    %20 = vector.broadcast %19 : vector<16x1xi32> to vector<16x32xi32>
    %21 = arith.cmpi eq, %5, %20 : vector<16x32xi32>
    %22 = arith.extui %21 : vector<16x32xi1> to vector<16x32xi32>
    %23 = arith.sitofp %22 : vector<16x32xi32> to vector<16x32xf32>
    %cst_6 = arith.constant dense<0.000000e+00> : vector<16x128xf32>
    %24 = tpu.matmul %23, %2, %cst_6 {dimension_numbers = #tpu.dot_dimension_numbers<[1], [0], [0], [1], [0, 0, 1, 1], [], []>} : vector<16x32xf32>, vector<32x128xf32>, vector<16x128xf32> -> vector<16x128xf32>
    %25 = arith.maximumf %18, %24 : vector<16x128xf32>
    %26 = vector.extract_strided_slice %4 {offsets = [0, 3], sizes = [16, 1], strides = [1, 1]} : vector<16x8xi32> to vector<16x1xi32>
    %27 = vector.broadcast %26 : vector<16x1xi32> to vector<16x32xi32>
    %28 = arith.cmpi eq, %5, %27 : vector<16x32xi32>
    %29 = arith.extui %28 : vector<16x32xi1> to vector<16x32xi32>
    %30 = arith.sitofp %29 : vector<16x32xi32> to vector<16x32xf32>
    %cst_7 = arith.constant dense<0.000000e+00> : vector<16x128xf32>
    %31 = tpu.matmul %30, %2, %cst_7 {dimension_numbers = #tpu.dot_dimension_numbers<[1], [0], [0], [1], [0, 0, 1, 1], [], []>} : vector<16x32xf32>, vector<32x128xf32>, vector<16x128xf32> -> vector<16x128xf32>
    %32 = arith.maximumf %25, %31 : vector<16x128xf32>
    %33 = vector.extract_strided_slice %4 {offsets = [0, 4], sizes = [16, 1], strides = [1, 1]} : vector<16x8xi32> to vector<16x1xi32>
    %34 = vector.broadcast %33 : vector<16x1xi32> to vector<16x32xi32>
    %35 = arith.cmpi eq, %5, %34 : vector<16x32xi32>
    %36 = arith.extui %35 : vector<16x32xi1> to vector<16x32xi32>
    %37 = arith.sitofp %36 : vector<16x32xi32> to vector<16x32xf32>
    %cst_8 = arith.constant dense<0.000000e+00> : vector<16x128xf32>
    %38 = tpu.matmul %37, %2, %cst_8 {dimension_numbers = #tpu.dot_dimension_numbers<[1], [0], [0], [1], [0, 0, 1, 1], [], []>} : vector<16x32xf32>, vector<32x128xf32>, vector<16x128xf32> -> vector<16x128xf32>
    %39 = arith.maximumf %32, %38 : vector<16x128xf32>
    %40 = vector.extract_strided_slice %4 {offsets = [0, 5], sizes = [16, 1], strides = [1, 1]} : vector<16x8xi32> to vector<16x1xi32>
    %41 = vector.broadcast %40 : vector<16x1xi32> to vector<16x32xi32>
    %42 = arith.cmpi eq, %5, %41 : vector<16x32xi32>
    %43 = arith.extui %42 : vector<16x32xi1> to vector<16x32xi32>
    %44 = arith.sitofp %43 : vector<16x32xi32> to vector<16x32xf32>
    %cst_9 = arith.constant dense<0.000000e+00> : vector<16x128xf32>
    %45 = tpu.matmul %44, %2, %cst_9 {dimension_numbers = #tpu.dot_dimension_numbers<[1], [0], [0], [1], [0, 0, 1, 1], [], []>} : vector<16x32xf32>, vector<32x128xf32>, vector<16x128xf32> -> vector<16x128xf32>
    %46 = arith.maximumf %39, %45 : vector<16x128xf32>
    %47 = vector.extract_strided_slice %4 {offsets = [0, 6], sizes = [16, 1], strides = [1, 1]} : vector<16x8xi32> to vector<16x1xi32>
    %48 = vector.broadcast %47 : vector<16x1xi32> to vector<16x32xi32>
    %49 = arith.cmpi eq, %5, %48 : vector<16x32xi32>
    %50 = arith.extui %49 : vector<16x32xi1> to vector<16x32xi32>
    %51 = arith.sitofp %50 : vector<16x32xi32> to vector<16x32xf32>
    %cst_10 = arith.constant dense<0.000000e+00> : vector<16x128xf32>
    %52 = tpu.matmul %51, %2, %cst_10 {dimension_numbers = #tpu.dot_dimension_numbers<[1], [0], [0], [1], [0, 0, 1, 1], [], []>} : vector<16x32xf32>, vector<32x128xf32>, vector<16x128xf32> -> vector<16x128xf32>
    %53 = arith.maximumf %46, %52 : vector<16x128xf32>
    %54 = vector.extract_strided_slice %4 {offsets = [0, 7], sizes = [16, 1], strides = [1, 1]} : vector<16x8xi32> to vector<16x1xi32>
    %55 = vector.broadcast %54 : vector<16x1xi32> to vector<16x32xi32>
    %56 = arith.cmpi eq, %5, %55 : vector<16x32xi32>
    %57 = arith.extui %56 : vector<16x32xi1> to vector<16x32xi32>
    %58 = arith.sitofp %57 : vector<16x32xi32> to vector<16x32xf32>
    %cst_11 = arith.constant dense<0.000000e+00> : vector<16x128xf32>
    %59 = tpu.matmul %58, %2, %cst_11 {dimension_numbers = #tpu.dot_dimension_numbers<[1], [0], [0], [1], [0, 0, 1, 1], [], []>} : vector<16x32xf32>, vector<32x128xf32>, vector<16x128xf32> -> vector<16x128xf32>
    %60 = arith.maximumf %53, %59 : vector<16x128xf32>
    %61 = arith.truncf %60 : vector<16x128xf32> to vector<16x128xbf16>
    %62 = vector.shape_cast %61 : vector<16x128xbf16> to vector<1x16x128xbf16>
    %c0_12 = arith.constant 0 : index
    %c0_13 = arith.constant 0 : index
    %c0_14 = arith.constant 0 : index
    %63 = vector.load %arg4[%c0_12, %c0_13, %c0_14] : memref<1x16x128xbf16, #tpu.memory_space<vmem>>, vector<1x16x128xbf16>
    tpu.vector_store %arg4[%c0_12, %c0_13, %c0_14], %62 {strides = array<i32>} : memref<1x16x128xbf16, #tpu.memory_space<vmem>>, vector<1x16x128xbf16>,
    return
  }
  func.func @transform_0(%arg0: i32, %arg1: i32) -> (i32, i32, i32) {
    %c0_i32 = arith.constant 0 : i32
    %c0_i32_0 = arith.constant 0 : i32
    %c0_i32_1 = arith.constant 0 : i32
    return %arg0, %c0_i32, %c0_i32_0 : i32, i32, i32
  }
  func.func @transform_1(%arg0: i32, %arg1: i32) -> (i32, i32, i32) {
    %c0_i32 = arith.constant 0 : i32
    %c0_i32_0 = arith.constant 0 : i32
    return %arg0, %arg1, %c0_i32 : i32, i32, i32
  }
  func.func @transform_2(%arg0: i32, %arg1: i32) -> (i32, i32, i32) {
    %c0_i32 = arith.constant 0 : i32
    %c0_i32_0 = arith.constant 0 : i32
    return %arg0, %arg1, %c0_i32 : i32, i32, i32
  }
}

module attributes {stable_mosaic.version = 11 : i64} {
  func.func @_mlp_chain_kernel(%arg0: i32, %arg1: memref<32x128xbf16, #tpu.memory_space<vmem>>, %arg2: memref<1x128x128xbf16, #tpu.memory_space<vmem>>, %arg3: memref<1x1x128xf32, #tpu.memory_space<vmem>>, %arg4: memref<32x128xbf16, #tpu.memory_space<vmem>>) attributes {dimension_semantics = [#tpu.dimension_semantics<parallel>], iteration_bounds = array<i64: 1>, scalar_prefetch = 0 : i64, scratch_operands = 0 : i64, tpu.core_type = #tpu.core_type<tc>, window_params = [{transform_indices = @transform_0, window_bounds = array<i64: 32, 128>}, {pipeline_mode = #tpu.pipeline_mode<synchronous>, transform_indices = @transform_1, window_bounds = array<i64: 1, 128, 128>}, {pipeline_mode = #tpu.pipeline_mode<synchronous>, transform_indices = @transform_2, window_bounds = array<i64: 1, 1, 128>}, {transform_indices = @transform_3, window_bounds = array<i64: 32, 128>}]} {
    %c0 = arith.constant 0 : index
    %c0_0 = arith.constant 0 : index
    %0 = vector.load %arg1[%c0, %c0_0] : memref<32x128xbf16, #tpu.memory_space<vmem>>, vector<32x128xbf16>
    %c0_1 = arith.constant 0 : index
    %c0_2 = arith.constant 0 : index
    %c0_3 = arith.constant 0 : index
    %1 = vector.load %arg2[%c0_1, %c0_2, %c0_3] : memref<1x128x128xbf16, #tpu.memory_space<vmem>>, vector<1x128x128xbf16>
    %2 = vector.shape_cast %1 : vector<1x128x128xbf16> to vector<128x128xbf16>
    %cst = arith.constant dense<0.000000e+00> : vector<32x128xf32>
    %3 = tpu.matmul %0, %2, %cst {dimension_numbers = #tpu.dot_dimension_numbers<[1], [0], [0], [1], [0, 0, 1, 1], [], []>} : vector<32x128xbf16>, vector<128x128xbf16>, vector<32x128xf32> -> vector<32x128xf32>
    %c0_4 = arith.constant 0 : index
    %c0_5 = arith.constant 0 : index
    %c0_6 = arith.constant 0 : index
    %4 = vector.load %arg3[%c0_4, %c0_5, %c0_6] : memref<1x1x128xf32, #tpu.memory_space<vmem>>, vector<1x1x128xf32>
    %5 = vector.shape_cast %4 : vector<1x1x128xf32> to vector<1x128xf32>
    %6 = vector.broadcast %5 : vector<1x128xf32> to vector<32x128xf32>
    %7 = arith.addf %3, %6 : vector<32x128xf32>
    %cst_7 = arith.constant 0.000000e+00 : f32
    %8 = vector.broadcast %cst_7 : f32 to vector<32x128xf32>
    %9 = arith.maximumf %7, %8 : vector<32x128xf32>
    %10 = arith.truncf %9 : vector<32x128xf32> to vector<32x128xbf16>
    %c0_8 = arith.constant 0 : index
    %c0_9 = arith.constant 0 : index
    %11 = vector.load %arg4[%c0_8, %c0_9] : memref<32x128xbf16, #tpu.memory_space<vmem>>, vector<32x128xbf16>
    tpu.vector_store %arg4[%c0_8, %c0_9], %10 {strides = array<i32>} : memref<32x128xbf16, #tpu.memory_space<vmem>>, vector<32x128xbf16>,
    return
  }
  func.func @transform_0(%arg0: i32) -> (i32, i32) {
    %c0_i32 = arith.constant 0 : i32
    %c0_i32_0 = arith.constant 0 : i32
    return %arg0, %c0_i32 : i32, i32
  }
  func.func @transform_1(%arg0: i32) -> (i32, i32, i32) {
    %c0_i32 = arith.constant 0 : i32
    %c0_i32_0 = arith.constant 0 : i32
    %c0_i32_1 = arith.constant 0 : i32
    %c0_i32_2 = arith.constant 0 : i32
    return %c0_i32, %c0_i32_0, %c0_i32_1 : i32, i32, i32
  }
  func.func @transform_2(%arg0: i32) -> (i32, i32, i32) {
    %c0_i32 = arith.constant 0 : i32
    %c0_i32_0 = arith.constant 0 : i32
    %c0_i32_1 = arith.constant 0 : i32
    %c0_i32_2 = arith.constant 0 : i32
    return %c0_i32, %c0_i32_0, %c0_i32_1 : i32, i32, i32
  }
  func.func @transform_3(%arg0: i32) -> (i32, i32) {
    %c0_i32 = arith.constant 0 : i32
    %c0_i32_0 = arith.constant 0 : i32
    return %arg0, %c0_i32 : i32, i32
  }
}

module attributes {stable_mosaic.version = 11 : i64} {
  func.func @_gather_max_kernel(%arg0: i32, %arg1: i32, %arg2: memref<1x16x128xbf16, #tpu.memory_space<vmem>>, %arg3: memref<1x16x8xi32, #tpu.memory_space<vmem>>, %arg4: memref<1x16x128xbf16, #tpu.memory_space<vmem>>) attributes {dimension_semantics = [#tpu.dimension_semantics<parallel>, #tpu.dimension_semantics<parallel>], iteration_bounds = array<i64: 2, 1>, scalar_prefetch = 0 : i64, scratch_operands = 0 : i64, tpu.core_type = #tpu.core_type<tc>, window_params = [{transform_indices = @transform_0, window_bounds = array<i64: 1, 16, 128>}, {transform_indices = @transform_1, window_bounds = array<i64: 1, 16, 8>}, {transform_indices = @transform_2, window_bounds = array<i64: 1, 16, 128>}]} {
    %c0 = arith.constant 0 : index
    %c0_0 = arith.constant 0 : index
    %c0_1 = arith.constant 0 : index
    %0 = vector.load %arg2[%c0, %c0_0, %c0_1] : memref<1x16x128xbf16, #tpu.memory_space<vmem>>, vector<1x16x128xbf16>
    %1 = vector.shape_cast %0 : vector<1x16x128xbf16> to vector<16x128xbf16>
    %2 = arith.extf %1 : vector<16x128xbf16> to vector<16x128xf32>
    %c0_2 = arith.constant 0 : index
    %c0_3 = arith.constant 0 : index
    %c0_4 = arith.constant 0 : index
    %3 = vector.load %arg3[%c0_2, %c0_3, %c0_4] : memref<1x16x8xi32, #tpu.memory_space<vmem>>, vector<1x16x8xi32>
    %4 = vector.shape_cast %3 : vector<1x16x8xi32> to vector<16x8xi32>
    %5 = tpu.iota {dimensions = array<i32: 1>} : vector<16x16xi32>
    %6 = vector.extract_strided_slice %4 {offsets = [0, 0], sizes = [16, 1], strides = [1, 1]} : vector<16x8xi32> to vector<16x1xi32>
    %7 = vector.broadcast %6 : vector<16x1xi32> to vector<16x16xi32>
    %8 = arith.cmpi eq, %5, %7 : vector<16x16xi32>
    %9 = arith.extui %8 : vector<16x16xi1> to vector<16x16xi32>
    %10 = arith.sitofp %9 : vector<16x16xi32> to vector<16x16xf32>
    %cst = arith.constant dense<0.000000e+00> : vector<16x128xf32>
    %11 = tpu.matmul %10, %2, %cst {dimension_numbers = #tpu.dot_dimension_numbers<[1], [0], [0], [1], [0, 0, 1, 1], [], []>} : vector<16x16xf32>, vector<16x128xf32>, vector<16x128xf32> -> vector<16x128xf32>
    %12 = vector.extract_strided_slice %4 {offsets = [0, 1], sizes = [16, 1], strides = [1, 1]} : vector<16x8xi32> to vector<16x1xi32>
    %13 = vector.broadcast %12 : vector<16x1xi32> to vector<16x16xi32>
    %14 = arith.cmpi eq, %5, %13 : vector<16x16xi32>
    %15 = arith.extui %14 : vector<16x16xi1> to vector<16x16xi32>
    %16 = arith.sitofp %15 : vector<16x16xi32> to vector<16x16xf32>
    %cst_5 = arith.constant dense<0.000000e+00> : vector<16x128xf32>
    %17 = tpu.matmul %16, %2, %cst_5 {dimension_numbers = #tpu.dot_dimension_numbers<[1], [0], [0], [1], [0, 0, 1, 1], [], []>} : vector<16x16xf32>, vector<16x128xf32>, vector<16x128xf32> -> vector<16x128xf32>
    %18 = arith.maximumf %11, %17 : vector<16x128xf32>
    %19 = vector.extract_strided_slice %4 {offsets = [0, 2], sizes = [16, 1], strides = [1, 1]} : vector<16x8xi32> to vector<16x1xi32>
    %20 = vector.broadcast %19 : vector<16x1xi32> to vector<16x16xi32>
    %21 = arith.cmpi eq, %5, %20 : vector<16x16xi32>
    %22 = arith.extui %21 : vector<16x16xi1> to vector<16x16xi32>
    %23 = arith.sitofp %22 : vector<16x16xi32> to vector<16x16xf32>
    %cst_6 = arith.constant dense<0.000000e+00> : vector<16x128xf32>
    %24 = tpu.matmul %23, %2, %cst_6 {dimension_numbers = #tpu.dot_dimension_numbers<[1], [0], [0], [1], [0, 0, 1, 1], [], []>} : vector<16x16xf32>, vector<16x128xf32>, vector<16x128xf32> -> vector<16x128xf32>
    %25 = arith.maximumf %18, %24 : vector<16x128xf32>
    %26 = vector.extract_strided_slice %4 {offsets = [0, 3], sizes = [16, 1], strides = [1, 1]} : vector<16x8xi32> to vector<16x1xi32>
    %27 = vector.broadcast %26 : vector<16x1xi32> to vector<16x16xi32>
    %28 = arith.cmpi eq, %5, %27 : vector<16x16xi32>
    %29 = arith.extui %28 : vector<16x16xi1> to vector<16x16xi32>
    %30 = arith.sitofp %29 : vector<16x16xi32> to vector<16x16xf32>
    %cst_7 = arith.constant dense<0.000000e+00> : vector<16x128xf32>
    %31 = tpu.matmul %30, %2, %cst_7 {dimension_numbers = #tpu.dot_dimension_numbers<[1], [0], [0], [1], [0, 0, 1, 1], [], []>} : vector<16x16xf32>, vector<16x128xf32>, vector<16x128xf32> -> vector<16x128xf32>
    %32 = arith.maximumf %25, %31 : vector<16x128xf32>
    %33 = vector.extract_strided_slice %4 {offsets = [0, 4], sizes = [16, 1], strides = [1, 1]} : vector<16x8xi32> to vector<16x1xi32>
    %34 = vector.broadcast %33 : vector<16x1xi32> to vector<16x16xi32>
    %35 = arith.cmpi eq, %5, %34 : vector<16x16xi32>
    %36 = arith.extui %35 : vector<16x16xi1> to vector<16x16xi32>
    %37 = arith.sitofp %36 : vector<16x16xi32> to vector<16x16xf32>
    %cst_8 = arith.constant dense<0.000000e+00> : vector<16x128xf32>
    %38 = tpu.matmul %37, %2, %cst_8 {dimension_numbers = #tpu.dot_dimension_numbers<[1], [0], [0], [1], [0, 0, 1, 1], [], []>} : vector<16x16xf32>, vector<16x128xf32>, vector<16x128xf32> -> vector<16x128xf32>
    %39 = arith.maximumf %32, %38 : vector<16x128xf32>
    %40 = vector.extract_strided_slice %4 {offsets = [0, 5], sizes = [16, 1], strides = [1, 1]} : vector<16x8xi32> to vector<16x1xi32>
    %41 = vector.broadcast %40 : vector<16x1xi32> to vector<16x16xi32>
    %42 = arith.cmpi eq, %5, %41 : vector<16x16xi32>
    %43 = arith.extui %42 : vector<16x16xi1> to vector<16x16xi32>
    %44 = arith.sitofp %43 : vector<16x16xi32> to vector<16x16xf32>
    %cst_9 = arith.constant dense<0.000000e+00> : vector<16x128xf32>
    %45 = tpu.matmul %44, %2, %cst_9 {dimension_numbers = #tpu.dot_dimension_numbers<[1], [0], [0], [1], [0, 0, 1, 1], [], []>} : vector<16x16xf32>, vector<16x128xf32>, vector<16x128xf32> -> vector<16x128xf32>
    %46 = arith.maximumf %39, %45 : vector<16x128xf32>
    %47 = vector.extract_strided_slice %4 {offsets = [0, 6], sizes = [16, 1], strides = [1, 1]} : vector<16x8xi32> to vector<16x1xi32>
    %48 = vector.broadcast %47 : vector<16x1xi32> to vector<16x16xi32>
    %49 = arith.cmpi eq, %5, %48 : vector<16x16xi32>
    %50 = arith.extui %49 : vector<16x16xi1> to vector<16x16xi32>
    %51 = arith.sitofp %50 : vector<16x16xi32> to vector<16x16xf32>
    %cst_10 = arith.constant dense<0.000000e+00> : vector<16x128xf32>
    %52 = tpu.matmul %51, %2, %cst_10 {dimension_numbers = #tpu.dot_dimension_numbers<[1], [0], [0], [1], [0, 0, 1, 1], [], []>} : vector<16x16xf32>, vector<16x128xf32>, vector<16x128xf32> -> vector<16x128xf32>
    %53 = arith.maximumf %46, %52 : vector<16x128xf32>
    %54 = vector.extract_strided_slice %4 {offsets = [0, 7], sizes = [16, 1], strides = [1, 1]} : vector<16x8xi32> to vector<16x1xi32>
    %55 = vector.broadcast %54 : vector<16x1xi32> to vector<16x16xi32>
    %56 = arith.cmpi eq, %5, %55 : vector<16x16xi32>
    %57 = arith.extui %56 : vector<16x16xi1> to vector<16x16xi32>
    %58 = arith.sitofp %57 : vector<16x16xi32> to vector<16x16xf32>
    %cst_11 = arith.constant dense<0.000000e+00> : vector<16x128xf32>
    %59 = tpu.matmul %58, %2, %cst_11 {dimension_numbers = #tpu.dot_dimension_numbers<[1], [0], [0], [1], [0, 0, 1, 1], [], []>} : vector<16x16xf32>, vector<16x128xf32>, vector<16x128xf32> -> vector<16x128xf32>
    %60 = arith.maximumf %53, %59 : vector<16x128xf32>
    %61 = arith.truncf %60 : vector<16x128xf32> to vector<16x128xbf16>
    %62 = vector.shape_cast %61 : vector<16x128xbf16> to vector<1x16x128xbf16>
    %c0_12 = arith.constant 0 : index
    %c0_13 = arith.constant 0 : index
    %c0_14 = arith.constant 0 : index
    %63 = vector.load %arg4[%c0_12, %c0_13, %c0_14] : memref<1x16x128xbf16, #tpu.memory_space<vmem>>, vector<1x16x128xbf16>
    tpu.vector_store %arg4[%c0_12, %c0_13, %c0_14], %62 {strides = array<i32>} : memref<1x16x128xbf16, #tpu.memory_space<vmem>>, vector<1x16x128xbf16>,
    return
  }
  func.func @transform_0(%arg0: i32, %arg1: i32) -> (i32, i32, i32) {
    %c0_i32 = arith.constant 0 : i32
    %c0_i32_0 = arith.constant 0 : i32
    %c0_i32_1 = arith.constant 0 : i32
    return %arg0, %c0_i32, %c0_i32_0 : i32, i32, i32
  }
  func.func @transform_1(%arg0: i32, %arg1: i32) -> (i32, i32, i32) {
    %c0_i32 = arith.constant 0 : i32
    %c0_i32_0 = arith.constant 0 : i32
    return %arg0, %arg1, %c0_i32 : i32, i32, i32
  }
  func.func @transform_2(%arg0: i32, %arg1: i32) -> (i32, i32, i32) {
    %c0_i32 = arith.constant 0 : i32
    %c0_i32_0 = arith.constant 0 : i32
    return %arg0, %arg1, %c0_i32 : i32, i32, i32
  }
}

module attributes {stable_mosaic.version = 11 : i64} {
  func.func @_mlp_chain_kernel(%arg0: i32, %arg1: memref<16x128xbf16, #tpu.memory_space<vmem>>, %arg2: memref<1x128x128xbf16, #tpu.memory_space<vmem>>, %arg3: memref<1x1x128xf32, #tpu.memory_space<vmem>>, %arg4: memref<16x128xbf16, #tpu.memory_space<vmem>>) attributes {dimension_semantics = [#tpu.dimension_semantics<parallel>], iteration_bounds = array<i64: 1>, scalar_prefetch = 0 : i64, scratch_operands = 0 : i64, tpu.core_type = #tpu.core_type<tc>, window_params = [{transform_indices = @transform_0, window_bounds = array<i64: 16, 128>}, {pipeline_mode = #tpu.pipeline_mode<synchronous>, transform_indices = @transform_1, window_bounds = array<i64: 1, 128, 128>}, {pipeline_mode = #tpu.pipeline_mode<synchronous>, transform_indices = @transform_2, window_bounds = array<i64: 1, 1, 128>}, {transform_indices = @transform_3, window_bounds = array<i64: 16, 128>}]} {
    %c0 = arith.constant 0 : index
    %c0_0 = arith.constant 0 : index
    %0 = vector.load %arg1[%c0, %c0_0] : memref<16x128xbf16, #tpu.memory_space<vmem>>, vector<16x128xbf16>
    %c0_1 = arith.constant 0 : index
    %c0_2 = arith.constant 0 : index
    %c0_3 = arith.constant 0 : index
    %1 = vector.load %arg2[%c0_1, %c0_2, %c0_3] : memref<1x128x128xbf16, #tpu.memory_space<vmem>>, vector<1x128x128xbf16>
    %2 = vector.shape_cast %1 : vector<1x128x128xbf16> to vector<128x128xbf16>
    %cst = arith.constant dense<0.000000e+00> : vector<16x128xf32>
    %3 = tpu.matmul %0, %2, %cst {dimension_numbers = #tpu.dot_dimension_numbers<[1], [0], [0], [1], [0, 0, 1, 1], [], []>} : vector<16x128xbf16>, vector<128x128xbf16>, vector<16x128xf32> -> vector<16x128xf32>
    %c0_4 = arith.constant 0 : index
    %c0_5 = arith.constant 0 : index
    %c0_6 = arith.constant 0 : index
    %4 = vector.load %arg3[%c0_4, %c0_5, %c0_6] : memref<1x1x128xf32, #tpu.memory_space<vmem>>, vector<1x1x128xf32>
    %5 = vector.shape_cast %4 : vector<1x1x128xf32> to vector<1x128xf32>
    %6 = vector.broadcast %5 : vector<1x128xf32> to vector<16x128xf32>
    %7 = arith.addf %3, %6 : vector<16x128xf32>
    %cst_7 = arith.constant 0.000000e+00 : f32
    %8 = vector.broadcast %cst_7 : f32 to vector<16x128xf32>
    %9 = arith.maximumf %7, %8 : vector<16x128xf32>
    %10 = arith.truncf %9 : vector<16x128xf32> to vector<16x128xbf16>
    %c0_8 = arith.constant 0 : index
    %c0_9 = arith.constant 0 : index
    %11 = vector.load %arg4[%c0_8, %c0_9] : memref<16x128xbf16, #tpu.memory_space<vmem>>, vector<16x128xbf16>
    tpu.vector_store %arg4[%c0_8, %c0_9], %10 {strides = array<i32>} : memref<16x128xbf16, #tpu.memory_space<vmem>>, vector<16x128xbf16>,
    return
  }
  func.func @transform_0(%arg0: i32) -> (i32, i32) {
    %c0_i32 = arith.constant 0 : i32
    %c0_i32_0 = arith.constant 0 : i32
    return %arg0, %c0_i32 : i32, i32
  }
  func.func @transform_1(%arg0: i32) -> (i32, i32, i32) {
    %c0_i32 = arith.constant 0 : i32
    %c0_i32_0 = arith.constant 0 : i32
    %c0_i32_1 = arith.constant 0 : i32
    %c0_i32_2 = arith.constant 0 : i32
    return %c0_i32, %c0_i32_0, %c0_i32_1 : i32, i32, i32
  }
  func.func @transform_2(%arg0: i32) -> (i32, i32, i32) {
    %c0_i32 = arith.constant 0 : i32
    %c0_i32_0 = arith.constant 0 : i32
    %c0_i32_1 = arith.constant 0 : i32
    %c0_i32_2 = arith.constant 0 : i32
    return %c0_i32, %c0_i32_0, %c0_i32_1 : i32, i32, i32
  }
  func.func @transform_3(%arg0: i32) -> (i32, i32) {
    %c0_i32 = arith.constant 0 : i32
    %c0_i32_0 = arith.constant 0 : i32
    return %arg0, %c0_i32 : i32, i32
  }
}

module attributes {stable_mosaic.version = 11 : i64} {
  func.func @_gather_max_kernel(%arg0: i32, %arg1: i32, %arg2: memref<1x16x128xbf16, #tpu.memory_space<vmem>>, %arg3: memref<1x8x8xi32, #tpu.memory_space<vmem>>, %arg4: memref<1x8x128xbf16, #tpu.memory_space<vmem>>) attributes {dimension_semantics = [#tpu.dimension_semantics<parallel>, #tpu.dimension_semantics<parallel>], iteration_bounds = array<i64: 2, 1>, scalar_prefetch = 0 : i64, scratch_operands = 0 : i64, tpu.core_type = #tpu.core_type<tc>, window_params = [{transform_indices = @transform_0, window_bounds = array<i64: 1, 16, 128>}, {transform_indices = @transform_1, window_bounds = array<i64: 1, 8, 8>}, {transform_indices = @transform_2, window_bounds = array<i64: 1, 8, 128>}]} {
    %c0 = arith.constant 0 : index
    %c0_0 = arith.constant 0 : index
    %c0_1 = arith.constant 0 : index
    %0 = vector.load %arg2[%c0, %c0_0, %c0_1] : memref<1x16x128xbf16, #tpu.memory_space<vmem>>, vector<1x16x128xbf16>
    %1 = vector.shape_cast %0 : vector<1x16x128xbf16> to vector<16x128xbf16>
    %2 = arith.extf %1 : vector<16x128xbf16> to vector<16x128xf32>
    %c0_2 = arith.constant 0 : index
    %c0_3 = arith.constant 0 : index
    %c0_4 = arith.constant 0 : index
    %3 = vector.load %arg3[%c0_2, %c0_3, %c0_4] : memref<1x8x8xi32, #tpu.memory_space<vmem>>, vector<1x8x8xi32>
    %4 = vector.shape_cast %3 : vector<1x8x8xi32> to vector<8x8xi32>
    %5 = tpu.iota {dimensions = array<i32: 1>} : vector<8x16xi32>
    %6 = vector.extract_strided_slice %4 {offsets = [0, 0], sizes = [8, 1], strides = [1, 1]} : vector<8x8xi32> to vector<8x1xi32>
    %7 = vector.broadcast %6 : vector<8x1xi32> to vector<8x16xi32>
    %8 = arith.cmpi eq, %5, %7 : vector<8x16xi32>
    %9 = arith.extui %8 : vector<8x16xi1> to vector<8x16xi32>
    %10 = arith.sitofp %9 : vector<8x16xi32> to vector<8x16xf32>
    %cst = arith.constant dense<0.000000e+00> : vector<8x128xf32>
    %11 = tpu.matmul %10, %2, %cst {dimension_numbers = #tpu.dot_dimension_numbers<[1], [0], [0], [1], [0, 0, 1, 1], [], []>} : vector<8x16xf32>, vector<16x128xf32>, vector<8x128xf32> -> vector<8x128xf32>
    %12 = vector.extract_strided_slice %4 {offsets = [0, 1], sizes = [8, 1], strides = [1, 1]} : vector<8x8xi32> to vector<8x1xi32>
    %13 = vector.broadcast %12 : vector<8x1xi32> to vector<8x16xi32>
    %14 = arith.cmpi eq, %5, %13 : vector<8x16xi32>
    %15 = arith.extui %14 : vector<8x16xi1> to vector<8x16xi32>
    %16 = arith.sitofp %15 : vector<8x16xi32> to vector<8x16xf32>
    %cst_5 = arith.constant dense<0.000000e+00> : vector<8x128xf32>
    %17 = tpu.matmul %16, %2, %cst_5 {dimension_numbers = #tpu.dot_dimension_numbers<[1], [0], [0], [1], [0, 0, 1, 1], [], []>} : vector<8x16xf32>, vector<16x128xf32>, vector<8x128xf32> -> vector<8x128xf32>
    %18 = arith.maximumf %11, %17 : vector<8x128xf32>
    %19 = vector.extract_strided_slice %4 {offsets = [0, 2], sizes = [8, 1], strides = [1, 1]} : vector<8x8xi32> to vector<8x1xi32>
    %20 = vector.broadcast %19 : vector<8x1xi32> to vector<8x16xi32>
    %21 = arith.cmpi eq, %5, %20 : vector<8x16xi32>
    %22 = arith.extui %21 : vector<8x16xi1> to vector<8x16xi32>
    %23 = arith.sitofp %22 : vector<8x16xi32> to vector<8x16xf32>
    %cst_6 = arith.constant dense<0.000000e+00> : vector<8x128xf32>
    %24 = tpu.matmul %23, %2, %cst_6 {dimension_numbers = #tpu.dot_dimension_numbers<[1], [0], [0], [1], [0, 0, 1, 1], [], []>} : vector<8x16xf32>, vector<16x128xf32>, vector<8x128xf32> -> vector<8x128xf32>
    %25 = arith.maximumf %18, %24 : vector<8x128xf32>
    %26 = vector.extract_strided_slice %4 {offsets = [0, 3], sizes = [8, 1], strides = [1, 1]} : vector<8x8xi32> to vector<8x1xi32>
    %27 = vector.broadcast %26 : vector<8x1xi32> to vector<8x16xi32>
    %28 = arith.cmpi eq, %5, %27 : vector<8x16xi32>
    %29 = arith.extui %28 : vector<8x16xi1> to vector<8x16xi32>
    %30 = arith.sitofp %29 : vector<8x16xi32> to vector<8x16xf32>
    %cst_7 = arith.constant dense<0.000000e+00> : vector<8x128xf32>
    %31 = tpu.matmul %30, %2, %cst_7 {dimension_numbers = #tpu.dot_dimension_numbers<[1], [0], [0], [1], [0, 0, 1, 1], [], []>} : vector<8x16xf32>, vector<16x128xf32>, vector<8x128xf32> -> vector<8x128xf32>
    %32 = arith.maximumf %25, %31 : vector<8x128xf32>
    %33 = vector.extract_strided_slice %4 {offsets = [0, 4], sizes = [8, 1], strides = [1, 1]} : vector<8x8xi32> to vector<8x1xi32>
    %34 = vector.broadcast %33 : vector<8x1xi32> to vector<8x16xi32>
    %35 = arith.cmpi eq, %5, %34 : vector<8x16xi32>
    %36 = arith.extui %35 : vector<8x16xi1> to vector<8x16xi32>
    %37 = arith.sitofp %36 : vector<8x16xi32> to vector<8x16xf32>
    %cst_8 = arith.constant dense<0.000000e+00> : vector<8x128xf32>
    %38 = tpu.matmul %37, %2, %cst_8 {dimension_numbers = #tpu.dot_dimension_numbers<[1], [0], [0], [1], [0, 0, 1, 1], [], []>} : vector<8x16xf32>, vector<16x128xf32>, vector<8x128xf32> -> vector<8x128xf32>
    %39 = arith.maximumf %32, %38 : vector<8x128xf32>
    %40 = vector.extract_strided_slice %4 {offsets = [0, 5], sizes = [8, 1], strides = [1, 1]} : vector<8x8xi32> to vector<8x1xi32>
    %41 = vector.broadcast %40 : vector<8x1xi32> to vector<8x16xi32>
    %42 = arith.cmpi eq, %5, %41 : vector<8x16xi32>
    %43 = arith.extui %42 : vector<8x16xi1> to vector<8x16xi32>
    %44 = arith.sitofp %43 : vector<8x16xi32> to vector<8x16xf32>
    %cst_9 = arith.constant dense<0.000000e+00> : vector<8x128xf32>
    %45 = tpu.matmul %44, %2, %cst_9 {dimension_numbers = #tpu.dot_dimension_numbers<[1], [0], [0], [1], [0, 0, 1, 1], [], []>} : vector<8x16xf32>, vector<16x128xf32>, vector<8x128xf32> -> vector<8x128xf32>
    %46 = arith.maximumf %39, %45 : vector<8x128xf32>
    %47 = vector.extract_strided_slice %4 {offsets = [0, 6], sizes = [8, 1], strides = [1, 1]} : vector<8x8xi32> to vector<8x1xi32>
    %48 = vector.broadcast %47 : vector<8x1xi32> to vector<8x16xi32>
    %49 = arith.cmpi eq, %5, %48 : vector<8x16xi32>
    %50 = arith.extui %49 : vector<8x16xi1> to vector<8x16xi32>
    %51 = arith.sitofp %50 : vector<8x16xi32> to vector<8x16xf32>
    %cst_10 = arith.constant dense<0.000000e+00> : vector<8x128xf32>
    %52 = tpu.matmul %51, %2, %cst_10 {dimension_numbers = #tpu.dot_dimension_numbers<[1], [0], [0], [1], [0, 0, 1, 1], [], []>} : vector<8x16xf32>, vector<16x128xf32>, vector<8x128xf32> -> vector<8x128xf32>
    %53 = arith.maximumf %46, %52 : vector<8x128xf32>
    %54 = vector.extract_strided_slice %4 {offsets = [0, 7], sizes = [8, 1], strides = [1, 1]} : vector<8x8xi32> to vector<8x1xi32>
    %55 = vector.broadcast %54 : vector<8x1xi32> to vector<8x16xi32>
    %56 = arith.cmpi eq, %5, %55 : vector<8x16xi32>
    %57 = arith.extui %56 : vector<8x16xi1> to vector<8x16xi32>
    %58 = arith.sitofp %57 : vector<8x16xi32> to vector<8x16xf32>
    %cst_11 = arith.constant dense<0.000000e+00> : vector<8x128xf32>
    %59 = tpu.matmul %58, %2, %cst_11 {dimension_numbers = #tpu.dot_dimension_numbers<[1], [0], [0], [1], [0, 0, 1, 1], [], []>} : vector<8x16xf32>, vector<16x128xf32>, vector<8x128xf32> -> vector<8x128xf32>
    %60 = arith.maximumf %53, %59 : vector<8x128xf32>
    %61 = arith.truncf %60 : vector<8x128xf32> to vector<8x128xbf16>
    %62 = vector.shape_cast %61 : vector<8x128xbf16> to vector<1x8x128xbf16>
    %c0_12 = arith.constant 0 : index
    %c0_13 = arith.constant 0 : index
    %c0_14 = arith.constant 0 : index
    %63 = vector.load %arg4[%c0_12, %c0_13, %c0_14] : memref<1x8x128xbf16, #tpu.memory_space<vmem>>, vector<1x8x128xbf16>
    tpu.vector_store %arg4[%c0_12, %c0_13, %c0_14], %62 {strides = array<i32>} : memref<1x8x128xbf16, #tpu.memory_space<vmem>>, vector<1x8x128xbf16>,
    return
  }
  func.func @transform_0(%arg0: i32, %arg1: i32) -> (i32, i32, i32) {
    %c0_i32 = arith.constant 0 : i32
    %c0_i32_0 = arith.constant 0 : i32
    %c0_i32_1 = arith.constant 0 : i32
    return %arg0, %c0_i32, %c0_i32_0 : i32, i32, i32
  }
  func.func @transform_1(%arg0: i32, %arg1: i32) -> (i32, i32, i32) {
    %c0_i32 = arith.constant 0 : i32
    %c0_i32_0 = arith.constant 0 : i32
    return %arg0, %arg1, %c0_i32 : i32, i32, i32
  }
  func.func @transform_2(%arg0: i32, %arg1: i32) -> (i32, i32, i32) {
    %c0_i32 = arith.constant 0 : i32
    %c0_i32_0 = arith.constant 0 : i32
    return %arg0, %arg1, %c0_i32 : i32, i32, i32
  }
}

module attributes {stable_mosaic.version = 11 : i64} {
  func.func @_gather_max_kernel(%arg0: i32, %arg1: i32, %arg2: memref<1x8x128xbf16, #tpu.memory_space<vmem>>, %arg3: memref<1x8x8xi32, #tpu.memory_space<vmem>>, %arg4: memref<1x8x128xbf16, #tpu.memory_space<vmem>>) attributes {dimension_semantics = [#tpu.dimension_semantics<parallel>, #tpu.dimension_semantics<parallel>], iteration_bounds = array<i64: 2, 1>, scalar_prefetch = 0 : i64, scratch_operands = 0 : i64, tpu.core_type = #tpu.core_type<tc>, window_params = [{transform_indices = @transform_0, window_bounds = array<i64: 1, 8, 128>}, {transform_indices = @transform_1, window_bounds = array<i64: 1, 8, 8>}, {transform_indices = @transform_2, window_bounds = array<i64: 1, 8, 128>}]} {
    %c0 = arith.constant 0 : index
    %c0_0 = arith.constant 0 : index
    %c0_1 = arith.constant 0 : index
    %0 = vector.load %arg2[%c0, %c0_0, %c0_1] : memref<1x8x128xbf16, #tpu.memory_space<vmem>>, vector<1x8x128xbf16>
    %1 = vector.shape_cast %0 : vector<1x8x128xbf16> to vector<8x128xbf16>
    %2 = arith.extf %1 : vector<8x128xbf16> to vector<8x128xf32>
    %c0_2 = arith.constant 0 : index
    %c0_3 = arith.constant 0 : index
    %c0_4 = arith.constant 0 : index
    %3 = vector.load %arg3[%c0_2, %c0_3, %c0_4] : memref<1x8x8xi32, #tpu.memory_space<vmem>>, vector<1x8x8xi32>
    %4 = vector.shape_cast %3 : vector<1x8x8xi32> to vector<8x8xi32>
    %5 = tpu.iota {dimensions = array<i32: 1>} : vector<8x8xi32>
    %6 = vector.extract_strided_slice %4 {offsets = [0, 0], sizes = [8, 1], strides = [1, 1]} : vector<8x8xi32> to vector<8x1xi32>
    %7 = vector.broadcast %6 : vector<8x1xi32> to vector<8x8xi32>
    %8 = arith.cmpi eq, %5, %7 : vector<8x8xi32>
    %9 = arith.extui %8 : vector<8x8xi1> to vector<8x8xi32>
    %10 = arith.sitofp %9 : vector<8x8xi32> to vector<8x8xf32>
    %cst = arith.constant dense<0.000000e+00> : vector<8x128xf32>
    %11 = tpu.matmul %10, %2, %cst {dimension_numbers = #tpu.dot_dimension_numbers<[1], [0], [0], [1], [0, 0, 1, 1], [], []>} : vector<8x8xf32>, vector<8x128xf32>, vector<8x128xf32> -> vector<8x128xf32>
    %12 = vector.extract_strided_slice %4 {offsets = [0, 1], sizes = [8, 1], strides = [1, 1]} : vector<8x8xi32> to vector<8x1xi32>
    %13 = vector.broadcast %12 : vector<8x1xi32> to vector<8x8xi32>
    %14 = arith.cmpi eq, %5, %13 : vector<8x8xi32>
    %15 = arith.extui %14 : vector<8x8xi1> to vector<8x8xi32>
    %16 = arith.sitofp %15 : vector<8x8xi32> to vector<8x8xf32>
    %cst_5 = arith.constant dense<0.000000e+00> : vector<8x128xf32>
    %17 = tpu.matmul %16, %2, %cst_5 {dimension_numbers = #tpu.dot_dimension_numbers<[1], [0], [0], [1], [0, 0, 1, 1], [], []>} : vector<8x8xf32>, vector<8x128xf32>, vector<8x128xf32> -> vector<8x128xf32>
    %18 = arith.maximumf %11, %17 : vector<8x128xf32>
    %19 = vector.extract_strided_slice %4 {offsets = [0, 2], sizes = [8, 1], strides = [1, 1]} : vector<8x8xi32> to vector<8x1xi32>
    %20 = vector.broadcast %19 : vector<8x1xi32> to vector<8x8xi32>
    %21 = arith.cmpi eq, %5, %20 : vector<8x8xi32>
    %22 = arith.extui %21 : vector<8x8xi1> to vector<8x8xi32>
    %23 = arith.sitofp %22 : vector<8x8xi32> to vector<8x8xf32>
    %cst_6 = arith.constant dense<0.000000e+00> : vector<8x128xf32>
    %24 = tpu.matmul %23, %2, %cst_6 {dimension_numbers = #tpu.dot_dimension_numbers<[1], [0], [0], [1], [0, 0, 1, 1], [], []>} : vector<8x8xf32>, vector<8x128xf32>, vector<8x128xf32> -> vector<8x128xf32>
    %25 = arith.maximumf %18, %24 : vector<8x128xf32>
    %26 = vector.extract_strided_slice %4 {offsets = [0, 3], sizes = [8, 1], strides = [1, 1]} : vector<8x8xi32> to vector<8x1xi32>
    %27 = vector.broadcast %26 : vector<8x1xi32> to vector<8x8xi32>
    %28 = arith.cmpi eq, %5, %27 : vector<8x8xi32>
    %29 = arith.extui %28 : vector<8x8xi1> to vector<8x8xi32>
    %30 = arith.sitofp %29 : vector<8x8xi32> to vector<8x8xf32>
    %cst_7 = arith.constant dense<0.000000e+00> : vector<8x128xf32>
    %31 = tpu.matmul %30, %2, %cst_7 {dimension_numbers = #tpu.dot_dimension_numbers<[1], [0], [0], [1], [0, 0, 1, 1], [], []>} : vector<8x8xf32>, vector<8x128xf32>, vector<8x128xf32> -> vector<8x128xf32>
    %32 = arith.maximumf %25, %31 : vector<8x128xf32>
    %33 = vector.extract_strided_slice %4 {offsets = [0, 4], sizes = [8, 1], strides = [1, 1]} : vector<8x8xi32> to vector<8x1xi32>
    %34 = vector.broadcast %33 : vector<8x1xi32> to vector<8x8xi32>
    %35 = arith.cmpi eq, %5, %34 : vector<8x8xi32>
    %36 = arith.extui %35 : vector<8x8xi1> to vector<8x8xi32>
    %37 = arith.sitofp %36 : vector<8x8xi32> to vector<8x8xf32>
    %cst_8 = arith.constant dense<0.000000e+00> : vector<8x128xf32>
    %38 = tpu.matmul %37, %2, %cst_8 {dimension_numbers = #tpu.dot_dimension_numbers<[1], [0], [0], [1], [0, 0, 1, 1], [], []>} : vector<8x8xf32>, vector<8x128xf32>, vector<8x128xf32> -> vector<8x128xf32>
    %39 = arith.maximumf %32, %38 : vector<8x128xf32>
    %40 = vector.extract_strided_slice %4 {offsets = [0, 5], sizes = [8, 1], strides = [1, 1]} : vector<8x8xi32> to vector<8x1xi32>
    %41 = vector.broadcast %40 : vector<8x1xi32> to vector<8x8xi32>
    %42 = arith.cmpi eq, %5, %41 : vector<8x8xi32>
    %43 = arith.extui %42 : vector<8x8xi1> to vector<8x8xi32>
    %44 = arith.sitofp %43 : vector<8x8xi32> to vector<8x8xf32>
    %cst_9 = arith.constant dense<0.000000e+00> : vector<8x128xf32>
    %45 = tpu.matmul %44, %2, %cst_9 {dimension_numbers = #tpu.dot_dimension_numbers<[1], [0], [0], [1], [0, 0, 1, 1], [], []>} : vector<8x8xf32>, vector<8x128xf32>, vector<8x128xf32> -> vector<8x128xf32>
    %46 = arith.maximumf %39, %45 : vector<8x128xf32>
    %47 = vector.extract_strided_slice %4 {offsets = [0, 6], sizes = [8, 1], strides = [1, 1]} : vector<8x8xi32> to vector<8x1xi32>
    %48 = vector.broadcast %47 : vector<8x1xi32> to vector<8x8xi32>
    %49 = arith.cmpi eq, %5, %48 : vector<8x8xi32>
    %50 = arith.extui %49 : vector<8x8xi1> to vector<8x8xi32>
    %51 = arith.sitofp %50 : vector<8x8xi32> to vector<8x8xf32>
    %cst_10 = arith.constant dense<0.000000e+00> : vector<8x128xf32>
    %52 = tpu.matmul %51, %2, %cst_10 {dimension_numbers = #tpu.dot_dimension_numbers<[1], [0], [0], [1], [0, 0, 1, 1], [], []>} : vector<8x8xf32>, vector<8x128xf32>, vector<8x128xf32> -> vector<8x128xf32>
    %53 = arith.maximumf %46, %52 : vector<8x128xf32>
    %54 = vector.extract_strided_slice %4 {offsets = [0, 7], sizes = [8, 1], strides = [1, 1]} : vector<8x8xi32> to vector<8x1xi32>
    %55 = vector.broadcast %54 : vector<8x1xi32> to vector<8x8xi32>
    %56 = arith.cmpi eq, %5, %55 : vector<8x8xi32>
    %57 = arith.extui %56 : vector<8x8xi1> to vector<8x8xi32>
    %58 = arith.sitofp %57 : vector<8x8xi32> to vector<8x8xf32>
    %cst_11 = arith.constant dense<0.000000e+00> : vector<8x128xf32>
    %59 = tpu.matmul %58, %2, %cst_11 {dimension_numbers = #tpu.dot_dimension_numbers<[1], [0], [0], [1], [0, 0, 1, 1], [], []>} : vector<8x8xf32>, vector<8x128xf32>, vector<8x128xf32> -> vector<8x128xf32>
    %60 = arith.maximumf %53, %59 : vector<8x128xf32>
    %61 = arith.truncf %60 : vector<8x128xf32> to vector<8x128xbf16>
    %62 = vector.shape_cast %61 : vector<8x128xbf16> to vector<1x8x128xbf16>
    %c0_12 = arith.constant 0 : index
    %c0_13 = arith.constant 0 : index
    %c0_14 = arith.constant 0 : index
    %63 = vector.load %arg4[%c0_12, %c0_13, %c0_14] : memref<1x8x128xbf16, #tpu.memory_space<vmem>>, vector<1x8x128xbf16>
    tpu.vector_store %arg4[%c0_12, %c0_13, %c0_14], %62 {strides = array<i32>} : memref<1x8x128xbf16, #tpu.memory_space<vmem>>, vector<1x8x128xbf16>,
    return
  }
  func.func @transform_0(%arg0: i32, %arg1: i32) -> (i32, i32, i32) {
    %c0_i32 = arith.constant 0 : i32
    %c0_i32_0 = arith.constant 0 : i32
    %c0_i32_1 = arith.constant 0 : i32
    return %arg0, %c0_i32, %c0_i32_0 : i32, i32, i32
  }
  func.func @transform_1(%arg0: i32, %arg1: i32) -> (i32, i32, i32) {
    %c0_i32 = arith.constant 0 : i32
    %c0_i32_0 = arith.constant 0 : i32
    return %arg0, %arg1, %c0_i32 : i32, i32, i32
  }
  func.func @transform_2(%arg0: i32, %arg1: i32) -> (i32, i32, i32) {
    %c0_i32 = arith.constant 0 : i32
    %c0_i32_0 = arith.constant 0 : i32
    return %arg0, %arg1, %c0_i32 : i32, i32, i32
  }
}

</mosaic_0001>

<llo_original>
// kernel: assanet_encoder_forward.17
$region0: #{assanet_encoder_forward.17}
  #allocation0 [shape = 'u32[]', space=smem, size = 0x4, offset = 0x4, fixed_abs, tag = 'smem constant byte address 0x4 - core index']
  #allocation1 [shape = 'u32[144,128]{1,0:T(1,128)}', space=vmem, size = 0x12000, scoped, tag = 'internal scratch']
  %s0 = inlined_call_operand.vmem [shape: bf16[64,128], index: 0, kind: input, shape index: {}]
  %s1 = inlined_call_operand.vmem [shape: bf16[1,128,128], index: 1, kind: input, shape index: {}]
  %s2 = inlined_call_operand.vmem [shape: f32[1,1,128], index: 2, kind: input, shape index: {}]
  %s3 = inlined_call_operand.vmem [shape: bf16[64,128], index: 3, kind: output, shape index: {}]
  %s4 = sld [smem:[#allocation0]]
  $region22: #{assanet_encoder_forward.17} parent=0
    _
  %s6 = ssub.s32 1, %s4
  %s7 = scalar_select 0, %s6, %s4
  // Predicated region
  $region2: #{assanet_encoder_forward.17} parent=0 // pred_check
    _
  $region3: #{assanet_encoder_forward.17} parent=0 // pred_check_branch
    %9 = sbr.rel (0) target = $region5
  $region4: #{assanet_encoder_forward.17} parent=0 // pred_region
    _
  $region5: #{assanet_encoder_forward.17} parent=0 // pred_fallthru
    _
  // Predicated region
  $region6: #{assanet_encoder_forward.17} parent=0 // pred_check
    _
  $region7: #{assanet_encoder_forward.17} parent=0 // pred_check_branch
    %11 = sbr.rel (0) target = $region9
  $region8: #{assanet_encoder_forward.17} parent=0 // pred_region
    _
  $region9: #{assanet_encoder_forward.17} parent=0 // pred_fallthru
    _
  // Predicated region
  $region10: #{assanet_encoder_forward.17} parent=0 // pred_check
    _
  $region11: #{assanet_encoder_forward.17} parent=0 // pred_check_branch
    %13 = sbr.rel (0) target = $region13
  $region12: #{assanet_encoder_forward.17} parent=0 // pred_region
    _
  $region13: #{assanet_encoder_forward.17} parent=0 // pred_fallthru
    _
  %v15 = vld [vmem:[%s0] sm:$0xf]
  %v16 = vld [vmem:[%s0 + $0x4] sm:$0xf]
  %v17 = vld [vmem:[%s0 + $0x8] sm:$0xf]
  %v18 = vld [vmem:[%s0 + $0xc] sm:$0xf]
  %v19 = vld [vmem:[%s0 + $0x10] sm:$0xf]
  %v20 = vld [vmem:[%s0 + $0x14] sm:$0xf]
  %v21 = vld [vmem:[%s0 + $0x18] sm:$0xf]
  %v22 = vld [vmem:[%s0 + $0x1c] sm:$0xf]
  %v23 = vld [vmem:[%s1] sm:$0xf]
  %v24 = vld [vmem:[%s1 + $0x4] sm:$0xf]
  %v25 = vld [vmem:[%s1 + $0x8] sm:$0xf]
  %v26 = vld [vmem:[%s1 + $0xc] sm:$0xf]
  %v27 = vld [vmem:[%s1 + $0x10] sm:$0xf]
  %v28 = vld [vmem:[%s1 + $0x14] sm:$0xf]
  %v29 = vld [vmem:[%s1 + $0x18] sm:$0xf]
  %v30 = vld [vmem:[%s1 + $0x1c] sm:$0xf]
  %v31 = vld [vmem:[%s1 + $0x20] sm:$0xf]
  %v32 = vld [vmem:[%s1 + $0x24] sm:$0xf]
  %v33 = vld [vmem:[%s1 + $0x28] sm:$0xf]
  %v34 = vld [vmem:[%s1 + $0x2c] sm:$0xf]
  %v35 = vld [vmem:[%s1 + $0x30] sm:$0xf]
  %v36 = vld [vmem:[%s1 + $0x34] sm:$0xf]
  %v37 = vld [vmem:[%s1 + $0x38] sm:$0xf]
  %v38 = vld [vmem:[%s1 + $0x3c] sm:$0xf]
  %v39 = vld [vmem:[%s2] sm:$0x1]
  %v41 = vlaneseq
  %v42 = vshrl.u32 %v41, 7
  %v43 = vsub.s32 0, %v42
  %v44 = vrot.slane %v39, %v43
  %v54 = vunpack.c.l.b16 %v15
  %v55 = vunpack.c.l.b16 %v16
  %v56 = vunpack.c.l.b16 %v17
  %v57 = vunpack.c.l.b16 %v18
  %v58 = vunpack.c.l.b16 %v19
  %v59 = vunpack.c.l.b16 %v20
  %v60 = vunpack.c.l.b16 %v21
  %v61 = vunpack.c.l.b16 %v22
  %v62 = vpack.c.b16 %v55, %v54
  %v63 = vpack.c.b16 %v57, %v56
  %v64 = vpack.c.b16 %v59, %v58
  %v65 = vpack.c.b16 %v61, %v60
  %v86 = vunpack.c.l.b16 %v23
  %v87 = vunpack.c.l.b16 %v24
  %v88 = vunpack.c.l.b16 %v25
  %v89 = vunpack.c.l.b16 %v26
  %v90 = vunpack.c.l.b16 %v27
  %v91 = vunpack.c.l.b16 %v28
  %v92 = vunpack.c.l.b16 %v29
  %v93 = vunpack.c.l.b16 %v30
  %v94 = vunpack.c.l.b16 %v31
  %v95 = vunpack.c.l.b16 %v32
  %v96 = vunpack.c.l.b16 %v33
  %v97 = vunpack.c.l.b16 %v34
  %v98 = vunpack.c.l.b16 %v35
  %v99 = vunpack.c.l.b16 %v36
  %v100 = vunpack.c.l.b16 %v37
  %v101 = vunpack.c.l.b16 %v38
  %v102 = vpack.c.b16 %v87, %v86
  %v103 = vpack.c.b16 %v89, %v88
  %v104 = vpack.c.b16 %v91, %v90
  %v105 = vpack.c.b16 %v93, %v92
  %v106 = vpack.c.b16 %v95, %v94
  %v107 = vpack.c.b16 %v97, %v96
  %v108 = vpack.c.b16 %v99, %v98
  %v109 = vpack.c.b16 %v101, %v100
  %118 = vmatprep.subr.bf16.mxu0 0
  %119 = vmatpush1.bf16.msra.mxu0 %v102
  %120 = vmatprep.subr.bf16.mxu0 0
  %121 = vmatpush1.bf16.msra.mxu0 %v103
  %122 = vmatprep.subr.bf16.mxu0 0
  %123 = vmatpush1.bf16.msra.mxu0 %v104
  %124 = vmatprep.subr.bf16.mxu0 0
  %125 = vmatpush1.bf16.msra.mxu0 %v105
  %126 = vmatprep.subr.bf16.mxu0 0
  %127 = vmatpush1.bf16.msra.mxu0 %v106
  %128 = vmatprep.subr.bf16.mxu0 0
  %129 = vmatpush1.bf16.msra.mxu0 %v107
  %130 = vmatprep.subr.bf16.mxu0 0
  %131 = vmatpush1.bf16.msra.mxu0 %v108
  %132 = vmatprep.subr.bf16.mxu0 0
  %133 = vmatpush1.bf16.msra.mxu0 %v109
  %134 = vmatprep.subr.bf16.mxu0 0
  %135 = vmatpush1.bf16.msra.mxu0 0
  %136 = vmatprep.subr.bf16.mxu0 0
  %137 = vmatpush1.bf16.msra.mxu0 0
  %138 = vmatprep.subr.bf16.mxu0 0
  %139 = vmatpush1.bf16.msra.mxu0 0
  %140 = vmatprep.subr.bf16.mxu0 0
  %141 = vmatpush1.bf16.msra.mxu0 0
  %142 = vmatprep.subr.bf16.mxu0 0
  %143 = vmatpush1.bf16.msra.mxu0 0
  %144 = vmatprep.subr.bf16.mxu0 0
  %145 = vmatpush1.bf16.msra.mxu0 0
  %146 = vmatprep.subr.bf16.mxu0 0
  %147 = vmatpush1.bf16.msra.mxu0 0
  %148 = vmatprep.subr.bf16.mxu0 0
  %149 = vmatpush1.bf16.msra.mxu0 0
  %150 = vmatprep.mubr.bf16.mxu0 0
  %151 = vmatmul.mubr.bf16.gmra.mrb[0].mxu0 %v62
  %v152 = vpop.f32.mrb[0].mxu0
  %v153 = vadd.f32 %v44, %v152
  %v154 = vpop.f32.mrb[0].mxu0
  %v155 = vpop.f32.mrb[0].mxu0
  %v156 = vadd.f32 %v44, %v155
  %v157 = vpop.f32.mrb[0].mxu0
  %158 = vmatprep.mubr.bf16.mxu0 0
  %159 = vmatmul.mubr.bf16.gmra.mrb[0].mxu0 %v63
  %v160 = vpop.f32.mrb[0].mxu0
  %v161 = vadd.f32 %v44, %v160
  %v162 = vpop.f32.mrb[0].mxu0
  %v163 = vpop.f32.mrb[0].mxu0
  %v164 = vadd.f32 %v44, %v163
  %v165 = vpop.f32.mrb[0].mxu0
  %166 = vmatprep.mubr.bf16.mxu0 0
  %167 = vmatmul.mubr.bf16.gmra.mrb[0].mxu0 %v64
  %v168 = vpop.f32.mrb[0].mxu0
  %v169 = vadd.f32 %v44, %v168
  %v170 = vpop.f32.mrb[0].mxu0
  %v171 = vpop.f32.mrb[0].mxu0
  %v172 = vadd.f32 %v44, %v171
  %v173 = vpop.f32.mrb[0].mxu0
  %174 = vmatprep.mubr.bf16.mxu0 0
  %175 = vmatmul.mubr.bf16.gmra.mrb[0].mxu0 %v65
  %v176 = vpop.f32.mrb[0].mxu0
  %v177 = vadd.f32 %v44, %v176
  %v178 = vpop.f32.mrb[0].mxu0
  %v179 = vpop.f32.mrb[0].mxu0
  %v180 = vadd.f32 %v44, %v179
  %v181 = vpop.f32.mrb[0].mxu0
  %182 = vdwg.mxu0
  %v183 = vmax.f32 %v153, 0.0
  %v184 = vmax.f32 %v156, 0.0
  %v185 = vmax.f32 %v161, 0.0
  %v186 = vmax.f32 %v164, 0.0
  %v187 = vmax.f32 %v169, 0.0
  %v188 = vmax.f32 %v172, 0.0
  %v189 = vmax.f32 %v177, 0.0
  %v190 = vmax.f32 %v180, 0.0
  %v191 = vpack.c.bf16 %v184, %v183
  %v192 = vpack.c.bf16 %v186, %v185
  %v193 = vpack.c.bf16 %v188, %v187
  %v194 = vpack.c.bf16 %v190, %v189
  %v199 = vunpack.c.l.b16 %v191
  %v200 = vunpack.c.h.b16 %v191
  %v201 = vunpack.c.l.b16 %v192
  %v202 = vunpack.c.h.b16 %v192
  %v203 = vunpack.c.l.b16 %v193
  %v204 = vunpack.c.h.b16 %v193
  %v205 = vunpack.c.l.b16 %v194
  %v206 = vunpack.c.h.b16 %v194
  %v207 = vpack.c.b16 %v199, %v199
  %v208 = vpack.c.b16 %v200, %v200
  %v209 = vpack.c.b16 %v201, %v201
  %v210 = vpack.c.b16 %v202, %v202
  %v211 = vpack.c.b16 %v203, %v203
  %v212 = vpack.c.b16 %v204, %v204
  %v213 = vpack.c.b16 %v205, %v205
  %v214 = vpack.c.b16 %v206, %v206
  %223 = vst [vmem:[%s3] sm:$0xf] %v207
  %224 = vst [vmem:[%s3 + $0x4] sm:$0xf] %v208
  %225 = vst [vmem:[%s3 + $0x8] sm:$0xf] %v209
  %226 = vst [vmem:[%s3 + $0xc] sm:$0xf] %v210
  %227 = vst [vmem:[%s3 + $0x10] sm:$0xf] %v211
  %228 = vst [vmem:[%s3 + $0x14] sm:$0xf] %v212
  %229 = vst [vmem:[%s3 + $0x18] sm:$0xf] %v213
  %230 = vst [vmem:[%s3 + $0x1c] sm:$0xf] %v214
  // Predicated region
  $region14: #{assanet_encoder_forward.17} parent=0 // pred_check
    _
  $region15: #{assanet_encoder_forward.17} parent=0 // pred_check_branch
    %232 = sbr.rel (0) target = $region17
  $region16: #{assanet_encoder_forward.17} parent=0 // pred_region
    _
  $region17: #{assanet_encoder_forward.17} parent=0 // pred_fallthru
    _
  // Predicated region
  $region18: #{assanet_encoder_forward.17} parent=0 // pred_check
    _
  $region19: #{assanet_encoder_forward.17} parent=0 // pred_check_branch
    %234 = sbr.rel (0) target = $region21
  $region20: #{assanet_encoder_forward.17} parent=0 // pred_region
    _
  $region21: #{assanet_encoder_forward.17} parent=0 // pred_fallthru
    _

// kernel: assanet_encoder_forward.15
$region0: #{assanet_encoder_forward.15}
  #allocation0 [shape = 'u32[]', space=smem, size = 0x4, offset = 0x4, fixed_abs, tag = 'smem constant byte address 0x4 - core index']
  #allocation1 [shape = 'u32[144,128]{1,0:T(1,128)}', space=vmem, size = 0x12000, scoped, tag = 'internal scratch']
  %s0 = inlined_call_operand.vmem [shape: bf16[64,128], index: 0, kind: input, shape index: {}]
  %s1 = inlined_call_operand.vmem [shape: bf16[3,128,128], index: 1, kind: input, shape index: {}]
  %s2 = inlined_call_operand.vmem [shape: f32[3,1,128], index: 2, kind: input, shape index: {}]
  %s3 = inlined_call_operand.vmem [shape: bf16[64,128], index: 3, kind: output, shape index: {}]
  %s4 = sld [smem:[#allocation0]]
  $region22: #{assanet_encoder_forward.15} parent=0
    _
  %s6 = ssub.s32 1, %s4
  %s7 = scalar_select 0, %s6, %s4
  // Predicated region
  $region2: #{assanet_encoder_forward.15} parent=0 // pred_check
    _
  $region3: #{assanet_encoder_forward.15} parent=0 // pred_check_branch
    %9 = sbr.rel (0) target = $region5
  $region4: #{assanet_encoder_forward.15} parent=0 // pred_region
    _
  $region5: #{assanet_encoder_forward.15} parent=0 // pred_fallthru
    _
  // Predicated region
  $region6: #{assanet_encoder_forward.15} parent=0 // pred_check
    _
  $region7: #{assanet_encoder_forward.15} parent=0 // pred_check_branch
    %11 = sbr.rel (0) target = $region9
  $region8: #{assanet_encoder_forward.15} parent=0 // pred_region
    _
  $region9: #{assanet_encoder_forward.15} parent=0 // pred_fallthru
    _
  // Predicated region
  $region10: #{assanet_encoder_forward.15} parent=0 // pred_check
    _
  $region11: #{assanet_encoder_forward.15} parent=0 // pred_check_branch
    %13 = sbr.rel (0) target = $region13
  $region12: #{assanet_encoder_forward.15} parent=0 // pred_region
    _
  $region13: #{assanet_encoder_forward.15} parent=0 // pred_fallthru
    _
  %v15 = vld [vmem:[%s0] sm:$0xf]
  %v16 = vld [vmem:[%s0 + $0x4] sm:$0xf]
  %v17 = vld [vmem:[%s0 + $0x8] sm:$0xf]
  %v18 = vld [vmem:[%s0 + $0xc] sm:$0xf]
  %v19 = vld [vmem:[%s0 + $0x10] sm:$0xf]
  %v20 = vld [vmem:[%s0 + $0x14] sm:$0xf]
  %v21 = vld [vmem:[%s0 + $0x18] sm:$0xf]
  %v22 = vld [vmem:[%s0 + $0x1c] sm:$0xf]
  %v23 = vld [vmem:[%s1] sm:$0xf]
  %v24 = vld [vmem:[%s1 + $0x4] sm:$0xf]
  %v25 = vld [vmem:[%s1 + $0x8] sm:$0xf]
  %v26 = vld [vmem:[%s1 + $0xc] sm:$0xf]
  %v27 = vld [vmem:[%s1 + $0x10] sm:$0xf]
  %v28 = vld [vmem:[%s1 + $0x14] sm:$0xf]
  %v29 = vld [vmem:[%s1 + $0x18] sm:$0xf]
  %v30 = vld [vmem:[%s1 + $0x1c] sm:$0xf]
  %v31 = vld [vmem:[%s1 + $0x20] sm:$0xf]
  %v32 = vld [vmem:[%s1 + $0x24] sm:$0xf]
  %v33 = vld [vmem:[%s1 + $0x28] sm:$0xf]
  %v34 = vld [vmem:[%s1 + $0x2c] sm:$0xf]
  %v35 = vld [vmem:[%s1 + $0x30] sm:$0xf]
  %v36 = vld [vmem:[%s1 + $0x34] sm:$0xf]
  %v37 = vld [vmem:[%s1 + $0x38] sm:$0xf]
  %v38 = vld [vmem:[%s1 + $0x3c] sm:$0xf]
  %v39 = vld [vmem:[%s2] sm:$0x1]
  %v41 = vlaneseq
  %v42 = vshrl.u32 %v41, 7
  %v43 = vsub.s32 0, %v42
  %v44 = vrot.slane %v39, %v43
  %v54 = vunpack.c.l.b16 %v15
  %v55 = vunpack.c.l.b16 %v16
  %v56 = vunpack.c.l.b16 %v17
  %v57 = vunpack.c.l.b16 %v18
  %v58 = vunpack.c.l.b16 %v19
  %v59 = vunpack.c.l.b16 %v20
  %v60 = vunpack.c.l.b16 %v21
  %v61 = vunpack.c.l.b16 %v22
  %v62 = vpack.c.b16 %v55, %v54
  %v63 = vpack.c.b16 %v57, %v56
  %v64 = vpack.c.b16 %v59, %v58
  %v65 = vpack.c.b16 %v61, %v60
  %v86 = vunpack.c.l.b16 %v23
  %v87 = vunpack.c.l.b16 %v24
  %v88 = vunpack.c.l.b16 %v25
  %v89 = vunpack.c.l.b16 %v26
  %v90 = vunpack.c.l.b16 %v27
  %v91 = vunpack.c.l.b16 %v28
  %v92 = vunpack.c.l.b16 %v29
  %v93 = vunpack.c.l.b16 %v30
  %v94 = vunpack.c.l.b16 %v31
  %v95 = vunpack.c.l.b16 %v32
  %v96 = vunpack.c.l.b16 %v33
  %v97 = vunpack.c.l.b16 %v34
  %v98 = vunpack.c.l.b16 %v35
  %v99 = vunpack.c.l.b16 %v36
  %v100 = vunpack.c.l.b16 %v37
  %v101 = vunpack.c.l.b16 %v38
  %v102 = vpack.c.b16 %v87, %v86
  %v103 = vpack.c.b16 %v89, %v88
  %v104 = vpack.c.b16 %v91, %v90
  %v105 = vpack.c.b16 %v93, %v92
  %v106 = vpack.c.b16 %v95, %v94
  %v107 = vpack.c.b16 %v97, %v96
  %v108 = vpack.c.b16 %v99, %v98
  %v109 = vpack.c.b16 %v101, %v100
  %118 = vmatprep.subr.bf16.mxu0 0
  %119 = vmatpush1.bf16.msra.mxu0 %v102
  %120 = vmatprep.subr.bf16.mxu0 0
  %121 = vmatpush1.bf16.msra.mxu0 %v103
  %122 = vmatprep.subr.bf16.mxu0 0
  %123 = vmatpush1.bf16.msra.mxu0 %v104
  %124 = vmatprep.subr.bf16.mxu0 0
  %125 = vmatpush1.bf16.msra.mxu0 %v105
  %126 = vmatprep.subr.bf16.mxu0 0
  %127 = vmatpush1.bf16.msra.mxu0 %v106
  %128 = vmatprep.subr.bf16.mxu0 0
  %129 = vmatpush1.bf16.msra.mxu0 %v107
  %130 = vmatprep.subr.bf16.mxu0 0
  %131 = vmatpush1.bf16.msra.mxu0 %v108
  %132 = vmatprep.subr.bf16.mxu0 0
  %133 = vmatpush1.bf16.msra.mxu0 %v109
  %134 = vmatprep.subr.bf16.mxu0 0
  %135 = vmatpush1.bf16.msra.mxu0 0
  %136 = vmatprep.subr.bf16.mxu0 0
  %137 = vmatpush1.bf16.msra.mxu0 0
  %138 = vmatprep.subr.bf16.mxu0 0
  %139 = vmatpush1.bf16.msra.mxu0 0
  %140 = vmatprep.subr.bf16.mxu0 0
  %141 = vmatpush1.bf16.msra.mxu0 0
  %142 = vmatprep.subr.bf16.mxu0 0
  %143 = vmatpush1.bf16.msra.mxu0 0
  %144 = vmatprep.subr.bf16.mxu0 0
  %145 = vmatpush1.bf16.msra.mxu0 0
  %146 = vmatprep.subr.bf16.mxu0 0
  %147 = vmatpush1.bf16.msra.mxu0 0
  %148 = vmatprep.subr.bf16.mxu0 0
  %149 = vmatpush1.bf16.msra.mxu0 0
  %150 = vmatprep.mubr.bf16.mxu0 0
  %151 = vmatmul.mubr.bf16.gmra.mrb[0].mxu0 %v62
  %v152 = vpop.f32.mrb[0].mxu0
  %v153 = vadd.f32 %v44, %v152
  %v154 = vpop.f32.mrb[0].mxu0
  %v155 = vpop.f32.mrb[0].mxu0
  %v156 = vadd.f32 %v44, %v155
  %v157 = vpop.f32.mrb[0].mxu0
  %158 = vmatprep.mubr.bf16.mxu0 0
  %159 = vmatmul.mubr.bf16.gmra.mrb[0].mxu0 %v63
  %v160 = vpop.f32.mrb[0].mxu0
  %v161 = vadd.f32 %v44, %v160
  %v162 = vpop.f32.mrb[0].mxu0
  %v163 = vpop.f32.mrb[0].mxu0
  %v164 = vadd.f32 %v44, %v163
  %v165 = vpop.f32.mrb[0].mxu0
  %166 = vmatprep.mubr.bf16.mxu0 0
  %167 = vmatmul.mubr.bf16.gmra.mrb[0].mxu0 %v64
  %v168 = vpop.f32.mrb[0].mxu0
  %v169 = vadd.f32 %v44, %v168
  %v170 = vpop.f32.mrb[0].mxu0
  %v171 = vpop.f32.mrb[0].mxu0
  %v172 = vadd.f32 %v44, %v171
  %v173 = vpop.f32.mrb[0].mxu0
  %174 = vmatprep.mubr.bf16.mxu0 0
  %175 = vmatmul.mubr.bf16.gmra.mrb[0].mxu0 %v65
  %v176 = vpop.f32.mrb[0].mxu0
  %v177 = vadd.f32 %v44, %v176
  %v178 = vpop.f32.mrb[0].mxu0
  %v179 = vpop.f32.mrb[0].mxu0
  %v180 = vadd.f32 %v44, %v179
  %v181 = vpop.f32.mrb[0].mxu0
  %182 = vdwg.mxu0
  %v183 = vmax.f32 %v153, 0.0
  %v184 = vmax.f32 %v156, 0.0
  %v185 = vmax.f32 %v161, 0.0
  %v186 = vmax.f32 %v164, 0.0
  %v187 = vmax.f32 %v169, 0.0
  %v188 = vmax.f32 %v172, 0.0
  %v189 = vmax.f32 %v177, 0.0
  %v190 = vmax.f32 %v180, 0.0
  %v191 = vpack.c.bf16 %v184, %v183
  %v192 = vpack.c.bf16 %v186, %v185
  %v193 = vpack.c.bf16 %v188, %v187
  %v194 = vpack.c.bf16 %v190, %v189
  %s195 = scalar_lea.vmem %s1, 64
  %v196 = vld [vmem:[%s195] sm:$0xf]
  %v197 = vld [vmem:[%s195 + $0x4] sm:$0xf]
  %v198 = vld [vmem:[%s195 + $0x8] sm:$0xf]
  %v199 = vld [vmem:[%s195 + $0xc] sm:$0xf]
  %v200 = vld [vmem:[%s195 + $0x10] sm:$0xf]
  %v201 = vld [vmem:[%s195 + $0x14] sm:$0xf]
  %v202 = vld [vmem:[%s195 + $0x18] sm:$0xf]
  %v203 = vld [vmem:[%s195 + $0x1c] sm:$0xf]
  %v204 = vld [vmem:[%s195 + $0x20] sm:$0xf]
  %v205 = vld [vmem:[%s195 + $0x24] sm:$0xf]
  %v206 = vld [vmem:[%s195 + $0x28] sm:$0xf]
  %v207 = vld [vmem:[%s195 + $0x2c] sm:$0xf]
  %v208 = vld [vmem:[%s195 + $0x30] sm:$0xf]
  %v209 = vld [vmem:[%s195 + $0x34] sm:$0xf]
  %v210 = vld [vmem:[%s195 + $0x38] sm:$0xf]
  %v211 = vld [vmem:[%s195 + $0x3c] sm:$0xf]
  %s212 = scalar_lea.vmem %s2, 1
  %v213 = vld [vmem:[%s212] sm:$0x1]
  %v215 = vlaneseq
  %v216 = vshrl.u32 %v215, 7
  %v217 = vsub.s32 0, %v216
  %v218 = vrot.slane %v213, %v217
  %v236 = vunpack.c.l.b16 %v196
  %v237 = vunpack.c.l.b16 %v197
  %v238 = vunpack.c.l.b16 %v198
  %v239 = vunpack.c.l.b16 %v199
  %v240 = vunpack.c.l.b16 %v200
  %v241 = vunpack.c.l.b16 %v201
  %v242 = vunpack.c.l.b16 %v202
  %v243 = vunpack.c.l.b16 %v203
  %v244 = vunpack.c.l.b16 %v204
  %v245 = vunpack.c.l.b16 %v205
  %v246 = vunpack.c.l.b16 %v206
  %v247 = vunpack.c.l.b16 %v207
  %v248 = vunpack.c.l.b16 %v208
  %v249 = vunpack.c.l.b16 %v209
  %v250 = vunpack.c.l.b16 %v210
  %v251 = vunpack.c.l.b16 %v211
  %v252 = vpack.c.b16 %v237, %v236
  %v253 = vpack.c.b16 %v239, %v238
  %v254 = vpack.c.b16 %v241, %v240
  %v255 = vpack.c.b16 %v243, %v242
  %v256 = vpack.c.b16 %v245, %v244
  %v257 = vpack.c.b16 %v247, %v246
  %v258 = vpack.c.b16 %v249, %v248
  %v259 = vpack.c.b16 %v251, %v250
  %268 = vmatprep.subr.bf16.mxu0 0
  %269 = vmatpush1.bf16.msra.mxu0 %v252
  %270 = vmatprep.subr.bf16.mxu0 0
  %271 = vmatpush1.bf16.msra.mxu0 %v253
  %272 = vmatprep.subr.bf16.mxu0 0
  %273 = vmatpush1.bf16.msra.mxu0 %v254
  %274 = vmatprep.subr.bf16.mxu0 0
  %275 = vmatpush1.bf16.msra.mxu0 %v255
  %276 = vmatprep.subr.bf16.mxu0 0
  %277 = vmatpush1.bf16.msra.mxu0 %v256
  %278 = vmatprep.subr.bf16.mxu0 0
  %279 = vmatpush1.bf16.msra.mxu0 %v257
  %280 = vmatprep.subr.bf16.mxu0 0
  %281 = vmatpush1.bf16.msra.mxu0 %v258
  %282 = vmatprep.subr.bf16.mxu0 0
  %283 = vmatpush1.bf16.msra.mxu0 %v259
  %284 = vmatprep.subr.bf16.mxu0 0
  %285 = vmatpush1.bf16.msra.mxu0 0
  %286 = vmatprep.subr.bf16.mxu0 0
  %287 = vmatpush1.bf16.msra.mxu0 0
  %288 = vmatprep.subr.bf16.mxu0 0
  %289 = vmatpush1.bf16.msra.mxu0 0
  %290 = vmatprep.subr.bf16.mxu0 0
  %291 = vmatpush1.bf16.msra.mxu0 0
  %292 = vmatprep.subr.bf16.mxu0 0
  %293 = vmatpush1.bf16.msra.mxu0 0
  %294 = vmatprep.subr.bf16.mxu0 0
  %295 = vmatpush1.bf16.msra.mxu0 0
  %296 = vmatprep.subr.bf16.mxu0 0
  %297 = vmatpush1.bf16.msra.mxu0 0
  %298 = vmatprep.subr.bf16.mxu0 0
  %299 = vmatpush1.bf16.msra.mxu0 0
  %300 = vmatprep.mubr.bf16.mxu0 0
  %301 = vmatmul.mubr.bf16.gmra.mrb[0].mxu0 %v191
  %v302 = vpop.f32.mrb[0].mxu0
  %v303 = vadd.f32 %v218, %v302
  %v304 = vpop.f32.mrb[0].mxu0
  %v305 = vpop.f32.mrb[0].mxu0
  %v306 = vadd.f32 %v218, %v305
  %v307 = vpop.f32.mrb[0].mxu0
  %308 = vmatprep.mubr.bf16.mxu0 0
  %309 = vmatmul.mubr.bf16.gmra.mrb[0].mxu0 %v192
  %v310 = vpop.f32.mrb[0].mxu0
  %v311 = vadd.f32 %v218, %v310
  %v312 = vpop.f32.mrb[0].mxu0
  %v313 = vpop.f32.mrb[0].mxu0
  %v314 = vadd.f32 %v218, %v313
  %v315 = vpop.f32.mrb[0].mxu0
  %316 = vmatprep.mubr.bf16.mxu0 0
  %317 = vmatmul.mubr.bf16.gmra.mrb[0].mxu0 %v193
  %v318 = vpop.f32.mrb[0].mxu0
  %v319 = vadd.f32 %v218, %v318
  %v320 = vpop.f32.mrb[0].mxu0
  %v321 = vpop.f32.mrb[0].mxu0
  %v322 = vadd.f32 %v218, %v321
  %v323 = vpop.f32.mrb[0].mxu0
  %324 = vmatprep.mubr.bf16.mxu0 0
  %325 = vmatmul.mubr.bf16.gmra.mrb[0].mxu0 %v194
  %v326 = vpop.f32.mrb[0].mxu0
  %v327 = vadd.f32 %v218, %v326
  %v328 = vpop.f32.mrb[0].mxu0
  %v329 = vpop.f32.mrb[0].mxu0
  %v330 = vadd.f32 %v218, %v329
  %v331 = vpop.f32.mrb[0].mxu0
  %332 = vdwg.mxu0
  %v333 = vmax.f32 %v303, 0.0
  %v334 = vmax.f32 %v306, 0.0
  %v335 = vmax.f32 %v311, 0.0
  %v336 = vmax.f32 %v314, 0.0
  %v337 = vmax.f32 %v319, 0.0
  %v338 = vmax.f32 %v322, 0.0
  %v339 = vmax.f32 %v327, 0.0
  %v340 = vmax.f32 %v330, 0.0
  %v341 = vpack.c.bf16 %v334, %v333
  %v342 = vpack.c.bf16 %v336, %v335
  %v343 = vpack.c.bf16 %v338, %v337
  %v344 = vpack.c.bf16 %v340, %v339
  %s345 = scalar_lea.vmem %s1, 128
  %v346 = vld [vmem:[%s345] sm:$0xf]
  %v347 = vld [vmem:[%s345 + $0x4] sm:$0xf]
  %v348 = vld [vmem:[%s345 + $0x8] sm:$0xf]
  %v349 = vld [vmem:[%s345 + $0xc] sm:$0xf]
  %v350 = vld [vmem:[%s345 + $0x10] sm:$0xf]
  %v351 = vld [vmem:[%s345 + $0x14] sm:$0xf]
  %v352 = vld [vmem:[%s345 + $0x18] sm:$0xf]
  %v353 = vld [vmem:[%s345 + $0x1c] sm:$0xf]
  %v354 = vld [vmem:[%s345 + $0x20] sm:$0xf]
  %v355 = vld [vmem:[%s345 + $0x24] sm:$0xf]
  %v356 = vld [vmem:[%s345 + $0x28] sm:$0xf]
  %v357 = vld [vmem:[%s345 + $0x2c] sm:$0xf]
  %v358 = vld [vmem:[%s345 + $0x30] sm:$0xf]
  %v359 = vld [vmem:[%s345 + $0x34] sm:$0xf]
  %v360 = vld [vmem:[%s345 + $0x38] sm:$0xf]
  %v361 = vld [vmem:[%s345 + $0x3c] sm:$0xf]
  %s362 = scalar_lea.vmem %s2, 2
  %v363 = vld [vmem:[%s362] sm:$0x1]
  %v365 = vlaneseq
  %v366 = vshrl.u32 %v365, 7
  %v367 = vsub.s32 0, %v366
  %v368 = vrot.slane %v363, %v367
  %v386 = vunpack.c.l.b16 %v346
  %v387 = vunpack.c.l.b16 %v347
  %v388 = vunpack.c.l.b16 %v348
  %v389 = vunpack.c.l.b16 %v349
  %v390 = vunpack.c.l.b16 %v350
  %v391 = vunpack.c.l.b16 %v351
  %v392 = vunpack.c.l.b16 %v352
  %v393 = vunpack.c.l.b16 %v353
  %v394 = vunpack.c.l.b16 %v354
  %v395 = vunpack.c.l.b16 %v355
  %v396 = vunpack.c.l.b16 %v356
  %v397 = vunpack.c.l.b16 %v357
  %v398 = vunpack.c.l.b16 %v358
  %v399 = vunpack.c.l.b16 %v359
  %v400 = vunpack.c.l.b16 %v360
  %v401 = vunpack.c.l.b16 %v361
  %v402 = vpack.c.b16 %v387, %v386
  %v403 = vpack.c.b16 %v389, %v388
  %v404 = vpack.c.b16 %v391, %v390
  %v405 = vpack.c.b16 %v393, %v392
  %v406 = vpack.c.b16 %v395, %v394
  %v407 = vpack.c.b16 %v397, %v396
  %v408 = vpack.c.b16 %v399, %v398
  %v409 = vpack.c.b16 %v401, %v400
  %418 = vmatprep.subr.bf16.mxu0 0
  %419 = vmatpush1.bf16.msra.mxu0 %v402
  %420 = vmatprep.subr.bf16.mxu0 0
  %421 = vmatpush1.bf16.msra.mxu0 %v403
  %422 = vmatprep.subr.bf16.mxu0 0
  %423 = vmatpush1.bf16.msra.mxu0 %v404
  %424 = vmatprep.subr.bf16.mxu0 0
  %425 = vmatpush1.bf16.msra.mxu0 %v405
  %426 = vmatprep.subr.bf16.mxu0 0
  %427 = vmatpush1.bf16.msra.mxu0 %v406
  %428 = vmatprep.subr.bf16.mxu0 0
  %429 = vmatpush1.bf16.msra.mxu0 %v407
  %430 = vmatprep.subr.bf16.mxu0 0
  %431 = vmatpush1.bf16.msra.mxu0 %v408
  %432 = vmatprep.subr.bf16.mxu0 0
  %433 = vmatpush1.bf16.msra.mxu0 %v409
  %434 = vmatprep.subr.bf16.mxu0 0
  %435 = vmatpush1.bf16.msra.mxu0 0
  %436 = vmatprep.subr.bf16.mxu0 0
  %437 = vmatpush1.bf16.msra.mxu0 0
  %438 = vmatprep.subr.bf16.mxu0 0
  %439 = vmatpush1.bf16.msra.mxu0 0
  %440 = vmatprep.subr.bf16.mxu0 0
  %441 = vmatpush1.bf16.msra.mxu0 0
  %442 = vmatprep.subr.bf16.mxu0 0
  %443 = vmatpush1.bf16.msra.mxu0 0
  %444 = vmatprep.subr.bf16.mxu0 0
  %445 = vmatpush1.bf16.msra.mxu0 0
  %446 = vmatprep.subr.bf16.mxu0 0
  %447 = vmatpush1.bf16.msra.mxu0 0
  %448 = vmatprep.subr.bf16.mxu0 0
  %449 = vmatpush1.bf16.msra.mxu0 0
  %450 = vmatprep.mubr.bf16.mxu0 0
  %451 = vmatmul.mubr.bf16.gmra.mrb[0].mxu0 %v341
  %v452 = vpop.f32.mrb[0].mxu0
  %v453 = vadd.f32 %v368, %v452
  %v454 = vpop.f32.mrb[0].mxu0
  %v455 = vpop.f32.mrb[0].mxu0
  %v456 = vadd.f32 %v368, %v455
  %v457 = vpop.f32.mrb[0].mxu0
  %458 = vmatprep.mubr.bf16.mxu0 0
  %459 = vmatmul.mubr.bf16.gmra.mrb[0].mxu0 %v342
  %v460 = vpop.f32.mrb[0].mxu0
  %v461 = vadd.f32 %v368, %v460
  %v462 = vpop.f32.mrb[0].mxu0
  %v463 = vpop.f32.mrb[0].mxu0
  %v464 = vadd.f32 %v368, %v463
  %v465 = vpop.f32.mrb[0].mxu0
  %466 = vmatprep.mubr.bf16.mxu0 0
  %467 = vmatmul.mubr.bf16.gmra.mrb[0].mxu0 %v343
  %v468 = vpop.f32.mrb[0].mxu0
  %v469 = vadd.f32 %v368, %v468
  %v470 = vpop.f32.mrb[0].mxu0
  %v471 = vpop.f32.mrb[0].mxu0
  %v472 = vadd.f32 %v368, %v471
  %v473 = vpop.f32.mrb[0].mxu0
  %474 = vmatprep.mubr.bf16.mxu0 0
  %475 = vmatmul.mubr.bf16.gmra.mrb[0].mxu0 %v344
  %v476 = vpop.f32.mrb[0].mxu0
  %v477 = vadd.f32 %v368, %v476
  %v478 = vpop.f32.mrb[0].mxu0
  %v479 = vpop.f32.mrb[0].mxu0
  %v480 = vadd.f32 %v368, %v479
  %v481 = vpop.f32.mrb[0].mxu0
  %482 = vdwg.mxu0
  %v483 = vmax.f32 %v453, 0.0
  %v484 = vmax.f32 %v456, 0.0
  %v485 = vmax.f32 %v461, 0.0
  %v486 = vmax.f32 %v464, 0.0
  %v487 = vmax.f32 %v469, 0.0
  %v488 = vmax.f32 %v472, 0.0
  %v489 = vmax.f32 %v477, 0.0
  %v490 = vmax.f32 %v480, 0.0
  %v491 = vpack.c.bf16 %v484, %v483
  %v492 = vpack.c.bf16 %v486, %v485
  %v493 = vpack.c.bf16 %v488, %v487
  %v494 = vpack.c.bf16 %v490, %v489
  %v499 = vunpack.c.l.b16 %v491
  %v500 = vunpack.c.h.b16 %v491
  %v501 = vunpack.c.l.b16 %v492
  %v502 = vunpack.c.h.b16 %v492
  %v503 = vunpack.c.l.b16 %v493
  %v504 = vunpack.c.h.b16 %v493
  %v505 = vunpack.c.l.b16 %v494
  %v506 = vunpack.c.h.b16 %v494
  %v507 = vpack.c.b16 %v499, %v499
  %v508 = vpack.c.b16 %v500, %v500
  %v509 = vpack.c.b16 %v501, %v501
  %v510 = vpack.c.b16 %v502, %v502
  %v511 = vpack.c.b16 %v503, %v503
  %v512 = vpack.c.b16 %v504, %v504
  %v513 = vpack.c.b16 %v505, %v505
  %v514 = vpack.c.b16 %v506, %v506
  %523 = vst [vmem:[%s3] sm:$0xf] %v507
  %524 = vst [vmem:[%s3 + $0x4] sm:$0xf] %v508
  %525 = vst [vmem:[%s3 + $0x8] sm:$0xf] %v509
  %526 = vst [vmem:[%s3 + $0xc] sm:$0xf] %v510
  %527 = vst [vmem:[%s3 + $0x10] sm:$0xf] %v511
  %528 = vst [vmem:[%s3 + $0x14] sm:$0xf] %v512
  %529 = vst [vmem:[%s3 + $0x18] sm:$0xf] %v513
  %530 = vst [vmem:[%s3 + $0x1c] sm:$0xf] %v514
  // Predicated region
  $region14: #{assanet_encoder_forward.15} parent=0 // pred_check
    _
  $region15: #{assanet_encoder_forward.15} parent=0 // pred_check_branch
    %532 = sbr.rel (0) target = $region17
  $region16: #{assanet_encoder_forward.15} parent=0 // pred_region
    _
  $region17: #{assanet_encoder_forward.15} parent=0 // pred_fallthru
    _
  // Predicated region
  $region18: #{assanet_encoder_forward.15} parent=0 // pred_check
    _
  $region19: #{assanet_encoder_forward.15} parent=0 // pred_check_branch
    %534 = sbr.rel (0) target = $region21
  $region20: #{assanet_encoder_forward.15} parent=0 // pred_region
    _
  $region21: #{assanet_encoder_forward.15} parent=0 // pred_fallthru
    _

// kernel: assanet_encoder_forward.16
$region0: #{assanet_encoder_forward.16}
  #allocation0 [shape = 'u32[]', space=smem, size = 0x4, offset = 0x4, fixed_abs, tag = 'smem constant byte address 0x4 - core index']
  #allocation1 [shape = 'u32[144,128]{1,0:T(1,128)}', space=vmem, size = 0x12000, scoped, tag = 'internal scratch']
  %s0 = inlined_call_operand.vmem [shape: bf16[2,32,128], index: 0, kind: input, shape index: {}]
  %s1 = inlined_call_operand.vmem [shape: s32[2,32,8], index: 1, kind: input, shape index: {}]
  %s2 = inlined_call_operand.vmem [shape: bf16[2,32,128], index: 2, kind: output, shape index: {}]
  %s3 = sld [smem:[#allocation0]]
  $region41: #{assanet_encoder_forward.16} parent=0
    _
  %s5 = ssub.s32 1, %s3
  %s6 = scalar_select 0, %s5, %s3
  loop: start=0, step=1, limit=4
  $region2: #{assanet_encoder_forward.16} parent=0 // loop_pre_header
    _
  $region3: #{assanet_encoder_forward.16} parent=0 // loop_header
    %s8 = sphi 0, %s12
    %p9 = scmp.ge.s32.totalorder %s8, 4
    %s15 = sphi 0, %s27
    %s16 = sphi 0, %s23
    %s17 = sphi 0, %s15
    %s18 = sphi 0, %s16
    %s19 = sphi 0, %s17
    %s20 = sphi 0, %s18
    %s30 = sphi 0, %s32
    %s33 = sphi 0, %s30
    %s34 = sphi 0, %s33
    %s50 = sphi 0, %s34
    %s58 = sphi 0, %s60
    %s61 = sphi 0, %s58
    %s62 = sphi 0, %s61
    %s78 = sphi 0, %s62
    %s86 = sphi 0, %s88
    %s89 = sphi 0, %s86
    %s90 = sphi 0, %s89
    %s106 = sphi 0, %s90
  $region4: #{assanet_encoder_forward.16} parent=0 // loop_header_branch
    %11 = sbr.rel (%p9) target = $region8
  $region5: #{assanet_encoder_forward.16} parent=0 // loop_body
    %s13 = ssub.s32 %s8, 1
    %s14 = ssub.s32 %s8, 2
    %s21 = sadd.s32 1, %s16
    %p22 = scmp.ge.s32.totalorder %s21, 1
    %s23 = scalar_select %p22, 0, %s21
    %s24 = sadd.s32 1, %s15
    %s25 = scalar_select %p22, %s24, %s15
    %p26 = scmp.ge.s32.totalorder %s25, 2
    %s27 = scalar_select %p26, 0, %s25
    %s28 = ssub.s32 %s15, %s27
    %p29 = scmp.eq.s32.totalorder %s28, 0
    %s31 = sadd.s32 %s30, 1
    %s32 = scalar_select %p29, %s30, %s31
    %p35 = pneg %p29
    %p36 = scmp.eq.s32.totalorder %s8, 1
    %p37 = por %p35, %p36
    %p38 = scmp.ne.s32.totalorder %s30, %s33
    %p39 = scmp.eq.s32.totalorder %s8, 0
    %p40 = por %p38, %p39
    %p41 = scmp.ne.s32.totalorder %s30, %s33
    %p42 = scmp.eq.s32.totalorder %s13, 1
    %p43 = por %p41, %p42
    %p44 = scmp.ne.s32.totalorder %s33, %s34
    %p45 = scmp.eq.s32.totalorder %s13, 0
    %p46 = por %p44, %p45
    %p47 = scmp.ne.s32.totalorder %s33, %s34
    %p48 = scmp.eq.s32.totalorder %s14, 1
    %p49 = por %p47, %p48
    %p51 = scmp.ne.s32.totalorder %s34, %s50
    %p52 = scmp.eq.s32.totalorder %s14, 0
    %p53 = por %p51, %p52
    %s54 = ssub.s32 %s15, %s27
    %s55 = ssub.s32 %s16, %s23
    %s56 = sor.u32 %s54, %s55
    %p57 = scmp.eq.s32.totalorder %s56, 0
    %s59 = sadd.s32 %s58, 1
    %s60 = scalar_select %p57, %s58, %s59
    %p63 = pneg %p57
    %p64 = scmp.eq.s32.totalorder %s8, 1
    %p65 = por %p63, %p64
    %p66 = scmp.ne.s32.totalorder %s58, %s61
    %p67 = scmp.eq.s32.totalorder %s8, 0
    %p68 = por %p66, %p67
    %p69 = scmp.ne.s32.totalorder %s58, %s61
    %p70 = scmp.eq.s32.totalorder %s13, 1
    %p71 = por %p69, %p70
    %p72 = scmp.ne.s32.totalorder %s61, %s62
    %p73 = scmp.eq.s32.totalorder %s13, 0
    %p74 = por %p72, %p73
    %p75 = scmp.ne.s32.totalorder %s61, %s62
    %p76 = scmp.eq.s32.totalorder %s14, 1
    %p77 = por %p75, %p76
    %p79 = scmp.ne.s32.totalorder %s62, %s78
    %p80 = scmp.eq.s32.totalorder %s14, 0
    %p81 = por %p79, %p80
    %s82 = ssub.s32 %s15, %s27
    %s83 = ssub.s32 %s16, %s23
    %s84 = sor.u32 %s82, %s83
    %p85 = scmp.eq.s32.totalorder %s84, 0
    %s87 = sadd.s32 %s86, 1
    %s88 = scalar_select %p85, %s86, %s87
    %p91 = pneg %p85
    %p92 = scmp.eq.s32.totalorder %s8, 1
    %p93 = por %p91, %p92
    %p94 = scmp.ne.s32.totalorder %s86, %s89
    %p95 = scmp.eq.s32.totalorder %s8, 0
    %p96 = por %p94, %p95
    %p97 = scmp.ne.s32.totalorder %s86, %s89
    %p98 = scmp.eq.s32.totalorder %s13, 1
    %p99 = por %p97, %p98
    %p100 = scmp.ne.s32.totalorder %s89, %s90
    %p101 = scmp.eq.s32.totalorder %s13, 0
    %p102 = por %p100, %p101
    %p103 = scmp.ne.s32.totalorder %s89, %s90
    %p104 = scmp.eq.s32.totalorder %s14, 1
    %p105 = por %p103, %p104
    %p107 = scmp.ne.s32.totalorder %s90, %s106
    %p108 = scmp.eq.s32.totalorder %s14, 0
    %p109 = por %p107, %p108
    %p110 = scmp.le.s32.totalorder 1, %s8
    %p111 = scmp.lt.s32.totalorder %s8, 3
    %p112 = pnand %p110, %p111
    %p113 = pneg %p112
    // Predicated region
    $region9: #{assanet_encoder_forward.16} parent=5 // pred_check
      _
    $region10: #{assanet_encoder_forward.16} parent=5 // pred_check_branch
      %115 = sbr.rel (%p112) target = $region12
    $region11: #{assanet_encoder_forward.16} parent=5 // pred_region
      %s116 = ssub.s32 %s8, 1
    $region12: #{assanet_encoder_forward.16} parent=5 // pred_fallthru
      _
    %p117 = scmp.lt.s32.totalorder %s8, 2
    // Predicated region
    $region13: #{assanet_encoder_forward.16} parent=5 // pred_check
      %p118 = pneg %p117
    $region14: #{assanet_encoder_forward.16} parent=5 // pred_check_branch
      %120 = sbr.rel (%p118) target = $region16
    $region15: #{assanet_encoder_forward.16} parent=5 // pred_region
      // Predicated region
      $region17: #{assanet_encoder_forward.16} parent=15 // pred_check
        %p121 = pneg %p40
      $region18: #{assanet_encoder_forward.16} parent=15 // pred_check_branch
        %123 = sbr.rel (%p121) target = $region20
      $region19: #{assanet_encoder_forward.16} parent=15 // pred_region
        %p124 = scmp.lt.s32.totalorder %s15, 1
        %s125 = scalar_select %p124, %s15, 1
        %s126 = smul.addr %s125, 4
        %s127 = smul.addr %s126, 4
        %s128 = scalar_lea.vmem %s0, %s127
      $region20: #{assanet_encoder_forward.16} parent=15 // pred_fallthru
        _
      // Predicated region
      $region21: #{assanet_encoder_forward.16} parent=15 // pred_check
        %p129 = pneg %p68
      $region22: #{assanet_encoder_forward.16} parent=15 // pred_check_branch
        %131 = sbr.rel (%p129) target = $region24
      $region23: #{assanet_encoder_forward.16} parent=15 // pred_region
        %s132 = smul.u32 4, %s16
        %p133 = scmp.lt.s32.totalorder %s15, 1
        %s134 = scalar_select %p133, %s15, 1
        %p135 = scmp.lt.s32.totalorder %s132, 3
        %s136 = scalar_select %p135, %s132, 3
        %s137 = smul.addr %s134, 4
        %s138 = sadd.s32 %s136, %s137
        %s139 = smul.addr %s138, 8
        %s140 = scalar_lea.vmem %s1, %s139
        %s141 = smul.u32 4, %s16
      $region24: #{assanet_encoder_forward.16} parent=15 // pred_fallthru
        _
    $region16: #{assanet_encoder_forward.16} parent=5 // pred_fallthru
      _
    %p142 = scmp.le.s32.totalorder 1, %s8
    %p143 = scmp.lt.s32.totalorder %s8, 3
    %p144 = pnand %p142, %p143
    %p145 = pneg %p144
    // Predicated region
    $region25: #{assanet_encoder_forward.16} parent=5 // pred_check
      _
    $region26: #{assanet_encoder_forward.16} parent=5 // pred_check_branch
      %147 = sbr.rel (%p144) target = $region28
    $region27: #{assanet_encoder_forward.16} parent=5 // pred_region
      %s148 = ssub.s32 %s8, 1
      %p149 = scmp.lt.s32.totalorder %s17, 1
      %s150 = scalar_select %p149, %s17, 1
      %s151 = smul.addr %s150, 4
      %s152 = smul.addr %s151, 4
      %s153 = scalar_lea.vmem %s0, %s152
      %p154 = pneg %p46
      %p155 = pneg %p43
      %s156 = smul.u32 4, %s18
      %p157 = scmp.lt.s32.totalorder %s17, 1
      %s158 = scalar_select %p157, %s17, 1
      %p159 = scmp.lt.s32.totalorder %s156, 3
      %s160 = scalar_select %p159, %s156, 3
      %s161 = smul.addr %s158, 4
      %s162 = sadd.s32 %s160, %s161
      %s163 = smul.addr %s162, 8
      %s164 = scalar_lea.vmem %s1, %s163
      %p165 = pneg %p74
      %p166 = pneg %p71
      %p167 = pneg %p102
      %p168 = pneg %p99
      %s169 = smul.u32 4, %s18
      %p170 = scmp.lt.s32.totalorder %s17, 1
      %s171 = scalar_select %p170, %s17, 1
      %p172 = scmp.lt.s32.totalorder %s169, 3
      %s173 = scalar_select %p172, %s169, 3
      %s174 = smul.addr %s171, 4
      %s175 = sadd.s32 %s173, %s174
      %s176 = smul.addr %s175, 4
      %s177 = scalar_lea.vmem %s2, %s176
      %p178 = scmp.lt.s32.totalorder %s17, 1
      %s179 = scalar_select %p178, %s17, 1
      %s180 = smul.addr %s179, 4
      %s181 = smul.addr %s180, 4
      %s182 = scalar_lea.vmem %s0, %s181
      %s183 = smul.u32 4, %s18
      %p184 = scmp.lt.s32.totalorder %s17, 1
      %s185 = scalar_select %p184, %s17, 1
      %p186 = scmp.lt.s32.totalorder %s183, 3
      %s187 = scalar_select %p186, %s183, 3
      %s188 = smul.addr %s185, 4
      %s189 = sadd.s32 %s187, %s188
      %s190 = smul.addr %s189, 8
      %s191 = scalar_lea.vmem %s1, %s190
      %s192 = smul.u32 4, %s18
      %s193 = smul.u32 4, %s18
      %p194 = scmp.lt.s32.totalorder %s17, 1
      %s195 = scalar_select %p194, %s17, 1
      %p196 = scmp.lt.s32.totalorder %s193, 3
      %s197 = scalar_select %p196, %s193, 3
      %s198 = smul.addr %s195, 4
      %s199 = sadd.s32 %s197, %s198
      %s200 = smul.addr %s199, 4
      %s201 = scalar_lea.vmem %s2, %s200
      %s202 = smul.u32 4, %s18
      %v203 = vld [vmem:[%s182] sm:$0xf]
      %v204 = vld [vmem:[%s182 + $0x4] sm:$0xf]
      %v205 = vld [vmem:[%s182 + $0x8] sm:$0xf]
      %v206 = vld [vmem:[%s182 + $0xc] sm:$0xf]
      %v207 = vunpack.c.l.bf16 %v203
      %v208 = vunpack.c.l.bf16 %v204
      %v209 = vunpack.c.l.bf16 %v205
      %v210 = vunpack.c.l.bf16 %v206
      %v211 = vld [vmem:[%s191] sm:$0xff]
      %v212 = vld [vmem:[%s191 + $0x8] sm:$0xff]
      %v213 = vld [vmem:[%s191 + $0x10] sm:$0xff]
      %v214 = vld [vmem:[%s191 + $0x18] sm:$0xff]
      %v215 = vlaneseq
      %v216 = vand.u32 %v215, 127
      %217 = vset.pattern.permute.xlu0 0
      %218 = vperm.xlu0 %217, %v211
      %v219 = vpop.permute.xlu0 %218
      %220 = vset.pattern.permute.xlu0 0
      %221 = vperm.xlu0 %220, %v212
      %v222 = vpop.permute.xlu0 %221
      %223 = vset.pattern.permute.xlu0 0
      %224 = vperm.xlu0 %223, %v213
      %v225 = vpop.permute.xlu0 %224
      %226 = vset.pattern.permute.xlu0 0
      %227 = vperm.xlu0 %226, %v214
      %v228 = vpop.permute.xlu0 %227
      %vm229 = vcmp.eq.s32.totalorder %v216, %v219
      %vm230 = vcmp.eq.s32.totalorder %v216, %v222
      %vm231 = vcmp.eq.s32.totalorder %v216, %v225
      %vm232 = vcmp.eq.s32.totalorder %v216, %v228
      %v233 = vsel %vm229, 1, 0
      %v234 = vsel %vm230, 1, 0
      %v235 = vsel %vm231, 1, 0
      %v236 = vsel %vm232, 1, 0
      %v237 = vcvt.s32.f32 %v233
      %v238 = vcvt.s32.f32 %v234
      %v239 = vcvt.s32.f32 %v235
      %v240 = vcvt.s32.f32 %v236
      %vm241 = vcmask 261120
      %v243 = vsel %vm241, %v237, 0
      %v246 = vsel %vm241, %v238, 0
      %v249 = vsel %vm241, %v239, 0
      %v252 = vsel %vm241, %v240, 0
      %254 = vmatprep.subr.mxu0 0.0
      %255 = vmatpush1.msra.mxu0 %v207
      %256 = vmatprep.subr.mxu0 0.0
      %257 = vmatpush1.msra.mxu0 %v208
      %258 = vmatprep.subr.mxu0 0.0
      %259 = vmatpush1.msra.mxu0 %v209
      %260 = vmatprep.subr.mxu0 0.0
      %261 = vmatpush1.msra.mxu0 %v210
      %262 = vmatprep.subr.mxu0 0.0
      %263 = vmatpush1.msra.mxu0 0.0
      %264 = vmatprep.subr.mxu0 0.0
      %265 = vmatpush1.msra.mxu0 0.0
      %266 = vmatprep.subr.mxu0 0.0
      %267 = vmatpush1.msra.mxu0 0.0
      %268 = vmatprep.subr.mxu0 0.0
      %269 = vmatpush1.msra.mxu0 0.0
      %270 = vmatprep.subr.mxu0 0.0
      %271 = vmatpush1.msra.mxu0 0.0
      %272 = vmatprep.subr.mxu0 0.0
      %273 = vmatpush1.msra.mxu0 0.0
      %274 = vmatprep.subr.mxu0 0.0
      %275 = vmatpush1.msra.mxu0 0.0
      %276 = vmatprep.subr.mxu0 0.0
      %277 = vmatpush1.msra.mxu0 0.0
      %278 = vmatprep.subr.mxu0 0.0
      %279 = vmatpush1.msra.mxu0 0.0
      %280 = vmatprep.subr.mxu0 0.0
      %281 = vmatpush1.msra.mxu0 0.0
      %282 = vmatprep.subr.mxu0 0.0
      %283 = vmatpush1.msra.mxu0 0.0
      %284 = vmatprep.subr.mxu0 0.0
      %285 = vmatpush1.msra.mxu0 0.0
      %286 = vmatprep.subr.mxu0 0.0
      %287 = vmatpush1.msra.mxu0 0.0
      %288 = vmatprep.subr.mxu0 0.0
      %289 = vmatpush1.msra.mxu0 0.0
      %290 = vmatprep.subr.mxu0 0.0
      %291 = vmatpush1.msra.mxu0 0.0
      %292 = vmatprep.subr.mxu0 0.0
      %293 = vmatpush1.msra.mxu0 0.0
      %294 = vmatprep.subr.mxu0 0.0
      %295 = vmatpush1.msra.mxu0 0.0
      %296 = vmatprep.subr.mxu0 0.0
      %297 = vmatpush1.msra.mxu0 0.0
      %298 = vmatprep.subr.mxu0 0.0
      %299 = vmatpush1.msra.mxu0 0.0
      %300 = vmatprep.subr.mxu0 0.0
      %301 = vmatpush1.msra.mxu0 0.0
      %302 = vmatprep.subr.mxu0 0.0
      %303 = vmatpush1.msra.mxu0 0.0
      %304 = vmatprep.subr.mxu0 0.0
      %305 = vmatpush1.msra.mxu0 0.0
      %306 = vmatprep.subr.mxu0 0.0
      %307 = vmatpush1.msra.mxu0 0.0
      %308 = vmatprep.subr.mxu0 0.0
      %309 = vmatpush1.msra.mxu0 0.0
      %310 = vmatprep.subr.mxu0 0.0
      %311 = vmatpush1.msra.mxu0 0.0
      %312 = vmatprep.subr.mxu0 0.0
      %313 = vmatpush1.msra.mxu0 0.0
      %314 = vmatprep.subr.mxu0 0.0
      %315 = vmatpush1.msra.mxu0 0.0
      %316 = vmatprep.subr.mxu0 0.0
      %317 = vmatpush1.msra.mxu0 0.0
      %318 = vmatprep.mubr.f32.mxu0 0.0
      %319 = vmatmul.mubr.f32.gmra.mrb[0].mxu0 %v243
      %v320 = vpop.f32.mrb[0].mxu0
      %v321 = vadd.f32 0.0, %v320
      %v322 = vpop.f32.mrb[0].mxu0
      %323 = vmatprep.mubr.f32.mxu0 0.0
      %324 = vmatmul.mubr.f32.gmra.mrb[0].mxu0 %v246
      %v325 = vpop.f32.mrb[0].mxu0
      %v326 = vadd.f32 0.0, %v325
      %v327 = vpop.f32.mrb[0].mxu0
      %328 = vmatprep.mubr.f32.mxu0 0.0
      %329 = vmatmul.mubr.f32.gmra.mrb[0].mxu0 %v249
      %v330 = vpop.f32.mrb[0].mxu0
      %v331 = vadd.f32 0.0, %v330
      %v332 = vpop.f32.mrb[0].mxu0
      %333 = vmatprep.mubr.f32.mxu0 0.0
      %334 = vmatmul.mubr.f32.gmra.mrb[0].mxu0 %v252
      %v335 = vpop.f32.mrb[0].mxu0
      %v336 = vadd.f32 0.0, %v335
      %v337 = vpop.f32.mrb[0].mxu0
      %338 = vdwg.mxu0
      %339 = vset.pattern.permute.xlu0 1
      %340 = vperm.xlu0 %339, %v211
      %v341 = vpop.permute.xlu0 %340
      %342 = vset.pattern.permute.xlu0 1
      %343 = vperm.xlu0 %342, %v212
      %v344 = vpop.permute.xlu0 %343
      %345 = vset.pattern.permute.xlu0 1
      %346 = vperm.xlu0 %345, %v213
      %v347 = vpop.permute.xlu0 %346
      %348 = vset.pattern.permute.xlu0 1
      %349 = vperm.xlu0 %348, %v214
      %v350 = vpop.permute.xlu0 %349
      %vm351 = vcmp.eq.s32.totalorder %v216, %v341
      %vm352 = vcmp.eq.s32.totalorder %v216, %v344
      %vm353 = vcmp.eq.s32.totalorder %v216, %v347
      %vm354 = vcmp.eq.s32.totalorder %v216, %v350
      %v355 = vsel %vm351, 1, 0
      %v356 = vsel %vm352, 1, 0
      %v357 = vsel %vm353, 1, 0
      %v358 = vsel %vm354, 1, 0
      %v359 = vcvt.s32.f32 %v355
      %v360 = vcvt.s32.f32 %v356
      %v361 = vcvt.s32.f32 %v357
      %v362 = vcvt.s32.f32 %v358
      %v364 = vsel %vm241, %v359, 0
      %v367 = vsel %vm241, %v360, 0
      %v370 = vsel %vm241, %v361, 0
      %v373 = vsel %vm241, %v362, 0
      %375 = vmatprep.subr.mxu0 0.0
      %376 = vmatpush1.msra.mxu0 %v207
      %377 = vmatprep.subr.mxu0 0.0
      %378 = vmatpush1.msra.mxu0 %v208
      %379 = vmatprep.subr.mxu0 0.0
      %380 = vmatpush1.msra.mxu0 %v209
      %381 = vmatprep.subr.mxu0 0.0
      %382 = vmatpush1.msra.mxu0 %v210
      %383 = vmatprep.subr.mxu0 0.0
      %384 = vmatpush1.msra.mxu0 0.0
      %385 = vmatprep.subr.mxu0 0.0
      %386 = vmatpush1.msra.mxu0 0.0
      %387 = vmatprep.subr.mxu0 0.0
      %388 = vmatpush1.msra.mxu0 0.0
      %389 = vmatprep.subr.mxu0 0.0
      %390 = vmatpush1.msra.mxu0 0.0
      %391 = vmatprep.subr.mxu0 0.0
      %392 = vmatpush1.msra.mxu0 0.0
      %393 = vmatprep.subr.mxu0 0.0
      %394 = vmatpush1.msra.mxu0 0.0
      %395 = vmatprep.subr.mxu0 0.0
      %396 = vmatpush1.msra.mxu0 0.0
      %397 = vmatprep.subr.mxu0 0.0
      %398 = vmatpush1.msra.mxu0 0.0
      %399 = vmatprep.subr.mxu0 0.0
      %400 = vmatpush1.msra.mxu0 0.0
      %401 = vmatprep.subr.mxu0 0.0
      %402 = vmatpush1.msra.mxu0 0.0
      %403 = vmatprep.subr.mxu0 0.0
      %404 = vmatpush1.msra.mxu0 0.0
      %405 = vmatprep.subr.mxu0 0.0
      %406 = vmatpush1.msra.mxu0 0.0
      %407 = vmatprep.subr.mxu0 0.0
      %408 = vmatpush1.msra.mxu0 0.0
      %409 = vmatprep.subr.mxu0 0.0
      %410 = vmatpush1.msra.mxu0 0.0
      %411 = vmatprep.subr.mxu0 0.0
      %412 = vmatpush1.msra.mxu0 0.0
      %413 = vmatprep.subr.mxu0 0.0
      %414 = vmatpush1.msra.mxu0 0.0
      %415 = vmatprep.subr.mxu0 0.0
      %416 = vmatpush1.msra.mxu0 0.0
      %417 = vmatprep.subr.mxu0 0.0
      %418 = vmatpush1.msra.mxu0 0.0
      %419 = vmatprep.subr.mxu0 0.0
      %420 = vmatpush1.msra.mxu0 0.0
      %421 = vmatprep.subr.mxu0 0.0
      %422 = vmatpush1.msra.mxu0 0.0
      %423 = vmatprep.subr.mxu0 0.0
      %424 = vmatpush1.msra.mxu0 0.0
      %425 = vmatprep.subr.mxu0 0.0
      %426 = vmatpush1.msra.mxu0 0.0
      %427 = vmatprep.subr.mxu0 0.0
      %428 = vmatpush1.msra.mxu0 0.0
      %429 = vmatprep.subr.mxu0 0.0
      %430 = vmatpush1.msra.mxu0 0.0
      %431 = vmatprep.subr.mxu0 0.0
      %432 = vmatpush1.msra.mxu0 0.0
      %433 = vmatprep.subr.mxu0 0.0
      %434 = vmatpush1.msra.mxu0 0.0
      %435 = vmatprep.subr.mxu0 0.0
      %436 = vmatpush1.msra.mxu0 0.0
      %437 = vmatprep.subr.mxu0 0.0
      %438 = vmatpush1.msra.mxu0 0.0
      %439 = vmatprep.mubr.f32.mxu0 0.0
      %440 = vmatmul.mubr.f32.gmra.mrb[0].mxu0 %v364
      %v441 = vpop.f32.mrb[0].mxu0
      %v442 = vadd.f32 0.0, %v441
      %v443 = vpop.f32.mrb[0].mxu0
      %444 = vmatprep.mubr.f32.mxu0 0.0
      %445 = vmatmul.mubr.f32.gmra.mrb[0].mxu0 %v367
      %v446 = vpop.f32.mrb[0].mxu0
      %v447 = vadd.f32 0.0, %v446
      %v448 = vpop.f32.mrb[0].mxu0
      %449 = vmatprep.mubr.f32.mxu0 0.0
      %450 = vmatmul.mubr.f32.gmra.mrb[0].mxu0 %v370
      %v451 = vpop.f32.mrb[0].mxu0
      %v452 = vadd.f32 0.0, %v451
      %v453 = vpop.f32.mrb[0].mxu0
      %454 = vmatprep.mubr.f32.mxu0 0.0
      %455 = vmatmul.mubr.f32.gmra.mrb[0].mxu0 %v373
      %v456 = vpop.f32.mrb[0].mxu0
      %v457 = vadd.f32 0.0, %v456
      %v458 = vpop.f32.mrb[0].mxu0
      %459 = vdwg.mxu0
      %v460 = vmax.f32 %v321, %v442
      %v461 = vmax.f32 %v326, %v447
      %v462 = vmax.f32 %v331, %v452
      %v463 = vmax.f32 %v336, %v457
      %464 = vset.pattern.permute.xlu0 2
      %465 = vperm.xlu0 %464, %v211
      %v466 = vpop.permute.xlu0 %465
      %467 = vset.pattern.permute.xlu0 2
      %468 = vperm.xlu0 %467, %v212
      %v469 = vpop.permute.xlu0 %468
      %470 = vset.pattern.permute.xlu0 2
      %471 = vperm.xlu0 %470, %v213
      %v472 = vpop.permute.xlu0 %471
      %473 = vset.pattern.permute.xlu0 2
      %474 = vperm.xlu0 %473, %v214
      %v475 = vpop.permute.xlu0 %474
      %vm476 = vcmp.eq.s32.totalorder %v216, %v466
      %vm477 = vcmp.eq.s32.totalorder %v216, %v469
      %vm478 = vcmp.eq.s32.totalorder %v216, %v472
      %vm479 = vcmp.eq.s32.totalorder %v216, %v475
      %v480 = vsel %vm476, 1, 0
      %v481 = vsel %vm477, 1, 0
      %v482 = vsel %vm478, 1, 0
      %v483 = vsel %vm479, 1, 0
      %v484 = vcvt.s32.f32 %v480
      %v485 = vcvt.s32.f32 %v481
      %v486 = vcvt.s32.f32 %v482
      %v487 = vcvt.s32.f32 %v483
      %v489 = vsel %vm241, %v484, 0
      %v492 = vsel %vm241, %v485, 0
      %v495 = vsel %vm241, %v486, 0
      %v498 = vsel %vm241, %v487, 0
      %500 = vmatprep.subr.mxu0 0.0
      %501 = vmatpush1.msra.mxu0 %v207
      %502 = vmatprep.subr.mxu0 0.0
      %503 = vmatpush1.msra.mxu0 %v208
      %504 = vmatprep.subr.mxu0 0.0
      %505 = vmatpush1.msra.mxu0 %v209
      %506 = vmatprep.subr.mxu0 0.0
      %507 = vmatpush1.msra.mxu0 %v210
      %508 = vmatprep.subr.mxu0 0.0
      %509 = vmatpush1.msra.mxu0 0.0
      %510 = vmatprep.subr.mxu0 0.0
      %511 = vmatpush1.msra.mxu0 0.0
      %512 = vmatprep.subr.mxu0 0.0
      %513 = vmatpush1.msra.mxu0 0.0
      %514 = vmatprep.subr.mxu0 0.0
      %515 = vmatpush1.msra.mxu0 0.0
      %516 = vmatprep.subr.mxu0 0.0
      %517 = vmatpush1.msra.mxu0 0.0
      %518 = vmatprep.subr.mxu0 0.0
      %519 = vmatpush1.msra.mxu0 0.0
      %520 = vmatprep.subr.mxu0 0.0
      %521 = vmatpush1.msra.mxu0 0.0
      %522 = vmatprep.subr.mxu0 0.0
      %523 = vmatpush1.msra.mxu0 0.0
      %524 = vmatprep.subr.mxu0 0.0
      %525 = vmatpush1.msra.mxu0 0.0
      %526 = vmatprep.subr.mxu0 0.0
      %527 = vmatpush1.msra.mxu0 0.0
      %528 = vmatprep.subr.mxu0 0.0
      %529 = vmatpush1.msra.mxu0 0.0
      %530 = vmatprep.subr.mxu0 0.0
      %531 = vmatpush1.msra.mxu0 0.0
      %532 = vmatprep.subr.mxu0 0.0
      %533 = vmatpush1.msra.mxu0 0.0
      %534 = vmatprep.subr.mxu0 0.0
      %535 = vmatpush1.msra.mxu0 0.0
      %536 = vmatprep.subr.mxu0 0.0
      %537 = vmatpush1.msra.mxu0 0.0
      %538 = vmatprep.subr.mxu0 0.0
      %539 = vmatpush1.msra.mxu0 0.0
      %540 = vmatprep.subr.mxu0 0.0
      %541 = vmatpush1.msra.mxu0 0.0
      %542 = vmatprep.subr.mxu0 0.0
      %543 = vmatpush1.msra.mxu0 0.0
      %544 = vmatprep.subr.mxu0 0.0
      %545 = vmatpush1.msra.mxu0 0.0
      %546 = vmatprep.subr.mxu0 0.0
      %547 = vmatpush1.msra.mxu0 0.0
      %548 = vmatprep.subr.mxu0 0.0
      %549 = vmatpush1.msra.mxu0 0.0
      %550 = vmatprep.subr.mxu0 0.0
      %551 = vmatpush1.msra.mxu0 0.0
      %552 = vmatprep.subr.mxu0 0.0
      %553 = vmatpush1.msra.mxu0 0.0
      %554 = vmatprep.subr.mxu0 0.0
      %555 = vmatpush1.msra.mxu0 0.0
      %556 = vmatprep.subr.mxu0 0.0
      %557 = vmatpush1.msra.mxu0 0.0
      %558 = vmatprep.subr.mxu0 0.0
      %559 = vmatpush1.msra.mxu0 0.0
      %560 = vmatprep.subr.mxu0 0.0
      %561 = vmatpush1.msra.mxu0 0.0
      %562 = vmatprep.subr.mxu0 0.0
      %563 = vmatpush1.msra.mxu0 0.0
      %564 = vmatprep.mubr.f32.mxu0 0.0
      %565 = vmatmul.mubr.f32.gmra.mrb[0].mxu0 %v489
      %v566 = vpop.f32.mrb[0].mxu0
      %v567 = vadd.f32 0.0, %v566
      %v568 = vpop.f32.mrb[0].mxu0
      %569 = vmatprep.mubr.f32.mxu0 0.0
      %570 = vmatmul.mubr.f32.gmra.mrb[0].mxu0 %v492
      %v571 = vpop.f32.mrb[0].mxu0
      %v572 = vadd.f32 0.0, %v571
      %v573 = vpop.f32.mrb[0].mxu0
      %574 = vmatprep.mubr.f32.mxu0 0.0
      %575 = vmatmul.mubr.f32.gmra.mrb[0].mxu0 %v495
      %v576 = vpop.f32.mrb[0].mxu0
      %v577 = vadd.f32 0.0, %v576
      %v578 = vpop.f32.mrb[0].mxu0
      %579 = vmatprep.mubr.f32.mxu0 0.0
      %580 = vmatmul.mubr.f32.gmra.mrb[0].mxu0 %v498
      %v581 = vpop.f32.mrb[0].mxu0
      %v582 = vadd.f32 0.0, %v581
      %v583 = vpop.f32.mrb[0].mxu0
      %584 = vdwg.mxu0
      %v585 = vmax.f32 %v460, %v567
      %v586 = vmax.f32 %v461, %v572
      %v587 = vmax.f32 %v462, %v577
      %v588 = vmax.f32 %v463, %v582
      %589 = vset.pattern.permute.xlu0 3
      %590 = vperm.xlu0 %589, %v211
      %v591 = vpop.permute.xlu0 %590
      %592 = vset.pattern.permute.xlu0 3
      %593 = vperm.xlu0 %592, %v212
      %v594 = vpop.permute.xlu0 %593
      %595 = vset.pattern.permute.xlu0 3
      %596 = vperm.xlu0 %595, %v213
      %v597 = vpop.permute.xlu0 %596
      %598 = vset.pattern.permute.xlu0 3
      %599 = vperm.xlu0 %598, %v214
      %v600 = vpop.permute.xlu0 %599
      %vm601 = vcmp.eq.s32.totalorder %v216, %v591
      %vm602 = vcmp.eq.s32.totalorder %v216, %v594
      %vm603 = vcmp.eq.s32.totalorder %v216, %v597
      %vm604 = vcmp.eq.s32.totalorder %v216, %v600
      %v605 = vsel %vm601, 1, 0
      %v606 = vsel %vm602, 1, 0
      %v607 = vsel %vm603, 1, 0
      %v608 = vsel %vm604, 1, 0
      %v609 = vcvt.s32.f32 %v605
      %v610 = vcvt.s32.f32 %v606
      %v611 = vcvt.s32.f32 %v607
      %v612 = vcvt.s32.f32 %v608
      %v614 = vsel %vm241, %v609, 0
      %v617 = vsel %vm241, %v610, 0
      %v620 = vsel %vm241, %v611, 0
      %v623 = vsel %vm241, %v612, 0
      %625 = vmatprep.subr.mxu0 0.0
      %626 = vmatpush1.msra.mxu0 %v207
      %627 = vmatprep.subr.mxu0 0.0
      %628 = vmatpush1.msra.mxu0 %v208
      %629 = vmatprep.subr.mxu0 0.0
      %630 = vmatpush1.msra.mxu0 %v209
      %631 = vmatprep.subr.mxu0 0.0
      %632 = vmatpush1.msra.mxu0 %v210
      %633 = vmatprep.subr.mxu0 0.0
      %634 = vmatpush1.msra.mxu0 0.0
      %635 = vmatprep.subr.mxu0 0.0
      %636 = vmatpush1.msra.mxu0 0.0
      %637 = vmatprep.subr.mxu0 0.0
      %638 = vmatpush1.msra.mxu0 0.0
      %639 = vmatprep.subr.mxu0 0.0
      %640 = vmatpush1.msra.mxu0 0.0
      %641 = vmatprep.subr.mxu0 0.0
      %642 = vmatpush1.msra.mxu0 0.0
      %643 = vmatprep.subr.mxu0 0.0
      %644 = vmatpush1.msra.mxu0 0.0
      %645 = vmatprep.subr.mxu0 0.0
      %646 = vmatpush1.msra.mxu0 0.0
      %647 = vmatprep.subr.mxu0 0.0
      %648 = vmatpush1.msra.mxu0 0.0
      %649 = vmatprep.subr.mxu0 0.0
      %650 = vmatpush1.msra.mxu0 0.0
      %651 = vmatprep.subr.mxu0 0.0
      %652 = vmatpush1.msra.mxu0 0.0
      %653 = vmatprep.subr.mxu0 0.0
      %654 = vmatpush1.msra.mxu0 0.0
      %655 = vmatprep.subr.mxu0 0.0
      %656 = vmatpush1.msra.mxu0 0.0
      %657 = vmatprep.subr.mxu0 0.0
      %658 = vmatpush1.msra.mxu0 0.0
      %659 = vmatprep.subr.mxu0 0.0
      %660 = vmatpush1.msra.mxu0 0.0
      %661 = vmatprep.subr.mxu0 0.0
      %662 = vmatpush1.msra.mxu0 0.0
      %663 = vmatprep.subr.mxu0 0.0
      %664 = vmatpush1.msra.mxu0 0.0
      %665 = vmatprep.subr.mxu0 0.0
      %666 = vmatpush1.msra.mxu0 0.0
      %667 = vmatprep.subr.mxu0 0.0
      %668 = vmatpush1.msra.mxu0 0.0
      %669 = vmatprep.subr.mxu0 0.0
      %670 = vmatpush1.msra.mxu0 0.0
      %671 = vmatprep.subr.mxu0 0.0
      %672 = vmatpush1.msra.mxu0 0.0
      %673 = vmatprep.subr.mxu0 0.0
      %674 = vmatpush1.msra.mxu0 0.0
      %675 = vmatprep.subr.mxu0 0.0
      %676 = vmatpush1.msra.mxu0 0.0
      %677 = vmatprep.subr.mxu0 0.0
      %678 = vmatpush1.msra.mxu0 0.0
      %679 = vmatprep.subr.mxu0 0.0
      %680 = vmatpush1.msra.mxu0 0.0
      %681 = vmatprep.subr.mxu0 0.0
      %682 = vmatpush1.msra.mxu0 0.0
      %683 = vmatprep.subr.mxu0 0.0
      %684 = vmatpush1.msra.mxu0 0.0
      %685 = vmatprep.subr.mxu0 0.0
      %686 = vmatpush1.msra.mxu0 0.0
      %687 = vmatprep.subr.mxu0 0.0
      %688 = vmatpush1.msra.mxu0 0.0
      %689 = vmatprep.mubr.f32.mxu0 0.0
      %690 = vmatmul.mubr.f32.gmra.mrb[0].mxu0 %v614
      %v691 = vpop.f32.mrb[0].mxu0
      %v692 = vadd.f32 0.0, %v691
      %v693 = vpop.f32.mrb[0].mxu0
      %694 = vmatprep.mubr.f32.mxu0 0.0
      %695 = vmatmul.mubr.f32.gmra.mrb[0].mxu0 %v617
      %v696 = vpop.f32.mrb[0].mxu0
      %v697 = vadd.f32 0.0, %v696
      %v698 = vpop.f32.mrb[0].mxu0
      %699 = vmatprep.mubr.f32.mxu0 0.0
      %700 = vmatmul.mubr.f32.gmra.mrb[0].mxu0 %v620
      %v701 = vpop.f32.mrb[0].mxu0
      %v702 = vadd.f32 0.0, %v701
      %v703 = vpop.f32.mrb[0].mxu0
      %704 = vmatprep.mubr.f32.mxu0 0.0
      %705 = vmatmul.mubr.f32.gmra.mrb[0].mxu0 %v623
      %v706 = vpop.f32.mrb[0].mxu0
      %v707 = vadd.f32 0.0, %v706
      %v708 = vpop.f32.mrb[0].mxu0
      %709 = vdwg.mxu0
      %v710 = vmax.f32 %v585, %v692
      %v711 = vmax.f32 %v586, %v697
      %v712 = vmax.f32 %v587, %v702
      %v713 = vmax.f32 %v588, %v707
      %714 = vset.pattern.permute.xlu0 4
      %715 = vperm.xlu0 %714, %v211
      %v716 = vpop.permute.xlu0 %715
      %717 = vset.pattern.permute.xlu0 4
      %718 = vperm.xlu0 %717, %v212
      %v719 = vpop.permute.xlu0 %718
      %720 = vset.pattern.permute.xlu0 4
      %721 = vperm.xlu0 %720, %v213
      %v722 = vpop.permute.xlu0 %721
      %723 = vset.pattern.permute.xlu0 4
      %724 = vperm.xlu0 %723, %v214
      %v725 = vpop.permute.xlu0 %724
      %vm726 = vcmp.eq.s32.totalorder %v216, %v716
      %vm727 = vcmp.eq.s32.totalorder %v216, %v719
      %vm728 = vcmp.eq.s32.totalorder %v216, %v722
      %vm729 = vcmp.eq.s32.totalorder %v216, %v725
      %v730 = vsel %vm726, 1, 0
      %v731 = vsel %vm727, 1, 0
      %v732 = vsel %vm728, 1, 0
      %v733 = vsel %vm729, 1, 0
      %v734 = vcvt.s32.f32 %v730
      %v735 = vcvt.s32.f32 %v731
      %v736 = vcvt.s32.f32 %v732
      %v737 = vcvt.s32.f32 %v733
      %v739 = vsel %vm241, %v734, 0
      %v742 = vsel %vm241, %v735, 0
      %v745 = vsel %vm241, %v736, 0
      %v748 = vsel %vm241, %v737, 0
      %750 = vmatprep.subr.mxu0 0.0
      %751 = vmatpush1.msra.mxu0 %v207
      %752 = vmatprep.subr.mxu0 0.0
      %753 = vmatpush1.msra.mxu0 %v208
      %754 = vmatprep.subr.mxu0 0.0
      %755 = vmatpush1.msra.mxu0 %v209
      %756 = vmatprep.subr.mxu0 0.0
      %757 = vmatpush1.msra.mxu0 %v210
      %758 = vmatprep.subr.mxu0 0.0
      %759 = vmatpush1.msra.mxu0 0.0
      %760 = vmatprep.subr.mxu0 0.0
      %761 = vmatpush1.msra.mxu0 0.0
      %762 = vmatprep.subr.mxu0 0.0
      %763 = vmatpush1.msra.mxu0 0.0
      %764 = vmatprep.subr.mxu0 0.0
      %765 = vmatpush1.msra.mxu0 0.0
      %766 = vmatprep.subr.mxu0 0.0
      %767 = vmatpush1.msra.mxu0 0.0
      %768 = vmatprep.subr.mxu0 0.0
      %769 = vmatpush1.msra.mxu0 0.0
      %770 = vmatprep.subr.mxu0 0.0
      %771 = vmatpush1.msra.mxu0 0.0
      %772 = vmatprep.subr.mxu0 0.0
      %773 = vmatpush1.msra.mxu0 0.0
      %774 = vmatprep.subr.mxu0 0.0
      %775 = vmatpush1.msra.mxu0 0.0
      %776 = vmatprep.subr.mxu0 0.0
      %777 = vmatpush1.msra.mxu0 0.0
      %778 = vmatprep.subr.mxu0 0.0
      %779 = vmatpush1.msra.mxu0 0.0
      %780 = vmatprep.subr.mxu0 0.0
      %781 = vmatpush1.msra.mxu0 0.0
      %782 = vmatprep.subr.mxu0 0.0
      %783 = vmatpush1.msra.mxu0 0.0
      %784 = vmatprep.subr.mxu0 0.0
      %785 = vmatpush1.msra.mxu0 0.0
      %786 = vmatprep.subr.mxu0 0.0
      %787 = vmatpush1.msra.mxu0 0.0
      %788 = vmatprep.subr.mxu0 0.0
      %789 = vmatpush1.msra.mxu0 0.0
      %790 = vmatprep.subr.mxu0 0.0
      %791 = vmatpush1.msra.mxu0 0.0
      %792 = vmatprep.subr.mxu0 0.0
      %793 = vmatpush1.msra.mxu0 0.0
      %794 = vmatprep.subr.mxu0 0.0
      %795 = vmatpush1.msra.mxu0 0.0
      %796 = vmatprep.subr.mxu0 0.0
      %797 = vmatpush1.msra.mxu0 0.0
      %798 = vmatprep.subr.mxu0 0.0
      %799 = vmatpush1.msra.mxu0 0.0
      %800 = vmatprep.subr.mxu0 0.0
      %801 = vmatpush1.msra.mxu0 0.0
      %802 = vmatprep.subr.mxu0 0.0
      %803 = vmatpush1.msra.mxu0 0.0
      %804 = vmatprep.subr.mxu0 0.0
      %805 = vmatpush1.msra.mxu0 0.0
      %806 = vmatprep.subr.mxu0 0.0
      %807 = vmatpush1.msra.mxu0 0.0
      %808 = vmatprep.subr.mxu0 0.0
      %809 = vmatpush1.msra.mxu0 0.0
      %810 = vmatprep.subr.mxu0 0.0
      %811 = vmatpush1.msra.mxu0 0.0
      %812 = vmatprep.subr.mxu0 0.0
      %813 = vmatpush1.msra.mxu0 0.0
      %814 = vmatprep.mubr.f32.mxu0 0.0
      %815 = vmatmul.mubr.f32.gmra.mrb[0].mxu0 %v739
      %v816 = vpop.f32.mrb[0].mxu0
      %v817 = vadd.f32 0.0, %v816
      %v818 = vpop.f32.mrb[0].mxu0
      %819 = vmatprep.mubr.f32.mxu0 0.0
      %820 = vmatmul.mubr.f32.gmra.mrb[0].mxu0 %v742
      %v821 = vpop.f32.mrb[0].mxu0
      %v822 = vadd.f32 0.0, %v821
      %v823 = vpop.f32.mrb[0].mxu0
      %824 = vmatprep.mubr.f32.mxu0 0.0
      %825 = vmatmul.mubr.f32.gmra.mrb[0].mxu0 %v745
      %v826 = vpop.f32.mrb[0].mxu0
      %v827 = vadd.f32 0.0, %v826
      %v828 = vpop.f32.mrb[0].mxu0
      %829 = vmatprep.mubr.f32.mxu0 0.0
      %830 = vmatmul.mubr.f32.gmra.mrb[0].mxu0 %v748
      %v831 = vpop.f32.mrb[0].mxu0
      %v832 = vadd.f32 0.0, %v831
      %v833 = vpop.f32.mrb[0].mxu0
      %834 = vdwg.mxu0
      %v835 = vmax.f32 %v710, %v817
      %v836 = vmax.f32 %v711, %v822
      %v837 = vmax.f32 %v712, %v827
      %v838 = vmax.f32 %v713, %v832
      %839 = vset.pattern.permute.xlu0 5
      %840 = vperm.xlu0 %839, %v211
      %v841 = vpop.permute.xlu0 %840
      %842 = vset.pattern.permute.xlu0 5
      %843 = vperm.xlu0 %842, %v212
      %v844 = vpop.permute.xlu0 %843
      %845 = vset.pattern.permute.xlu0 5
      %846 = vperm.xlu0 %845, %v213
      %v847 = vpop.permute.xlu0 %846
      %848 = vset.pattern.permute.xlu0 5
      %849 = vperm.xlu0 %848, %v214
      %v850 = vpop.permute.xlu0 %849
      %vm851 = vcmp.eq.s32.totalorder %v216, %v841
      %vm852 = vcmp.eq.s32.totalorder %v216, %v844
      %vm853 = vcmp.eq.s32.totalorder %v216, %v847
      %vm854 = vcmp.eq.s32.totalorder %v216, %v850
      %v855 = vsel %vm851, 1, 0
      %v856 = vsel %vm852, 1, 0
      %v857 = vsel %vm853, 1, 0
      %v858 = vsel %vm854, 1, 0
      %v859 = vcvt.s32.f32 %v855
      %v860 = vcvt.s32.f32 %v856
      %v861 = vcvt.s32.f32 %v857
      %v862 = vcvt.s32.f32 %v858
      %v864 = vsel %vm241, %v859, 0
      %v867 = vsel %vm241, %v860, 0
      %v870 = vsel %vm241, %v861, 0
      %v873 = vsel %vm241, %v862, 0
      %875 = vmatprep.subr.mxu0 0.0
      %876 = vmatpush1.msra.mxu0 %v207
      %877 = vmatprep.subr.mxu0 0.0
      %878 = vmatpush1.msra.mxu0 %v208
      %879 = vmatprep.subr.mxu0 0.0
      %880 = vmatpush1.msra.mxu0 %v209
      %881 = vmatprep.subr.mxu0 0.0
      %882 = vmatpush1.msra.mxu0 %v210
      %883 = vmatprep.subr.mxu0 0.0
      %884 = vmatpush1.msra.mxu0 0.0
      %885 = vmatprep.subr.mxu0 0.0
      %886 = vmatpush1.msra.mxu0 0.0
      %887 = vmatprep.subr.mxu0 0.0
      %888 = vmatpush1.msra.mxu0 0.0
      %889 = vmatprep.subr.mxu0 0.0
      %890 = vmatpush1.msra.mxu0 0.0
      %891 = vmatprep.subr.mxu0 0.0
      %892 = vmatpush1.msra.mxu0 0.0
      %893 = vmatprep.subr.mxu0 0.0
      %894 = vmatpush1.msra.mxu0 0.0
      %895 = vmatprep.subr.mxu0 0.0
      %896 = vmatpush1.msra.mxu0 0.0
      %897 = vmatprep.subr.mxu0 0.0
      %898 = vmatpush1.msra.mxu0 0.0
      %899 = vmatprep.subr.mxu0 0.0
      %900 = vmatpush1.msra.mxu0 0.0
      %901 = vmatprep.subr.mxu0 0.0
      %902 = vmatpush1.msra.mxu0 0.0
      %903 = vmatprep.subr.mxu0 0.0
      %904 = vmatpush1.msra.mxu0 0.0
      %905 = vmatprep.subr.mxu0 0.0
      %906 = vmatpush1.msra.mxu0 0.0
      %907 = vmatprep.subr.mxu0 0.0
      %908 = vmatpush1.msra.mxu0 0.0
      %909 = vmatprep.subr.mxu0 0.0
      %910 = vmatpush1.msra.mxu0 0.0
      %911 = vmatprep.subr.mxu0 0.0
      %912 = vmatpush1.msra.mxu0 0.0
      %913 = vmatprep.subr.mxu0 0.0
      %914 = vmatpush1.msra.mxu0 0.0
      %915 = vmatprep.subr.mxu0 0.0
      %916 = vmatpush1.msra.mxu0 0.0
      %917 = vmatprep.subr.mxu0 0.0
      %918 = vmatpush1.msra.mxu0 0.0
      %919 = vmatprep.subr.mxu0 0.0
      %920 = vmatpush1.msra.mxu0 0.0
      %921 = vmatprep.subr.mxu0 0.0
      %922 = vmatpush1.msra.mxu0 0.0
      %923 = vmatprep.subr.mxu0 0.0
      %924 = vmatpush1.msra.mxu0 0.0
      %925 = vmatprep.subr.mxu0 0.0
      %926 = vmatpush1.msra.mxu0 0.0
      %927 = vmatprep.subr.mxu0 0.0
      %928 = vmatpush1.msra.mxu0 0.0
      %929 = vmatprep.subr.mxu0 0.0
      %930 = vmatpush1.msra.mxu0 0.0
      %931 = vmatprep.subr.mxu0 0.0
      %932 = vmatpush1.msra.mxu0 0.0
      %933 = vmatprep.subr.mxu0 0.0
      %934 = vmatpush1.msra.mxu0 0.0
      %935 = vmatprep.subr.mxu0 0.0
      %936 = vmatpush1.msra.mxu0 0.0
      %937 = vmatprep.subr.mxu0 0.0
      %938 = vmatpush1.msra.mxu0 0.0
      %939 = vmatprep.mubr.f32.mxu0 0.0
      %940 = vmatmul.mubr.f32.gmra.mrb[0].mxu0 %v864
      %v941 = vpop.f32.mrb[0].mxu0
      %v942 = vadd.f32 0.0, %v941
      %v943 = vpop.f32.mrb[0].mxu0
      %944 = vmatprep.mubr.f32.mxu0 0.0
      %945 = vmatmul.mubr.f32.gmra.mrb[0].mxu0 %v867
      %v946 = vpop.f32.mrb[0].mxu0
      %v947 = vadd.f32 0.0, %v946
      %v948 = vpop.f32.mrb[0].mxu0
      %949 = vmatprep.mubr.f32.mxu0 0.0
      %950 = vmatmul.mubr.f32.gmra.mrb[0].mxu0 %v870
      %v951 = vpop.f32.mrb[0].mxu0
      %v952 = vadd.f32 0.0, %v951
      %v953 = vpop.f32.mrb[0].mxu0
      %954 = vmatprep.mubr.f32.mxu0 0.0
      %955 = vmatmul.mubr.f32.gmra.mrb[0].mxu0 %v873
      %v956 = vpop.f32.mrb[0].mxu0
      %v957 = vadd.f32 0.0, %v956
      %v958 = vpop.f32.mrb[0].mxu0
      %959 = vdwg.mxu0
      %v960 = vmax.f32 %v835, %v942
      %v961 = vmax.f32 %v836, %v947
      %v962 = vmax.f32 %v837, %v952
      %v963 = vmax.f32 %v838, %v957
      %964 = vset.pattern.permute.xlu0 6
      %965 = vperm.xlu0 %964, %v211
      %v966 = vpop.permute.xlu0 %965
      %967 = vset.pattern.permute.xlu0 6
      %968 = vperm.xlu0 %967, %v212
      %v969 = vpop.permute.xlu0 %968
      %970 = vset.pattern.permute.xlu0 6
      %971 = vperm.xlu0 %970, %v213
      %v972 = vpop.permute.xlu0 %971
      %973 = vset.pattern.permute.xlu0 6
      %974 = vperm.xlu0 %973, %v214
      %v975 = vpop.permute.xlu0 %974
      %vm976 = vcmp.eq.s32.totalorder %v216, %v966
      %vm977 = vcmp.eq.s32.totalorder %v216, %v969
      %vm978 = vcmp.eq.s32.totalorder %v216, %v972
      %vm979 = vcmp.eq.s32.totalorder %v216, %v975
      %v980 = vsel %vm976, 1, 0
      %v981 = vsel %vm977, 1, 0
      %v982 = vsel %vm978, 1, 0
      %v983 = vsel %vm979, 1, 0
      %v984 = vcvt.s32.f32 %v980
      %v985 = vcvt.s32.f32 %v981
      %v986 = vcvt.s32.f32 %v982
      %v987 = vcvt.s32.f32 %v983
      %v989 = vsel %vm241, %v984, 0
      %v992 = vsel %vm241, %v985, 0
      %v995 = vsel %vm241, %v986, 0
      %v998 = vsel %vm241, %v987, 0
      %1000 = vmatprep.subr.mxu0 0.0
      %1001 = vmatpush1.msra.mxu0 %v207
      %1002 = vmatprep.subr.mxu0 0.0
      %1003 = vmatpush1.msra.mxu0 %v208
      %1004 = vmatprep.subr.mxu0 0.0
      %1005 = vmatpush1.msra.mxu0 %v209
      %1006 = vmatprep.subr.mxu0 0.0
      %1007 = vmatpush1.msra.mxu0 %v210
      %1008 = vmatprep.subr.mxu0 0.0
      %1009 = vmatpush1.msra.mxu0 0.0
      %1010 = vmatprep.subr.mxu0 0.0
      %1011 = vmatpush1.msra.mxu0 0.0
      %1012 = vmatprep.subr.mxu0 0.0
      %1013 = vmatpush1.msra.mxu0 0.0
      %1014 = vmatprep.subr.mxu0 0.0
      %1015 = vmatpush1.msra.mxu0 0.0
      %1016 = vmatprep.subr.mxu0 0.0
      %1017 = vmatpush1.msra.mxu0 0.0
      %1018 = vmatprep.subr.mxu0 0.0
      %1019 = vmatpush1.msra.mxu0 0.0
      %1020 = vmatprep.subr.mxu0 0.0
      %1021 = vmatpush1.msra.mxu0 0.0
      %1022 = vmatprep.subr.mxu0 0.0
      %1023 = vmatpush1.msra.mxu0 0.0
      %1024 = vmatprep.subr.mxu0 0.0
      %1025 = vmatpush1.msra.mxu0 0.0
      %1026 = vmatprep.subr.mxu0 0.0
      %1027 = vmatpush1.msra.mxu0 0.0
      %1028 = vmatprep.subr.mxu0 0.0
      %1029 = vmatpush1.msra.mxu0 0.0
      %1030 = vmatprep.subr.mxu0 0.0
      %1031 = vmatpush1.msra.mxu0 0.0
      %1032 = vmatprep.subr.mxu0 0.0
      %1033 = vmatpush1.msra.mxu0 0.0
      %1034 = vmatprep.subr.mxu0 0.0
      %1035 = vmatpush1.msra.mxu0 0.0
      %1036 = vmatprep.subr.mxu0 0.0
      %1037 = vmatpush1.msra.mxu0 0.0
      %1038 = vmatprep.subr.mxu0 0.0
      %1039 = vmatpush1.msra.mxu0 0.0
      %1040 = vmatprep.subr.mxu0 0.0
      %1041 = vmatpush1.msra.mxu0 0.0
      %1042 = vmatprep.subr.mxu0 0.0
      %1043 = vmatpush1.msra.mxu0 0.0
      %1044 = vmatprep.subr.mxu0 0.0
      %1045 = vmatpush1.msra.mxu0 0.0
      %1046 = vmatprep.subr.mxu0 0.0
      %1047 = vmatpush1.msra.mxu0 0.0
      %1048 = vmatprep.subr.mxu0 0.0
      %1049 = vmatpush1.msra.mxu0 0.0
      %1050 = vmatprep.subr.mxu0 0.0
      %1051 = vmatpush1.msra.mxu0 0.0
      %1052 = vmatprep.subr.mxu0 0.0
      %1053 = vmatpush1.msra.mxu0 0.0
      %1054 = vmatprep.subr.mxu0 0.0
      %1055 = vmatpush1.msra.mxu0 0.0
      %1056 = vmatprep.subr.mxu0 0.0
      %1057 = vmatpush1.msra.mxu0 0.0
      %1058 = vmatprep.subr.mxu0 0.0
      %1059 = vmatpush1.msra.mxu0 0.0
      %1060 = vmatprep.subr.mxu0 0.0
      %1061 = vmatpush1.msra.mxu0 0.0
      %1062 = vmatprep.subr.mxu0 0.0
      %1063 = vmatpush1.msra.mxu0 0.0
      %1064 = vmatprep.mubr.f32.mxu0 0.0
      %1065 = vmatmul.mubr.f32.gmra.mrb[0].mxu0 %v989
      %v1066 = vpop.f32.mrb[0].mxu0
      %v1067 = vadd.f32 0.0, %v1066
      %v1068 = vpop.f32.mrb[0].mxu0
      %1069 = vmatprep.mubr.f32.mxu0 0.0
      %1070 = vmatmul.mubr.f32.gmra.mrb[0].mxu0 %v992
      %v1071 = vpop.f32.mrb[0].mxu0
      %v1072 = vadd.f32 0.0, %v1071
      %v1073 = vpop.f32.mrb[0].mxu0
      %1074 = vmatprep.mubr.f32.mxu0 0.0
      %1075 = vmatmul.mubr.f32.gmra.mrb[0].mxu0 %v995
      %v1076 = vpop.f32.mrb[0].mxu0
      %v1077 = vadd.f32 0.0, %v1076
      %v1078 = vpop.f32.mrb[0].mxu0
      %1079 = vmatprep.mubr.f32.mxu0 0.0
      %1080 = vmatmul.mubr.f32.gmra.mrb[0].mxu0 %v998
      %v1081 = vpop.f32.mrb[0].mxu0
      %v1082 = vadd.f32 0.0, %v1081
      %v1083 = vpop.f32.mrb[0].mxu0
      %1084 = vdwg.mxu0
      %v1085 = vmax.f32 %v960, %v1067
      %v1086 = vmax.f32 %v961, %v1072
      %v1087 = vmax.f32 %v962, %v1077
      %v1088 = vmax.f32 %v963, %v1082
      %1089 = vset.pattern.permute.xlu0 7
      %1090 = vperm.xlu0 %1089, %v211
      %v1091 = vpop.permute.xlu0 %1090
      %1092 = vset.pattern.permute.xlu0 7
      %1093 = vperm.xlu0 %1092, %v212
      %v1094 = vpop.permute.xlu0 %1093
      %1095 = vset.pattern.permute.xlu0 7
      %1096 = vperm.xlu0 %1095, %v213
      %v1097 = vpop.permute.xlu0 %1096
      %1098 = vset.pattern.permute.xlu0 7
      %1099 = vperm.xlu0 %1098, %v214
      %v1100 = vpop.permute.xlu0 %1099
      %vm1101 = vcmp.eq.s32.totalorder %v216, %v1091
      %vm1102 = vcmp.eq.s32.totalorder %v216, %v1094
      %vm1103 = vcmp.eq.s32.totalorder %v216, %v1097
      %vm1104 = vcmp.eq.s32.totalorder %v216, %v1100
      %v1105 = vsel %vm1101, 1, 0
      %v1106 = vsel %vm1102, 1, 0
      %v1107 = vsel %vm1103, 1, 0
      %v1108 = vsel %vm1104, 1, 0
      %v1109 = vcvt.s32.f32 %v1105
      %v1110 = vcvt.s32.f32 %v1106
      %v1111 = vcvt.s32.f32 %v1107
      %v1112 = vcvt.s32.f32 %v1108
      %v1114 = vsel %vm241, %v1109, 0
      %v1117 = vsel %vm241, %v1110, 0
      %v1120 = vsel %vm241, %v1111, 0
      %v1123 = vsel %vm241, %v1112, 0
      %1125 = vmatprep.subr.mxu0 0.0
      %1126 = vmatpush1.msra.mxu0 %v207
      %1127 = vmatprep.subr.mxu0 0.0
      %1128 = vmatpush1.msra.mxu0 %v208
      %1129 = vmatprep.subr.mxu0 0.0
      %1130 = vmatpush1.msra.mxu0 %v209
      %1131 = vmatprep.subr.mxu0 0.0
      %1132 = vmatpush1.msra.mxu0 %v210
      %1133 = vmatprep.subr.mxu0 0.0
      %1134 = vmatpush1.msra.mxu0 0.0
      %1135 = vmatprep.subr.mxu0 0.0
      %1136 = vmatpush1.msra.mxu0 0.0
      %1137 = vmatprep.subr.mxu0 0.0
      %1138 = vmatpush1.msra.mxu0 0.0
      %1139 = vmatprep.subr.mxu0 0.0
      %1140 = vmatpush1.msra.mxu0 0.0
      %1141 = vmatprep.subr.mxu0 0.0
      %1142 = vmatpush1.msra.mxu0 0.0
      %1143 = vmatprep.subr.mxu0 0.0
      %1144 = vmatpush1.msra.mxu0 0.0
      %1145 = vmatprep.subr.mxu0 0.0
      %1146 = vmatpush1.msra.mxu0 0.0
      %1147 = vmatprep.subr.mxu0 0.0
      %1148 = vmatpush1.msra.mxu0 0.0
      %1149 = vmatprep.subr.mxu0 0.0
      %1150 = vmatpush1.msra.mxu0 0.0
      %1151 = vmatprep.subr.mxu0 0.0
      %1152 = vmatpush1.msra.mxu0 0.0
      %1153 = vmatprep.subr.mxu0 0.0
      %1154 = vmatpush1.msra.mxu0 0.0
      %1155 = vmatprep.subr.mxu0 0.0
      %1156 = vmatpush1.msra.mxu0 0.0
      %1157 = vmatprep.subr.mxu0 0.0
      %1158 = vmatpush1.msra.mxu0 0.0
      %1159 = vmatprep.subr.mxu0 0.0
      %1160 = vmatpush1.msra.mxu0 0.0
      %1161 = vmatprep.subr.mxu0 0.0
      %1162 = vmatpush1.msra.mxu0 0.0
      %1163 = vmatprep.subr.mxu0 0.0
      %1164 = vmatpush1.msra.mxu0 0.0
      %1165 = vmatprep.subr.mxu0 0.0
      %1166 = vmatpush1.msra.mxu0 0.0
      %1167 = vmatprep.subr.mxu0 0.0
      %1168 = vmatpush1.msra.mxu0 0.0
      %1169 = vmatprep.subr.mxu0 0.0
      %1170 = vmatpush1.msra.mxu0 0.0
      %1171 = vmatprep.subr.mxu0 0.0
      %1172 = vmatpush1.msra.mxu0 0.0
      %1173 = vmatprep.subr.mxu0 0.0
      %1174 = vmatpush1.msra.mxu0 0.0
      %1175 = vmatprep.subr.mxu0 0.0
      %1176 = vmatpush1.msra.mxu0 0.0
      %1177 = vmatprep.subr.mxu0 0.0
      %1178 = vmatpush1.msra.mxu0 0.0
      %1179 = vmatprep.subr.mxu0 0.0
      %1180 = vmatpush1.msra.mxu0 0.0
      %1181 = vmatprep.subr.mxu0 0.0
      %1182 = vmatpush1.msra.mxu0 0.0
      %1183 = vmatprep.subr.mxu0 0.0
      %1184 = vmatpush1.msra.mxu0 0.0
      %1185 = vmatprep.subr.mxu0 0.0
      %1186 = vmatpush1.msra.mxu0 0.0
      %1187 = vmatprep.subr.mxu0 0.0
      %1188 = vmatpush1.msra.mxu0 0.0
      %1189 = vmatprep.mubr.f32.mxu0 0.0
      %1190 = vmatmul.mubr.f32.gmra.mrb[0].mxu0 %v1114
      %v1191 = vpop.f32.mrb[0].mxu0
      %v1192 = vadd.f32 0.0, %v1191
      %v1193 = vpop.f32.mrb[0].mxu0
      %1194 = vmatprep.mubr.f32.mxu0 0.0
      %1195 = vmatmul.mubr.f32.gmra.mrb[0].mxu0 %v1117
      %v1196 = vpop.f32.mrb[0].mxu0
      %v1197 = vadd.f32 0.0, %v1196
      %v1198 = vpop.f32.mrb[0].mxu0
      %1199 = vmatprep.mubr.f32.mxu0 0.0
      %1200 = vmatmul.mubr.f32.gmra.mrb[0].mxu0 %v1120
      %v1201 = vpop.f32.mrb[0].mxu0
      %v1202 = vadd.f32 0.0, %v1201
      %v1203 = vpop.f32.mrb[0].mxu0
      %1204 = vmatprep.mubr.f32.mxu0 0.0
      %1205 = vmatmul.mubr.f32.gmra.mrb[0].mxu0 %v1123
      %v1206 = vpop.f32.mrb[0].mxu0
      %v1207 = vadd.f32 0.0, %v1206
      %v1208 = vpop.f32.mrb[0].mxu0
      %1209 = vdwg.mxu0
      %v1210 = vmax.f32 %v1085, %v1192
      %v1211 = vmax.f32 %v1086, %v1197
      %v1212 = vmax.f32 %v1087, %v1202
      %v1213 = vmax.f32 %v1088, %v1207
      %v1214 = vpack.c.bf16 %v1211, %v1210
      %v1215 = vpack.c.bf16 %v1213, %v1212
      %v1218 = vunpack.c.l.b16 %v1214
      %v1219 = vunpack.c.h.b16 %v1214
      %v1220 = vunpack.c.l.b16 %v1215
      %v1221 = vunpack.c.h.b16 %v1215
      %v1222 = vpack.c.b16 %v1218, %v1218
      %v1223 = vpack.c.b16 %v1219, %v1219
      %v1224 = vpack.c.b16 %v1220, %v1220
      %v1225 = vpack.c.b16 %v1221, %v1221
      %1230 = vst [vmem:[%s201] sm:$0xf] %v1222
      %1231 = vst [vmem:[%s201 + $0x4] sm:$0xf] %v1223
      %1232 = vst [vmem:[%s201 + $0x8] sm:$0xf] %v1224
      %1233 = vst [vmem:[%s201 + $0xc] sm:$0xf] %v1225
      %s1234 = smul.u32 4, %s18
      %p1235 = scmp.lt.s32.totalorder %s17, 1
      %s1236 = scalar_select %p1235, %s17, 1
      %p1237 = scmp.lt.s32.totalorder %s1234, 3
      %s1238 = scalar_select %p1237, %s1234, 3
      %s1239 = smul.addr %s1236, 4
      %s1240 = sadd.s32 %s1238, %s1239
      %s1241 = smul.addr %s1240, 4
      %s1242 = scalar_lea.vmem %s2, %s1241
      // Predicated region
      $region29: #{assanet_encoder_forward.16} parent=27 // pred_check
        %p1243 = pneg %p99
      $region30: #{assanet_encoder_forward.16} parent=27 // pred_check_branch
        %1245 = sbr.rel (%p1243) target = $region32
      $region31: #{assanet_encoder_forward.16} parent=27 // pred_region
        %s1246 = smul.u32 4, %s18
      $region32: #{assanet_encoder_forward.16} parent=27 // pred_fallthru
        _
    $region28: #{assanet_encoder_forward.16} parent=5 // pred_fallthru
      _
    %p1247 = scmp.le.s32.totalorder 2, %s8
    // Predicated region
    $region33: #{assanet_encoder_forward.16} parent=5 // pred_check
      %p1248 = pneg %p1247
    $region34: #{assanet_encoder_forward.16} parent=5 // pred_check_branch
      %1250 = sbr.rel (%p1248) target = $region36
    $region35: #{assanet_encoder_forward.16} parent=5 // pred_region
      %s1251 = ssub.s32 %s8, 2
      // Predicated region
      $region37: #{assanet_encoder_forward.16} parent=35 // pred_check
        %p1252 = pneg %p105
      $region38: #{assanet_encoder_forward.16} parent=35 // pred_check_branch
        %1254 = sbr.rel (%p1252) target = $region40
      $region39: #{assanet_encoder_forward.16} parent=35 // pred_region
        %s1255 = smul.u32 4, %s20
        %p1256 = scmp.lt.s32.totalorder %s19, 1
        %s1257 = scalar_select %p1256, %s19, 1
        %p1258 = scmp.lt.s32.totalorder %s1255, 3
        %s1259 = scalar_select %p1258, %s1255, 3
        %s1260 = smul.addr %s1257, 4
        %s1261 = sadd.s32 %s1259, %s1260
        %s1262 = smul.addr %s1261, 4
        %s1263 = scalar_lea.vmem %s2, %s1262
      $region40: #{assanet_encoder_forward.16} parent=35 // pred_fallthru
        _
    $region36: #{assanet_encoder_forward.16} parent=5 // pred_fallthru
      _
  $region6: #{assanet_encoder_forward.16} parent=0 // loop_footer
    %s12 = sadd.s32 1, %s8
  $region7: #{assanet_encoder_forward.16} parent=0 // loop_footer_branch
    %7 = sbr.rel target = $region3
  $region8: #{assanet_encoder_forward.16} parent=0 // loop_exit
    _

// kernel: assanet_encoder_forward.20
$region0: #{assanet_encoder_forward.20}
  #allocation0 [shape = 'u32[]', space=smem, size = 0x4, offset = 0x4, fixed_abs, tag = 'smem constant byte address 0x4 - core index']
  #allocation1 [shape = 'u32[144,128]{1,0:T(1,128)}', space=vmem, size = 0x12000, scoped, tag = 'internal scratch']
  %s0 = inlined_call_operand.vmem [shape: bf16[32,128], index: 0, kind: input, shape index: {}]
  %s1 = inlined_call_operand.vmem [shape: bf16[1,128,128], index: 1, kind: input, shape index: {}]
  %s2 = inlined_call_operand.vmem [shape: f32[1,1,128], index: 2, kind: input, shape index: {}]
  %s3 = inlined_call_operand.vmem [shape: bf16[32,128], index: 3, kind: output, shape index: {}]
  %s4 = sld [smem:[#allocation0]]
  $region22: #{assanet_encoder_forward.20} parent=0
    _
  %s6 = ssub.s32 1, %s4
  %s7 = scalar_select 0, %s6, %s4
  // Predicated region
  $region2: #{assanet_encoder_forward.20} parent=0 // pred_check
    _
  $region3: #{assanet_encoder_forward.20} parent=0 // pred_check_branch
    %9 = sbr.rel (0) target = $region5
  $region4: #{assanet_encoder_forward.20} parent=0 // pred_region
    _
  $region5: #{assanet_encoder_forward.20} parent=0 // pred_fallthru
    _
  // Predicated region
  $region6: #{assanet_encoder_forward.20} parent=0 // pred_check
    _
  $region7: #{assanet_encoder_forward.20} parent=0 // pred_check_branch
    %11 = sbr.rel (0) target = $region9
  $region8: #{assanet_encoder_forward.20} parent=0 // pred_region
    _
  $region9: #{assanet_encoder_forward.20} parent=0 // pred_fallthru
    _
  // Predicated region
  $region10: #{assanet_encoder_forward.20} parent=0 // pred_check
    _
  $region11: #{assanet_encoder_forward.20} parent=0 // pred_check_branch
    %13 = sbr.rel (0) target = $region13
  $region12: #{assanet_encoder_forward.20} parent=0 // pred_region
    _
  $region13: #{assanet_encoder_forward.20} parent=0 // pred_fallthru
    _
  %v15 = vld [vmem:[%s0] sm:$0xf]
  %v16 = vld [vmem:[%s0 + $0x4] sm:$0xf]
  %v17 = vld [vmem:[%s0 + $0x8] sm:$0xf]
  %v18 = vld [vmem:[%s0 + $0xc] sm:$0xf]
  %v19 = vld [vmem:[%s1] sm:$0xf]
  %v20 = vld [vmem:[%s1 + $0x4] sm:$0xf]
  %v21 = vld [vmem:[%s1 + $0x8] sm:$0xf]
  %v22 = vld [vmem:[%s1 + $0xc] sm:$0xf]
  %v23 = vld [vmem:[%s1 + $0x10] sm:$0xf]
  %v24 = vld [vmem:[%s1 + $0x14] sm:$0xf]
  %v25 = vld [vmem:[%s1 + $0x18] sm:$0xf]
  %v26 = vld [vmem:[%s1 + $0x1c] sm:$0xf]
  %v27 = vld [vmem:[%s1 + $0x20] sm:$0xf]
  %v28 = vld [vmem:[%s1 + $0x24] sm:$0xf]
  %v29 = vld [vmem:[%s1 + $0x28] sm:$0xf]
  %v30 = vld [vmem:[%s1 + $0x2c] sm:$0xf]
  %v31 = vld [vmem:[%s1 + $0x30] sm:$0xf]
  %v32 = vld [vmem:[%s1 + $0x34] sm:$0xf]
  %v33 = vld [vmem:[%s1 + $0x38] sm:$0xf]
  %v34 = vld [vmem:[%s1 + $0x3c] sm:$0xf]
  %v35 = vld [vmem:[%s2] sm:$0x1]
  %v37 = vlaneseq
  %v38 = vshrl.u32 %v37, 7
  %v39 = vsub.s32 0, %v38
  %v40 = vrot.slane %v35, %v39
  %v46 = vunpack.c.l.b16 %v15
  %v47 = vunpack.c.l.b16 %v16
  %v48 = vunpack.c.l.b16 %v17
  %v49 = vunpack.c.l.b16 %v18
  %v50 = vpack.c.b16 %v47, %v46
  %v51 = vpack.c.b16 %v49, %v48
  %v70 = vunpack.c.l.b16 %v19
  %v71 = vunpack.c.l.b16 %v20
  %v72 = vunpack.c.l.b16 %v21
  %v73 = vunpack.c.l.b16 %v22
  %v74 = vunpack.c.l.b16 %v23
  %v75 = vunpack.c.l.b16 %v24
  %v76 = vunpack.c.l.b16 %v25
  %v77 = vunpack.c.l.b16 %v26
  %v78 = vunpack.c.l.b16 %v27
  %v79 = vunpack.c.l.b16 %v28
  %v80 = vunpack.c.l.b16 %v29
  %v81 = vunpack.c.l.b16 %v30
  %v82 = vunpack.c.l.b16 %v31
  %v83 = vunpack.c.l.b16 %v32
  %v84 = vunpack.c.l.b16 %v33
  %v85 = vunpack.c.l.b16 %v34
  %v86 = vpack.c.b16 %v71, %v70
  %v87 = vpack.c.b16 %v73, %v72
  %v88 = vpack.c.b16 %v75, %v74
  %v89 = vpack.c.b16 %v77, %v76
  %v90 = vpack.c.b16 %v79, %v78
  %v91 = vpack.c.b16 %v81, %v80
  %v92 = vpack.c.b16 %v83, %v82
  %v93 = vpack.c.b16 %v85, %v84
  %102 = vmatprep.subr.bf16.mxu0 0
  %103 = vmatpush1.bf16.msra.mxu0 %v86
  %104 = vmatprep.subr.bf16.mxu0 0
  %105 = vmatpush1.bf16.msra.mxu0 %v87
  %106 = vmatprep.subr.bf16.mxu0 0
  %107 = vmatpush1.bf16.msra.mxu0 %v88
  %108 = vmatprep.subr.bf16.mxu0 0
  %109 = vmatpush1.bf16.msra.mxu0 %v89
  %110 = vmatprep.subr.bf16.mxu0 0
  %111 = vmatpush1.bf16.msra.mxu0 %v90
  %112 = vmatprep.subr.bf16.mxu0 0
  %113 = vmatpush1.bf16.msra.mxu0 %v91
  %114 = vmatprep.subr.bf16.mxu0 0
  %115 = vmatpush1.bf16.msra.mxu0 %v92
  %116 = vmatprep.subr.bf16.mxu0 0
  %117 = vmatpush1.bf16.msra.mxu0 %v93
  %118 = vmatprep.subr.bf16.mxu0 0
  %119 = vmatpush1.bf16.msra.mxu0 0
  %120 = vmatprep.subr.bf16.mxu0 0
  %121 = vmatpush1.bf16.msra.mxu0 0
  %122 = vmatprep.subr.bf16.mxu0 0
  %123 = vmatpush1.bf16.msra.mxu0 0
  %124 = vmatprep.subr.bf16.mxu0 0
  %125 = vmatpush1.bf16.msra.mxu0 0
  %126 = vmatprep.subr.bf16.mxu0 0
  %127 = vmatpush1.bf16.msra.mxu0 0
  %128 = vmatprep.subr.bf16.mxu0 0
  %129 = vmatpush1.bf16.msra.mxu0 0
  %130 = vmatprep.subr.bf16.mxu0 0
  %131 = vmatpush1.bf16.msra.mxu0 0
  %132 = vmatprep.subr.bf16.mxu0 0
  %133 = vmatpush1.bf16.msra.mxu0 0
  %134 = vmatprep.mubr.bf16.mxu0 0
  %135 = vmatmul.mubr.bf16.gmra.mrb[0].mxu0 %v50
  %v136 = vpop.f32.mrb[0].mxu0
  %v137 = vadd.f32 %v40, %v136
  %v138 = vpop.f32.mrb[0].mxu0
  %v139 = vpop.f32.mrb[0].mxu0
  %v140 = vadd.f32 %v40, %v139
  %v141 = vpop.f32.mrb[0].mxu0
  %142 = vmatprep.mubr.bf16.mxu0 0
  %143 = vmatmul.mubr.bf16.gmra.mrb[0].mxu0 %v51
  %v144 = vpop.f32.mrb[0].mxu0
  %v145 = vadd.f32 %v40, %v144
  %v146 = vpop.f32.mrb[0].mxu0
  %v147 = vpop.f32.mrb[0].mxu0
  %v148 = vadd.f32 %v40, %v147
  %v149 = vpop.f32.mrb[0].mxu0
  %150 = vdwg.mxu0
  %v151 = vmax.f32 %v137, 0.0
  %v152 = vmax.f32 %v140, 0.0
  %v153 = vmax.f32 %v145, 0.0
  %v154 = vmax.f32 %v148, 0.0
  %v155 = vpack.c.bf16 %v152, %v151
  %v156 = vpack.c.bf16 %v154, %v153
  %v159 = vunpack.c.l.b16 %v155
  %v160 = vunpack.c.h.b16 %v155
  %v161 = vunpack.c.l.b16 %v156
  %v162 = vunpack.c.h.b16 %v156
  %v163 = vpack.c.b16 %v159, %v159
  %v164 = vpack.c.b16 %v160, %v160
  %v165 = vpack.c.b16 %v161, %v161
  %v166 = vpack.c.b16 %v162, %v162
  %171 = vst [vmem:[%s3] sm:$0xf] %v163
  %172 = vst [vmem:[%s3 + $0x4] sm:$0xf] %v164
  %173 = vst [vmem:[%s3 + $0x8] sm:$0xf] %v165
  %174 = vst [vmem:[%s3 + $0xc] sm:$0xf] %v166
  // Predicated region
  $region14: #{assanet_encoder_forward.20} parent=0 // pred_check
    _
  $region15: #{assanet_encoder_forward.20} parent=0 // pred_check_branch
    %176 = sbr.rel (0) target = $region17
  $region16: #{assanet_encoder_forward.20} parent=0 // pred_region
    _
  $region17: #{assanet_encoder_forward.20} parent=0 // pred_fallthru
    _
  // Predicated region
  $region18: #{assanet_encoder_forward.20} parent=0 // pred_check
    _
  $region19: #{assanet_encoder_forward.20} parent=0 // pred_check_branch
    %178 = sbr.rel (0) target = $region21
  $region20: #{assanet_encoder_forward.20} parent=0 // pred_region
    _
  $region21: #{assanet_encoder_forward.20} parent=0 // pred_fallthru
    _

// kernel: assanet_encoder_forward.19
$region0: #{assanet_encoder_forward.19}
  #allocation0 [shape = 'u32[]', space=smem, size = 0x4, offset = 0x4, fixed_abs, tag = 'smem constant byte address 0x4 - core index']
  #allocation1 [shape = 'u32[144,128]{1,0:T(1,128)}', space=vmem, size = 0x12000, scoped, tag = 'internal scratch']
  %s0 = inlined_call_operand.vmem [shape: bf16[2,32,128], index: 0, kind: input, shape index: {}]
  %s1 = inlined_call_operand.vmem [shape: s32[2,16,8], index: 1, kind: input, shape index: {}]
  %s2 = inlined_call_operand.vmem [shape: bf16[2,16,128], index: 2, kind: output, shape index: {}]
  %s3 = sld [smem:[#allocation0]]
  $region41: #{assanet_encoder_forward.19} parent=0
    _
  %s5 = ssub.s32 1, %s3
  %s6 = scalar_select 0, %s5, %s3
  loop: start=0, step=1, limit=4
  $region2: #{assanet_encoder_forward.19} parent=0 // loop_pre_header
    _
  $region3: #{assanet_encoder_forward.19} parent=0 // loop_header
    %s8 = sphi 0, %s12
    %p9 = scmp.ge.s32.totalorder %s8, 4
    %s15 = sphi 0, %s27
    %s16 = sphi 0, %s23
    %s17 = sphi 0, %s15
    %s18 = sphi 0, %s16
    %s19 = sphi 0, %s17
    %s20 = sphi 0, %s18
    %s30 = sphi 0, %s32
    %s33 = sphi 0, %s30
    %s34 = sphi 0, %s33
    %s50 = sphi 0, %s34
    %s58 = sphi 0, %s60
    %s61 = sphi 0, %s58
    %s62 = sphi 0, %s61
    %s78 = sphi 0, %s62
    %s86 = sphi 0, %s88
    %s89 = sphi 0, %s86
    %s90 = sphi 0, %s89
    %s106 = sphi 0, %s90
  $region4: #{assanet_encoder_forward.19} parent=0 // loop_header_branch
    %11 = sbr.rel (%p9) target = $region8
  $region5: #{assanet_encoder_forward.19} parent=0 // loop_body
    %s13 = ssub.s32 %s8, 1
    %s14 = ssub.s32 %s8, 2
    %s21 = sadd.s32 1, %s16
    %p22 = scmp.ge.s32.totalorder %s21, 1
    %s23 = scalar_select %p22, 0, %s21
    %s24 = sadd.s32 1, %s15
    %s25 = scalar_select %p22, %s24, %s15
    %p26 = scmp.ge.s32.totalorder %s25, 2
    %s27 = scalar_select %p26, 0, %s25
    %s28 = ssub.s32 %s15, %s27
    %p29 = scmp.eq.s32.totalorder %s28, 0
    %s31 = sadd.s32 %s30, 1
    %s32 = scalar_select %p29, %s30, %s31
    %p35 = pneg %p29
    %p36 = scmp.eq.s32.totalorder %s8, 1
    %p37 = por %p35, %p36
    %p38 = scmp.ne.s32.totalorder %s30, %s33
    %p39 = scmp.eq.s32.totalorder %s8, 0
    %p40 = por %p38, %p39
    %p41 = scmp.ne.s32.totalorder %s30, %s33
    %p42 = scmp.eq.s32.totalorder %s13, 1
    %p43 = por %p41, %p42
    %p44 = scmp.ne.s32.totalorder %s33, %s34
    %p45 = scmp.eq.s32.totalorder %s13, 0
    %p46 = por %p44, %p45
    %p47 = scmp.ne.s32.totalorder %s33, %s34
    %p48 = scmp.eq.s32.totalorder %s14, 1
    %p49 = por %p47, %p48
    %p51 = scmp.ne.s32.totalorder %s34, %s50
    %p52 = scmp.eq.s32.totalorder %s14, 0
    %p53 = por %p51, %p52
    %s54 = ssub.s32 %s15, %s27
    %s55 = ssub.s32 %s16, %s23
    %s56 = sor.u32 %s54, %s55
    %p57 = scmp.eq.s32.totalorder %s56, 0
    %s59 = sadd.s32 %s58, 1
    %s60 = scalar_select %p57, %s58, %s59
    %p63 = pneg %p57
    %p64 = scmp.eq.s32.totalorder %s8, 1
    %p65 = por %p63, %p64
    %p66 = scmp.ne.s32.totalorder %s58, %s61
    %p67 = scmp.eq.s32.totalorder %s8, 0
    %p68 = por %p66, %p67
    %p69 = scmp.ne.s32.totalorder %s58, %s61
    %p70 = scmp.eq.s32.totalorder %s13, 1
    %p71 = por %p69, %p70
    %p72 = scmp.ne.s32.totalorder %s61, %s62
    %p73 = scmp.eq.s32.totalorder %s13, 0
    %p74 = por %p72, %p73
    %p75 = scmp.ne.s32.totalorder %s61, %s62
    %p76 = scmp.eq.s32.totalorder %s14, 1
    %p77 = por %p75, %p76
    %p79 = scmp.ne.s32.totalorder %s62, %s78
    %p80 = scmp.eq.s32.totalorder %s14, 0
    %p81 = por %p79, %p80
    %s82 = ssub.s32 %s15, %s27
    %s83 = ssub.s32 %s16, %s23
    %s84 = sor.u32 %s82, %s83
    %p85 = scmp.eq.s32.totalorder %s84, 0
    %s87 = sadd.s32 %s86, 1
    %s88 = scalar_select %p85, %s86, %s87
    %p91 = pneg %p85
    %p92 = scmp.eq.s32.totalorder %s8, 1
    %p93 = por %p91, %p92
    %p94 = scmp.ne.s32.totalorder %s86, %s89
    %p95 = scmp.eq.s32.totalorder %s8, 0
    %p96 = por %p94, %p95
    %p97 = scmp.ne.s32.totalorder %s86, %s89
    %p98 = scmp.eq.s32.totalorder %s13, 1
    %p99 = por %p97, %p98
    %p100 = scmp.ne.s32.totalorder %s89, %s90
    %p101 = scmp.eq.s32.totalorder %s13, 0
    %p102 = por %p100, %p101
    %p103 = scmp.ne.s32.totalorder %s89, %s90
    %p104 = scmp.eq.s32.totalorder %s14, 1
    %p105 = por %p103, %p104
    %p107 = scmp.ne.s32.totalorder %s90, %s106
    %p108 = scmp.eq.s32.totalorder %s14, 0
    %p109 = por %p107, %p108
    %p110 = scmp.le.s32.totalorder 1, %s8
    %p111 = scmp.lt.s32.totalorder %s8, 3
    %p112 = pnand %p110, %p111
    %p113 = pneg %p112
    // Predicated region
    $region9: #{assanet_encoder_forward.19} parent=5 // pred_check
      _
    $region10: #{assanet_encoder_forward.19} parent=5 // pred_check_branch
      %115 = sbr.rel (%p112) target = $region12
    $region11: #{assanet_encoder_forward.19} parent=5 // pred_region
      %s116 = ssub.s32 %s8, 1
    $region12: #{assanet_encoder_forward.19} parent=5 // pred_fallthru
      _
    %p117 = scmp.lt.s32.totalorder %s8, 2
    // Predicated region
    $region13: #{assanet_encoder_forward.19} parent=5 // pred_check
      %p118 = pneg %p117
    $region14: #{assanet_encoder_forward.19} parent=5 // pred_check_branch
      %120 = sbr.rel (%p118) target = $region16
    $region15: #{assanet_encoder_forward.19} parent=5 // pred_region
      // Predicated region
      $region17: #{assanet_encoder_forward.19} parent=15 // pred_check
        %p121 = pneg %p40
      $region18: #{assanet_encoder_forward.19} parent=15 // pred_check_branch
        %123 = sbr.rel (%p121) target = $region20
      $region19: #{assanet_encoder_forward.19} parent=15 // pred_region
        %p124 = scmp.lt.s32.totalorder %s15, 1
        %s125 = scalar_select %p124, %s15, 1
        %s126 = smul.addr %s125, 4
        %s127 = smul.addr %s126, 4
        %s128 = scalar_lea.vmem %s0, %s127
      $region20: #{assanet_encoder_forward.19} parent=15 // pred_fallthru
        _
      // Predicated region
      $region21: #{assanet_encoder_forward.19} parent=15 // pred_check
        %p129 = pneg %p68
      $region22: #{assanet_encoder_forward.19} parent=15 // pred_check_branch
        %131 = sbr.rel (%p129) target = $region24
      $region23: #{assanet_encoder_forward.19} parent=15 // pred_region
        %s132 = smul.u32 2, %s16
        %p133 = scmp.lt.s32.totalorder %s15, 1
        %s134 = scalar_select %p133, %s15, 1
        %p135 = scmp.lt.s32.totalorder %s132, 1
        %s136 = scalar_select %p135, %s132, 1
        %s137 = smul.addr %s134, 2
        %s138 = sadd.s32 %s136, %s137
        %s139 = smul.addr %s138, 8
        %s140 = scalar_lea.vmem %s1, %s139
        %s141 = smul.u32 2, %s16
      $region24: #{assanet_encoder_forward.19} parent=15 // pred_fallthru
        _
    $region16: #{assanet_encoder_forward.19} parent=5 // pred_fallthru
      _
    %p142 = scmp.le.s32.totalorder 1, %s8
    %p143 = scmp.lt.s32.totalorder %s8, 3
    %p144 = pnand %p142, %p143
    %p145 = pneg %p144
    // Predicated region
    $region25: #{assanet_encoder_forward.19} parent=5 // pred_check
      _
    $region26: #{assanet_encoder_forward.19} parent=5 // pred_check_branch
      %147 = sbr.rel (%p144) target = $region28
    $region27: #{assanet_encoder_forward.19} parent=5 // pred_region
      %s148 = ssub.s32 %s8, 1
      %p149 = scmp.lt.s32.totalorder %s17, 1
      %s150 = scalar_select %p149, %s17, 1
      %s151 = smul.addr %s150, 4
      %s152 = smul.addr %s151, 4
      %s153 = scalar_lea.vmem %s0, %s152
      %p154 = pneg %p46
      %p155 = pneg %p43
      %s156 = smul.u32 2, %s18
      %p157 = scmp.lt.s32.totalorder %s17, 1
      %s158 = scalar_select %p157, %s17, 1
      %p159 = scmp.lt.s32.totalorder %s156, 1
      %s160 = scalar_select %p159, %s156, 1
      %s161 = smul.addr %s158, 2
      %s162 = sadd.s32 %s160, %s161
      %s163 = smul.addr %s162, 8
      %s164 = scalar_lea.vmem %s1, %s163
      %p165 = pneg %p74
      %p166 = pneg %p71
      %p167 = pneg %p102
      %p168 = pneg %p99
      %s169 = smul.u32 2, %s18
      %p170 = scmp.lt.s32.totalorder %s17, 1
      %s171 = scalar_select %p170, %s17, 1
      %p172 = scmp.lt.s32.totalorder %s169, 1
      %s173 = scalar_select %p172, %s169, 1
      %s174 = smul.addr %s171, 2
      %s175 = sadd.s32 %s173, %s174
      %s176 = smul.addr %s175, 4
      %s177 = scalar_lea.vmem %s2, %s176
      %p178 = scmp.lt.s32.totalorder %s17, 1
      %s179 = scalar_select %p178, %s17, 1
      %s180 = smul.addr %s179, 4
      %s181 = smul.addr %s180, 4
      %s182 = scalar_lea.vmem %s0, %s181
      %s183 = smul.u32 2, %s18
      %p184 = scmp.lt.s32.totalorder %s17, 1
      %s185 = scalar_select %p184, %s17, 1
      %p186 = scmp.lt.s32.totalorder %s183, 1
      %s187 = scalar_select %p186, %s183, 1
      %s188 = smul.addr %s185, 2
      %s189 = sadd.s32 %s187, %s188
      %s190 = smul.addr %s189, 8
      %s191 = scalar_lea.vmem %s1, %s190
      %s192 = smul.u32 2, %s18
      %s193 = smul.u32 2, %s18
      %p194 = scmp.lt.s32.totalorder %s17, 1
      %s195 = scalar_select %p194, %s17, 1
      %p196 = scmp.lt.s32.totalorder %s193, 1
      %s197 = scalar_select %p196, %s193, 1
      %s198 = smul.addr %s195, 2
      %s199 = sadd.s32 %s197, %s198
      %s200 = smul.addr %s199, 4
      %s201 = scalar_lea.vmem %s2, %s200
      %s202 = smul.u32 2, %s18
      %v203 = vld [vmem:[%s182] sm:$0xf]
      %v204 = vld [vmem:[%s182 + $0x4] sm:$0xf]
      %v205 = vld [vmem:[%s182 + $0x8] sm:$0xf]
      %v206 = vld [vmem:[%s182 + $0xc] sm:$0xf]
      %v207 = vunpack.c.l.bf16 %v203
      %v208 = vunpack.c.l.bf16 %v204
      %v209 = vunpack.c.l.bf16 %v205
      %v210 = vunpack.c.l.bf16 %v206
      %v211 = vld [vmem:[%s191] sm:$0xff]
      %v212 = vld [vmem:[%s191 + $0x8] sm:$0xff]
      %v213 = vlaneseq
      %v214 = vand.u32 %v213, 127
      %215 = vset.pattern.permute.xlu0 0
      %216 = vperm.xlu0 %215, %v211
      %v217 = vpop.permute.xlu0 %216
      %218 = vset.pattern.permute.xlu0 0
      %219 = vperm.xlu0 %218, %v212
      %v220 = vpop.permute.xlu0 %219
      %vm221 = vcmp.eq.s32.totalorder %v214, %v217
      %vm222 = vcmp.eq.s32.totalorder %v214, %v220
      %v223 = vsel %vm221, 1, 0
      %v224 = vsel %vm222, 1, 0
      %v225 = vcvt.s32.f32 %v223
      %v226 = vcvt.s32.f32 %v224
      %vm227 = vcmask 261120
      %v229 = vsel %vm227, %v225, 0
      %v232 = vsel %vm227, %v226, 0
      %234 = vmatprep.subr.mxu0 0.0
      %235 = vmatpush1.msra.mxu0 %v207
      %236 = vmatprep.subr.mxu0 0.0
      %237 = vmatpush1.msra.mxu0 %v208
      %238 = vmatprep.subr.mxu0 0.0
      %239 = vmatpush1.msra.mxu0 %v209
      %240 = vmatprep.subr.mxu0 0.0
      %241 = vmatpush1.msra.mxu0 %v210
      %242 = vmatprep.subr.mxu0 0.0
      %243 = vmatpush1.msra.mxu0 0.0
      %244 = vmatprep.subr.mxu0 0.0
      %245 = vmatpush1.msra.mxu0 0.0
      %246 = vmatprep.subr.mxu0 0.0
      %247 = vmatpush1.msra.mxu0 0.0
      %248 = vmatprep.subr.mxu0 0.0
      %249 = vmatpush1.msra.mxu0 0.0
      %250 = vmatprep.subr.mxu0 0.0
      %251 = vmatpush1.msra.mxu0 0.0
      %252 = vmatprep.subr.mxu0 0.0
      %253 = vmatpush1.msra.mxu0 0.0
      %254 = vmatprep.subr.mxu0 0.0
      %255 = vmatpush1.msra.mxu0 0.0
      %256 = vmatprep.subr.mxu0 0.0
      %257 = vmatpush1.msra.mxu0 0.0
      %258 = vmatprep.subr.mxu0 0.0
      %259 = vmatpush1.msra.mxu0 0.0
      %260 = vmatprep.subr.mxu0 0.0
      %261 = vmatpush1.msra.mxu0 0.0
      %262 = vmatprep.subr.mxu0 0.0
      %263 = vmatpush1.msra.mxu0 0.0
      %264 = vmatprep.subr.mxu0 0.0
      %265 = vmatpush1.msra.mxu0 0.0
      %266 = vmatprep.subr.mxu0 0.0
      %267 = vmatpush1.msra.mxu0 0.0
      %268 = vmatprep.subr.mxu0 0.0
      %269 = vmatpush1.msra.mxu0 0.0
      %270 = vmatprep.subr.mxu0 0.0
      %271 = vmatpush1.msra.mxu0 0.0
      %272 = vmatprep.subr.mxu0 0.0
      %273 = vmatpush1.msra.mxu0 0.0
      %274 = vmatprep.subr.mxu0 0.0
      %275 = vmatpush1.msra.mxu0 0.0
      %276 = vmatprep.subr.mxu0 0.0
      %277 = vmatpush1.msra.mxu0 0.0
      %278 = vmatprep.subr.mxu0 0.0
      %279 = vmatpush1.msra.mxu0 0.0
      %280 = vmatprep.subr.mxu0 0.0
      %281 = vmatpush1.msra.mxu0 0.0
      %282 = vmatprep.subr.mxu0 0.0
      %283 = vmatpush1.msra.mxu0 0.0
      %284 = vmatprep.subr.mxu0 0.0
      %285 = vmatpush1.msra.mxu0 0.0
      %286 = vmatprep.subr.mxu0 0.0
      %287 = vmatpush1.msra.mxu0 0.0
      %288 = vmatprep.subr.mxu0 0.0
      %289 = vmatpush1.msra.mxu0 0.0
      %290 = vmatprep.subr.mxu0 0.0
      %291 = vmatpush1.msra.mxu0 0.0
      %292 = vmatprep.subr.mxu0 0.0
      %293 = vmatpush1.msra.mxu0 0.0
      %294 = vmatprep.subr.mxu0 0.0
      %295 = vmatpush1.msra.mxu0 0.0
      %296 = vmatprep.subr.mxu0 0.0
      %297 = vmatpush1.msra.mxu0 0.0
      %298 = vmatprep.mubr.f32.mxu0 0.0
      %299 = vmatmul.mubr.f32.gmra.mrb[0].mxu0 %v229
      %v300 = vpop.f32.mrb[0].mxu0
      %v301 = vadd.f32 0.0, %v300
      %v302 = vpop.f32.mrb[0].mxu0
      %303 = vmatprep.mubr.f32.mxu0 0.0
      %304 = vmatmul.mubr.f32.gmra.mrb[0].mxu0 %v232
      %v305 = vpop.f32.mrb[0].mxu0
      %v306 = vadd.f32 0.0, %v305
      %v307 = vpop.f32.mrb[0].mxu0
      %308 = vdwg.mxu0
      %309 = vset.pattern.permute.xlu0 1
      %310 = vperm.xlu0 %309, %v211
      %v311 = vpop.permute.xlu0 %310
      %312 = vset.pattern.permute.xlu0 1
      %313 = vperm.xlu0 %312, %v212
      %v314 = vpop.permute.xlu0 %313
      %vm315 = vcmp.eq.s32.totalorder %v214, %v311
      %vm316 = vcmp.eq.s32.totalorder %v214, %v314
      %v317 = vsel %vm315, 1, 0
      %v318 = vsel %vm316, 1, 0
      %v319 = vcvt.s32.f32 %v317
      %v320 = vcvt.s32.f32 %v318
      %v322 = vsel %vm227, %v319, 0
      %v325 = vsel %vm227, %v320, 0
      %327 = vmatprep.subr.mxu0 0.0
      %328 = vmatpush1.msra.mxu0 %v207
      %329 = vmatprep.subr.mxu0 0.0
      %330 = vmatpush1.msra.mxu0 %v208
      %331 = vmatprep.subr.mxu0 0.0
      %332 = vmatpush1.msra.mxu0 %v209
      %333 = vmatprep.subr.mxu0 0.0
      %334 = vmatpush1.msra.mxu0 %v210
      %335 = vmatprep.subr.mxu0 0.0
      %336 = vmatpush1.msra.mxu0 0.0
      %337 = vmatprep.subr.mxu0 0.0
      %338 = vmatpush1.msra.mxu0 0.0
      %339 = vmatprep.subr.mxu0 0.0
      %340 = vmatpush1.msra.mxu0 0.0
      %341 = vmatprep.subr.mxu0 0.0
      %342 = vmatpush1.msra.mxu0 0.0
      %343 = vmatprep.subr.mxu0 0.0
      %344 = vmatpush1.msra.mxu0 0.0
      %345 = vmatprep.subr.mxu0 0.0
      %346 = vmatpush1.msra.mxu0 0.0
      %347 = vmatprep.subr.mxu0 0.0
      %348 = vmatpush1.msra.mxu0 0.0
      %349 = vmatprep.subr.mxu0 0.0
      %350 = vmatpush1.msra.mxu0 0.0
      %351 = vmatprep.subr.mxu0 0.0
      %352 = vmatpush1.msra.mxu0 0.0
      %353 = vmatprep.subr.mxu0 0.0
      %354 = vmatpush1.msra.mxu0 0.0
      %355 = vmatprep.subr.mxu0 0.0
      %356 = vmatpush1.msra.mxu0 0.0
      %357 = vmatprep.subr.mxu0 0.0
      %358 = vmatpush1.msra.mxu0 0.0
      %359 = vmatprep.subr.mxu0 0.0
      %360 = vmatpush1.msra.mxu0 0.0
      %361 = vmatprep.subr.mxu0 0.0
      %362 = vmatpush1.msra.mxu0 0.0
      %363 = vmatprep.subr.mxu0 0.0
      %364 = vmatpush1.msra.mxu0 0.0
      %365 = vmatprep.subr.mxu0 0.0
      %366 = vmatpush1.msra.mxu0 0.0
      %367 = vmatprep.subr.mxu0 0.0
      %368 = vmatpush1.msra.mxu0 0.0
      %369 = vmatprep.subr.mxu0 0.0
      %370 = vmatpush1.msra.mxu0 0.0
      %371 = vmatprep.subr.mxu0 0.0
      %372 = vmatpush1.msra.mxu0 0.0
      %373 = vmatprep.subr.mxu0 0.0
      %374 = vmatpush1.msra.mxu0 0.0
      %375 = vmatprep.subr.mxu0 0.0
      %376 = vmatpush1.msra.mxu0 0.0
      %377 = vmatprep.subr.mxu0 0.0
      %378 = vmatpush1.msra.mxu0 0.0
      %379 = vmatprep.subr.mxu0 0.0
      %380 = vmatpush1.msra.mxu0 0.0
      %381 = vmatprep.subr.mxu0 0.0
      %382 = vmatpush1.msra.mxu0 0.0
      %383 = vmatprep.subr.mxu0 0.0
      %384 = vmatpush1.msra.mxu0 0.0
      %385 = vmatprep.subr.mxu0 0.0
      %386 = vmatpush1.msra.mxu0 0.0
      %387 = vmatprep.subr.mxu0 0.0
      %388 = vmatpush1.msra.mxu0 0.0
      %389 = vmatprep.subr.mxu0 0.0
      %390 = vmatpush1.msra.mxu0 0.0
      %391 = vmatprep.mubr.f32.mxu0 0.0
      %392 = vmatmul.mubr.f32.gmra.mrb[0].mxu0 %v322
      %v393 = vpop.f32.mrb[0].mxu0
      %v394 = vadd.f32 0.0, %v393
      %v395 = vpop.f32.mrb[0].mxu0
      %396 = vmatprep.mubr.f32.mxu0 0.0
      %397 = vmatmul.mubr.f32.gmra.mrb[0].mxu0 %v325
      %v398 = vpop.f32.mrb[0].mxu0
      %v399 = vadd.f32 0.0, %v398
      %v400 = vpop.f32.mrb[0].mxu0
      %401 = vdwg.mxu0
      %v402 = vmax.f32 %v301, %v394
      %v403 = vmax.f32 %v306, %v399
      %404 = vset.pattern.permute.xlu0 2
      %405 = vperm.xlu0 %404, %v211
      %v406 = vpop.permute.xlu0 %405
      %407 = vset.pattern.permute.xlu0 2
      %408 = vperm.xlu0 %407, %v212
      %v409 = vpop.permute.xlu0 %408
      %vm410 = vcmp.eq.s32.totalorder %v214, %v406
      %vm411 = vcmp.eq.s32.totalorder %v214, %v409
      %v412 = vsel %vm410, 1, 0
      %v413 = vsel %vm411, 1, 0
      %v414 = vcvt.s32.f32 %v412
      %v415 = vcvt.s32.f32 %v413
      %v417 = vsel %vm227, %v414, 0
      %v420 = vsel %vm227, %v415, 0
      %422 = vmatprep.subr.mxu0 0.0
      %423 = vmatpush1.msra.mxu0 %v207
      %424 = vmatprep.subr.mxu0 0.0
      %425 = vmatpush1.msra.mxu0 %v208
      %426 = vmatprep.subr.mxu0 0.0
      %427 = vmatpush1.msra.mxu0 %v209
      %428 = vmatprep.subr.mxu0 0.0
      %429 = vmatpush1.msra.mxu0 %v210
      %430 = vmatprep.subr.mxu0 0.0
      %431 = vmatpush1.msra.mxu0 0.0
      %432 = vmatprep.subr.mxu0 0.0
      %433 = vmatpush1.msra.mxu0 0.0
      %434 = vmatprep.subr.mxu0 0.0
      %435 = vmatpush1.msra.mxu0 0.0
      %436 = vmatprep.subr.mxu0 0.0
      %437 = vmatpush1.msra.mxu0 0.0
      %438 = vmatprep.subr.mxu0 0.0
      %439 = vmatpush1.msra.mxu0 0.0
      %440 = vmatprep.subr.mxu0 0.0
      %441 = vmatpush1.msra.mxu0 0.0
      %442 = vmatprep.subr.mxu0 0.0
      %443 = vmatpush1.msra.mxu0 0.0
      %444 = vmatprep.subr.mxu0 0.0
      %445 = vmatpush1.msra.mxu0 0.0
      %446 = vmatprep.subr.mxu0 0.0
      %447 = vmatpush1.msra.mxu0 0.0
      %448 = vmatprep.subr.mxu0 0.0
      %449 = vmatpush1.msra.mxu0 0.0
      %450 = vmatprep.subr.mxu0 0.0
      %451 = vmatpush1.msra.mxu0 0.0
      %452 = vmatprep.subr.mxu0 0.0
      %453 = vmatpush1.msra.mxu0 0.0
      %454 = vmatprep.subr.mxu0 0.0
      %455 = vmatpush1.msra.mxu0 0.0
      %456 = vmatprep.subr.mxu0 0.0
      %457 = vmatpush1.msra.mxu0 0.0
      %458 = vmatprep.subr.mxu0 0.0
      %459 = vmatpush1.msra.mxu0 0.0
      %460 = vmatprep.subr.mxu0 0.0
      %461 = vmatpush1.msra.mxu0 0.0
      %462 = vmatprep.subr.mxu0 0.0
      %463 = vmatpush1.msra.mxu0 0.0
      %464 = vmatprep.subr.mxu0 0.0
      %465 = vmatpush1.msra.mxu0 0.0
      %466 = vmatprep.subr.mxu0 0.0
      %467 = vmatpush1.msra.mxu0 0.0
      %468 = vmatprep.subr.mxu0 0.0
      %469 = vmatpush1.msra.mxu0 0.0
      %470 = vmatprep.subr.mxu0 0.0
      %471 = vmatpush1.msra.mxu0 0.0
      %472 = vmatprep.subr.mxu0 0.0
      %473 = vmatpush1.msra.mxu0 0.0
      %474 = vmatprep.subr.mxu0 0.0
      %475 = vmatpush1.msra.mxu0 0.0
      %476 = vmatprep.subr.mxu0 0.0
      %477 = vmatpush1.msra.mxu0 0.0
      %478 = vmatprep.subr.mxu0 0.0
      %479 = vmatpush1.msra.mxu0 0.0
      %480 = vmatprep.subr.mxu0 0.0
      %481 = vmatpush1.msra.mxu0 0.0
      %482 = vmatprep.subr.mxu0 0.0
      %483 = vmatpush1.msra.mxu0 0.0
      %484 = vmatprep.subr.mxu0 0.0
      %485 = vmatpush1.msra.mxu0 0.0
      %486 = vmatprep.mubr.f32.mxu0 0.0
      %487 = vmatmul.mubr.f32.gmra.mrb[0].mxu0 %v417
      %v488 = vpop.f32.mrb[0].mxu0
      %v489 = vadd.f32 0.0, %v488
      %v490 = vpop.f32.mrb[0].mxu0
      %491 = vmatprep.mubr.f32.mxu0 0.0
      %492 = vmatmul.mubr.f32.gmra.mrb[0].mxu0 %v420
      %v493 = vpop.f32.mrb[0].mxu0
      %v494 = vadd.f32 0.0, %v493
      %v495 = vpop.f32.mrb[0].mxu0
      %496 = vdwg.mxu0
      %v497 = vmax.f32 %v402, %v489
      %v498 = vmax.f32 %v403, %v494
      %499 = vset.pattern.permute.xlu0 3
      %500 = vperm.xlu0 %499, %v211
      %v501 = vpop.permute.xlu0 %500
      %502 = vset.pattern.permute.xlu0 3
      %503 = vperm.xlu0 %502, %v212
      %v504 = vpop.permute.xlu0 %503
      %vm505 = vcmp.eq.s32.totalorder %v214, %v501
      %vm506 = vcmp.eq.s32.totalorder %v214, %v504
      %v507 = vsel %vm505, 1, 0
      %v508 = vsel %vm506, 1, 0
      %v509 = vcvt.s32.f32 %v507
      %v510 = vcvt.s32.f32 %v508
      %v512 = vsel %vm227, %v509, 0
      %v515 = vsel %vm227, %v510, 0
      %517 = vmatprep.subr.mxu0 0.0
      %518 = vmatpush1.msra.mxu0 %v207
      %519 = vmatprep.subr.mxu0 0.0
      %520 = vmatpush1.msra.mxu0 %v208
      %521 = vmatprep.subr.mxu0 0.0
      %522 = vmatpush1.msra.mxu0 %v209
      %523 = vmatprep.subr.mxu0 0.0
      %524 = vmatpush1.msra.mxu0 %v210
      %525 = vmatprep.subr.mxu0 0.0
      %526 = vmatpush1.msra.mxu0 0.0
      %527 = vmatprep.subr.mxu0 0.0
      %528 = vmatpush1.msra.mxu0 0.0
      %529 = vmatprep.subr.mxu0 0.0
      %530 = vmatpush1.msra.mxu0 0.0
      %531 = vmatprep.subr.mxu0 0.0
      %532 = vmatpush1.msra.mxu0 0.0
      %533 = vmatprep.subr.mxu0 0.0
      %534 = vmatpush1.msra.mxu0 0.0
      %535 = vmatprep.subr.mxu0 0.0
      %536 = vmatpush1.msra.mxu0 0.0
      %537 = vmatprep.subr.mxu0 0.0
      %538 = vmatpush1.msra.mxu0 0.0
      %539 = vmatprep.subr.mxu0 0.0
      %540 = vmatpush1.msra.mxu0 0.0
      %541 = vmatprep.subr.mxu0 0.0
      %542 = vmatpush1.msra.mxu0 0.0
      %543 = vmatprep.subr.mxu0 0.0
      %544 = vmatpush1.msra.mxu0 0.0
      %545 = vmatprep.subr.mxu0 0.0
      %546 = vmatpush1.msra.mxu0 0.0
      %547 = vmatprep.subr.mxu0 0.0
      %548 = vmatpush1.msra.mxu0 0.0
      %549 = vmatprep.subr.mxu0 0.0
      %550 = vmatpush1.msra.mxu0 0.0
      %551 = vmatprep.subr.mxu0 0.0
      %552 = vmatpush1.msra.mxu0 0.0
      %553 = vmatprep.subr.mxu0 0.0
      %554 = vmatpush1.msra.mxu0 0.0
      %555 = vmatprep.subr.mxu0 0.0
      %556 = vmatpush1.msra.mxu0 0.0
      %557 = vmatprep.subr.mxu0 0.0
      %558 = vmatpush1.msra.mxu0 0.0
      %559 = vmatprep.subr.mxu0 0.0
      %560 = vmatpush1.msra.mxu0 0.0
      %561 = vmatprep.subr.mxu0 0.0
      %562 = vmatpush1.msra.mxu0 0.0
      %563 = vmatprep.subr.mxu0 0.0
      %564 = vmatpush1.msra.mxu0 0.0
      %565 = vmatprep.subr.mxu0 0.0
      %566 = vmatpush1.msra.mxu0 0.0
      %567 = vmatprep.subr.mxu0 0.0
      %568 = vmatpush1.msra.mxu0 0.0
      %569 = vmatprep.subr.mxu0 0.0
      %570 = vmatpush1.msra.mxu0 0.0
      %571 = vmatprep.subr.mxu0 0.0
      %572 = vmatpush1.msra.mxu0 0.0
      %573 = vmatprep.subr.mxu0 0.0
      %574 = vmatpush1.msra.mxu0 0.0
      %575 = vmatprep.subr.mxu0 0.0
      %576 = vmatpush1.msra.mxu0 0.0
      %577 = vmatprep.subr.mxu0 0.0
      %578 = vmatpush1.msra.mxu0 0.0
      %579 = vmatprep.subr.mxu0 0.0
      %580 = vmatpush1.msra.mxu0 0.0
      %581 = vmatprep.mubr.f32.mxu0 0.0
      %582 = vmatmul.mubr.f32.gmra.mrb[0].mxu0 %v512
      %v583 = vpop.f32.mrb[0].mxu0
      %v584 = vadd.f32 0.0, %v583
      %v585 = vpop.f32.mrb[0].mxu0
      %586 = vmatprep.mubr.f32.mxu0 0.0
      %587 = vmatmul.mubr.f32.gmra.mrb[0].mxu0 %v515
      %v588 = vpop.f32.mrb[0].mxu0
      %v589 = vadd.f32 0.0, %v588
      %v590 = vpop.f32.mrb[0].mxu0
      %591 = vdwg.mxu0
      %v592 = vmax.f32 %v497, %v584
      %v593 = vmax.f32 %v498, %v589
      %594 = vset.pattern.permute.xlu0 4
      %595 = vperm.xlu0 %594, %v211
      %v596 = vpop.permute.xlu0 %595
      %597 = vset.pattern.permute.xlu0 4
      %598 = vperm.xlu0 %597, %v212
      %v599 = vpop.permute.xlu0 %598
      %vm600 = vcmp.eq.s32.totalorder %v214, %v596
      %vm601 = vcmp.eq.s32.totalorder %v214, %v599
      %v602 = vsel %vm600, 1, 0
      %v603 = vsel %vm601, 1, 0
      %v604 = vcvt.s32.f32 %v602
      %v605 = vcvt.s32.f32 %v603
      %v607 = vsel %vm227, %v604, 0
      %v610 = vsel %vm227, %v605, 0
      %612 = vmatprep.subr.mxu0 0.0
      %613 = vmatpush1.msra.mxu0 %v207
      %614 = vmatprep.subr.mxu0 0.0
      %615 = vmatpush1.msra.mxu0 %v208
      %616 = vmatprep.subr.mxu0 0.0
      %617 = vmatpush1.msra.mxu0 %v209
      %618 = vmatprep.subr.mxu0 0.0
      %619 = vmatpush1.msra.mxu0 %v210
      %620 = vmatprep.subr.mxu0 0.0
      %621 = vmatpush1.msra.mxu0 0.0
      %622 = vmatprep.subr.mxu0 0.0
      %623 = vmatpush1.msra.mxu0 0.0
      %624 = vmatprep.subr.mxu0 0.0
      %625 = vmatpush1.msra.mxu0 0.0
      %626 = vmatprep.subr.mxu0 0.0
      %627 = vmatpush1.msra.mxu0 0.0
      %628 = vmatprep.subr.mxu0 0.0
      %629 = vmatpush1.msra.mxu0 0.0
      %630 = vmatprep.subr.mxu0 0.0
      %631 = vmatpush1.msra.mxu0 0.0
      %632 = vmatprep.subr.mxu0 0.0
      %633 = vmatpush1.msra.mxu0 0.0
      %634 = vmatprep.subr.mxu0 0.0
      %635 = vmatpush1.msra.mxu0 0.0
      %636 = vmatprep.subr.mxu0 0.0
      %637 = vmatpush1.msra.mxu0 0.0
      %638 = vmatprep.subr.mxu0 0.0
      %639 = vmatpush1.msra.mxu0 0.0
      %640 = vmatprep.subr.mxu0 0.0
      %641 = vmatpush1.msra.mxu0 0.0
      %642 = vmatprep.subr.mxu0 0.0
      %643 = vmatpush1.msra.mxu0 0.0
      %644 = vmatprep.subr.mxu0 0.0
      %645 = vmatpush1.msra.mxu0 0.0
      %646 = vmatprep.subr.mxu0 0.0
      %647 = vmatpush1.msra.mxu0 0.0
      %648 = vmatprep.subr.mxu0 0.0
      %649 = vmatpush1.msra.mxu0 0.0
      %650 = vmatprep.subr.mxu0 0.0
      %651 = vmatpush1.msra.mxu0 0.0
      %652 = vmatprep.subr.mxu0 0.0
      %653 = vmatpush1.msra.mxu0 0.0
      %654 = vmatprep.subr.mxu0 0.0
      %655 = vmatpush1.msra.mxu0 0.0
      %656 = vmatprep.subr.mxu0 0.0
      %657 = vmatpush1.msra.mxu0 0.0
      %658 = vmatprep.subr.mxu0 0.0
      %659 = vmatpush1.msra.mxu0 0.0
      %660 = vmatprep.subr.mxu0 0.0
      %661 = vmatpush1.msra.mxu0 0.0
      %662 = vmatprep.subr.mxu0 0.0
      %663 = vmatpush1.msra.mxu0 0.0
      %664 = vmatprep.subr.mxu0 0.0
      %665 = vmatpush1.msra.mxu0 0.0
      %666 = vmatprep.subr.mxu0 0.0
      %667 = vmatpush1.msra.mxu0 0.0
      %668 = vmatprep.subr.mxu0 0.0
      %669 = vmatpush1.msra.mxu0 0.0
      %670 = vmatprep.subr.mxu0 0.0
      %671 = vmatpush1.msra.mxu0 0.0
      %672 = vmatprep.subr.mxu0 0.0
      %673 = vmatpush1.msra.mxu0 0.0
      %674 = vmatprep.subr.mxu0 0.0
      %675 = vmatpush1.msra.mxu0 0.0
      %676 = vmatprep.mubr.f32.mxu0 0.0
      %677 = vmatmul.mubr.f32.gmra.mrb[0].mxu0 %v607
      %v678 = vpop.f32.mrb[0].mxu0
      %v679 = vadd.f32 0.0, %v678
      %v680 = vpop.f32.mrb[0].mxu0
      %681 = vmatprep.mubr.f32.mxu0 0.0
      %682 = vmatmul.mubr.f32.gmra.mrb[0].mxu0 %v610
      %v683 = vpop.f32.mrb[0].mxu0
      %v684 = vadd.f32 0.0, %v683
      %v685 = vpop.f32.mrb[0].mxu0
      %686 = vdwg.mxu0
      %v687 = vmax.f32 %v592, %v679
      %v688 = vmax.f32 %v593, %v684
      %689 = vset.pattern.permute.xlu0 5
      %690 = vperm.xlu0 %689, %v211
      %v691 = vpop.permute.xlu0 %690
      %692 = vset.pattern.permute.xlu0 5
      %693 = vperm.xlu0 %692, %v212
      %v694 = vpop.permute.xlu0 %693
      %vm695 = vcmp.eq.s32.totalorder %v214, %v691
      %vm696 = vcmp.eq.s32.totalorder %v214, %v694
      %v697 = vsel %vm695, 1, 0
      %v698 = vsel %vm696, 1, 0
      %v699 = vcvt.s32.f32 %v697
      %v700 = vcvt.s32.f32 %v698
      %v702 = vsel %vm227, %v699, 0
      %v705 = vsel %vm227, %v700, 0
      %707 = vmatprep.subr.mxu0 0.0
      %708 = vmatpush1.msra.mxu0 %v207
      %709 = vmatprep.subr.mxu0 0.0
      %710 = vmatpush1.msra.mxu0 %v208
      %711 = vmatprep.subr.mxu0 0.0
      %712 = vmatpush1.msra.mxu0 %v209
      %713 = vmatprep.subr.mxu0 0.0
      %714 = vmatpush1.msra.mxu0 %v210
      %715 = vmatprep.subr.mxu0 0.0
      %716 = vmatpush1.msra.mxu0 0.0
      %717 = vmatprep.subr.mxu0 0.0
      %718 = vmatpush1.msra.mxu0 0.0
      %719 = vmatprep.subr.mxu0 0.0
      %720 = vmatpush1.msra.mxu0 0.0
      %721 = vmatprep.subr.mxu0 0.0
      %722 = vmatpush1.msra.mxu0 0.0
      %723 = vmatprep.subr.mxu0 0.0
      %724 = vmatpush1.msra.mxu0 0.0
      %725 = vmatprep.subr.mxu0 0.0
      %726 = vmatpush1.msra.mxu0 0.0
      %727 = vmatprep.subr.mxu0 0.0
      %728 = vmatpush1.msra.mxu0 0.0
      %729 = vmatprep.subr.mxu0 0.0
      %730 = vmatpush1.msra.mxu0 0.0
      %731 = vmatprep.subr.mxu0 0.0
      %732 = vmatpush1.msra.mxu0 0.0
      %733 = vmatprep.subr.mxu0 0.0
      %734 = vmatpush1.msra.mxu0 0.0
      %735 = vmatprep.subr.mxu0 0.0
      %736 = vmatpush1.msra.mxu0 0.0
      %737 = vmatprep.subr.mxu0 0.0
      %738 = vmatpush1.msra.mxu0 0.0
      %739 = vmatprep.subr.mxu0 0.0
      %740 = vmatpush1.msra.mxu0 0.0
      %741 = vmatprep.subr.mxu0 0.0
      %742 = vmatpush1.msra.mxu0 0.0
      %743 = vmatprep.subr.mxu0 0.0
      %744 = vmatpush1.msra.mxu0 0.0
      %745 = vmatprep.subr.mxu0 0.0
      %746 = vmatpush1.msra.mxu0 0.0
      %747 = vmatprep.subr.mxu0 0.0
      %748 = vmatpush1.msra.mxu0 0.0
      %749 = vmatprep.subr.mxu0 0.0
      %750 = vmatpush1.msra.mxu0 0.0
      %751 = vmatprep.subr.mxu0 0.0
      %752 = vmatpush1.msra.mxu0 0.0
      %753 = vmatprep.subr.mxu0 0.0
      %754 = vmatpush1.msra.mxu0 0.0
      %755 = vmatprep.subr.mxu0 0.0
      %756 = vmatpush1.msra.mxu0 0.0
      %757 = vmatprep.subr.mxu0 0.0
      %758 = vmatpush1.msra.mxu0 0.0
      %759 = vmatprep.subr.mxu0 0.0
      %760 = vmatpush1.msra.mxu0 0.0
      %761 = vmatprep.subr.mxu0 0.0
      %762 = vmatpush1.msra.mxu0 0.0
      %763 = vmatprep.subr.mxu0 0.0
      %764 = vmatpush1.msra.mxu0 0.0
      %765 = vmatprep.subr.mxu0 0.0
      %766 = vmatpush1.msra.mxu0 0.0
      %767 = vmatprep.subr.mxu0 0.0
      %768 = vmatpush1.msra.mxu0 0.0
      %769 = vmatprep.subr.mxu0 0.0
      %770 = vmatpush1.msra.mxu0 0.0
      %771 = vmatprep.mubr.f32.mxu0 0.0
      %772 = vmatmul.mubr.f32.gmra.mrb[0].mxu0 %v702
      %v773 = vpop.f32.mrb[0].mxu0
      %v774 = vadd.f32 0.0, %v773
      %v775 = vpop.f32.mrb[0].mxu0
      %776 = vmatprep.mubr.f32.mxu0 0.0
      %777 = vmatmul.mubr.f32.gmra.mrb[0].mxu0 %v705
      %v778 = vpop.f32.mrb[0].mxu0
      %v779 = vadd.f32 0.0, %v778
      %v780 = vpop.f32.mrb[0].mxu0
      %781 = vdwg.mxu0
      %v782 = vmax.f32 %v687, %v774
      %v783 = vmax.f32 %v688, %v779
      %784 = vset.pattern.permute.xlu0 6
      %785 = vperm.xlu0 %784, %v211
      %v786 = vpop.permute.xlu0 %785
      %787 = vset.pattern.permute.xlu0 6
      %788 = vperm.xlu0 %787, %v212
      %v789 = vpop.permute.xlu0 %788
      %vm790 = vcmp.eq.s32.totalorder %v214, %v786
      %vm791 = vcmp.eq.s32.totalorder %v214, %v789
      %v792 = vsel %vm790, 1, 0
      %v793 = vsel %vm791, 1, 0
      %v794 = vcvt.s32.f32 %v792
      %v795 = vcvt.s32.f32 %v793
      %v797 = vsel %vm227, %v794, 0
      %v800 = vsel %vm227, %v795, 0
      %802 = vmatprep.subr.mxu0 0.0
      %803 = vmatpush1.msra.mxu0 %v207
      %804 = vmatprep.subr.mxu0 0.0
      %805 = vmatpush1.msra.mxu0 %v208
      %806 = vmatprep.subr.mxu0 0.0
      %807 = vmatpush1.msra.mxu0 %v209
      %808 = vmatprep.subr.mxu0 0.0
      %809 = vmatpush1.msra.mxu0 %v210
      %810 = vmatprep.subr.mxu0 0.0
      %811 = vmatpush1.msra.mxu0 0.0
      %812 = vmatprep.subr.mxu0 0.0
      %813 = vmatpush1.msra.mxu0 0.0
      %814 = vmatprep.subr.mxu0 0.0
      %815 = vmatpush1.msra.mxu0 0.0
      %816 = vmatprep.subr.mxu0 0.0
      %817 = vmatpush1.msra.mxu0 0.0
      %818 = vmatprep.subr.mxu0 0.0
      %819 = vmatpush1.msra.mxu0 0.0
      %820 = vmatprep.subr.mxu0 0.0
      %821 = vmatpush1.msra.mxu0 0.0
      %822 = vmatprep.subr.mxu0 0.0
      %823 = vmatpush1.msra.mxu0 0.0
      %824 = vmatprep.subr.mxu0 0.0
      %825 = vmatpush1.msra.mxu0 0.0
      %826 = vmatprep.subr.mxu0 0.0
      %827 = vmatpush1.msra.mxu0 0.0
      %828 = vmatprep.subr.mxu0 0.0
      %829 = vmatpush1.msra.mxu0 0.0
      %830 = vmatprep.subr.mxu0 0.0
      %831 = vmatpush1.msra.mxu0 0.0
      %832 = vmatprep.subr.mxu0 0.0
      %833 = vmatpush1.msra.mxu0 0.0
      %834 = vmatprep.subr.mxu0 0.0
      %835 = vmatpush1.msra.mxu0 0.0
      %836 = vmatprep.subr.mxu0 0.0
      %837 = vmatpush1.msra.mxu0 0.0
      %838 = vmatprep.subr.mxu0 0.0
      %839 = vmatpush1.msra.mxu0 0.0
      %840 = vmatprep.subr.mxu0 0.0
      %841 = vmatpush1.msra.mxu0 0.0
      %842 = vmatprep.subr.mxu0 0.0
      %843 = vmatpush1.msra.mxu0 0.0
      %844 = vmatprep.subr.mxu0 0.0
      %845 = vmatpush1.msra.mxu0 0.0
      %846 = vmatprep.subr.mxu0 0.0
      %847 = vmatpush1.msra.mxu0 0.0
      %848 = vmatprep.subr.mxu0 0.0
      %849 = vmatpush1.msra.mxu0 0.0
      %850 = vmatprep.subr.mxu0 0.0
      %851 = vmatpush1.msra.mxu0 0.0
      %852 = vmatprep.subr.mxu0 0.0
      %853 = vmatpush1.msra.mxu0 0.0
      %854 = vmatprep.subr.mxu0 0.0
      %855 = vmatpush1.msra.mxu0 0.0
      %856 = vmatprep.subr.mxu0 0.0
      %857 = vmatpush1.msra.mxu0 0.0
      %858 = vmatprep.subr.mxu0 0.0
      %859 = vmatpush1.msra.mxu0 0.0
      %860 = vmatprep.subr.mxu0 0.0
      %861 = vmatpush1.msra.mxu0 0.0
      %862 = vmatprep.subr.mxu0 0.0
      %863 = vmatpush1.msra.mxu0 0.0
      %864 = vmatprep.subr.mxu0 0.0
      %865 = vmatpush1.msra.mxu0 0.0
      %866 = vmatprep.mubr.f32.mxu0 0.0
      %867 = vmatmul.mubr.f32.gmra.mrb[0].mxu0 %v797
      %v868 = vpop.f32.mrb[0].mxu0
      %v869 = vadd.f32 0.0, %v868
      %v870 = vpop.f32.mrb[0].mxu0
      %871 = vmatprep.mubr.f32.mxu0 0.0
      %872 = vmatmul.mubr.f32.gmra.mrb[0].mxu0 %v800
      %v873 = vpop.f32.mrb[0].mxu0
      %v874 = vadd.f32 0.0, %v873
      %v875 = vpop.f32.mrb[0].mxu0
      %876 = vdwg.mxu0
      %v877 = vmax.f32 %v782, %v869
      %v878 = vmax.f32 %v783, %v874
      %879 = vset.pattern.permute.xlu0 7
      %880 = vperm.xlu0 %879, %v211
      %v881 = vpop.permute.xlu0 %880
      %882 = vset.pattern.permute.xlu0 7
      %883 = vperm.xlu0 %882, %v212
      %v884 = vpop.permute.xlu0 %883
      %vm885 = vcmp.eq.s32.totalorder %v214, %v881
      %vm886 = vcmp.eq.s32.totalorder %v214, %v884
      %v887 = vsel %vm885, 1, 0
      %v888 = vsel %vm886, 1, 0
      %v889 = vcvt.s32.f32 %v887
      %v890 = vcvt.s32.f32 %v888
      %v892 = vsel %vm227, %v889, 0
      %v895 = vsel %vm227, %v890, 0
      %897 = vmatprep.subr.mxu0 0.0
      %898 = vmatpush1.msra.mxu0 %v207
      %899 = vmatprep.subr.mxu0 0.0
      %900 = vmatpush1.msra.mxu0 %v208
      %901 = vmatprep.subr.mxu0 0.0
      %902 = vmatpush1.msra.mxu0 %v209
      %903 = vmatprep.subr.mxu0 0.0
      %904 = vmatpush1.msra.mxu0 %v210
      %905 = vmatprep.subr.mxu0 0.0
      %906 = vmatpush1.msra.mxu0 0.0
      %907 = vmatprep.subr.mxu0 0.0
      %908 = vmatpush1.msra.mxu0 0.0
      %909 = vmatprep.subr.mxu0 0.0
      %910 = vmatpush1.msra.mxu0 0.0
      %911 = vmatprep.subr.mxu0 0.0
      %912 = vmatpush1.msra.mxu0 0.0
      %913 = vmatprep.subr.mxu0 0.0
      %914 = vmatpush1.msra.mxu0 0.0
      %915 = vmatprep.subr.mxu0 0.0
      %916 = vmatpush1.msra.mxu0 0.0
      %917 = vmatprep.subr.mxu0 0.0
      %918 = vmatpush1.msra.mxu0 0.0
      %919 = vmatprep.subr.mxu0 0.0
      %920 = vmatpush1.msra.mxu0 0.0
      %921 = vmatprep.subr.mxu0 0.0
      %922 = vmatpush1.msra.mxu0 0.0
      %923 = vmatprep.subr.mxu0 0.0
      %924 = vmatpush1.msra.mxu0 0.0
      %925 = vmatprep.subr.mxu0 0.0
      %926 = vmatpush1.msra.mxu0 0.0
      %927 = vmatprep.subr.mxu0 0.0
      %928 = vmatpush1.msra.mxu0 0.0
      %929 = vmatprep.subr.mxu0 0.0
      %930 = vmatpush1.msra.mxu0 0.0
      %931 = vmatprep.subr.mxu0 0.0
      %932 = vmatpush1.msra.mxu0 0.0
      %933 = vmatprep.subr.mxu0 0.0
      %934 = vmatpush1.msra.mxu0 0.0
      %935 = vmatprep.subr.mxu0 0.0
      %936 = vmatpush1.msra.mxu0 0.0
      %937 = vmatprep.subr.mxu0 0.0
      %938 = vmatpush1.msra.mxu0 0.0
      %939 = vmatprep.subr.mxu0 0.0
      %940 = vmatpush1.msra.mxu0 0.0
      %941 = vmatprep.subr.mxu0 0.0
      %942 = vmatpush1.msra.mxu0 0.0
      %943 = vmatprep.subr.mxu0 0.0
      %944 = vmatpush1.msra.mxu0 0.0
      %945 = vmatprep.subr.mxu0 0.0
      %946 = vmatpush1.msra.mxu0 0.0
      %947 = vmatprep.subr.mxu0 0.0
      %948 = vmatpush1.msra.mxu0 0.0
      %949 = vmatprep.subr.mxu0 0.0
      %950 = vmatpush1.msra.mxu0 0.0
      %951 = vmatprep.subr.mxu0 0.0
      %952 = vmatpush1.msra.mxu0 0.0
      %953 = vmatprep.subr.mxu0 0.0
      %954 = vmatpush1.msra.mxu0 0.0
      %955 = vmatprep.subr.mxu0 0.0
      %956 = vmatpush1.msra.mxu0 0.0
      %957 = vmatprep.subr.mxu0 0.0
      %958 = vmatpush1.msra.mxu0 0.0
      %959 = vmatprep.subr.mxu0 0.0
      %960 = vmatpush1.msra.mxu0 0.0
      %961 = vmatprep.mubr.f32.mxu0 0.0
      %962 = vmatmul.mubr.f32.gmra.mrb[0].mxu0 %v892
      %v963 = vpop.f32.mrb[0].mxu0
      %v964 = vadd.f32 0.0, %v963
      %v965 = vpop.f32.mrb[0].mxu0
      %966 = vmatprep.mubr.f32.mxu0 0.0
      %967 = vmatmul.mubr.f32.gmra.mrb[0].mxu0 %v895
      %v968 = vpop.f32.mrb[0].mxu0
      %v969 = vadd.f32 0.0, %v968
      %v970 = vpop.f32.mrb[0].mxu0
      %971 = vdwg.mxu0
      %v972 = vmax.f32 %v877, %v964
      %v973 = vmax.f32 %v878, %v969
      %v974 = vpack.c.bf16 %v973, %v972
      %v976 = vunpack.c.l.b16 %v974
      %v977 = vunpack.c.h.b16 %v974
      %v978 = vpack.c.b16 %v976, %v976
      %v979 = vpack.c.b16 %v977, %v977
      %982 = vst [vmem:[%s201] sm:$0xf] %v978
      %983 = vst [vmem:[%s201 + $0x4] sm:$0xf] %v979
      %s984 = smul.u32 2, %s18
      %p985 = scmp.lt.s32.totalorder %s17, 1
      %s986 = scalar_select %p985, %s17, 1
      %p987 = scmp.lt.s32.totalorder %s984, 1
      %s988 = scalar_select %p987, %s984, 1
      %s989 = smul.addr %s986, 2
      %s990 = sadd.s32 %s988, %s989
      %s991 = smul.addr %s990, 4
      %s992 = scalar_lea.vmem %s2, %s991
      // Predicated region
      $region29: #{assanet_encoder_forward.19} parent=27 // pred_check
        %p993 = pneg %p99
      $region30: #{assanet_encoder_forward.19} parent=27 // pred_check_branch
        %995 = sbr.rel (%p993) target = $region32
      $region31: #{assanet_encoder_forward.19} parent=27 // pred_region
        %s996 = smul.u32 2, %s18
      $region32: #{assanet_encoder_forward.19} parent=27 // pred_fallthru
        _
    $region28: #{assanet_encoder_forward.19} parent=5 // pred_fallthru
      _
    %p997 = scmp.le.s32.totalorder 2, %s8
    // Predicated region
    $region33: #{assanet_encoder_forward.19} parent=5 // pred_check
      %p998 = pneg %p997
    $region34: #{assanet_encoder_forward.19} parent=5 // pred_check_branch
      %1000 = sbr.rel (%p998) target = $region36
    $region35: #{assanet_encoder_forward.19} parent=5 // pred_region
      %s1001 = ssub.s32 %s8, 2
      // Predicated region
      $region37: #{assanet_encoder_forward.19} parent=35 // pred_check
        %p1002 = pneg %p105
      $region38: #{assanet_encoder_forward.19} parent=35 // pred_check_branch
        %1004 = sbr.rel (%p1002) target = $region40
      $region39: #{assanet_encoder_forward.19} parent=35 // pred_region
        %s1005 = smul.u32 2, %s20
        %p1006 = scmp.lt.s32.totalorder %s19, 1
        %s1007 = scalar_select %p1006, %s19, 1
        %p1008 = scmp.lt.s32.totalorder %s1005, 1
        %s1009 = scalar_select %p1008, %s1005, 1
        %s1010 = smul.addr %s1007, 2
        %s1011 = sadd.s32 %s1009, %s1010
        %s1012 = smul.addr %s1011, 4
        %s1013 = scalar_lea.vmem %s2, %s1012
      $region40: #{assanet_encoder_forward.19} parent=35 // pred_fallthru
        _
    $region36: #{assanet_encoder_forward.19} parent=5 // pred_fallthru
      _
  $region6: #{assanet_encoder_forward.19} parent=0 // loop_footer
    %s12 = sadd.s32 1, %s8
  $region7: #{assanet_encoder_forward.19} parent=0 // loop_footer_branch
    %7 = sbr.rel target = $region3
  $region8: #{assanet_encoder_forward.19} parent=0 // loop_exit
    _

// kernel: assanet_encoder_forward.22
$region0: #{assanet_encoder_forward.22}
  #allocation0 [shape = 'u32[]', space=smem, size = 0x4, offset = 0x4, fixed_abs, tag = 'smem constant byte address 0x4 - core index']
  #allocation1 [shape = 'u32[144,128]{1,0:T(1,128)}', space=vmem, size = 0x12000, scoped, tag = 'internal scratch']
  %s0 = inlined_call_operand.vmem [shape: bf16[2,16,128], index: 0, kind: input, shape index: {}]
  %s1 = inlined_call_operand.vmem [shape: s32[2,16,8], index: 1, kind: input, shape index: {}]
  %s2 = inlined_call_operand.vmem [shape: bf16[2,16,128], index: 2, kind: output, shape index: {}]
  %s3 = sld [smem:[#allocation0]]
  $region41: #{assanet_encoder_forward.22} parent=0
    _
  %s5 = ssub.s32 1, %s3
  %s6 = scalar_select 0, %s5, %s3
  loop: start=0, step=1, limit=4
  $region2: #{assanet_encoder_forward.22} parent=0 // loop_pre_header
    _
  $region3: #{assanet_encoder_forward.22} parent=0 // loop_header
    %s8 = sphi 0, %s12
    %p9 = scmp.ge.s32.totalorder %s8, 4
    %s15 = sphi 0, %s27
    %s16 = sphi 0, %s23
    %s17 = sphi 0, %s15
    %s18 = sphi 0, %s16
    %s19 = sphi 0, %s17
    %s20 = sphi 0, %s18
    %s30 = sphi 0, %s32
    %s33 = sphi 0, %s30
    %s34 = sphi 0, %s33
    %s50 = sphi 0, %s34
    %s58 = sphi 0, %s60
    %s61 = sphi 0, %s58
    %s62 = sphi 0, %s61
    %s78 = sphi 0, %s62
    %s86 = sphi 0, %s88
    %s89 = sphi 0, %s86
    %s90 = sphi 0, %s89
    %s106 = sphi 0, %s90
  $region4: #{assanet_encoder_forward.22} parent=0 // loop_header_branch
    %11 = sbr.rel (%p9) target = $region8
  $region5: #{assanet_encoder_forward.22} parent=0 // loop_body
    %s13 = ssub.s32 %s8, 1
    %s14 = ssub.s32 %s8, 2
    %s21 = sadd.s32 1, %s16
    %p22 = scmp.ge.s32.totalorder %s21, 1
    %s23 = scalar_select %p22, 0, %s21
    %s24 = sadd.s32 1, %s15
    %s25 = scalar_select %p22, %s24, %s15
    %p26 = scmp.ge.s32.totalorder %s25, 2
    %s27 = scalar_select %p26, 0, %s25
    %s28 = ssub.s32 %s15, %s27
    %p29 = scmp.eq.s32.totalorder %s28, 0
    %s31 = sadd.s32 %s30, 1
    %s32 = scalar_select %p29, %s30, %s31
    %p35 = pneg %p29
    %p36 = scmp.eq.s32.totalorder %s8, 1
    %p37 = por %p35, %p36
    %p38 = scmp.ne.s32.totalorder %s30, %s33
    %p39 = scmp.eq.s32.totalorder %s8, 0
    %p40 = por %p38, %p39
    %p41 = scmp.ne.s32.totalorder %s30, %s33
    %p42 = scmp.eq.s32.totalorder %s13, 1
    %p43 = por %p41, %p42
    %p44 = scmp.ne.s32.totalorder %s33, %s34
    %p45 = scmp.eq.s32.totalorder %s13, 0
    %p46 = por %p44, %p45
    %p47 = scmp.ne.s32.totalorder %s33, %s34
    %p48 = scmp.eq.s32.totalorder %s14, 1
    %p49 = por %p47, %p48
    %p51 = scmp.ne.s32.totalorder %s34, %s50
    %p52 = scmp.eq.s32.totalorder %s14, 0
    %p53 = por %p51, %p52
    %s54 = ssub.s32 %s15, %s27
    %s55 = ssub.s32 %s16, %s23
    %s56 = sor.u32 %s54, %s55
    %p57 = scmp.eq.s32.totalorder %s56, 0
    %s59 = sadd.s32 %s58, 1
    %s60 = scalar_select %p57, %s58, %s59
    %p63 = pneg %p57
    %p64 = scmp.eq.s32.totalorder %s8, 1
    %p65 = por %p63, %p64
    %p66 = scmp.ne.s32.totalorder %s58, %s61
    %p67 = scmp.eq.s32.totalorder %s8, 0
    %p68 = por %p66, %p67
    %p69 = scmp.ne.s32.totalorder %s58, %s61
    %p70 = scmp.eq.s32.totalorder %s13, 1
    %p71 = por %p69, %p70
    %p72 = scmp.ne.s32.totalorder %s61, %s62
    %p73 = scmp.eq.s32.totalorder %s13, 0
    %p74 = por %p72, %p73
    %p75 = scmp.ne.s32.totalorder %s61, %s62
    %p76 = scmp.eq.s32.totalorder %s14, 1
    %p77 = por %p75, %p76
    %p79 = scmp.ne.s32.totalorder %s62, %s78
    %p80 = scmp.eq.s32.totalorder %s14, 0
    %p81 = por %p79, %p80
    %s82 = ssub.s32 %s15, %s27
    %s83 = ssub.s32 %s16, %s23
    %s84 = sor.u32 %s82, %s83
    %p85 = scmp.eq.s32.totalorder %s84, 0
    %s87 = sadd.s32 %s86, 1
    %s88 = scalar_select %p85, %s86, %s87
    %p91 = pneg %p85
    %p92 = scmp.eq.s32.totalorder %s8, 1
    %p93 = por %p91, %p92
    %p94 = scmp.ne.s32.totalorder %s86, %s89
    %p95 = scmp.eq.s32.totalorder %s8, 0
    %p96 = por %p94, %p95
    %p97 = scmp.ne.s32.totalorder %s86, %s89
    %p98 = scmp.eq.s32.totalorder %s13, 1
    %p99 = por %p97, %p98
    %p100 = scmp.ne.s32.totalorder %s89, %s90
    %p101 = scmp.eq.s32.totalorder %s13, 0
    %p102 = por %p100, %p101
    %p103 = scmp.ne.s32.totalorder %s89, %s90
    %p104 = scmp.eq.s32.totalorder %s14, 1
    %p105 = por %p103, %p104
    %p107 = scmp.ne.s32.totalorder %s90, %s106
    %p108 = scmp.eq.s32.totalorder %s14, 0
    %p109 = por %p107, %p108
    %p110 = scmp.le.s32.totalorder 1, %s8
    %p111 = scmp.lt.s32.totalorder %s8, 3
    %p112 = pnand %p110, %p111
    %p113 = pneg %p112
    // Predicated region
    $region9: #{assanet_encoder_forward.22} parent=5 // pred_check
      _
    $region10: #{assanet_encoder_forward.22} parent=5 // pred_check_branch
      %115 = sbr.rel (%p112) target = $region12
    $region11: #{assanet_encoder_forward.22} parent=5 // pred_region
      %s116 = ssub.s32 %s8, 1
    $region12: #{assanet_encoder_forward.22} parent=5 // pred_fallthru
      _
    %p117 = scmp.lt.s32.totalorder %s8, 2
    // Predicated region
    $region13: #{assanet_encoder_forward.22} parent=5 // pred_check
      %p118 = pneg %p117
    $region14: #{assanet_encoder_forward.22} parent=5 // pred_check_branch
      %120 = sbr.rel (%p118) target = $region16
    $region15: #{assanet_encoder_forward.22} parent=5 // pred_region
      // Predicated region
      $region17: #{assanet_encoder_forward.22} parent=15 // pred_check
        %p121 = pneg %p40
      $region18: #{assanet_encoder_forward.22} parent=15 // pred_check_branch
        %123 = sbr.rel (%p121) target = $region20
      $region19: #{assanet_encoder_forward.22} parent=15 // pred_region
        %p124 = scmp.lt.s32.totalorder %s15, 1
        %s125 = scalar_select %p124, %s15, 1
        %s126 = smul.addr %s125, 2
        %s127 = smul.addr %s126, 4
        %s128 = scalar_lea.vmem %s0, %s127
      $region20: #{assanet_encoder_forward.22} parent=15 // pred_fallthru
        _
      // Predicated region
      $region21: #{assanet_encoder_forward.22} parent=15 // pred_check
        %p129 = pneg %p68
      $region22: #{assanet_encoder_forward.22} parent=15 // pred_check_branch
        %131 = sbr.rel (%p129) target = $region24
      $region23: #{assanet_encoder_forward.22} parent=15 // pred_region
        %s132 = smul.u32 2, %s16
        %p133 = scmp.lt.s32.totalorder %s15, 1
        %s134 = scalar_select %p133, %s15, 1
        %p135 = scmp.lt.s32.totalorder %s132, 1
        %s136 = scalar_select %p135, %s132, 1
        %s137 = smul.addr %s134, 2
        %s138 = sadd.s32 %s136, %s137
        %s139 = smul.addr %s138, 8
        %s140 = scalar_lea.vmem %s1, %s139
        %s141 = smul.u32 2, %s16
      $region24: #{assanet_encoder_forward.22} parent=15 // pred_fallthru
        _
    $region16: #{assanet_encoder_forward.22} parent=5 // pred_fallthru
      _
    %p142 = scmp.le.s32.totalorder 1, %s8
    %p143 = scmp.lt.s32.totalorder %s8, 3
    %p144 = pnand %p142, %p143
    %p145 = pneg %p144
    // Predicated region
    $region25: #{assanet_encoder_forward.22} parent=5 // pred_check
      _
    $region26: #{assanet_encoder_forward.22} parent=5 // pred_check_branch
      %147 = sbr.rel (%p144) target = $region28
    $region27: #{assanet_encoder_forward.22} parent=5 // pred_region
      %s148 = ssub.s32 %s8, 1
      %p149 = scmp.lt.s32.totalorder %s17, 1
      %s150 = scalar_select %p149, %s17, 1
      %s151 = smul.addr %s150, 2
      %s152 = smul.addr %s151, 4
      %s153 = scalar_lea.vmem %s0, %s152
      %p154 = pneg %p46
      %p155 = pneg %p43
      %s156 = smul.u32 2, %s18
      %p157 = scmp.lt.s32.totalorder %s17, 1
      %s158 = scalar_select %p157, %s17, 1
      %p159 = scmp.lt.s32.totalorder %s156, 1
      %s160 = scalar_select %p159, %s156, 1
      %s161 = smul.addr %s158, 2
      %s162 = sadd.s32 %s160, %s161
      %s163 = smul.addr %s162, 8
      %s164 = scalar_lea.vmem %s1, %s163
      %p165 = pneg %p74
      %p166 = pneg %p71
      %p167 = pneg %p102
      %p168 = pneg %p99
      %s169 = smul.u32 2, %s18
      %p170 = scmp.lt.s32.totalorder %s17, 1
      %s171 = scalar_select %p170, %s17, 1
      %p172 = scmp.lt.s32.totalorder %s169, 1
      %s173 = scalar_select %p172, %s169, 1
      %s174 = smul.addr %s171, 2
      %s175 = sadd.s32 %s173, %s174
      %s176 = smul.addr %s175, 4
      %s177 = scalar_lea.vmem %s2, %s176
      %p178 = scmp.lt.s32.totalorder %s17, 1
      %s179 = scalar_select %p178, %s17, 1
      %s180 = smul.addr %s179, 2
      %s181 = smul.addr %s180, 4
      %s182 = scalar_lea.vmem %s0, %s181
      %s183 = smul.u32 2, %s18
      %p184 = scmp.lt.s32.totalorder %s17, 1
      %s185 = scalar_select %p184, %s17, 1
      %p186 = scmp.lt.s32.totalorder %s183, 1
      %s187 = scalar_select %p186, %s183, 1
      %s188 = smul.addr %s185, 2
      %s189 = sadd.s32 %s187, %s188
      %s190 = smul.addr %s189, 8
      %s191 = scalar_lea.vmem %s1, %s190
      %s192 = smul.u32 2, %s18
      %s193 = smul.u32 2, %s18
      %p194 = scmp.lt.s32.totalorder %s17, 1
      %s195 = scalar_select %p194, %s17, 1
      %p196 = scmp.lt.s32.totalorder %s193, 1
      %s197 = scalar_select %p196, %s193, 1
      %s198 = smul.addr %s195, 2
      %s199 = sadd.s32 %s197, %s198
      %s200 = smul.addr %s199, 4
      %s201 = scalar_lea.vmem %s2, %s200
      %s202 = smul.u32 2, %s18
      %v203 = vld [vmem:[%s182] sm:$0xf]
      %v204 = vld [vmem:[%s182 + $0x4] sm:$0xf]
      %v205 = vunpack.c.l.bf16 %v203
      %v206 = vunpack.c.l.bf16 %v204
      %v207 = vld [vmem:[%s191] sm:$0xff]
      %v208 = vld [vmem:[%s191 + $0x8] sm:$0xff]
      %v209 = vlaneseq
      %v210 = vand.u32 %v209, 127
      %211 = vset.pattern.permute.xlu0 0
      %212 = vperm.xlu0 %211, %v207
      %v213 = vpop.permute.xlu0 %212
      %214 = vset.pattern.permute.xlu0 0
      %215 = vperm.xlu0 %214, %v208
      %v216 = vpop.permute.xlu0 %215
      %vm217 = vcmp.eq.s32.totalorder %v210, %v213
      %vm218 = vcmp.eq.s32.totalorder %v210, %v216
      %v219 = vsel %vm217, 1, 0
      %v220 = vsel %vm218, 1, 0
      %v221 = vcvt.s32.f32 %v219
      %v222 = vcvt.s32.f32 %v220
      %vm223 = vcmask 130048
      %v225 = vsel %vm223, %v221, 0
      %v228 = vsel %vm223, %v222, 0
      %230 = vmatprep.subr.mxu0 0.0
      %231 = vmatpush1.msra.mxu0 %v205
      %232 = vmatprep.subr.mxu0 0.0
      %233 = vmatpush1.msra.mxu0 %v206
      %234 = vmatprep.subr.mxu0 0.0
      %235 = vmatpush1.msra.mxu0 0.0
      %236 = vmatprep.subr.mxu0 0.0
      %237 = vmatpush1.msra.mxu0 0.0
      %238 = vmatprep.subr.mxu0 0.0
      %239 = vmatpush1.msra.mxu0 0.0
      %240 = vmatprep.subr.mxu0 0.0
      %241 = vmatpush1.msra.mxu0 0.0
      %242 = vmatprep.subr.mxu0 0.0
      %243 = vmatpush1.msra.mxu0 0.0
      %244 = vmatprep.subr.mxu0 0.0
      %245 = vmatpush1.msra.mxu0 0.0
      %246 = vmatprep.subr.mxu0 0.0
      %247 = vmatpush1.msra.mxu0 0.0
      %248 = vmatprep.subr.mxu0 0.0
      %249 = vmatpush1.msra.mxu0 0.0
      %250 = vmatprep.subr.mxu0 0.0
      %251 = vmatpush1.msra.mxu0 0.0
      %252 = vmatprep.subr.mxu0 0.0
      %253 = vmatpush1.msra.mxu0 0.0
      %254 = vmatprep.subr.mxu0 0.0
      %255 = vmatpush1.msra.mxu0 0.0
      %256 = vmatprep.subr.mxu0 0.0
      %257 = vmatpush1.msra.mxu0 0.0
      %258 = vmatprep.subr.mxu0 0.0
      %259 = vmatpush1.msra.mxu0 0.0
      %260 = vmatprep.subr.mxu0 0.0
      %261 = vmatpush1.msra.mxu0 0.0
      %262 = vmatprep.subr.mxu0 0.0
      %263 = vmatpush1.msra.mxu0 0.0
      %264 = vmatprep.subr.mxu0 0.0
      %265 = vmatpush1.msra.mxu0 0.0
      %266 = vmatprep.subr.mxu0 0.0
      %267 = vmatpush1.msra.mxu0 0.0
      %268 = vmatprep.subr.mxu0 0.0
      %269 = vmatpush1.msra.mxu0 0.0
      %270 = vmatprep.subr.mxu0 0.0
      %271 = vmatpush1.msra.mxu0 0.0
      %272 = vmatprep.subr.mxu0 0.0
      %273 = vmatpush1.msra.mxu0 0.0
      %274 = vmatprep.subr.mxu0 0.0
      %275 = vmatpush1.msra.mxu0 0.0
      %276 = vmatprep.subr.mxu0 0.0
      %277 = vmatpush1.msra.mxu0 0.0
      %278 = vmatprep.subr.mxu0 0.0
      %279 = vmatpush1.msra.mxu0 0.0
      %280 = vmatprep.subr.mxu0 0.0
      %281 = vmatpush1.msra.mxu0 0.0
      %282 = vmatprep.subr.mxu0 0.0
      %283 = vmatpush1.msra.mxu0 0.0
      %284 = vmatprep.subr.mxu0 0.0
      %285 = vmatpush1.msra.mxu0 0.0
      %286 = vmatprep.subr.mxu0 0.0
      %287 = vmatpush1.msra.mxu0 0.0
      %288 = vmatprep.subr.mxu0 0.0
      %289 = vmatpush1.msra.mxu0 0.0
      %290 = vmatprep.subr.mxu0 0.0
      %291 = vmatpush1.msra.mxu0 0.0
      %292 = vmatprep.subr.mxu0 0.0
      %293 = vmatpush1.msra.mxu0 0.0
      %294 = vmatprep.mubr.f32.mxu0 0.0
      %295 = vmatmul.mubr.f32.gmra.mrb[0].mxu0 %v225
      %v296 = vpop.f32.mrb[0].mxu0
      %v297 = vadd.f32 0.0, %v296
      %v298 = vpop.f32.mrb[0].mxu0
      %299 = vmatprep.mubr.f32.mxu0 0.0
      %300 = vmatmul.mubr.f32.gmra.mrb[0].mxu0 %v228
      %v301 = vpop.f32.mrb[0].mxu0
      %v302 = vadd.f32 0.0, %v301
      %v303 = vpop.f32.mrb[0].mxu0
      %304 = vdwg.mxu0
      %305 = vset.pattern.permute.xlu0 1
      %306 = vperm.xlu0 %305, %v207
      %v307 = vpop.permute.xlu0 %306
      %308 = vset.pattern.permute.xlu0 1
      %309 = vperm.xlu0 %308, %v208
      %v310 = vpop.permute.xlu0 %309
      %vm311 = vcmp.eq.s32.totalorder %v210, %v307
      %vm312 = vcmp.eq.s32.totalorder %v210, %v310
      %v313 = vsel %vm311, 1, 0
      %v314 = vsel %vm312, 1, 0
      %v315 = vcvt.s32.f32 %v313
      %v316 = vcvt.s32.f32 %v314
      %v318 = vsel %vm223, %v315, 0
      %v321 = vsel %vm223, %v316, 0
      %323 = vmatprep.subr.mxu0 0.0
      %324 = vmatpush1.msra.mxu0 %v205
      %325 = vmatprep.subr.mxu0 0.0
      %326 = vmatpush1.msra.mxu0 %v206
      %327 = vmatprep.subr.mxu0 0.0
      %328 = vmatpush1.msra.mxu0 0.0
      %329 = vmatprep.subr.mxu0 0.0
      %330 = vmatpush1.msra.mxu0 0.0
      %331 = vmatprep.subr.mxu0 0.0
      %332 = vmatpush1.msra.mxu0 0.0
      %333 = vmatprep.subr.mxu0 0.0
      %334 = vmatpush1.msra.mxu0 0.0
      %335 = vmatprep.subr.mxu0 0.0
      %336 = vmatpush1.msra.mxu0 0.0
      %337 = vmatprep.subr.mxu0 0.0
      %338 = vmatpush1.msra.mxu0 0.0
      %339 = vmatprep.subr.mxu0 0.0
      %340 = vmatpush1.msra.mxu0 0.0
      %341 = vmatprep.subr.mxu0 0.0
      %342 = vmatpush1.msra.mxu0 0.0
      %343 = vmatprep.subr.mxu0 0.0
      %344 = vmatpush1.msra.mxu0 0.0
      %345 = vmatprep.subr.mxu0 0.0
      %346 = vmatpush1.msra.mxu0 0.0
      %347 = vmatprep.subr.mxu0 0.0
      %348 = vmatpush1.msra.mxu0 0.0
      %349 = vmatprep.subr.mxu0 0.0
      %350 = vmatpush1.msra.mxu0 0.0
      %351 = vmatprep.subr.mxu0 0.0
      %352 = vmatpush1.msra.mxu0 0.0
      %353 = vmatprep.subr.mxu0 0.0
      %354 = vmatpush1.msra.mxu0 0.0
      %355 = vmatprep.subr.mxu0 0.0
      %356 = vmatpush1.msra.mxu0 0.0
      %357 = vmatprep.subr.mxu0 0.0
      %358 = vmatpush1.msra.mxu0 0.0
      %359 = vmatprep.subr.mxu0 0.0
      %360 = vmatpush1.msra.mxu0 0.0
      %361 = vmatprep.subr.mxu0 0.0
      %362 = vmatpush1.msra.mxu0 0.0
      %363 = vmatprep.subr.mxu0 0.0
      %364 = vmatpush1.msra.mxu0 0.0
      %365 = vmatprep.subr.mxu0 0.0
      %366 = vmatpush1.msra.mxu0 0.0
      %367 = vmatprep.subr.mxu0 0.0
      %368 = vmatpush1.msra.mxu0 0.0
      %369 = vmatprep.subr.mxu0 0.0
      %370 = vmatpush1.msra.mxu0 0.0
      %371 = vmatprep.subr.mxu0 0.0
      %372 = vmatpush1.msra.mxu0 0.0
      %373 = vmatprep.subr.mxu0 0.0
      %374 = vmatpush1.msra.mxu0 0.0
      %375 = vmatprep.subr.mxu0 0.0
      %376 = vmatpush1.msra.mxu0 0.0
      %377 = vmatprep.subr.mxu0 0.0
      %378 = vmatpush1.msra.mxu0 0.0
      %379 = vmatprep.subr.mxu0 0.0
      %380 = vmatpush1.msra.mxu0 0.0
      %381 = vmatprep.subr.mxu0 0.0
      %382 = vmatpush1.msra.mxu0 0.0
      %383 = vmatprep.subr.mxu0 0.0
      %384 = vmatpush1.msra.mxu0 0.0
      %385 = vmatprep.subr.mxu0 0.0
      %386 = vmatpush1.msra.mxu0 0.0
      %387 = vmatprep.mubr.f32.mxu0 0.0
      %388 = vmatmul.mubr.f32.gmra.mrb[0].mxu0 %v318
      %v389 = vpop.f32.mrb[0].mxu0
      %v390 = vadd.f32 0.0, %v389
      %v391 = vpop.f32.mrb[0].mxu0
      %392 = vmatprep.mubr.f32.mxu0 0.0
      %393 = vmatmul.mubr.f32.gmra.mrb[0].mxu0 %v321
      %v394 = vpop.f32.mrb[0].mxu0
      %v395 = vadd.f32 0.0, %v394
      %v396 = vpop.f32.mrb[0].mxu0
      %397 = vdwg.mxu0
      %v398 = vmax.f32 %v297, %v390
      %v399 = vmax.f32 %v302, %v395
      %400 = vset.pattern.permute.xlu0 2
      %401 = vperm.xlu0 %400, %v207
      %v402 = vpop.permute.xlu0 %401
      %403 = vset.pattern.permute.xlu0 2
      %404 = vperm.xlu0 %403, %v208
      %v405 = vpop.permute.xlu0 %404
      %vm406 = vcmp.eq.s32.totalorder %v210, %v402
      %vm407 = vcmp.eq.s32.totalorder %v210, %v405
      %v408 = vsel %vm406, 1, 0
      %v409 = vsel %vm407, 1, 0
      %v410 = vcvt.s32.f32 %v408
      %v411 = vcvt.s32.f32 %v409
      %v413 = vsel %vm223, %v410, 0
      %v416 = vsel %vm223, %v411, 0
      %418 = vmatprep.subr.mxu0 0.0
      %419 = vmatpush1.msra.mxu0 %v205
      %420 = vmatprep.subr.mxu0 0.0
      %421 = vmatpush1.msra.mxu0 %v206
      %422 = vmatprep.subr.mxu0 0.0
      %423 = vmatpush1.msra.mxu0 0.0
      %424 = vmatprep.subr.mxu0 0.0
      %425 = vmatpush1.msra.mxu0 0.0
      %426 = vmatprep.subr.mxu0 0.0
      %427 = vmatpush1.msra.mxu0 0.0
      %428 = vmatprep.subr.mxu0 0.0
      %429 = vmatpush1.msra.mxu0 0.0
      %430 = vmatprep.subr.mxu0 0.0
      %431 = vmatpush1.msra.mxu0 0.0
      %432 = vmatprep.subr.mxu0 0.0
      %433 = vmatpush1.msra.mxu0 0.0
      %434 = vmatprep.subr.mxu0 0.0
      %435 = vmatpush1.msra.mxu0 0.0
      %436 = vmatprep.subr.mxu0 0.0
      %437 = vmatpush1.msra.mxu0 0.0
      %438 = vmatprep.subr.mxu0 0.0
      %439 = vmatpush1.msra.mxu0 0.0
      %440 = vmatprep.subr.mxu0 0.0
      %441 = vmatpush1.msra.mxu0 0.0
      %442 = vmatprep.subr.mxu0 0.0
      %443 = vmatpush1.msra.mxu0 0.0
      %444 = vmatprep.subr.mxu0 0.0
      %445 = vmatpush1.msra.mxu0 0.0
      %446 = vmatprep.subr.mxu0 0.0
      %447 = vmatpush1.msra.mxu0 0.0
      %448 = vmatprep.subr.mxu0 0.0
      %449 = vmatpush1.msra.mxu0 0.0
      %450 = vmatprep.subr.mxu0 0.0
      %451 = vmatpush1.msra.mxu0 0.0
      %452 = vmatprep.subr.mxu0 0.0
      %453 = vmatpush1.msra.mxu0 0.0
      %454 = vmatprep.subr.mxu0 0.0
      %455 = vmatpush1.msra.mxu0 0.0
      %456 = vmatprep.subr.mxu0 0.0
      %457 = vmatpush1.msra.mxu0 0.0
      %458 = vmatprep.subr.mxu0 0.0
      %459 = vmatpush1.msra.mxu0 0.0
      %460 = vmatprep.subr.mxu0 0.0
      %461 = vmatpush1.msra.mxu0 0.0
      %462 = vmatprep.subr.mxu0 0.0
      %463 = vmatpush1.msra.mxu0 0.0
      %464 = vmatprep.subr.mxu0 0.0
      %465 = vmatpush1.msra.mxu0 0.0
      %466 = vmatprep.subr.mxu0 0.0
      %467 = vmatpush1.msra.mxu0 0.0
      %468 = vmatprep.subr.mxu0 0.0
      %469 = vmatpush1.msra.mxu0 0.0
      %470 = vmatprep.subr.mxu0 0.0
      %471 = vmatpush1.msra.mxu0 0.0
      %472 = vmatprep.subr.mxu0 0.0
      %473 = vmatpush1.msra.mxu0 0.0
      %474 = vmatprep.subr.mxu0 0.0
      %475 = vmatpush1.msra.mxu0 0.0
      %476 = vmatprep.subr.mxu0 0.0
      %477 = vmatpush1.msra.mxu0 0.0
      %478 = vmatprep.subr.mxu0 0.0
      %479 = vmatpush1.msra.mxu0 0.0
      %480 = vmatprep.subr.mxu0 0.0
      %481 = vmatpush1.msra.mxu0 0.0
      %482 = vmatprep.mubr.f32.mxu0 0.0
      %483 = vmatmul.mubr.f32.gmra.mrb[0].mxu0 %v413
      %v484 = vpop.f32.mrb[0].mxu0
      %v485 = vadd.f32 0.0, %v484
      %v486 = vpop.f32.mrb[0].mxu0
      %487 = vmatprep.mubr.f32.mxu0 0.0
      %488 = vmatmul.mubr.f32.gmra.mrb[0].mxu0 %v416
      %v489 = vpop.f32.mrb[0].mxu0
      %v490 = vadd.f32 0.0, %v489
      %v491 = vpop.f32.mrb[0].mxu0
      %492 = vdwg.mxu0
      %v493 = vmax.f32 %v398, %v485
      %v494 = vmax.f32 %v399, %v490
      %495 = vset.pattern.permute.xlu0 3
      %496 = vperm.xlu0 %495, %v207
      %v497 = vpop.permute.xlu0 %496
      %498 = vset.pattern.permute.xlu0 3
      %499 = vperm.xlu0 %498, %v208
      %v500 = vpop.permute.xlu0 %499
      %vm501 = vcmp.eq.s32.totalorder %v210, %v497
      %vm502 = vcmp.eq.s32.totalorder %v210, %v500
      %v503 = vsel %vm501, 1, 0
      %v504 = vsel %vm502, 1, 0
      %v505 = vcvt.s32.f32 %v503
      %v506 = vcvt.s32.f32 %v504
      %v508 = vsel %vm223, %v505, 0
      %v511 = vsel %vm223, %v506, 0
      %513 = vmatprep.subr.mxu0 0.0
      %514 = vmatpush1.msra.mxu0 %v205
      %515 = vmatprep.subr.mxu0 0.0
      %516 = vmatpush1.msra.mxu0 %v206
      %517 = vmatprep.subr.mxu0 0.0
      %518 = vmatpush1.msra.mxu0 0.0
      %519 = vmatprep.subr.mxu0 0.0
      %520 = vmatpush1.msra.mxu0 0.0
      %521 = vmatprep.subr.mxu0 0.0
      %522 = vmatpush1.msra.mxu0 0.0
      %523 = vmatprep.subr.mxu0 0.0
      %524 = vmatpush1.msra.mxu0 0.0
      %525 = vmatprep.subr.mxu0 0.0
      %526 = vmatpush1.msra.mxu0 0.0
      %527 = vmatprep.subr.mxu0 0.0
      %528 = vmatpush1.msra.mxu0 0.0
      %529 = vmatprep.subr.mxu0 0.0
      %530 = vmatpush1.msra.mxu0 0.0
      %531 = vmatprep.subr.mxu0 0.0
      %532 = vmatpush1.msra.mxu0 0.0
      %533 = vmatprep.subr.mxu0 0.0
      %534 = vmatpush1.msra.mxu0 0.0
      %535 = vmatprep.subr.mxu0 0.0
      %536 = vmatpush1.msra.mxu0 0.0
      %537 = vmatprep.subr.mxu0 0.0
      %538 = vmatpush1.msra.mxu0 0.0
      %539 = vmatprep.subr.mxu0 0.0
      %540 = vmatpush1.msra.mxu0 0.0
      %541 = vmatprep.subr.mxu0 0.0
      %542 = vmatpush1.msra.mxu0 0.0
      %543 = vmatprep.subr.mxu0 0.0
      %544 = vmatpush1.msra.mxu0 0.0
      %545 = vmatprep.subr.mxu0 0.0
      %546 = vmatpush1.msra.mxu0 0.0
      %547 = vmatprep.subr.mxu0 0.0
      %548 = vmatpush1.msra.mxu0 0.0
      %549 = vmatprep.subr.mxu0 0.0
      %550 = vmatpush1.msra.mxu0 0.0
      %551 = vmatprep.subr.mxu0 0.0
      %552 = vmatpush1.msra.mxu0 0.0
      %553 = vmatprep.subr.mxu0 0.0
      %554 = vmatpush1.msra.mxu0 0.0
      %555 = vmatprep.subr.mxu0 0.0
      %556 = vmatpush1.msra.mxu0 0.0
      %557 = vmatprep.subr.mxu0 0.0
      %558 = vmatpush1.msra.mxu0 0.0
      %559 = vmatprep.subr.mxu0 0.0
      %560 = vmatpush1.msra.mxu0 0.0
      %561 = vmatprep.subr.mxu0 0.0
      %562 = vmatpush1.msra.mxu0 0.0
      %563 = vmatprep.subr.mxu0 0.0
      %564 = vmatpush1.msra.mxu0 0.0
      %565 = vmatprep.subr.mxu0 0.0
      %566 = vmatpush1.msra.mxu0 0.0
      %567 = vmatprep.subr.mxu0 0.0
      %568 = vmatpush1.msra.mxu0 0.0
      %569 = vmatprep.subr.mxu0 0.0
      %570 = vmatpush1.msra.mxu0 0.0
      %571 = vmatprep.subr.mxu0 0.0
      %572 = vmatpush1.msra.mxu0 0.0
      %573 = vmatprep.subr.mxu0 0.0
      %574 = vmatpush1.msra.mxu0 0.0
      %575 = vmatprep.subr.mxu0 0.0
      %576 = vmatpush1.msra.mxu0 0.0
      %577 = vmatprep.mubr.f32.mxu0 0.0
      %578 = vmatmul.mubr.f32.gmra.mrb[0].mxu0 %v508
      %v579 = vpop.f32.mrb[0].mxu0
      %v580 = vadd.f32 0.0, %v579
      %v581 = vpop.f32.mrb[0].mxu0
      %582 = vmatprep.mubr.f32.mxu0 0.0
      %583 = vmatmul.mubr.f32.gmra.mrb[0].mxu0 %v511
      %v584 = vpop.f32.mrb[0].mxu0
      %v585 = vadd.f32 0.0, %v584
      %v586 = vpop.f32.mrb[0].mxu0
      %587 = vdwg.mxu0
      %v588 = vmax.f32 %v493, %v580
      %v589 = vmax.f32 %v494, %v585
      %590 = vset.pattern.permute.xlu0 4
      %591 = vperm.xlu0 %590, %v207
      %v592 = vpop.permute.xlu0 %591
      %593 = vset.pattern.permute.xlu0 4
      %594 = vperm.xlu0 %593, %v208
      %v595 = vpop.permute.xlu0 %594
      %vm596 = vcmp.eq.s32.totalorder %v210, %v592
      %vm597 = vcmp.eq.s32.totalorder %v210, %v595
      %v598 = vsel %vm596, 1, 0
      %v599 = vsel %vm597, 1, 0
      %v600 = vcvt.s32.f32 %v598
      %v601 = vcvt.s32.f32 %v599
      %v603 = vsel %vm223, %v600, 0
      %v606 = vsel %vm223, %v601, 0
      %608 = vmatprep.subr.mxu0 0.0
      %609 = vmatpush1.msra.mxu0 %v205
      %610 = vmatprep.subr.mxu0 0.0
      %611 = vmatpush1.msra.mxu0 %v206
      %612 = vmatprep.subr.mxu0 0.0
      %613 = vmatpush1.msra.mxu0 0.0
      %614 = vmatprep.subr.mxu0 0.0
      %615 = vmatpush1.msra.mxu0 0.0
      %616 = vmatprep.subr.mxu0 0.0
      %617 = vmatpush1.msra.mxu0 0.0
      %618 = vmatprep.subr.mxu0 0.0
      %619 = vmatpush1.msra.mxu0 0.0
      %620 = vmatprep.subr.mxu0 0.0
      %621 = vmatpush1.msra.mxu0 0.0
      %622 = vmatprep.subr.mxu0 0.0
      %623 = vmatpush1.msra.mxu0 0.0
      %624 = vmatprep.subr.mxu0 0.0
      %625 = vmatpush1.msra.mxu0 0.0
      %626 = vmatprep.subr.mxu0 0.0
      %627 = vmatpush1.msra.mxu0 0.0
      %628 = vmatprep.subr.mxu0 0.0
      %629 = vmatpush1.msra.mxu0 0.0
      %630 = vmatprep.subr.mxu0 0.0
      %631 = vmatpush1.msra.mxu0 0.0
      %632 = vmatprep.subr.mxu0 0.0
      %633 = vmatpush1.msra.mxu0 0.0
      %634 = vmatprep.subr.mxu0 0.0
      %635 = vmatpush1.msra.mxu0 0.0
      %636 = vmatprep.subr.mxu0 0.0
      %637 = vmatpush1.msra.mxu0 0.0
      %638 = vmatprep.subr.mxu0 0.0
      %639 = vmatpush1.msra.mxu0 0.0
      %640 = vmatprep.subr.mxu0 0.0
      %641 = vmatpush1.msra.mxu0 0.0
      %642 = vmatprep.subr.mxu0 0.0
      %643 = vmatpush1.msra.mxu0 0.0
      %644 = vmatprep.subr.mxu0 0.0
      %645 = vmatpush1.msra.mxu0 0.0
      %646 = vmatprep.subr.mxu0 0.0
      %647 = vmatpush1.msra.mxu0 0.0
      %648 = vmatprep.subr.mxu0 0.0
      %649 = vmatpush1.msra.mxu0 0.0
      %650 = vmatprep.subr.mxu0 0.0
      %651 = vmatpush1.msra.mxu0 0.0
      %652 = vmatprep.subr.mxu0 0.0
      %653 = vmatpush1.msra.mxu0 0.0
      %654 = vmatprep.subr.mxu0 0.0
      %655 = vmatpush1.msra.mxu0 0.0
      %656 = vmatprep.subr.mxu0 0.0
      %657 = vmatpush1.msra.mxu0 0.0
      %658 = vmatprep.subr.mxu0 0.0
      %659 = vmatpush1.msra.mxu0 0.0
      %660 = vmatprep.subr.mxu0 0.0
      %661 = vmatpush1.msra.mxu0 0.0
      %662 = vmatprep.subr.mxu0 0.0
      %663 = vmatpush1.msra.mxu0 0.0
      %664 = vmatprep.subr.mxu0 0.0
      %665 = vmatpush1.msra.mxu0 0.0
      %666 = vmatprep.subr.mxu0 0.0
      %667 = vmatpush1.msra.mxu0 0.0
      %668 = vmatprep.subr.mxu0 0.0
      %669 = vmatpush1.msra.mxu0 0.0
      %670 = vmatprep.subr.mxu0 0.0
      %671 = vmatpush1.msra.mxu0 0.0
      %672 = vmatprep.mubr.f32.mxu0 0.0
      %673 = vmatmul.mubr.f32.gmra.mrb[0].mxu0 %v603
      %v674 = vpop.f32.mrb[0].mxu0
      %v675 = vadd.f32 0.0, %v674
      %v676 = vpop.f32.mrb[0].mxu0
      %677 = vmatprep.mubr.f32.mxu0 0.0
      %678 = vmatmul.mubr.f32.gmra.mrb[0].mxu0 %v606
      %v679 = vpop.f32.mrb[0].mxu0
      %v680 = vadd.f32 0.0, %v679
      %v681 = vpop.f32.mrb[0].mxu0
      %682 = vdwg.mxu0
      %v683 = vmax.f32 %v588, %v675
      %v684 = vmax.f32 %v589, %v680
      %685 = vset.pattern.permute.xlu0 5
      %686 = vperm.xlu0 %685, %v207
      %v687 = vpop.permute.xlu0 %686
      %688 = vset.pattern.permute.xlu0 5
      %689 = vperm.xlu0 %688, %v208
      %v690 = vpop.permute.xlu0 %689
      %vm691 = vcmp.eq.s32.totalorder %v210, %v687
      %vm692 = vcmp.eq.s32.totalorder %v210, %v690
      %v693 = vsel %vm691, 1, 0
      %v694 = vsel %vm692, 1, 0
      %v695 = vcvt.s32.f32 %v693
      %v696 = vcvt.s32.f32 %v694
      %v698 = vsel %vm223, %v695, 0
      %v701 = vsel %vm223, %v696, 0
      %703 = vmatprep.subr.mxu0 0.0
      %704 = vmatpush1.msra.mxu0 %v205
      %705 = vmatprep.subr.mxu0 0.0
      %706 = vmatpush1.msra.mxu0 %v206
      %707 = vmatprep.subr.mxu0 0.0
      %708 = vmatpush1.msra.mxu0 0.0
      %709 = vmatprep.subr.mxu0 0.0
      %710 = vmatpush1.msra.mxu0 0.0
      %711 = vmatprep.subr.mxu0 0.0
      %712 = vmatpush1.msra.mxu0 0.0
      %713 = vmatprep.subr.mxu0 0.0
      %714 = vmatpush1.msra.mxu0 0.0
      %715 = vmatprep.subr.mxu0 0.0
      %716 = vmatpush1.msra.mxu0 0.0
      %717 = vmatprep.subr.mxu0 0.0
      %718 = vmatpush1.msra.mxu0 0.0
      %719 = vmatprep.subr.mxu0 0.0
      %720 = vmatpush1.msra.mxu0 0.0
      %721 = vmatprep.subr.mxu0 0.0
      %722 = vmatpush1.msra.mxu0 0.0
      %723 = vmatprep.subr.mxu0 0.0
      %724 = vmatpush1.msra.mxu0 0.0
      %725 = vmatprep.subr.mxu0 0.0
      %726 = vmatpush1.msra.mxu0 0.0
      %727 = vmatprep.subr.mxu0 0.0
      %728 = vmatpush1.msra.mxu0 0.0
      %729 = vmatprep.subr.mxu0 0.0
      %730 = vmatpush1.msra.mxu0 0.0
      %731 = vmatprep.subr.mxu0 0.0
      %732 = vmatpush1.msra.mxu0 0.0
      %733 = vmatprep.subr.mxu0 0.0
      %734 = vmatpush1.msra.mxu0 0.0
      %735 = vmatprep.subr.mxu0 0.0
      %736 = vmatpush1.msra.mxu0 0.0
      %737 = vmatprep.subr.mxu0 0.0
      %738 = vmatpush1.msra.mxu0 0.0
      %739 = vmatprep.subr.mxu0 0.0
      %740 = vmatpush1.msra.mxu0 0.0
      %741 = vmatprep.subr.mxu0 0.0
      %742 = vmatpush1.msra.mxu0 0.0
      %743 = vmatprep.subr.mxu0 0.0
      %744 = vmatpush1.msra.mxu0 0.0
      %745 = vmatprep.subr.mxu0 0.0
      %746 = vmatpush1.msra.mxu0 0.0
      %747 = vmatprep.subr.mxu0 0.0
      %748 = vmatpush1.msra.mxu0 0.0
      %749 = vmatprep.subr.mxu0 0.0
      %750 = vmatpush1.msra.mxu0 0.0
      %751 = vmatprep.subr.mxu0 0.0
      %752 = vmatpush1.msra.mxu0 0.0
      %753 = vmatprep.subr.mxu0 0.0
      %754 = vmatpush1.msra.mxu0 0.0
      %755 = vmatprep.subr.mxu0 0.0
      %756 = vmatpush1.msra.mxu0 0.0
      %757 = vmatprep.subr.mxu0 0.0
      %758 = vmatpush1.msra.mxu0 0.0
      %759 = vmatprep.subr.mxu0 0.0
      %760 = vmatpush1.msra.mxu0 0.0
      %761 = vmatprep.subr.mxu0 0.0
      %762 = vmatpush1.msra.mxu0 0.0
      %763 = vmatprep.subr.mxu0 0.0
      %764 = vmatpush1.msra.mxu0 0.0
      %765 = vmatprep.subr.mxu0 0.0
      %766 = vmatpush1.msra.mxu0 0.0
      %767 = vmatprep.mubr.f32.mxu0 0.0
      %768 = vmatmul.mubr.f32.gmra.mrb[0].mxu0 %v698
      %v769 = vpop.f32.mrb[0].mxu0
      %v770 = vadd.f32 0.0, %v769
      %v771 = vpop.f32.mrb[0].mxu0
      %772 = vmatprep.mubr.f32.mxu0 0.0
      %773 = vmatmul.mubr.f32.gmra.mrb[0].mxu0 %v701
      %v774 = vpop.f32.mrb[0].mxu0
      %v775 = vadd.f32 0.0, %v774
      %v776 = vpop.f32.mrb[0].mxu0
      %777 = vdwg.mxu0
      %v778 = vmax.f32 %v683, %v770
      %v779 = vmax.f32 %v684, %v775
      %780 = vset.pattern.permute.xlu0 6
      %781 = vperm.xlu0 %780, %v207
      %v782 = vpop.permute.xlu0 %781
      %783 = vset.pattern.permute.xlu0 6
      %784 = vperm.xlu0 %783, %v208
      %v785 = vpop.permute.xlu0 %784
      %vm786 = vcmp.eq.s32.totalorder %v210, %v782
      %vm787 = vcmp.eq.s32.totalorder %v210, %v785
      %v788 = vsel %vm786, 1, 0
      %v789 = vsel %vm787, 1, 0
      %v790 = vcvt.s32.f32 %v788
      %v791 = vcvt.s32.f32 %v789
      %v793 = vsel %vm223, %v790, 0
      %v796 = vsel %vm223, %v791, 0
      %798 = vmatprep.subr.mxu0 0.0
      %799 = vmatpush1.msra.mxu0 %v205
      %800 = vmatprep.subr.mxu0 0.0
      %801 = vmatpush1.msra.mxu0 %v206
      %802 = vmatprep.subr.mxu0 0.0
      %803 = vmatpush1.msra.mxu0 0.0
      %804 = vmatprep.subr.mxu0 0.0
      %805 = vmatpush1.msra.mxu0 0.0
      %806 = vmatprep.subr.mxu0 0.0
      %807 = vmatpush1.msra.mxu0 0.0
      %808 = vmatprep.subr.mxu0 0.0
      %809 = vmatpush1.msra.mxu0 0.0
      %810 = vmatprep.subr.mxu0 0.0
      %811 = vmatpush1.msra.mxu0 0.0
      %812 = vmatprep.subr.mxu0 0.0
      %813 = vmatpush1.msra.mxu0 0.0
      %814 = vmatprep.subr.mxu0 0.0
      %815 = vmatpush1.msra.mxu0 0.0
      %816 = vmatprep.subr.mxu0 0.0
      %817 = vmatpush1.msra.mxu0 0.0
      %818 = vmatprep.subr.mxu0 0.0
      %819 = vmatpush1.msra.mxu0 0.0
      %820 = vmatprep.subr.mxu0 0.0
      %821 = vmatpush1.msra.mxu0 0.0
      %822 = vmatprep.subr.mxu0 0.0
      %823 = vmatpush1.msra.mxu0 0.0
      %824 = vmatprep.subr.mxu0 0.0
      %825 = vmatpush1.msra.mxu0 0.0
      %826 = vmatprep.subr.mxu0 0.0
      %827 = vmatpush1.msra.mxu0 0.0
      %828 = vmatprep.subr.mxu0 0.0
      %829 = vmatpush1.msra.mxu0 0.0
      %830 = vmatprep.subr.mxu0 0.0
      %831 = vmatpush1.msra.mxu0 0.0
      %832 = vmatprep.subr.mxu0 0.0
      %833 = vmatpush1.msra.mxu0 0.0
      %834 = vmatprep.subr.mxu0 0.0
      %835 = vmatpush1.msra.mxu0 0.0
      %836 = vmatprep.subr.mxu0 0.0
      %837 = vmatpush1.msra.mxu0 0.0
      %838 = vmatprep.subr.mxu0 0.0
      %839 = vmatpush1.msra.mxu0 0.0
      %840 = vmatprep.subr.mxu0 0.0
      %841 = vmatpush1.msra.mxu0 0.0
      %842 = vmatprep.subr.mxu0 0.0
      %843 = vmatpush1.msra.mxu0 0.0
      %844 = vmatprep.subr.mxu0 0.0
      %845 = vmatpush1.msra.mxu0 0.0
      %846 = vmatprep.subr.mxu0 0.0
      %847 = vmatpush1.msra.mxu0 0.0
      %848 = vmatprep.subr.mxu0 0.0
      %849 = vmatpush1.msra.mxu0 0.0
      %850 = vmatprep.subr.mxu0 0.0
      %851 = vmatpush1.msra.mxu0 0.0
      %852 = vmatprep.subr.mxu0 0.0
      %853 = vmatpush1.msra.mxu0 0.0
      %854 = vmatprep.subr.mxu0 0.0
      %855 = vmatpush1.msra.mxu0 0.0
      %856 = vmatprep.subr.mxu0 0.0
      %857 = vmatpush1.msra.mxu0 0.0
      %858 = vmatprep.subr.mxu0 0.0
      %859 = vmatpush1.msra.mxu0 0.0
      %860 = vmatprep.subr.mxu0 0.0
      %861 = vmatpush1.msra.mxu0 0.0
      %862 = vmatprep.mubr.f32.mxu0 0.0
      %863 = vmatmul.mubr.f32.gmra.mrb[0].mxu0 %v793
      %v864 = vpop.f32.mrb[0].mxu0
      %v865 = vadd.f32 0.0, %v864
      %v866 = vpop.f32.mrb[0].mxu0
      %867 = vmatprep.mubr.f32.mxu0 0.0
      %868 = vmatmul.mubr.f32.gmra.mrb[0].mxu0 %v796
      %v869 = vpop.f32.mrb[0].mxu0
      %v870 = vadd.f32 0.0, %v869
      %v871 = vpop.f32.mrb[0].mxu0
      %872 = vdwg.mxu0
      %v873 = vmax.f32 %v778, %v865
      %v874 = vmax.f32 %v779, %v870
      %875 = vset.pattern.permute.xlu0 7
      %876 = vperm.xlu0 %875, %v207
      %v877 = vpop.permute.xlu0 %876
      %878 = vset.pattern.permute.xlu0 7
      %879 = vperm.xlu0 %878, %v208
      %v880 = vpop.permute.xlu0 %879
      %vm881 = vcmp.eq.s32.totalorder %v210, %v877
      %vm882 = vcmp.eq.s32.totalorder %v210, %v880
      %v883 = vsel %vm881, 1, 0
      %v884 = vsel %vm882, 1, 0
      %v885 = vcvt.s32.f32 %v883
      %v886 = vcvt.s32.f32 %v884
      %v888 = vsel %vm223, %v885, 0
      %v891 = vsel %vm223, %v886, 0
      %893 = vmatprep.subr.mxu0 0.0
      %894 = vmatpush1.msra.mxu0 %v205
      %895 = vmatprep.subr.mxu0 0.0
      %896 = vmatpush1.msra.mxu0 %v206
      %897 = vmatprep.subr.mxu0 0.0
      %898 = vmatpush1.msra.mxu0 0.0
      %899 = vmatprep.subr.mxu0 0.0
      %900 = vmatpush1.msra.mxu0 0.0
      %901 = vmatprep.subr.mxu0 0.0
      %902 = vmatpush1.msra.mxu0 0.0
      %903 = vmatprep.subr.mxu0 0.0
      %904 = vmatpush1.msra.mxu0 0.0
      %905 = vmatprep.subr.mxu0 0.0
      %906 = vmatpush1.msra.mxu0 0.0
      %907 = vmatprep.subr.mxu0 0.0
      %908 = vmatpush1.msra.mxu0 0.0
      %909 = vmatprep.subr.mxu0 0.0
      %910 = vmatpush1.msra.mxu0 0.0
      %911 = vmatprep.subr.mxu0 0.0
      %912 = vmatpush1.msra.mxu0 0.0
      %913 = vmatprep.subr.mxu0 0.0
      %914 = vmatpush1.msra.mxu0 0.0
      %915 = vmatprep.subr.mxu0 0.0
      %916 = vmatpush1.msra.mxu0 0.0
      %917 = vmatprep.subr.mxu0 0.0
      %918 = vmatpush1.msra.mxu0 0.0
      %919 = vmatprep.subr.mxu0 0.0
      %920 = vmatpush1.msra.mxu0 0.0
      %921 = vmatprep.subr.mxu0 0.0
      %922 = vmatpush1.msra.mxu0 0.0
      %923 = vmatprep.subr.mxu0 0.0
      %924 = vmatpush1.msra.mxu0 0.0
      %925 = vmatprep.subr.mxu0 0.0
      %926 = vmatpush1.msra.mxu0 0.0
      %927 = vmatprep.subr.mxu0 0.0
      %928 = vmatpush1.msra.mxu0 0.0
      %929 = vmatprep.subr.mxu0 0.0
      %930 = vmatpush1.msra.mxu0 0.0
      %931 = vmatprep.subr.mxu0 0.0
      %932 = vmatpush1.msra.mxu0 0.0
      %933 = vmatprep.subr.mxu0 0.0
      %934 = vmatpush1.msra.mxu0 0.0
      %935 = vmatprep.subr.mxu0 0.0
      %936 = vmatpush1.msra.mxu0 0.0
      %937 = vmatprep.subr.mxu0 0.0
      %938 = vmatpush1.msra.mxu0 0.0
      %939 = vmatprep.subr.mxu0 0.0
      %940 = vmatpush1.msra.mxu0 0.0
      %941 = vmatprep.subr.mxu0 0.0
      %942 = vmatpush1.msra.mxu0 0.0
      %943 = vmatprep.subr.mxu0 0.0
      %944 = vmatpush1.msra.mxu0 0.0
      %945 = vmatprep.subr.mxu0 0.0
      %946 = vmatpush1.msra.mxu0 0.0
      %947 = vmatprep.subr.mxu0 0.0
      %948 = vmatpush1.msra.mxu0 0.0
      %949 = vmatprep.subr.mxu0 0.0
      %950 = vmatpush1.msra.mxu0 0.0
      %951 = vmatprep.subr.mxu0 0.0
      %952 = vmatpush1.msra.mxu0 0.0
      %953 = vmatprep.subr.mxu0 0.0
      %954 = vmatpush1.msra.mxu0 0.0
      %955 = vmatprep.subr.mxu0 0.0
      %956 = vmatpush1.msra.mxu0 0.0
      %957 = vmatprep.mubr.f32.mxu0 0.0
      %958 = vmatmul.mubr.f32.gmra.mrb[0].mxu0 %v888
      %v959 = vpop.f32.mrb[0].mxu0
      %v960 = vadd.f32 0.0, %v959
      %v961 = vpop.f32.mrb[0].mxu0
      %962 = vmatprep.mubr.f32.mxu0 0.0
      %963 = vmatmul.mubr.f32.gmra.mrb[0].mxu0 %v891
      %v964 = vpop.f32.mrb[0].mxu0
      %v965 = vadd.f32 0.0, %v964
      %v966 = vpop.f32.mrb[0].mxu0
      %967 = vdwg.mxu0
      %v968 = vmax.f32 %v873, %v960
      %v969 = vmax.f32 %v874, %v965
      %v970 = vpack.c.bf16 %v969, %v968
      %v972 = vunpack.c.l.b16 %v970
      %v973 = vunpack.c.h.b16 %v970
      %v974 = vpack.c.b16 %v972, %v972
      %v975 = vpack.c.b16 %v973, %v973
      %978 = vst [vmem:[%s201] sm:$0xf] %v974
      %979 = vst [vmem:[%s201 + $0x4] sm:$0xf] %v975
      %s980 = smul.u32 2, %s18
      %p981 = scmp.lt.s32.totalorder %s17, 1
      %s982 = scalar_select %p981, %s17, 1
      %p983 = scmp.lt.s32.totalorder %s980, 1
      %s984 = scalar_select %p983, %s980, 1
      %s985 = smul.addr %s982, 2
      %s986 = sadd.s32 %s984, %s985
      %s987 = smul.addr %s986, 4
      %s988 = scalar_lea.vmem %s2, %s987
      // Predicated region
      $region29: #{assanet_encoder_forward.22} parent=27 // pred_check
        %p989 = pneg %p99
      $region30: #{assanet_encoder_forward.22} parent=27 // pred_check_branch
        %991 = sbr.rel (%p989) target = $region32
      $region31: #{assanet_encoder_forward.22} parent=27 // pred_region
        %s992 = smul.u32 2, %s18
      $region32: #{assanet_encoder_forward.22} parent=27 // pred_fallthru
        _
    $region28: #{assanet_encoder_forward.22} parent=5 // pred_fallthru
      _
    %p993 = scmp.le.s32.totalorder 2, %s8
    // Predicated region
    $region33: #{assanet_encoder_forward.22} parent=5 // pred_check
      %p994 = pneg %p993
    $region34: #{assanet_encoder_forward.22} parent=5 // pred_check_branch
      %996 = sbr.rel (%p994) target = $region36
    $region35: #{assanet_encoder_forward.22} parent=5 // pred_region
      %s997 = ssub.s32 %s8, 2
      // Predicated region
      $region37: #{assanet_encoder_forward.22} parent=35 // pred_check
        %p998 = pneg %p105
      $region38: #{assanet_encoder_forward.22} parent=35 // pred_check_branch
        %1000 = sbr.rel (%p998) target = $region40
      $region39: #{assanet_encoder_forward.22} parent=35 // pred_region
        %s1001 = smul.u32 2, %s20
        %p1002 = scmp.lt.s32.totalorder %s19, 1
        %s1003 = scalar_select %p1002, %s19, 1
        %p1004 = scmp.lt.s32.totalorder %s1001, 1
        %s1005 = scalar_select %p1004, %s1001, 1
        %s1006 = smul.addr %s1003, 2
        %s1007 = sadd.s32 %s1005, %s1006
        %s1008 = smul.addr %s1007, 4
        %s1009 = scalar_lea.vmem %s2, %s1008
      $region40: #{assanet_encoder_forward.22} parent=35 // pred_fallthru
        _
    $region36: #{assanet_encoder_forward.22} parent=5 // pred_fallthru
      _
  $region6: #{assanet_encoder_forward.22} parent=0 // loop_footer
    %s12 = sadd.s32 1, %s8
  $region7: #{assanet_encoder_forward.22} parent=0 // loop_footer_branch
    %7 = sbr.rel target = $region3
  $region8: #{assanet_encoder_forward.22} parent=0 // loop_exit
    _

// kernel: assanet_encoder_forward.26
$region0: #{assanet_encoder_forward.26}
  #allocation0 [shape = 'u32[]', space=smem, size = 0x4, offset = 0x4, fixed_abs, tag = 'smem constant byte address 0x4 - core index']
  #allocation1 [shape = 'u32[144,128]{1,0:T(1,128)}', space=vmem, size = 0x12000, scoped, tag = 'internal scratch']
  %s0 = inlined_call_operand.vmem [shape: bf16[16,128], index: 0, kind: input, shape index: {}]
  %s1 = inlined_call_operand.vmem [shape: bf16[1,128,128], index: 1, kind: input, shape index: {}]
  %s2 = inlined_call_operand.vmem [shape: f32[1,1,128], index: 2, kind: input, shape index: {}]
  %s3 = inlined_call_operand.vmem [shape: bf16[16,128], index: 3, kind: output, shape index: {}]
  %s4 = sld [smem:[#allocation0]]
  $region22: #{assanet_encoder_forward.26} parent=0
    _
  %s6 = ssub.s32 1, %s4
  %s7 = scalar_select 0, %s6, %s4
  // Predicated region
  $region2: #{assanet_encoder_forward.26} parent=0 // pred_check
    _
  $region3: #{assanet_encoder_forward.26} parent=0 // pred_check_branch
    %9 = sbr.rel (0) target = $region5
  $region4: #{assanet_encoder_forward.26} parent=0 // pred_region
    _
  $region5: #{assanet_encoder_forward.26} parent=0 // pred_fallthru
    _
  // Predicated region
  $region6: #{assanet_encoder_forward.26} parent=0 // pred_check
    _
  $region7: #{assanet_encoder_forward.26} parent=0 // pred_check_branch
    %11 = sbr.rel (0) target = $region9
  $region8: #{assanet_encoder_forward.26} parent=0 // pred_region
    _
  $region9: #{assanet_encoder_forward.26} parent=0 // pred_fallthru
    _
  // Predicated region
  $region10: #{assanet_encoder_forward.26} parent=0 // pred_check
    _
  $region11: #{assanet_encoder_forward.26} parent=0 // pred_check_branch
    %13 = sbr.rel (0) target = $region13
  $region12: #{assanet_encoder_forward.26} parent=0 // pred_region
    _
  $region13: #{assanet_encoder_forward.26} parent=0 // pred_fallthru
    _
  %v15 = vld [vmem:[%s0] sm:$0xf]
  %v16 = vld [vmem:[%s0 + $0x4] sm:$0xf]
  %v17 = vld [vmem:[%s1] sm:$0xf]
  %v18 = vld [vmem:[%s1 + $0x4] sm:$0xf]
  %v19 = vld [vmem:[%s1 + $0x8] sm:$0xf]
  %v20 = vld [vmem:[%s1 + $0xc] sm:$0xf]
  %v21 = vld [vmem:[%s1 + $0x10] sm:$0xf]
  %v22 = vld [vmem:[%s1 + $0x14] sm:$0xf]
  %v23 = vld [vmem:[%s1 + $0x18] sm:$0xf]
  %v24 = vld [vmem:[%s1 + $0x1c] sm:$0xf]
  %v25 = vld [vmem:[%s1 + $0x20] sm:$0xf]
  %v26 = vld [vmem:[%s1 + $0x24] sm:$0xf]
  %v27 = vld [vmem:[%s1 + $0x28] sm:$0xf]
  %v28 = vld [vmem:[%s1 + $0x2c] sm:$0xf]
  %v29 = vld [vmem:[%s1 + $0x30] sm:$0xf]
  %v30 = vld [vmem:[%s1 + $0x34] sm:$0xf]
  %v31 = vld [vmem:[%s1 + $0x38] sm:$0xf]
  %v32 = vld [vmem:[%s1 + $0x3c] sm:$0xf]
  %v33 = vld [vmem:[%s2] sm:$0x1]
  %v35 = vlaneseq
  %v36 = vshrl.u32 %v35, 7
  %v37 = vsub.s32 0, %v36
  %v38 = vrot.slane %v33, %v37
  %v42 = vunpack.c.l.b16 %v15
  %v43 = vunpack.c.l.b16 %v16
  %v44 = vpack.c.b16 %v43, %v42
  %v62 = vunpack.c.l.b16 %v17
  %v63 = vunpack.c.l.b16 %v18
  %v64 = vunpack.c.l.b16 %v19
  %v65 = vunpack.c.l.b16 %v20
  %v66 = vunpack.c.l.b16 %v21
  %v67 = vunpack.c.l.b16 %v22
  %v68 = vunpack.c.l.b16 %v23
  %v69 = vunpack.c.l.b16 %v24
  %v70 = vunpack.c.l.b16 %v25
  %v71 = vunpack.c.l.b16 %v26
  %v72 = vunpack.c.l.b16 %v27
  %v73 = vunpack.c.l.b16 %v28
  %v74 = vunpack.c.l.b16 %v29
  %v75 = vunpack.c.l.b16 %v30
  %v76 = vunpack.c.l.b16 %v31
  %v77 = vunpack.c.l.b16 %v32
  %v78 = vpack.c.b16 %v63, %v62
  %v79 = vpack.c.b16 %v65, %v64
  %v80 = vpack.c.b16 %v67, %v66
  %v81 = vpack.c.b16 %v69, %v68
  %v82 = vpack.c.b16 %v71, %v70
  %v83 = vpack.c.b16 %v73, %v72
  %v84 = vpack.c.b16 %v75, %v74
  %v85 = vpack.c.b16 %v77, %v76
  %94 = vmatprep.subr.bf16.mxu0 0
  %95 = vmatpush1.bf16.msra.mxu0 %v78
  %96 = vmatprep.subr.bf16.mxu0 0
  %97 = vmatpush1.bf16.msra.mxu0 %v79
  %98 = vmatprep.subr.bf16.mxu0 0
  %99 = vmatpush1.bf16.msra.mxu0 %v80
  %100 = vmatprep.subr.bf16.mxu0 0
  %101 = vmatpush1.bf16.msra.mxu0 %v81
  %102 = vmatprep.subr.bf16.mxu0 0
  %103 = vmatpush1.bf16.msra.mxu0 %v82
  %104 = vmatprep.subr.bf16.mxu0 0
  %105 = vmatpush1.bf16.msra.mxu0 %v83
  %106 = vmatprep.subr.bf16.mxu0 0
  %107 = vmatpush1.bf16.msra.mxu0 %v84
  %108 = vmatprep.subr.bf16.mxu0 0
  %109 = vmatpush1.bf16.msra.mxu0 %v85
  %110 = vmatprep.subr.bf16.mxu0 0
  %111 = vmatpush1.bf16.msra.mxu0 0
  %112 = vmatprep.subr.bf16.mxu0 0
  %113 = vmatpush1.bf16.msra.mxu0 0
  %114 = vmatprep.subr.bf16.mxu0 0
  %115 = vmatpush1.bf16.msra.mxu0 0
  %116 = vmatprep.subr.bf16.mxu0 0
  %117 = vmatpush1.bf16.msra.mxu0 0
  %118 = vmatprep.subr.bf16.mxu0 0
  %119 = vmatpush1.bf16.msra.mxu0 0
  %120 = vmatprep.subr.bf16.mxu0 0
  %121 = vmatpush1.bf16.msra.mxu0 0
  %122 = vmatprep.subr.bf16.mxu0 0
  %123 = vmatpush1.bf16.msra.mxu0 0
  %124 = vmatprep.subr.bf16.mxu0 0
  %125 = vmatpush1.bf16.msra.mxu0 0
  %126 = vmatprep.mubr.bf16.mxu0 0
  %127 = vmatmul.mubr.bf16.gmra.mrb[0].mxu0 %v44
  %v128 = vpop.f32.mrb[0].mxu0
  %v129 = vadd.f32 %v38, %v128
  %v130 = vpop.f32.mrb[0].mxu0
  %v131 = vpop.f32.mrb[0].mxu0
  %v132 = vadd.f32 %v38, %v131
  %v133 = vpop.f32.mrb[0].mxu0
  %134 = vdwg.mxu0
  %v135 = vmax.f32 %v129, 0.0
  %v136 = vmax.f32 %v132, 0.0
  %v137 = vpack.c.bf16 %v136, %v135
  %v139 = vunpack.c.l.b16 %v137
  %v140 = vunpack.c.h.b16 %v137
  %v141 = vpack.c.b16 %v139, %v139
  %v142 = vpack.c.b16 %v140, %v140
  %145 = vst [vmem:[%s3] sm:$0xf] %v141
  %146 = vst [vmem:[%s3 + $0x4] sm:$0xf] %v142
  // Predicated region
  $region14: #{assanet_encoder_forward.26} parent=0 // pred_check
    _
  $region15: #{assanet_encoder_forward.26} parent=0 // pred_check_branch
    %148 = sbr.rel (0) target = $region17
  $region16: #{assanet_encoder_forward.26} parent=0 // pred_region
    _
  $region17: #{assanet_encoder_forward.26} parent=0 // pred_fallthru
    _
  // Predicated region
  $region18: #{assanet_encoder_forward.26} parent=0 // pred_check
    _
  $region19: #{assanet_encoder_forward.26} parent=0 // pred_check_branch
    %150 = sbr.rel (0) target = $region21
  $region20: #{assanet_encoder_forward.26} parent=0 // pred_region
    _
  $region21: #{assanet_encoder_forward.26} parent=0 // pred_fallthru
    _

// kernel: assanet_encoder_forward.25
$region0: #{assanet_encoder_forward.25}
  #allocation0 [shape = 'u32[]', space=smem, size = 0x4, offset = 0x4, fixed_abs, tag = 'smem constant byte address 0x4 - core index']
  #allocation1 [shape = 'u32[144,128]{1,0:T(1,128)}', space=vmem, size = 0x12000, scoped, tag = 'internal scratch']
  %s0 = inlined_call_operand.vmem [shape: bf16[2,16,128], index: 0, kind: input, shape index: {}]
  %s1 = inlined_call_operand.vmem [shape: s32[2,8,8], index: 1, kind: input, shape index: {}]
  %s2 = inlined_call_operand.vmem [shape: bf16[2,8,128], index: 2, kind: output, shape index: {}]
  %s3 = sld [smem:[#allocation0]]
  $region41: #{assanet_encoder_forward.25} parent=0
    _
  %s5 = ssub.s32 1, %s3
  %s6 = scalar_select 0, %s5, %s3
  loop: start=0, step=1, limit=4
  $region2: #{assanet_encoder_forward.25} parent=0 // loop_pre_header
    _
  $region3: #{assanet_encoder_forward.25} parent=0 // loop_header
    %s8 = sphi 0, %s12
    %p9 = scmp.ge.s32.totalorder %s8, 4
    %s15 = sphi 0, %s27
    %s16 = sphi 0, %s23
    %s17 = sphi 0, %s15
    %s18 = sphi 0, %s16
    %s19 = sphi 0, %s17
    %s20 = sphi 0, %s18
    %s30 = sphi 0, %s32
    %s33 = sphi 0, %s30
    %s34 = sphi 0, %s33
    %s50 = sphi 0, %s34
    %s58 = sphi 0, %s60
    %s61 = sphi 0, %s58
    %s62 = sphi 0, %s61
    %s78 = sphi 0, %s62
    %s86 = sphi 0, %s88
    %s89 = sphi 0, %s86
    %s90 = sphi 0, %s89
    %s106 = sphi 0, %s90
  $region4: #{assanet_encoder_forward.25} parent=0 // loop_header_branch
    %11 = sbr.rel (%p9) target = $region8
  $region5: #{assanet_encoder_forward.25} parent=0 // loop_body
    %s13 = ssub.s32 %s8, 1
    %s14 = ssub.s32 %s8, 2
    %s21 = sadd.s32 1, %s16
    %p22 = scmp.ge.s32.totalorder %s21, 1
    %s23 = scalar_select %p22, 0, %s21
    %s24 = sadd.s32 1, %s15
    %s25 = scalar_select %p22, %s24, %s15
    %p26 = scmp.ge.s32.totalorder %s25, 2
    %s27 = scalar_select %p26, 0, %s25
    %s28 = ssub.s32 %s15, %s27
    %p29 = scmp.eq.s32.totalorder %s28, 0
    %s31 = sadd.s32 %s30, 1
    %s32 = scalar_select %p29, %s30, %s31
    %p35 = pneg %p29
    %p36 = scmp.eq.s32.totalorder %s8, 1
    %p37 = por %p35, %p36
    %p38 = scmp.ne.s32.totalorder %s30, %s33
    %p39 = scmp.eq.s32.totalorder %s8, 0
    %p40 = por %p38, %p39
    %p41 = scmp.ne.s32.totalorder %s30, %s33
    %p42 = scmp.eq.s32.totalorder %s13, 1
    %p43 = por %p41, %p42
    %p44 = scmp.ne.s32.totalorder %s33, %s34
    %p45 = scmp.eq.s32.totalorder %s13, 0
    %p46 = por %p44, %p45
    %p47 = scmp.ne.s32.totalorder %s33, %s34
    %p48 = scmp.eq.s32.totalorder %s14, 1
    %p49 = por %p47, %p48
    %p51 = scmp.ne.s32.totalorder %s34, %s50
    %p52 = scmp.eq.s32.totalorder %s14, 0
    %p53 = por %p51, %p52
    %s54 = ssub.s32 %s15, %s27
    %s55 = ssub.s32 %s16, %s23
    %s56 = sor.u32 %s54, %s55
    %p57 = scmp.eq.s32.totalorder %s56, 0
    %s59 = sadd.s32 %s58, 1
    %s60 = scalar_select %p57, %s58, %s59
    %p63 = pneg %p57
    %p64 = scmp.eq.s32.totalorder %s8, 1
    %p65 = por %p63, %p64
    %p66 = scmp.ne.s32.totalorder %s58, %s61
    %p67 = scmp.eq.s32.totalorder %s8, 0
    %p68 = por %p66, %p67
    %p69 = scmp.ne.s32.totalorder %s58, %s61
    %p70 = scmp.eq.s32.totalorder %s13, 1
    %p71 = por %p69, %p70
    %p72 = scmp.ne.s32.totalorder %s61, %s62
    %p73 = scmp.eq.s32.totalorder %s13, 0
    %p74 = por %p72, %p73
    %p75 = scmp.ne.s32.totalorder %s61, %s62
    %p76 = scmp.eq.s32.totalorder %s14, 1
    %p77 = por %p75, %p76
    %p79 = scmp.ne.s32.totalorder %s62, %s78
    %p80 = scmp.eq.s32.totalorder %s14, 0
    %p81 = por %p79, %p80
    %s82 = ssub.s32 %s15, %s27
    %s83 = ssub.s32 %s16, %s23
    %s84 = sor.u32 %s82, %s83
    %p85 = scmp.eq.s32.totalorder %s84, 0
    %s87 = sadd.s32 %s86, 1
    %s88 = scalar_select %p85, %s86, %s87
    %p91 = pneg %p85
    %p92 = scmp.eq.s32.totalorder %s8, 1
    %p93 = por %p91, %p92
    %p94 = scmp.ne.s32.totalorder %s86, %s89
    %p95 = scmp.eq.s32.totalorder %s8, 0
    %p96 = por %p94, %p95
    %p97 = scmp.ne.s32.totalorder %s86, %s89
    %p98 = scmp.eq.s32.totalorder %s13, 1
    %p99 = por %p97, %p98
    %p100 = scmp.ne.s32.totalorder %s89, %s90
    %p101 = scmp.eq.s32.totalorder %s13, 0
    %p102 = por %p100, %p101
    %p103 = scmp.ne.s32.totalorder %s89, %s90
    %p104 = scmp.eq.s32.totalorder %s14, 1
    %p105 = por %p103, %p104
    %p107 = scmp.ne.s32.totalorder %s90, %s106
    %p108 = scmp.eq.s32.totalorder %s14, 0
    %p109 = por %p107, %p108
    %p110 = scmp.le.s32.totalorder 1, %s8
    %p111 = scmp.lt.s32.totalorder %s8, 3
    %p112 = pnand %p110, %p111
    %p113 = pneg %p112
    // Predicated region
    $region9: #{assanet_encoder_forward.25} parent=5 // pred_check
      _
    $region10: #{assanet_encoder_forward.25} parent=5 // pred_check_branch
      %115 = sbr.rel (%p112) target = $region12
    $region11: #{assanet_encoder_forward.25} parent=5 // pred_region
      %s116 = ssub.s32 %s8, 1
    $region12: #{assanet_encoder_forward.25} parent=5 // pred_fallthru
      _
    %p117 = scmp.lt.s32.totalorder %s8, 2
    // Predicated region
    $region13: #{assanet_encoder_forward.25} parent=5 // pred_check
      %p118 = pneg %p117
    $region14: #{assanet_encoder_forward.25} parent=5 // pred_check_branch
      %120 = sbr.rel (%p118) target = $region16
    $region15: #{assanet_encoder_forward.25} parent=5 // pred_region
      // Predicated region
      $region17: #{assanet_encoder_forward.25} parent=15 // pred_check
        %p121 = pneg %p40
      $region18: #{assanet_encoder_forward.25} parent=15 // pred_check_branch
        %123 = sbr.rel (%p121) target = $region20
      $region19: #{assanet_encoder_forward.25} parent=15 // pred_region
        %p124 = scmp.lt.s32.totalorder %s15, 1
        %s125 = scalar_select %p124, %s15, 1
        %s126 = smul.addr %s125, 2
        %s127 = smul.addr %s126, 4
        %s128 = scalar_lea.vmem %s0, %s127
      $region20: #{assanet_encoder_forward.25} parent=15 // pred_fallthru
        _
      // Predicated region
      $region21: #{assanet_encoder_forward.25} parent=15 // pred_check
        %p129 = pneg %p68
      $region22: #{assanet_encoder_forward.25} parent=15 // pred_check_branch
        %131 = sbr.rel (%p129) target = $region24
      $region23: #{assanet_encoder_forward.25} parent=15 // pred_region
        %p132 = scmp.lt.s32.totalorder %s15, 1
        %s133 = scalar_select %p132, %s15, 1
        %p134 = scmp.lt.s32.totalorder %s16, 0
        %s135 = scalar_select %p134, %s16, 0
        %s136 = sadd.s32 %s135, %s133
        %s137 = smul.addr %s136, 8
        %s138 = scalar_lea.vmem %s1, %s137
      $region24: #{assanet_encoder_forward.25} parent=15 // pred_fallthru
        _
    $region16: #{assanet_encoder_forward.25} parent=5 // pred_fallthru
      _
    %p139 = scmp.le.s32.totalorder 1, %s8
    %p140 = scmp.lt.s32.totalorder %s8, 3
    %p141 = pnand %p139, %p140
    %p142 = pneg %p141
    // Predicated region
    $region25: #{assanet_encoder_forward.25} parent=5 // pred_check
      _
    $region26: #{assanet_encoder_forward.25} parent=5 // pred_check_branch
      %144 = sbr.rel (%p141) target = $region28
    $region27: #{assanet_encoder_forward.25} parent=5 // pred_region
      %s145 = ssub.s32 %s8, 1
      %p146 = scmp.lt.s32.totalorder %s17, 1
      %s147 = scalar_select %p146, %s17, 1
      %s148 = smul.addr %s147, 2
      %s149 = smul.addr %s148, 4
      %s150 = scalar_lea.vmem %s0, %s149
      %p151 = pneg %p46
      %p152 = pneg %p43
      %p153 = scmp.lt.s32.totalorder %s17, 1
      %s154 = scalar_select %p153, %s17, 1
      %p155 = scmp.lt.s32.totalorder %s18, 0
      %s156 = scalar_select %p155, %s18, 0
      %s157 = sadd.s32 %s156, %s154
      %s158 = smul.addr %s157, 8
      %s159 = scalar_lea.vmem %s1, %s158
      %p160 = pneg %p74
      %p161 = pneg %p71
      %p162 = pneg %p102
      %p163 = pneg %p99
      %p164 = scmp.lt.s32.totalorder %s17, 1
      %s165 = scalar_select %p164, %s17, 1
      %p166 = scmp.lt.s32.totalorder %s18, 0
      %s167 = scalar_select %p166, %s18, 0
      %s168 = sadd.s32 %s167, %s165
      %s169 = smul.addr %s168, 4
      %s170 = scalar_lea.vmem %s2, %s169
      %p171 = scmp.lt.s32.totalorder %s17, 1
      %s172 = scalar_select %p171, %s17, 1
      %s173 = smul.addr %s172, 2
      %s174 = smul.addr %s173, 4
      %s175 = scalar_lea.vmem %s0, %s174
      %p176 = scmp.lt.s32.totalorder %s17, 1
      %s177 = scalar_select %p176, %s17, 1
      %p178 = scmp.lt.s32.totalorder %s18, 0
      %s179 = scalar_select %p178, %s18, 0
      %s180 = sadd.s32 %s179, %s177
      %s181 = smul.addr %s180, 8
      %s182 = scalar_lea.vmem %s1, %s181
      %p183 = scmp.lt.s32.totalorder %s17, 1
      %s184 = scalar_select %p183, %s17, 1
      %p185 = scmp.lt.s32.totalorder %s18, 0
      %s186 = scalar_select %p185, %s18, 0
      %s187 = sadd.s32 %s186, %s184
      %s188 = smul.addr %s187, 4
      %s189 = scalar_lea.vmem %s2, %s188
      %v190 = vld [vmem:[%s175] sm:$0xf]
      %v191 = vld [vmem:[%s175 + $0x4] sm:$0xf]
      %v192 = vunpack.c.l.bf16 %v190
      %v193 = vunpack.c.l.bf16 %v191
      %v194 = vld [vmem:[%s182] sm:$0xff]
      %v195 = vlaneseq
      %v196 = vand.u32 %v195, 127
      %197 = vset.pattern.permute.xlu0 0
      %198 = vperm.xlu0 %197, %v194
      %v199 = vpop.permute.xlu0 %198
      %vm200 = vcmp.eq.s32.totalorder %v196, %v199
      %v201 = vsel %vm200, 1, 0
      %v202 = vcvt.s32.f32 %v201
      %vm203 = vcmask 130048
      %v205 = vsel %vm203, %v202, 0
      %207 = vmatprep.subr.mxu0 0.0
      %208 = vmatpush1.msra.mxu0 %v192
      %209 = vmatprep.subr.mxu0 0.0
      %210 = vmatpush1.msra.mxu0 %v193
      %211 = vmatprep.subr.mxu0 0.0
      %212 = vmatpush1.msra.mxu0 0.0
      %213 = vmatprep.subr.mxu0 0.0
      %214 = vmatpush1.msra.mxu0 0.0
      %215 = vmatprep.subr.mxu0 0.0
      %216 = vmatpush1.msra.mxu0 0.0
      %217 = vmatprep.subr.mxu0 0.0
      %218 = vmatpush1.msra.mxu0 0.0
      %219 = vmatprep.subr.mxu0 0.0
      %220 = vmatpush1.msra.mxu0 0.0
      %221 = vmatprep.subr.mxu0 0.0
      %222 = vmatpush1.msra.mxu0 0.0
      %223 = vmatprep.subr.mxu0 0.0
      %224 = vmatpush1.msra.mxu0 0.0
      %225 = vmatprep.subr.mxu0 0.0
      %226 = vmatpush1.msra.mxu0 0.0
      %227 = vmatprep.subr.mxu0 0.0
      %228 = vmatpush1.msra.mxu0 0.0
      %229 = vmatprep.subr.mxu0 0.0
      %230 = vmatpush1.msra.mxu0 0.0
      %231 = vmatprep.subr.mxu0 0.0
      %232 = vmatpush1.msra.mxu0 0.0
      %233 = vmatprep.subr.mxu0 0.0
      %234 = vmatpush1.msra.mxu0 0.0
      %235 = vmatprep.subr.mxu0 0.0
      %236 = vmatpush1.msra.mxu0 0.0
      %237 = vmatprep.subr.mxu0 0.0
      %238 = vmatpush1.msra.mxu0 0.0
      %239 = vmatprep.subr.mxu0 0.0
      %240 = vmatpush1.msra.mxu0 0.0
      %241 = vmatprep.subr.mxu0 0.0
      %242 = vmatpush1.msra.mxu0 0.0
      %243 = vmatprep.subr.mxu0 0.0
      %244 = vmatpush1.msra.mxu0 0.0
      %245 = vmatprep.subr.mxu0 0.0
      %246 = vmatpush1.msra.mxu0 0.0
      %247 = vmatprep.subr.mxu0 0.0
      %248 = vmatpush1.msra.mxu0 0.0
      %249 = vmatprep.subr.mxu0 0.0
      %250 = vmatpush1.msra.mxu0 0.0
      %251 = vmatprep.subr.mxu0 0.0
      %252 = vmatpush1.msra.mxu0 0.0
      %253 = vmatprep.subr.mxu0 0.0
      %254 = vmatpush1.msra.mxu0 0.0
      %255 = vmatprep.subr.mxu0 0.0
      %256 = vmatpush1.msra.mxu0 0.0
      %257 = vmatprep.subr.mxu0 0.0
      %258 = vmatpush1.msra.mxu0 0.0
      %259 = vmatprep.subr.mxu0 0.0
      %260 = vmatpush1.msra.mxu0 0.0
      %261 = vmatprep.subr.mxu0 0.0
      %262 = vmatpush1.msra.mxu0 0.0
      %263 = vmatprep.subr.mxu0 0.0
      %264 = vmatpush1.msra.mxu0 0.0
      %265 = vmatprep.subr.mxu0 0.0
      %266 = vmatpush1.msra.mxu0 0.0
      %267 = vmatprep.subr.mxu0 0.0
      %268 = vmatpush1.msra.mxu0 0.0
      %269 = vmatprep.subr.mxu0 0.0
      %270 = vmatpush1.msra.mxu0 0.0
      %271 = vmatprep.mubr.f32.mxu0 0.0
      %272 = vmatmul.mubr.f32.gmra.mrb[0].mxu0 %v205
      %v273 = vpop.f32.mrb[0].mxu0
      %v274 = vadd.f32 0.0, %v273
      %v275 = vpop.f32.mrb[0].mxu0
      %276 = vdwg.mxu0
      %277 = vset.pattern.permute.xlu0 1
      %278 = vperm.xlu0 %277, %v194
      %v279 = vpop.permute.xlu0 %278
      %vm280 = vcmp.eq.s32.totalorder %v196, %v279
      %v281 = vsel %vm280, 1, 0
      %v282 = vcvt.s32.f32 %v281
      %v284 = vsel %vm203, %v282, 0
      %286 = vmatprep.subr.mxu0 0.0
      %287 = vmatpush1.msra.mxu0 %v192
      %288 = vmatprep.subr.mxu0 0.0
      %289 = vmatpush1.msra.mxu0 %v193
      %290 = vmatprep.subr.mxu0 0.0
      %291 = vmatpush1.msra.mxu0 0.0
      %292 = vmatprep.subr.mxu0 0.0
      %293 = vmatpush1.msra.mxu0 0.0
      %294 = vmatprep.subr.mxu0 0.0
      %295 = vmatpush1.msra.mxu0 0.0
      %296 = vmatprep.subr.mxu0 0.0
      %297 = vmatpush1.msra.mxu0 0.0
      %298 = vmatprep.subr.mxu0 0.0
      %299 = vmatpush1.msra.mxu0 0.0
      %300 = vmatprep.subr.mxu0 0.0
      %301 = vmatpush1.msra.mxu0 0.0
      %302 = vmatprep.subr.mxu0 0.0
      %303 = vmatpush1.msra.mxu0 0.0
      %304 = vmatprep.subr.mxu0 0.0
      %305 = vmatpush1.msra.mxu0 0.0
      %306 = vmatprep.subr.mxu0 0.0
      %307 = vmatpush1.msra.mxu0 0.0
      %308 = vmatprep.subr.mxu0 0.0
      %309 = vmatpush1.msra.mxu0 0.0
      %310 = vmatprep.subr.mxu0 0.0
      %311 = vmatpush1.msra.mxu0 0.0
      %312 = vmatprep.subr.mxu0 0.0
      %313 = vmatpush1.msra.mxu0 0.0
      %314 = vmatprep.subr.mxu0 0.0
      %315 = vmatpush1.msra.mxu0 0.0
      %316 = vmatprep.subr.mxu0 0.0
      %317 = vmatpush1.msra.mxu0 0.0
      %318 = vmatprep.subr.mxu0 0.0
      %319 = vmatpush1.msra.mxu0 0.0
      %320 = vmatprep.subr.mxu0 0.0
      %321 = vmatpush1.msra.mxu0 0.0
      %322 = vmatprep.subr.mxu0 0.0
      %323 = vmatpush1.msra.mxu0 0.0
      %324 = vmatprep.subr.mxu0 0.0
      %325 = vmatpush1.msra.mxu0 0.0
      %326 = vmatprep.subr.mxu0 0.0
      %327 = vmatpush1.msra.mxu0 0.0
      %328 = vmatprep.subr.mxu0 0.0
      %329 = vmatpush1.msra.mxu0 0.0
      %330 = vmatprep.subr.mxu0 0.0
      %331 = vmatpush1.msra.mxu0 0.0
      %332 = vmatprep.subr.mxu0 0.0
      %333 = vmatpush1.msra.mxu0 0.0
      %334 = vmatprep.subr.mxu0 0.0
      %335 = vmatpush1.msra.mxu0 0.0
      %336 = vmatprep.subr.mxu0 0.0
      %337 = vmatpush1.msra.mxu0 0.0
      %338 = vmatprep.subr.mxu0 0.0
      %339 = vmatpush1.msra.mxu0 0.0
      %340 = vmatprep.subr.mxu0 0.0
      %341 = vmatpush1.msra.mxu0 0.0
      %342 = vmatprep.subr.mxu0 0.0
      %343 = vmatpush1.msra.mxu0 0.0
      %344 = vmatprep.subr.mxu0 0.0
      %345 = vmatpush1.msra.mxu0 0.0
      %346 = vmatprep.subr.mxu0 0.0
      %347 = vmatpush1.msra.mxu0 0.0
      %348 = vmatprep.subr.mxu0 0.0
      %349 = vmatpush1.msra.mxu0 0.0
      %350 = vmatprep.mubr.f32.mxu0 0.0
      %351 = vmatmul.mubr.f32.gmra.mrb[0].mxu0 %v284
      %v352 = vpop.f32.mrb[0].mxu0
      %v353 = vadd.f32 0.0, %v352
      %v354 = vpop.f32.mrb[0].mxu0
      %355 = vdwg.mxu0
      %v356 = vmax.f32 %v274, %v353
      %357 = vset.pattern.permute.xlu0 2
      %358 = vperm.xlu0 %357, %v194
      %v359 = vpop.permute.xlu0 %358
      %vm360 = vcmp.eq.s32.totalorder %v196, %v359
      %v361 = vsel %vm360, 1, 0
      %v362 = vcvt.s32.f32 %v361
      %v364 = vsel %vm203, %v362, 0
      %366 = vmatprep.subr.mxu0 0.0
      %367 = vmatpush1.msra.mxu0 %v192
      %368 = vmatprep.subr.mxu0 0.0
      %369 = vmatpush1.msra.mxu0 %v193
      %370 = vmatprep.subr.mxu0 0.0
      %371 = vmatpush1.msra.mxu0 0.0
      %372 = vmatprep.subr.mxu0 0.0
      %373 = vmatpush1.msra.mxu0 0.0
      %374 = vmatprep.subr.mxu0 0.0
      %375 = vmatpush1.msra.mxu0 0.0
      %376 = vmatprep.subr.mxu0 0.0
      %377 = vmatpush1.msra.mxu0 0.0
      %378 = vmatprep.subr.mxu0 0.0
      %379 = vmatpush1.msra.mxu0 0.0
      %380 = vmatprep.subr.mxu0 0.0
      %381 = vmatpush1.msra.mxu0 0.0
      %382 = vmatprep.subr.mxu0 0.0
      %383 = vmatpush1.msra.mxu0 0.0
      %384 = vmatprep.subr.mxu0 0.0
      %385 = vmatpush1.msra.mxu0 0.0
      %386 = vmatprep.subr.mxu0 0.0
      %387 = vmatpush1.msra.mxu0 0.0
      %388 = vmatprep.subr.mxu0 0.0
      %389 = vmatpush1.msra.mxu0 0.0
      %390 = vmatprep.subr.mxu0 0.0
      %391 = vmatpush1.msra.mxu0 0.0
      %392 = vmatprep.subr.mxu0 0.0
      %393 = vmatpush1.msra.mxu0 0.0
      %394 = vmatprep.subr.mxu0 0.0
      %395 = vmatpush1.msra.mxu0 0.0
      %396 = vmatprep.subr.mxu0 0.0
      %397 = vmatpush1.msra.mxu0 0.0
      %398 = vmatprep.subr.mxu0 0.0
      %399 = vmatpush1.msra.mxu0 0.0
      %400 = vmatprep.subr.mxu0 0.0
      %401 = vmatpush1.msra.mxu0 0.0
      %402 = vmatprep.subr.mxu0 0.0
      %403 = vmatpush1.msra.mxu0 0.0
      %404 = vmatprep.subr.mxu0 0.0
      %405 = vmatpush1.msra.mxu0 0.0
      %406 = vmatprep.subr.mxu0 0.0
      %407 = vmatpush1.msra.mxu0 0.0
      %408 = vmatprep.subr.mxu0 0.0
      %409 = vmatpush1.msra.mxu0 0.0
      %410 = vmatprep.subr.mxu0 0.0
      %411 = vmatpush1.msra.mxu0 0.0
      %412 = vmatprep.subr.mxu0 0.0
      %413 = vmatpush1.msra.mxu0 0.0
      %414 = vmatprep.subr.mxu0 0.0
      %415 = vmatpush1.msra.mxu0 0.0
      %416 = vmatprep.subr.mxu0 0.0
      %417 = vmatpush1.msra.mxu0 0.0
      %418 = vmatprep.subr.mxu0 0.0
      %419 = vmatpush1.msra.mxu0 0.0
      %420 = vmatprep.subr.mxu0 0.0
      %421 = vmatpush1.msra.mxu0 0.0
      %422 = vmatprep.subr.mxu0 0.0
      %423 = vmatpush1.msra.mxu0 0.0
      %424 = vmatprep.subr.mxu0 0.0
      %425 = vmatpush1.msra.mxu0 0.0
      %426 = vmatprep.subr.mxu0 0.0
      %427 = vmatpush1.msra.mxu0 0.0
      %428 = vmatprep.subr.mxu0 0.0
      %429 = vmatpush1.msra.mxu0 0.0
      %430 = vmatprep.mubr.f32.mxu0 0.0
      %431 = vmatmul.mubr.f32.gmra.mrb[0].mxu0 %v364
      %v432 = vpop.f32.mrb[0].mxu0
      %v433 = vadd.f32 0.0, %v432
      %v434 = vpop.f32.mrb[0].mxu0
      %435 = vdwg.mxu0
      %v436 = vmax.f32 %v356, %v433
      %437 = vset.pattern.permute.xlu0 3
      %438 = vperm.xlu0 %437, %v194
      %v439 = vpop.permute.xlu0 %438
      %vm440 = vcmp.eq.s32.totalorder %v196, %v439
      %v441 = vsel %vm440, 1, 0
      %v442 = vcvt.s32.f32 %v441
      %v444 = vsel %vm203, %v442, 0
      %446 = vmatprep.subr.mxu0 0.0
      %447 = vmatpush1.msra.mxu0 %v192
      %448 = vmatprep.subr.mxu0 0.0
      %449 = vmatpush1.msra.mxu0 %v193
      %450 = vmatprep.subr.mxu0 0.0
      %451 = vmatpush1.msra.mxu0 0.0
      %452 = vmatprep.subr.mxu0 0.0
      %453 = vmatpush1.msra.mxu0 0.0
      %454 = vmatprep.subr.mxu0 0.0
      %455 = vmatpush1.msra.mxu0 0.0
      %456 = vmatprep.subr.mxu0 0.0
      %457 = vmatpush1.msra.mxu0 0.0
      %458 = vmatprep.subr.mxu0 0.0
      %459 = vmatpush1.msra.mxu0 0.0
      %460 = vmatprep.subr.mxu0 0.0
      %461 = vmatpush1.msra.mxu0 0.0
      %462 = vmatprep.subr.mxu0 0.0
      %463 = vmatpush1.msra.mxu0 0.0
      %464 = vmatprep.subr.mxu0 0.0
      %465 = vmatpush1.msra.mxu0 0.0
      %466 = vmatprep.subr.mxu0 0.0
      %467 = vmatpush1.msra.mxu0 0.0
      %468 = vmatprep.subr.mxu0 0.0
      %469 = vmatpush1.msra.mxu0 0.0
      %470 = vmatprep.subr.mxu0 0.0
      %471 = vmatpush1.msra.mxu0 0.0
      %472 = vmatprep.subr.mxu0 0.0
      %473 = vmatpush1.msra.mxu0 0.0
      %474 = vmatprep.subr.mxu0 0.0
      %475 = vmatpush1.msra.mxu0 0.0
      %476 = vmatprep.subr.mxu0 0.0
      %477 = vmatpush1.msra.mxu0 0.0
      %478 = vmatprep.subr.mxu0 0.0
      %479 = vmatpush1.msra.mxu0 0.0
      %480 = vmatprep.subr.mxu0 0.0
      %481 = vmatpush1.msra.mxu0 0.0
      %482 = vmatprep.subr.mxu0 0.0
      %483 = vmatpush1.msra.mxu0 0.0
      %484 = vmatprep.subr.mxu0 0.0
      %485 = vmatpush1.msra.mxu0 0.0
      %486 = vmatprep.subr.mxu0 0.0
      %487 = vmatpush1.msra.mxu0 0.0
      %488 = vmatprep.subr.mxu0 0.0
      %489 = vmatpush1.msra.mxu0 0.0
      %490 = vmatprep.subr.mxu0 0.0
      %491 = vmatpush1.msra.mxu0 0.0
      %492 = vmatprep.subr.mxu0 0.0
      %493 = vmatpush1.msra.mxu0 0.0
      %494 = vmatprep.subr.mxu0 0.0
      %495 = vmatpush1.msra.mxu0 0.0
      %496 = vmatprep.subr.mxu0 0.0
      %497 = vmatpush1.msra.mxu0 0.0
      %498 = vmatprep.subr.mxu0 0.0
      %499 = vmatpush1.msra.mxu0 0.0
      %500 = vmatprep.subr.mxu0 0.0
      %501 = vmatpush1.msra.mxu0 0.0
      %502 = vmatprep.subr.mxu0 0.0
      %503 = vmatpush1.msra.mxu0 0.0
      %504 = vmatprep.subr.mxu0 0.0
      %505 = vmatpush1.msra.mxu0 0.0
      %506 = vmatprep.subr.mxu0 0.0
      %507 = vmatpush1.msra.mxu0 0.0
      %508 = vmatprep.subr.mxu0 0.0
      %509 = vmatpush1.msra.mxu0 0.0
      %510 = vmatprep.mubr.f32.mxu0 0.0
      %511 = vmatmul.mubr.f32.gmra.mrb[0].mxu0 %v444
      %v512 = vpop.f32.mrb[0].mxu0
      %v513 = vadd.f32 0.0, %v512
      %v514 = vpop.f32.mrb[0].mxu0
      %515 = vdwg.mxu0
      %v516 = vmax.f32 %v436, %v513
      %517 = vset.pattern.permute.xlu0 4
      %518 = vperm.xlu0 %517, %v194
      %v519 = vpop.permute.xlu0 %518
      %vm520 = vcmp.eq.s32.totalorder %v196, %v519
      %v521 = vsel %vm520, 1, 0
      %v522 = vcvt.s32.f32 %v521
      %v524 = vsel %vm203, %v522, 0
      %526 = vmatprep.subr.mxu0 0.0
      %527 = vmatpush1.msra.mxu0 %v192
      %528 = vmatprep.subr.mxu0 0.0
      %529 = vmatpush1.msra.mxu0 %v193
      %530 = vmatprep.subr.mxu0 0.0
      %531 = vmatpush1.msra.mxu0 0.0
      %532 = vmatprep.subr.mxu0 0.0
      %533 = vmatpush1.msra.mxu0 0.0
      %534 = vmatprep.subr.mxu0 0.0
      %535 = vmatpush1.msra.mxu0 0.0
      %536 = vmatprep.subr.mxu0 0.0
      %537 = vmatpush1.msra.mxu0 0.0
      %538 = vmatprep.subr.mxu0 0.0
      %539 = vmatpush1.msra.mxu0 0.0
      %540 = vmatprep.subr.mxu0 0.0
      %541 = vmatpush1.msra.mxu0 0.0
      %542 = vmatprep.subr.mxu0 0.0
      %543 = vmatpush1.msra.mxu0 0.0
      %544 = vmatprep.subr.mxu0 0.0
      %545 = vmatpush1.msra.mxu0 0.0
      %546 = vmatprep.subr.mxu0 0.0
      %547 = vmatpush1.msra.mxu0 0.0
      %548 = vmatprep.subr.mxu0 0.0
      %549 = vmatpush1.msra.mxu0 0.0
      %550 = vmatprep.subr.mxu0 0.0
      %551 = vmatpush1.msra.mxu0 0.0
      %552 = vmatprep.subr.mxu0 0.0
      %553 = vmatpush1.msra.mxu0 0.0
      %554 = vmatprep.subr.mxu0 0.0
      %555 = vmatpush1.msra.mxu0 0.0
      %556 = vmatprep.subr.mxu0 0.0
      %557 = vmatpush1.msra.mxu0 0.0
      %558 = vmatprep.subr.mxu0 0.0
      %559 = vmatpush1.msra.mxu0 0.0
      %560 = vmatprep.subr.mxu0 0.0
      %561 = vmatpush1.msra.mxu0 0.0
      %562 = vmatprep.subr.mxu0 0.0
      %563 = vmatpush1.msra.mxu0 0.0
      %564 = vmatprep.subr.mxu0 0.0
      %565 = vmatpush1.msra.mxu0 0.0
      %566 = vmatprep.subr.mxu0 0.0
      %567 = vmatpush1.msra.mxu0 0.0
      %568 = vmatprep.subr.mxu0 0.0
      %569 = vmatpush1.msra.mxu0 0.0
      %570 = vmatprep.subr.mxu0 0.0
      %571 = vmatpush1.msra.mxu0 0.0
      %572 = vmatprep.subr.mxu0 0.0
      %573 = vmatpush1.msra.mxu0 0.0
      %574 = vmatprep.subr.mxu0 0.0
      %575 = vmatpush1.msra.mxu0 0.0
      %576 = vmatprep.subr.mxu0 0.0
      %577 = vmatpush1.msra.mxu0 0.0
      %578 = vmatprep.subr.mxu0 0.0
      %579 = vmatpush1.msra.mxu0 0.0
      %580 = vmatprep.subr.mxu0 0.0
      %581 = vmatpush1.msra.mxu0 0.0
      %582 = vmatprep.subr.mxu0 0.0
      %583 = vmatpush1.msra.mxu0 0.0
      %584 = vmatprep.subr.mxu0 0.0
      %585 = vmatpush1.msra.mxu0 0.0
      %586 = vmatprep.subr.mxu0 0.0
      %587 = vmatpush1.msra.mxu0 0.0
      %588 = vmatprep.subr.mxu0 0.0
      %589 = vmatpush1.msra.mxu0 0.0
      %590 = vmatprep.mubr.f32.mxu0 0.0
      %591 = vmatmul.mubr.f32.gmra.mrb[0].mxu0 %v524
      %v592 = vpop.f32.mrb[0].mxu0
      %v593 = vadd.f32 0.0, %v592
      %v594 = vpop.f32.mrb[0].mxu0
      %595 = vdwg.mxu0
      %v596 = vmax.f32 %v516, %v593
      %597 = vset.pattern.permute.xlu0 5
      %598 = vperm.xlu0 %597, %v194
      %v599 = vpop.permute.xlu0 %598
      %vm600 = vcmp.eq.s32.totalorder %v196, %v599
      %v601 = vsel %vm600, 1, 0
      %v602 = vcvt.s32.f32 %v601
      %v604 = vsel %vm203, %v602, 0
      %606 = vmatprep.subr.mxu0 0.0
      %607 = vmatpush1.msra.mxu0 %v192
      %608 = vmatprep.subr.mxu0 0.0
      %609 = vmatpush1.msra.mxu0 %v193
      %610 = vmatprep.subr.mxu0 0.0
      %611 = vmatpush1.msra.mxu0 0.0
      %612 = vmatprep.subr.mxu0 0.0
      %613 = vmatpush1.msra.mxu0 0.0
      %614 = vmatprep.subr.mxu0 0.0
      %615 = vmatpush1.msra.mxu0 0.0
      %616 = vmatprep.subr.mxu0 0.0
      %617 = vmatpush1.msra.mxu0 0.0
      %618 = vmatprep.subr.mxu0 0.0
      %619 = vmatpush1.msra.mxu0 0.0
      %620 = vmatprep.subr.mxu0 0.0
      %621 = vmatpush1.msra.mxu0 0.0
      %622 = vmatprep.subr.mxu0 0.0
      %623 = vmatpush1.msra.mxu0 0.0
      %624 = vmatprep.subr.mxu0 0.0
      %625 = vmatpush1.msra.mxu0 0.0
      %626 = vmatprep.subr.mxu0 0.0
      %627 = vmatpush1.msra.mxu0 0.0
      %628 = vmatprep.subr.mxu0 0.0
      %629 = vmatpush1.msra.mxu0 0.0
      %630 = vmatprep.subr.mxu0 0.0
      %631 = vmatpush1.msra.mxu0 0.0
      %632 = vmatprep.subr.mxu0 0.0
      %633 = vmatpush1.msra.mxu0 0.0
      %634 = vmatprep.subr.mxu0 0.0
      %635 = vmatpush1.msra.mxu0 0.0
      %636 = vmatprep.subr.mxu0 0.0
      %637 = vmatpush1.msra.mxu0 0.0
      %638 = vmatprep.subr.mxu0 0.0
      %639 = vmatpush1.msra.mxu0 0.0
      %640 = vmatprep.subr.mxu0 0.0
      %641 = vmatpush1.msra.mxu0 0.0
      %642 = vmatprep.subr.mxu0 0.0
      %643 = vmatpush1.msra.mxu0 0.0
      %644 = vmatprep.subr.mxu0 0.0
      %645 = vmatpush1.msra.mxu0 0.0
      %646 = vmatprep.subr.mxu0 0.0
      %647 = vmatpush1.msra.mxu0 0.0
      %648 = vmatprep.subr.mxu0 0.0
      %649 = vmatpush1.msra.mxu0 0.0
      %650 = vmatprep.subr.mxu0 0.0
      %651 = vmatpush1.msra.mxu0 0.0
      %652 = vmatprep.subr.mxu0 0.0
      %653 = vmatpush1.msra.mxu0 0.0
      %654 = vmatprep.subr.mxu0 0.0
      %655 = vmatpush1.msra.mxu0 0.0
      %656 = vmatprep.subr.mxu0 0.0
      %657 = vmatpush1.msra.mxu0 0.0
      %658 = vmatprep.subr.mxu0 0.0
      %659 = vmatpush1.msra.mxu0 0.0
      %660 = vmatprep.subr.mxu0 0.0
      %661 = vmatpush1.msra.mxu0 0.0
      %662 = vmatprep.subr.mxu0 0.0
      %663 = vmatpush1.msra.mxu0 0.0
      %664 = vmatprep.subr.mxu0 0.0
      %665 = vmatpush1.msra.mxu0 0.0
      %666 = vmatprep.subr.mxu0 0.0
      %667 = vmatpush1.msra.mxu0 0.0
      %668 = vmatprep.subr.mxu0 0.0
      %669 = vmatpush1.msra.mxu0 0.0
      %670 = vmatprep.mubr.f32.mxu0 0.0
      %671 = vmatmul.mubr.f32.gmra.mrb[0].mxu0 %v604
      %v672 = vpop.f32.mrb[0].mxu0
      %v673 = vadd.f32 0.0, %v672
      %v674 = vpop.f32.mrb[0].mxu0
      %675 = vdwg.mxu0
      %v676 = vmax.f32 %v596, %v673
      %677 = vset.pattern.permute.xlu0 6
      %678 = vperm.xlu0 %677, %v194
      %v679 = vpop.permute.xlu0 %678
      %vm680 = vcmp.eq.s32.totalorder %v196, %v679
      %v681 = vsel %vm680, 1, 0
      %v682 = vcvt.s32.f32 %v681
      %v684 = vsel %vm203, %v682, 0
      %686 = vmatprep.subr.mxu0 0.0
      %687 = vmatpush1.msra.mxu0 %v192
      %688 = vmatprep.subr.mxu0 0.0
      %689 = vmatpush1.msra.mxu0 %v193
      %690 = vmatprep.subr.mxu0 0.0
      %691 = vmatpush1.msra.mxu0 0.0
      %692 = vmatprep.subr.mxu0 0.0
      %693 = vmatpush1.msra.mxu0 0.0
      %694 = vmatprep.subr.mxu0 0.0
      %695 = vmatpush1.msra.mxu0 0.0
      %696 = vmatprep.subr.mxu0 0.0
      %697 = vmatpush1.msra.mxu0 0.0
      %698 = vmatprep.subr.mxu0 0.0
      %699 = vmatpush1.msra.mxu0 0.0
      %700 = vmatprep.subr.mxu0 0.0
      %701 = vmatpush1.msra.mxu0 0.0
      %702 = vmatprep.subr.mxu0 0.0
      %703 = vmatpush1.msra.mxu0 0.0
      %704 = vmatprep.subr.mxu0 0.0
      %705 = vmatpush1.msra.mxu0 0.0
      %706 = vmatprep.subr.mxu0 0.0
      %707 = vmatpush1.msra.mxu0 0.0
      %708 = vmatprep.subr.mxu0 0.0
      %709 = vmatpush1.msra.mxu0 0.0
      %710 = vmatprep.subr.mxu0 0.0
      %711 = vmatpush1.msra.mxu0 0.0
      %712 = vmatprep.subr.mxu0 0.0
      %713 = vmatpush1.msra.mxu0 0.0
      %714 = vmatprep.subr.mxu0 0.0
      %715 = vmatpush1.msra.mxu0 0.0
      %716 = vmatprep.subr.mxu0 0.0
      %717 = vmatpush1.msra.mxu0 0.0
      %718 = vmatprep.subr.mxu0 0.0
      %719 = vmatpush1.msra.mxu0 0.0
      %720 = vmatprep.subr.mxu0 0.0
      %721 = vmatpush1.msra.mxu0 0.0
      %722 = vmatprep.subr.mxu0 0.0
      %723 = vmatpush1.msra.mxu0 0.0
      %724 = vmatprep.subr.mxu0 0.0
      %725 = vmatpush1.msra.mxu0 0.0
      %726 = vmatprep.subr.mxu0 0.0
      %727 = vmatpush1.msra.mxu0 0.0
      %728 = vmatprep.subr.mxu0 0.0
      %729 = vmatpush1.msra.mxu0 0.0
      %730 = vmatprep.subr.mxu0 0.0
      %731 = vmatpush1.msra.mxu0 0.0
      %732 = vmatprep.subr.mxu0 0.0
      %733 = vmatpush1.msra.mxu0 0.0
      %734 = vmatprep.subr.mxu0 0.0
      %735 = vmatpush1.msra.mxu0 0.0
      %736 = vmatprep.subr.mxu0 0.0
      %737 = vmatpush1.msra.mxu0 0.0
      %738 = vmatprep.subr.mxu0 0.0
      %739 = vmatpush1.msra.mxu0 0.0
      %740 = vmatprep.subr.mxu0 0.0
      %741 = vmatpush1.msra.mxu0 0.0
      %742 = vmatprep.subr.mxu0 0.0
      %743 = vmatpush1.msra.mxu0 0.0
      %744 = vmatprep.subr.mxu0 0.0
      %745 = vmatpush1.msra.mxu0 0.0
      %746 = vmatprep.subr.mxu0 0.0
      %747 = vmatpush1.msra.mxu0 0.0
      %748 = vmatprep.subr.mxu0 0.0
      %749 = vmatpush1.msra.mxu0 0.0
      %750 = vmatprep.mubr.f32.mxu0 0.0
      %751 = vmatmul.mubr.f32.gmra.mrb[0].mxu0 %v684
      %v752 = vpop.f32.mrb[0].mxu0
      %v753 = vadd.f32 0.0, %v752
      %v754 = vpop.f32.mrb[0].mxu0
      %755 = vdwg.mxu0
      %v756 = vmax.f32 %v676, %v753
      %757 = vset.pattern.permute.xlu0 7
      %758 = vperm.xlu0 %757, %v194
      %v759 = vpop.permute.xlu0 %758
      %vm760 = vcmp.eq.s32.totalorder %v196, %v759
      %v761 = vsel %vm760, 1, 0
      %v762 = vcvt.s32.f32 %v761
      %v764 = vsel %vm203, %v762, 0
      %766 = vmatprep.subr.mxu0 0.0
      %767 = vmatpush1.msra.mxu0 %v192
      %768 = vmatprep.subr.mxu0 0.0
      %769 = vmatpush1.msra.mxu0 %v193
      %770 = vmatprep.subr.mxu0 0.0
      %771 = vmatpush1.msra.mxu0 0.0
      %772 = vmatprep.subr.mxu0 0.0
      %773 = vmatpush1.msra.mxu0 0.0
      %774 = vmatprep.subr.mxu0 0.0
      %775 = vmatpush1.msra.mxu0 0.0
      %776 = vmatprep.subr.mxu0 0.0
      %777 = vmatpush1.msra.mxu0 0.0
      %778 = vmatprep.subr.mxu0 0.0
      %779 = vmatpush1.msra.mxu0 0.0
      %780 = vmatprep.subr.mxu0 0.0
      %781 = vmatpush1.msra.mxu0 0.0
      %782 = vmatprep.subr.mxu0 0.0
      %783 = vmatpush1.msra.mxu0 0.0
      %784 = vmatprep.subr.mxu0 0.0
      %785 = vmatpush1.msra.mxu0 0.0
      %786 = vmatprep.subr.mxu0 0.0
      %787 = vmatpush1.msra.mxu0 0.0
      %788 = vmatprep.subr.mxu0 0.0
      %789 = vmatpush1.msra.mxu0 0.0
      %790 = vmatprep.subr.mxu0 0.0
      %791 = vmatpush1.msra.mxu0 0.0
      %792 = vmatprep.subr.mxu0 0.0
      %793 = vmatpush1.msra.mxu0 0.0
      %794 = vmatprep.subr.mxu0 0.0
      %795 = vmatpush1.msra.mxu0 0.0
      %796 = vmatprep.subr.mxu0 0.0
      %797 = vmatpush1.msra.mxu0 0.0
      %798 = vmatprep.subr.mxu0 0.0
      %799 = vmatpush1.msra.mxu0 0.0
      %800 = vmatprep.subr.mxu0 0.0
      %801 = vmatpush1.msra.mxu0 0.0
      %802 = vmatprep.subr.mxu0 0.0
      %803 = vmatpush1.msra.mxu0 0.0
      %804 = vmatprep.subr.mxu0 0.0
      %805 = vmatpush1.msra.mxu0 0.0
      %806 = vmatprep.subr.mxu0 0.0
      %807 = vmatpush1.msra.mxu0 0.0
      %808 = vmatprep.subr.mxu0 0.0
      %809 = vmatpush1.msra.mxu0 0.0
      %810 = vmatprep.subr.mxu0 0.0
      %811 = vmatpush1.msra.mxu0 0.0
      %812 = vmatprep.subr.mxu0 0.0
      %813 = vmatpush1.msra.mxu0 0.0
      %814 = vmatprep.subr.mxu0 0.0
      %815 = vmatpush1.msra.mxu0 0.0
      %816 = vmatprep.subr.mxu0 0.0
      %817 = vmatpush1.msra.mxu0 0.0
      %818 = vmatprep.subr.mxu0 0.0
      %819 = vmatpush1.msra.mxu0 0.0
      %820 = vmatprep.subr.mxu0 0.0
      %821 = vmatpush1.msra.mxu0 0.0
      %822 = vmatprep.subr.mxu0 0.0
      %823 = vmatpush1.msra.mxu0 0.0
      %824 = vmatprep.subr.mxu0 0.0
      %825 = vmatpush1.msra.mxu0 0.0
      %826 = vmatprep.subr.mxu0 0.0
      %827 = vmatpush1.msra.mxu0 0.0
      %828 = vmatprep.subr.mxu0 0.0
      %829 = vmatpush1.msra.mxu0 0.0
      %830 = vmatprep.mubr.f32.mxu0 0.0
      %831 = vmatmul.mubr.f32.gmra.mrb[0].mxu0 %v764
      %v832 = vpop.f32.mrb[0].mxu0
      %v833 = vadd.f32 0.0, %v832
      %v834 = vpop.f32.mrb[0].mxu0
      %835 = vdwg.mxu0
      %v836 = vmax.f32 %v756, %v833
      %v837 = vpack.c.bf16 %v836, %v836
      %838 = vst [vmem:[%s189] sm:$0xf] %v837
      %p839 = scmp.lt.s32.totalorder %s17, 1
      %s840 = scalar_select %p839, %s17, 1
      %p841 = scmp.lt.s32.totalorder %s18, 0
      %s842 = scalar_select %p841, %s18, 0
      %s843 = sadd.s32 %s842, %s840
      %s844 = smul.addr %s843, 4
      %s845 = scalar_lea.vmem %s2, %s844
      // Predicated region
      $region29: #{assanet_encoder_forward.25} parent=27 // pred_check
        %p846 = pneg %p99
      $region30: #{assanet_encoder_forward.25} parent=27 // pred_check_branch
        %848 = sbr.rel (%p846) target = $region32
      $region31: #{assanet_encoder_forward.25} parent=27 // pred_region
        _
      $region32: #{assanet_encoder_forward.25} parent=27 // pred_fallthru
        _
    $region28: #{assanet_encoder_forward.25} parent=5 // pred_fallthru
      _
    %p849 = scmp.le.s32.totalorder 2, %s8
    // Predicated region
    $region33: #{assanet_encoder_forward.25} parent=5 // pred_check
      %p850 = pneg %p849
    $region34: #{assanet_encoder_forward.25} parent=5 // pred_check_branch
      %852 = sbr.rel (%p850) target = $region36
    $region35: #{assanet_encoder_forward.25} parent=5 // pred_region
      %s853 = ssub.s32 %s8, 2
      // Predicated region
      $region37: #{assanet_encoder_forward.25} parent=35 // pred_check
        %p854 = pneg %p105
      $region38: #{assanet_encoder_forward.25} parent=35 // pred_check_branch
        %856 = sbr.rel (%p854) target = $region40
      $region39: #{assanet_encoder_forward.25} parent=35 // pred_region
        %p857 = scmp.lt.s32.totalorder %s19, 1
        %s858 = scalar_select %p857, %s19, 1
        %p859 = scmp.lt.s32.totalorder %s20, 0
        %s860 = scalar_select %p859, %s20, 0
        %s861 = sadd.s32 %s860, %s858
        %s862 = smul.addr %s861, 4
        %s863 = scalar_lea.vmem %s2, %s862
      $region40: #{assanet_encoder_forward.25} parent=35 // pred_fallthru
        _
    $region36: #{assanet_encoder_forward.25} parent=5 // pred_fallthru
      _
  $region6: #{assanet_encoder_forward.25} parent=0 // loop_footer
    %s12 = sadd.s32 1, %s8
  $region7: #{assanet_encoder_forward.25} parent=0 // loop_footer_branch
    %7 = sbr.rel target = $region3
  $region8: #{assanet_encoder_forward.25} parent=0 // loop_exit
    _

// kernel: assanet_encoder_forward.28
$region0: #{assanet_encoder_forward.28}
  #allocation0 [shape = 'u32[]', space=smem, size = 0x4, offset = 0x4, fixed_abs, tag = 'smem constant byte address 0x4 - core index']
  #allocation1 [shape = 'u32[144,128]{1,0:T(1,128)}', space=vmem, size = 0x12000, scoped, tag = 'internal scratch']
  %s0 = inlined_call_operand.vmem [shape: bf16[2,8,128], index: 0, kind: input, shape index: {}]
  %s1 = inlined_call_operand.vmem [shape: s32[2,8,8], index: 1, kind: input, shape index: {}]
  %s2 = inlined_call_operand.vmem [shape: bf16[2,8,128], index: 2, kind: output, shape index: {}]
  %s3 = sld [smem:[#allocation0]]
  $region41: #{assanet_encoder_forward.28} parent=0
    _
  %s5 = ssub.s32 1, %s3
  %s6 = scalar_select 0, %s5, %s3
  loop: start=0, step=1, limit=4
  $region2: #{assanet_encoder_forward.28} parent=0 // loop_pre_header
    _
  $region3: #{assanet_encoder_forward.28} parent=0 // loop_header
    %s8 = sphi 0, %s12
    %p9 = scmp.ge.s32.totalorder %s8, 4
    %s15 = sphi 0, %s27
    %s16 = sphi 0, %s23
    %s17 = sphi 0, %s15
    %s18 = sphi 0, %s16
    %s19 = sphi 0, %s17
    %s20 = sphi 0, %s18
    %s30 = sphi 0, %s32
    %s33 = sphi 0, %s30
    %s34 = sphi 0, %s33
    %s50 = sphi 0, %s34
    %s58 = sphi 0, %s60
    %s61 = sphi 0, %s58
    %s62 = sphi 0, %s61
    %s78 = sphi 0, %s62
    %s86 = sphi 0, %s88
    %s89 = sphi 0, %s86
    %s90 = sphi 0, %s89
    %s106 = sphi 0, %s90
  $region4: #{assanet_encoder_forward.28} parent=0 // loop_header_branch
    %11 = sbr.rel (%p9) target = $region8
  $region5: #{assanet_encoder_forward.28} parent=0 // loop_body
    %s13 = ssub.s32 %s8, 1
    %s14 = ssub.s32 %s8, 2
    %s21 = sadd.s32 1, %s16
    %p22 = scmp.ge.s32.totalorder %s21, 1
    %s23 = scalar_select %p22, 0, %s21
    %s24 = sadd.s32 1, %s15
    %s25 = scalar_select %p22, %s24, %s15
    %p26 = scmp.ge.s32.totalorder %s25, 2
    %s27 = scalar_select %p26, 0, %s25
    %s28 = ssub.s32 %s15, %s27
    %p29 = scmp.eq.s32.totalorder %s28, 0
    %s31 = sadd.s32 %s30, 1
    %s32 = scalar_select %p29, %s30, %s31
    %p35 = pneg %p29
    %p36 = scmp.eq.s32.totalorder %s8, 1
    %p37 = por %p35, %p36
    %p38 = scmp.ne.s32.totalorder %s30, %s33
    %p39 = scmp.eq.s32.totalorder %s8, 0
    %p40 = por %p38, %p39
    %p41 = scmp.ne.s32.totalorder %s30, %s33
    %p42 = scmp.eq.s32.totalorder %s13, 1
    %p43 = por %p41, %p42
    %p44 = scmp.ne.s32.totalorder %s33, %s34
    %p45 = scmp.eq.s32.totalorder %s13, 0
    %p46 = por %p44, %p45
    %p47 = scmp.ne.s32.totalorder %s33, %s34
    %p48 = scmp.eq.s32.totalorder %s14, 1
    %p49 = por %p47, %p48
    %p51 = scmp.ne.s32.totalorder %s34, %s50
    %p52 = scmp.eq.s32.totalorder %s14, 0
    %p53 = por %p51, %p52
    %s54 = ssub.s32 %s15, %s27
    %s55 = ssub.s32 %s16, %s23
    %s56 = sor.u32 %s54, %s55
    %p57 = scmp.eq.s32.totalorder %s56, 0
    %s59 = sadd.s32 %s58, 1
    %s60 = scalar_select %p57, %s58, %s59
    %p63 = pneg %p57
    %p64 = scmp.eq.s32.totalorder %s8, 1
    %p65 = por %p63, %p64
    %p66 = scmp.ne.s32.totalorder %s58, %s61
    %p67 = scmp.eq.s32.totalorder %s8, 0
    %p68 = por %p66, %p67
    %p69 = scmp.ne.s32.totalorder %s58, %s61
    %p70 = scmp.eq.s32.totalorder %s13, 1
    %p71 = por %p69, %p70
    %p72 = scmp.ne.s32.totalorder %s61, %s62
    %p73 = scmp.eq.s32.totalorder %s13, 0
    %p74 = por %p72, %p73
    %p75 = scmp.ne.s32.totalorder %s61, %s62
    %p76 = scmp.eq.s32.totalorder %s14, 1
    %p77 = por %p75, %p76
    %p79 = scmp.ne.s32.totalorder %s62, %s78
    %p80 = scmp.eq.s32.totalorder %s14, 0
    %p81 = por %p79, %p80
    %s82 = ssub.s32 %s15, %s27
    %s83 = ssub.s32 %s16, %s23
    %s84 = sor.u32 %s82, %s83
    %p85 = scmp.eq.s32.totalorder %s84, 0
    %s87 = sadd.s32 %s86, 1
    %s88 = scalar_select %p85, %s86, %s87
    %p91 = pneg %p85
    %p92 = scmp.eq.s32.totalorder %s8, 1
    %p93 = por %p91, %p92
    %p94 = scmp.ne.s32.totalorder %s86, %s89
    %p95 = scmp.eq.s32.totalorder %s8, 0
    %p96 = por %p94, %p95
    %p97 = scmp.ne.s32.totalorder %s86, %s89
    %p98 = scmp.eq.s32.totalorder %s13, 1
    %p99 = por %p97, %p98
    %p100 = scmp.ne.s32.totalorder %s89, %s90
    %p101 = scmp.eq.s32.totalorder %s13, 0
    %p102 = por %p100, %p101
    %p103 = scmp.ne.s32.totalorder %s89, %s90
    %p104 = scmp.eq.s32.totalorder %s14, 1
    %p105 = por %p103, %p104
    %p107 = scmp.ne.s32.totalorder %s90, %s106
    %p108 = scmp.eq.s32.totalorder %s14, 0
    %p109 = por %p107, %p108
    %p110 = scmp.le.s32.totalorder 1, %s8
    %p111 = scmp.lt.s32.totalorder %s8, 3
    %p112 = pnand %p110, %p111
    %p113 = pneg %p112
    // Predicated region
    $region9: #{assanet_encoder_forward.28} parent=5 // pred_check
      _
    $region10: #{assanet_encoder_forward.28} parent=5 // pred_check_branch
      %115 = sbr.rel (%p112) target = $region12
    $region11: #{assanet_encoder_forward.28} parent=5 // pred_region
      %s116 = ssub.s32 %s8, 1
    $region12: #{assanet_encoder_forward.28} parent=5 // pred_fallthru
      _
    %p117 = scmp.lt.s32.totalorder %s8, 2
    // Predicated region
    $region13: #{assanet_encoder_forward.28} parent=5 // pred_check
      %p118 = pneg %p117
    $region14: #{assanet_encoder_forward.28} parent=5 // pred_check_branch
      %120 = sbr.rel (%p118) target = $region16
    $region15: #{assanet_encoder_forward.28} parent=5 // pred_region
      // Predicated region
      $region17: #{assanet_encoder_forward.28} parent=15 // pred_check
        %p121 = pneg %p40
      $region18: #{assanet_encoder_forward.28} parent=15 // pred_check_branch
        %123 = sbr.rel (%p121) target = $region20
      $region19: #{assanet_encoder_forward.28} parent=15 // pred_region
        %p124 = scmp.lt.s32.totalorder %s15, 1
        %s125 = scalar_select %p124, %s15, 1
        %s126 = smul.addr %s125, 4
        %s127 = scalar_lea.vmem %s0, %s126
      $region20: #{assanet_encoder_forward.28} parent=15 // pred_fallthru
        _
      // Predicated region
      $region21: #{assanet_encoder_forward.28} parent=15 // pred_check
        %p128 = pneg %p68
      $region22: #{assanet_encoder_forward.28} parent=15 // pred_check_branch
        %130 = sbr.rel (%p128) target = $region24
      $region23: #{assanet_encoder_forward.28} parent=15 // pred_region
        %p131 = scmp.lt.s32.totalorder %s15, 1
        %s132 = scalar_select %p131, %s15, 1
        %p133 = scmp.lt.s32.totalorder %s16, 0
        %s134 = scalar_select %p133, %s16, 0
        %s135 = sadd.s32 %s134, %s132
        %s136 = smul.addr %s135, 8
        %s137 = scalar_lea.vmem %s1, %s136
      $region24: #{assanet_encoder_forward.28} parent=15 // pred_fallthru
        _
    $region16: #{assanet_encoder_forward.28} parent=5 // pred_fallthru
      _
    %p138 = scmp.le.s32.totalorder 1, %s8
    %p139 = scmp.lt.s32.totalorder %s8, 3
    %p140 = pnand %p138, %p139
    %p141 = pneg %p140
    // Predicated region
    $region25: #{assanet_encoder_forward.28} parent=5 // pred_check
      _
    $region26: #{assanet_encoder_forward.28} parent=5 // pred_check_branch
      %143 = sbr.rel (%p140) target = $region28
    $region27: #{assanet_encoder_forward.28} parent=5 // pred_region
      %s144 = ssub.s32 %s8, 1
      %p145 = scmp.lt.s32.totalorder %s17, 1
      %s146 = scalar_select %p145, %s17, 1
      %s147 = smul.addr %s146, 4
      %s148 = scalar_lea.vmem %s0, %s147
      %p149 = pneg %p46
      %p150 = pneg %p43
      %p151 = scmp.lt.s32.totalorder %s17, 1
      %s152 = scalar_select %p151, %s17, 1
      %p153 = scmp.lt.s32.totalorder %s18, 0
      %s154 = scalar_select %p153, %s18, 0
      %s155 = sadd.s32 %s154, %s152
      %s156 = smul.addr %s155, 8
      %s157 = scalar_lea.vmem %s1, %s156
      %p158 = pneg %p74
      %p159 = pneg %p71
      %p160 = pneg %p102
      %p161 = pneg %p99
      %p162 = scmp.lt.s32.totalorder %s17, 1
      %s163 = scalar_select %p162, %s17, 1
      %p164 = scmp.lt.s32.totalorder %s18, 0
      %s165 = scalar_select %p164, %s18, 0
      %s166 = sadd.s32 %s165, %s163
      %s167 = smul.addr %s166, 4
      %s168 = scalar_lea.vmem %s2, %s167
      %p169 = scmp.lt.s32.totalorder %s17, 1
      %s170 = scalar_select %p169, %s17, 1
      %s171 = smul.addr %s170, 4
      %s172 = scalar_lea.vmem %s0, %s171
      %p173 = scmp.lt.s32.totalorder %s17, 1
      %s174 = scalar_select %p173, %s17, 1
      %p175 = scmp.lt.s32.totalorder %s18, 0
      %s176 = scalar_select %p175, %s18, 0
      %s177 = sadd.s32 %s176, %s174
      %s178 = smul.addr %s177, 8
      %s179 = scalar_lea.vmem %s1, %s178
      %p180 = scmp.lt.s32.totalorder %s17, 1
      %s181 = scalar_select %p180, %s17, 1
      %p182 = scmp.lt.s32.totalorder %s18, 0
      %s183 = scalar_select %p182, %s18, 0
      %s184 = sadd.s32 %s183, %s181
      %s185 = smul.addr %s184, 4
      %s186 = scalar_lea.vmem %s2, %s185
      %v187 = vld [vmem:[%s172] sm:$0xf]
      %v188 = vunpack.c.l.bf16 %v187
      %v189 = vld [vmem:[%s179] sm:$0xff]
      %v190 = vlaneseq
      %v191 = vand.u32 %v190, 127
      %192 = vset.pattern.permute.xlu0 0
      %193 = vperm.xlu0 %192, %v189
      %v194 = vpop.permute.xlu0 %193
      %vm195 = vcmp.eq.s32.totalorder %v191, %v194
      %v196 = vsel %vm195, 1, 0
      %v197 = vcvt.s32.f32 %v196
      %vm198 = vcmask 64512
      %v200 = vsel %vm198, %v197, 0
      %202 = vmatprep.subr.mxu0 0.0
      %203 = vmatpush1.msra.mxu0 %v188
      %204 = vmatprep.subr.mxu0 0.0
      %205 = vmatpush1.msra.mxu0 0.0
      %206 = vmatprep.subr.mxu0 0.0
      %207 = vmatpush1.msra.mxu0 0.0
      %208 = vmatprep.subr.mxu0 0.0
      %209 = vmatpush1.msra.mxu0 0.0
      %210 = vmatprep.subr.mxu0 0.0
      %211 = vmatpush1.msra.mxu0 0.0
      %212 = vmatprep.subr.mxu0 0.0
      %213 = vmatpush1.msra.mxu0 0.0
      %214 = vmatprep.subr.mxu0 0.0
      %215 = vmatpush1.msra.mxu0 0.0
      %216 = vmatprep.subr.mxu0 0.0
      %217 = vmatpush1.msra.mxu0 0.0
      %218 = vmatprep.subr.mxu0 0.0
      %219 = vmatpush1.msra.mxu0 0.0
      %220 = vmatprep.subr.mxu0 0.0
      %221 = vmatpush1.msra.mxu0 0.0
      %222 = vmatprep.subr.mxu0 0.0
      %223 = vmatpush1.msra.mxu0 0.0
      %224 = vmatprep.subr.mxu0 0.0
      %225 = vmatpush1.msra.mxu0 0.0
      %226 = vmatprep.subr.mxu0 0.0
      %227 = vmatpush1.msra.mxu0 0.0
      %228 = vmatprep.subr.mxu0 0.0
      %229 = vmatpush1.msra.mxu0 0.0
      %230 = vmatprep.subr.mxu0 0.0
      %231 = vmatpush1.msra.mxu0 0.0
      %232 = vmatprep.subr.mxu0 0.0
      %233 = vmatpush1.msra.mxu0 0.0
      %234 = vmatprep.subr.mxu0 0.0
      %235 = vmatpush1.msra.mxu0 0.0
      %236 = vmatprep.subr.mxu0 0.0
      %237 = vmatpush1.msra.mxu0 0.0
      %238 = vmatprep.subr.mxu0 0.0
      %239 = vmatpush1.msra.mxu0 0.0
      %240 = vmatprep.subr.mxu0 0.0
      %241 = vmatpush1.msra.mxu0 0.0
      %242 = vmatprep.subr.mxu0 0.0
      %243 = vmatpush1.msra.mxu0 0.0
      %244 = vmatprep.subr.mxu0 0.0
      %245 = vmatpush1.msra.mxu0 0.0
      %246 = vmatprep.subr.mxu0 0.0
      %247 = vmatpush1.msra.mxu0 0.0
      %248 = vmatprep.subr.mxu0 0.0
      %249 = vmatpush1.msra.mxu0 0.0
      %250 = vmatprep.subr.mxu0 0.0
      %251 = vmatpush1.msra.mxu0 0.0
      %252 = vmatprep.subr.mxu0 0.0
      %253 = vmatpush1.msra.mxu0 0.0
      %254 = vmatprep.subr.mxu0 0.0
      %255 = vmatpush1.msra.mxu0 0.0
      %256 = vmatprep.subr.mxu0 0.0
      %257 = vmatpush1.msra.mxu0 0.0
      %258 = vmatprep.subr.mxu0 0.0
      %259 = vmatpush1.msra.mxu0 0.0
      %260 = vmatprep.subr.mxu0 0.0
      %261 = vmatpush1.msra.mxu0 0.0
      %262 = vmatprep.subr.mxu0 0.0
      %263 = vmatpush1.msra.mxu0 0.0
      %264 = vmatprep.subr.mxu0 0.0
      %265 = vmatpush1.msra.mxu0 0.0
      %266 = vmatprep.mubr.f32.mxu0 0.0
      %267 = vmatmul.mubr.f32.gmra.mrb[0].mxu0 %v200
      %v268 = vpop.f32.mrb[0].mxu0
      %v269 = vadd.f32 0.0, %v268
      %v270 = vpop.f32.mrb[0].mxu0
      %271 = vdwg.mxu0
      %272 = vset.pattern.permute.xlu0 1
      %273 = vperm.xlu0 %272, %v189
      %v274 = vpop.permute.xlu0 %273
      %vm275 = vcmp.eq.s32.totalorder %v191, %v274
      %v276 = vsel %vm275, 1, 0
      %v277 = vcvt.s32.f32 %v276
      %v279 = vsel %vm198, %v277, 0
      %281 = vmatprep.subr.mxu0 0.0
      %282 = vmatpush1.msra.mxu0 %v188
      %283 = vmatprep.subr.mxu0 0.0
      %284 = vmatpush1.msra.mxu0 0.0
      %285 = vmatprep.subr.mxu0 0.0
      %286 = vmatpush1.msra.mxu0 0.0
      %287 = vmatprep.subr.mxu0 0.0
      %288 = vmatpush1.msra.mxu0 0.0
      %289 = vmatprep.subr.mxu0 0.0
      %290 = vmatpush1.msra.mxu0 0.0
      %291 = vmatprep.subr.mxu0 0.0
      %292 = vmatpush1.msra.mxu0 0.0
      %293 = vmatprep.subr.mxu0 0.0
      %294 = vmatpush1.msra.mxu0 0.0
      %295 = vmatprep.subr.mxu0 0.0
      %296 = vmatpush1.msra.mxu0 0.0
      %297 = vmatprep.subr.mxu0 0.0
      %298 = vmatpush1.msra.mxu0 0.0
      %299 = vmatprep.subr.mxu0 0.0
      %300 = vmatpush1.msra.mxu0 0.0
      %301 = vmatprep.subr.mxu0 0.0
      %302 = vmatpush1.msra.mxu0 0.0
      %303 = vmatprep.subr.mxu0 0.0
      %304 = vmatpush1.msra.mxu0 0.0
      %305 = vmatprep.subr.mxu0 0.0
      %306 = vmatpush1.msra.mxu0 0.0
      %307 = vmatprep.subr.mxu0 0.0
      %308 = vmatpush1.msra.mxu0 0.0
      %309 = vmatprep.subr.mxu0 0.0
      %310 = vmatpush1.msra.mxu0 0.0
      %311 = vmatprep.subr.mxu0 0.0
      %312 = vmatpush1.msra.mxu0 0.0
      %313 = vmatprep.subr.mxu0 0.0
      %314 = vmatpush1.msra.mxu0 0.0
      %315 = vmatprep.subr.mxu0 0.0
      %316 = vmatpush1.msra.mxu0 0.0
      %317 = vmatprep.subr.mxu0 0.0
      %318 = vmatpush1.msra.mxu0 0.0
      %319 = vmatprep.subr.mxu0 0.0
      %320 = vmatpush1.msra.mxu0 0.0
      %321 = vmatprep.subr.mxu0 0.0
      %322 = vmatpush1.msra.mxu0 0.0
      %323 = vmatprep.subr.mxu0 0.0
      %324 = vmatpush1.msra.mxu0 0.0
      %325 = vmatprep.subr.mxu0 0.0
      %326 = vmatpush1.msra.mxu0 0.0
      %327 = vmatprep.subr.mxu0 0.0
      %328 = vmatpush1.msra.mxu0 0.0
      %329 = vmatprep.subr.mxu0 0.0
      %330 = vmatpush1.msra.mxu0 0.0
      %331 = vmatprep.subr.mxu0 0.0
      %332 = vmatpush1.msra.mxu0 0.0
      %333 = vmatprep.subr.mxu0 0.0
      %334 = vmatpush1.msra.mxu0 0.0
      %335 = vmatprep.subr.mxu0 0.0
      %336 = vmatpush1.msra.mxu0 0.0
      %337 = vmatprep.subr.mxu0 0.0
      %338 = vmatpush1.msra.mxu0 0.0
      %339 = vmatprep.subr.mxu0 0.0
      %340 = vmatpush1.msra.mxu0 0.0
      %341 = vmatprep.subr.mxu0 0.0
      %342 = vmatpush1.msra.mxu0 0.0
      %343 = vmatprep.subr.mxu0 0.0
      %344 = vmatpush1.msra.mxu0 0.0
      %345 = vmatprep.mubr.f32.mxu0 0.0
      %346 = vmatmul.mubr.f32.gmra.mrb[0].mxu0 %v279
      %v347 = vpop.f32.mrb[0].mxu0
      %v348 = vadd.f32 0.0, %v347
      %v349 = vpop.f32.mrb[0].mxu0
      %350 = vdwg.mxu0
      %v351 = vmax.f32 %v269, %v348
      %352 = vset.pattern.permute.xlu0 2
      %353 = vperm.xlu0 %352, %v189
      %v354 = vpop.permute.xlu0 %353
      %vm355 = vcmp.eq.s32.totalorder %v191, %v354
      %v356 = vsel %vm355, 1, 0
      %v357 = vcvt.s32.f32 %v356
      %v359 = vsel %vm198, %v357, 0
      %361 = vmatprep.subr.mxu0 0.0
      %362 = vmatpush1.msra.mxu0 %v188
      %363 = vmatprep.subr.mxu0 0.0
      %364 = vmatpush1.msra.mxu0 0.0
      %365 = vmatprep.subr.mxu0 0.0
      %366 = vmatpush1.msra.mxu0 0.0
      %367 = vmatprep.subr.mxu0 0.0
      %368 = vmatpush1.msra.mxu0 0.0
      %369 = vmatprep.subr.mxu0 0.0
      %370 = vmatpush1.msra.mxu0 0.0
      %371 = vmatprep.subr.mxu0 0.0
      %372 = vmatpush1.msra.mxu0 0.0
      %373 = vmatprep.subr.mxu0 0.0
      %374 = vmatpush1.msra.mxu0 0.0
      %375 = vmatprep.subr.mxu0 0.0
      %376 = vmatpush1.msra.mxu0 0.0
      %377 = vmatprep.subr.mxu0 0.0
      %378 = vmatpush1.msra.mxu0 0.0
      %379 = vmatprep.subr.mxu0 0.0
      %380 = vmatpush1.msra.mxu0 0.0
      %381 = vmatprep.subr.mxu0 0.0
      %382 = vmatpush1.msra.mxu0 0.0
      %383 = vmatprep.subr.mxu0 0.0
      %384 = vmatpush1.msra.mxu0 0.0
      %385 = vmatprep.subr.mxu0 0.0
      %386 = vmatpush1.msra.mxu0 0.0
      %387 = vmatprep.subr.mxu0 0.0
      %388 = vmatpush1.msra.mxu0 0.0
      %389 = vmatprep.subr.mxu0 0.0
      %390 = vmatpush1.msra.mxu0 0.0
      %391 = vmatprep.subr.mxu0 0.0
      %392 = vmatpush1.msra.mxu0 0.0
      %393 = vmatprep.subr.mxu0 0.0
      %394 = vmatpush1.msra.mxu0 0.0
      %395 = vmatprep.subr.mxu0 0.0
      %396 = vmatpush1.msra.mxu0 0.0
      %397 = vmatprep.subr.mxu0 0.0
      %398 = vmatpush1.msra.mxu0 0.0
      %399 = vmatprep.subr.mxu0 0.0
      %400 = vmatpush1.msra.mxu0 0.0
      %401 = vmatprep.subr.mxu0 0.0
      %402 = vmatpush1.msra.mxu0 0.0
      %403 = vmatprep.subr.mxu0 0.0
      %404 = vmatpush1.msra.mxu0 0.0
      %405 = vmatprep.subr.mxu0 0.0
      %406 = vmatpush1.msra.mxu0 0.0
      %407 = vmatprep.subr.mxu0 0.0
      %408 = vmatpush1.msra.mxu0 0.0
      %409 = vmatprep.subr.mxu0 0.0
      %410 = vmatpush1.msra.mxu0 0.0
      %411 = vmatprep.subr.mxu0 0.0
      %412 = vmatpush1.msra.mxu0 0.0
      %413 = vmatprep.subr.mxu0 0.0
      %414 = vmatpush1.msra.mxu0 0.0
      %415 = vmatprep.subr.mxu0 0.0
      %416 = vmatpush1.msra.mxu0 0.0
      %417 = vmatprep.subr.mxu0 0.0
      %418 = vmatpush1.msra.mxu0 0.0
      %419 = vmatprep.subr.mxu0 0.0
      %420 = vmatpush1.msra.mxu0 0.0
      %421 = vmatprep.subr.mxu0 0.0
      %422 = vmatpush1.msra.mxu0 0.0
      %423 = vmatprep.subr.mxu0 0.0
      %424 = vmatpush1.msra.mxu0 0.0
      %425 = vmatprep.mubr.f32.mxu0 0.0
      %426 = vmatmul.mubr.f32.gmra.mrb[0].mxu0 %v359
      %v427 = vpop.f32.mrb[0].mxu0
      %v428 = vadd.f32 0.0, %v427
      %v429 = vpop.f32.mrb[0].mxu0
      %430 = vdwg.mxu0
      %v431 = vmax.f32 %v351, %v428
      %432 = vset.pattern.permute.xlu0 3
      %433 = vperm.xlu0 %432, %v189
      %v434 = vpop.permute.xlu0 %433
      %vm435 = vcmp.eq.s32.totalorder %v191, %v434
      %v436 = vsel %vm435, 1, 0
      %v437 = vcvt.s32.f32 %v436
      %v439 = vsel %vm198, %v437, 0
      %441 = vmatprep.subr.mxu0 0.0
      %442 = vmatpush1.msra.mxu0 %v188
      %443 = vmatprep.subr.mxu0 0.0
      %444 = vmatpush1.msra.mxu0 0.0
      %445 = vmatprep.subr.mxu0 0.0
      %446 = vmatpush1.msra.mxu0 0.0
      %447 = vmatprep.subr.mxu0 0.0
      %448 = vmatpush1.msra.mxu0 0.0
      %449 = vmatprep.subr.mxu0 0.0
      %450 = vmatpush1.msra.mxu0 0.0
      %451 = vmatprep.subr.mxu0 0.0
      %452 = vmatpush1.msra.mxu0 0.0
      %453 = vmatprep.subr.mxu0 0.0
      %454 = vmatpush1.msra.mxu0 0.0
      %455 = vmatprep.subr.mxu0 0.0
      %456 = vmatpush1.msra.mxu0 0.0
      %457 = vmatprep.subr.mxu0 0.0
      %458 = vmatpush1.msra.mxu0 0.0
      %459 = vmatprep.subr.mxu0 0.0
      %460 = vmatpush1.msra.mxu0 0.0
      %461 = vmatprep.subr.mxu0 0.0
      %462 = vmatpush1.msra.mxu0 0.0
      %463 = vmatprep.subr.mxu0 0.0
      %464 = vmatpush1.msra.mxu0 0.0
      %465 = vmatprep.subr.mxu0 0.0
      %466 = vmatpush1.msra.mxu0 0.0
      %467 = vmatprep.subr.mxu0 0.0
      %468 = vmatpush1.msra.mxu0 0.0
      %469 = vmatprep.subr.mxu0 0.0
      %470 = vmatpush1.msra.mxu0 0.0
      %471 = vmatprep.subr.mxu0 0.0
      %472 = vmatpush1.msra.mxu0 0.0
      %473 = vmatprep.subr.mxu0 0.0
      %474 = vmatpush1.msra.mxu0 0.0
      %475 = vmatprep.subr.mxu0 0.0
      %476 = vmatpush1.msra.mxu0 0.0
      %477 = vmatprep.subr.mxu0 0.0
      %478 = vmatpush1.msra.mxu0 0.0
      %479 = vmatprep.subr.mxu0 0.0
      %480 = vmatpush1.msra.mxu0 0.0
      %481 = vmatprep.subr.mxu0 0.0
      %482 = vmatpush1.msra.mxu0 0.0
      %483 = vmatprep.subr.mxu0 0.0
      %484 = vmatpush1.msra.mxu0 0.0
      %485 = vmatprep.subr.mxu0 0.0
      %486 = vmatpush1.msra.mxu0 0.0
      %487 = vmatprep.subr.mxu0 0.0
      %488 = vmatpush1.msra.mxu0 0.0
      %489 = vmatprep.subr.mxu0 0.0
      %490 = vmatpush1.msra.mxu0 0.0
      %491 = vmatprep.subr.mxu0 0.0
      %492 = vmatpush1.msra.mxu0 0.0
      %493 = vmatprep.subr.mxu0 0.0
      %494 = vmatpush1.msra.mxu0 0.0
      %495 = vmatprep.subr.mxu0 0.0
      %496 = vmatpush1.msra.mxu0 0.0
      %497 = vmatprep.subr.mxu0 0.0
      %498 = vmatpush1.msra.mxu0 0.0
      %499 = vmatprep.subr.mxu0 0.0
      %500 = vmatpush1.msra.mxu0 0.0
      %501 = vmatprep.subr.mxu0 0.0
      %502 = vmatpush1.msra.mxu0 0.0
      %503 = vmatprep.subr.mxu0 0.0
      %504 = vmatpush1.msra.mxu0 0.0
      %505 = vmatprep.mubr.f32.mxu0 0.0
      %506 = vmatmul.mubr.f32.gmra.mrb[0].mxu0 %v439
      %v507 = vpop.f32.mrb[0].mxu0
      %v508 = vadd.f32 0.0, %v507
      %v509 = vpop.f32.mrb[0].mxu0
      %510 = vdwg.mxu0
      %v511 = vmax.f32 %v431, %v508
      %512 = vset.pattern.permute.xlu0 4
      %513 = vperm.xlu0 %512, %v189
      %v514 = vpop.permute.xlu0 %513
      %vm515 = vcmp.eq.s32.totalorder %v191, %v514
      %v516 = vsel %vm515, 1, 0
      %v517 = vcvt.s32.f32 %v516
      %v519 = vsel %vm198, %v517, 0
      %521 = vmatprep.subr.mxu0 0.0
      %522 = vmatpush1.msra.mxu0 %v188
      %523 = vmatprep.subr.mxu0 0.0
      %524 = vmatpush1.msra.mxu0 0.0
      %525 = vmatprep.subr.mxu0 0.0
      %526 = vmatpush1.msra.mxu0 0.0
      %527 = vmatprep.subr.mxu0 0.0
      %528 = vmatpush1.msra.mxu0 0.0
      %529 = vmatprep.subr.mxu0 0.0
      %530 = vmatpush1.msra.mxu0 0.0
      %531 = vmatprep.subr.mxu0 0.0
      %532 = vmatpush1.msra.mxu0 0.0
      %533 = vmatprep.subr.mxu0 0.0
      %534 = vmatpush1.msra.mxu0 0.0
      %535 = vmatprep.subr.mxu0 0.0
      %536 = vmatpush1.msra.mxu0 0.0
      %537 = vmatprep.subr.mxu0 0.0
      %538 = vmatpush1.msra.mxu0 0.0
      %539 = vmatprep.subr.mxu0 0.0
      %540 = vmatpush1.msra.mxu0 0.0
      %541 = vmatprep.subr.mxu0 0.0
      %542 = vmatpush1.msra.mxu0 0.0
      %543 = vmatprep.subr.mxu0 0.0
      %544 = vmatpush1.msra.mxu0 0.0
      %545 = vmatprep.subr.mxu0 0.0
      %546 = vmatpush1.msra.mxu0 0.0
      %547 = vmatprep.subr.mxu0 0.0
      %548 = vmatpush1.msra.mxu0 0.0
      %549 = vmatprep.subr.mxu0 0.0
      %550 = vmatpush1.msra.mxu0 0.0
      %551 = vmatprep.subr.mxu0 0.0
      %552 = vmatpush1.msra.mxu0 0.0
      %553 = vmatprep.subr.mxu0 0.0
      %554 = vmatpush1.msra.mxu0 0.0
      %555 = vmatprep.subr.mxu0 0.0
      %556 = vmatpush1.msra.mxu0 0.0
      %557 = vmatprep.subr.mxu0 0.0
      %558 = vmatpush1.msra.mxu0 0.0
      %559 = vmatprep.subr.mxu0 0.0
      %560 = vmatpush1.msra.mxu0 0.0
      %561 = vmatprep.subr.mxu0 0.0
      %562 = vmatpush1.msra.mxu0 0.0
      %563 = vmatprep.subr.mxu0 0.0
      %564 = vmatpush1.msra.mxu0 0.0
      %565 = vmatprep.subr.mxu0 0.0
      %566 = vmatpush1.msra.mxu0 0.0
      %567 = vmatprep.subr.mxu0 0.0
      %568 = vmatpush1.msra.mxu0 0.0
      %569 = vmatprep.subr.mxu0 0.0
      %570 = vmatpush1.msra.mxu0 0.0
      %571 = vmatprep.subr.mxu0 0.0
      %572 = vmatpush1.msra.mxu0 0.0
      %573 = vmatprep.subr.mxu0 0.0
      %574 = vmatpush1.msra.mxu0 0.0
      %575 = vmatprep.subr.mxu0 0.0
      %576 = vmatpush1.msra.mxu0 0.0
      %577 = vmatprep.subr.mxu0 0.0
      %578 = vmatpush1.msra.mxu0 0.0
      %579 = vmatprep.subr.mxu0 0.0
      %580 = vmatpush1.msra.mxu0 0.0
      %581 = vmatprep.subr.mxu0 0.0
      %582 = vmatpush1.msra.mxu0 0.0
      %583 = vmatprep.subr.mxu0 0.0
      %584 = vmatpush1.msra.mxu0 0.0
      %585 = vmatprep.mubr.f32.mxu0 0.0
      %586 = vmatmul.mubr.f32.gmra.mrb[0].mxu0 %v519
      %v587 = vpop.f32.mrb[0].mxu0
      %v588 = vadd.f32 0.0, %v587
      %v589 = vpop.f32.mrb[0].mxu0
      %590 = vdwg.mxu0
      %v591 = vmax.f32 %v511, %v588
      %592 = vset.pattern.permute.xlu0 5
      %593 = vperm.xlu0 %592, %v189
      %v594 = vpop.permute.xlu0 %593
      %vm595 = vcmp.eq.s32.totalorder %v191, %v594
      %v596 = vsel %vm595, 1, 0
      %v597 = vcvt.s32.f32 %v596
      %v599 = vsel %vm198, %v597, 0
      %601 = vmatprep.subr.mxu0 0.0
      %602 = vmatpush1.msra.mxu0 %v188
      %603 = vmatprep.subr.mxu0 0.0
      %604 = vmatpush1.msra.mxu0 0.0
      %605 = vmatprep.subr.mxu0 0.0
      %606 = vmatpush1.msra.mxu0 0.0
      %607 = vmatprep.subr.mxu0 0.0
      %608 = vmatpush1.msra.mxu0 0.0
      %609 = vmatprep.subr.mxu0 0.0
      %610 = vmatpush1.msra.mxu0 0.0
      %611 = vmatprep.subr.mxu0 0.0
      %612 = vmatpush1.msra.mxu0 0.0
      %613 = vmatprep.subr.mxu0 0.0
      %614 = vmatpush1.msra.mxu0 0.0
      %615 = vmatprep.subr.mxu0 0.0
      %616 = vmatpush1.msra.mxu0 0.0
      %617 = vmatprep.subr.mxu0 0.0
      %618 = vmatpush1.msra.mxu0 0.0
      %619 = vmatprep.subr.mxu0 0.0
      %620 = vmatpush1.msra.mxu0 0.0
      %621 = vmatprep.subr.mxu0 0.0
      %622 = vmatpush1.msra.mxu0 0.0
      %623 = vmatprep.subr.mxu0 0.0
      %624 = vmatpush1.msra.mxu0 0.0
      %625 = vmatprep.subr.mxu0 0.0
      %626 = vmatpush1.msra.mxu0 0.0
      %627 = vmatprep.subr.mxu0 0.0
      %628 = vmatpush1.msra.mxu0 0.0
      %629 = vmatprep.subr.mxu0 0.0
      %630 = vmatpush1.msra.mxu0 0.0
      %631 = vmatprep.subr.mxu0 0.0
      %632 = vmatpush1.msra.mxu0 0.0
      %633 = vmatprep.subr.mxu0 0.0
      %634 = vmatpush1.msra.mxu0 0.0
      %635 = vmatprep.subr.mxu0 0.0
      %636 = vmatpush1.msra.mxu0 0.0
      %637 = vmatprep.subr.mxu0 0.0
      %638 = vmatpush1.msra.mxu0 0.0
      %639 = vmatprep.subr.mxu0 0.0
      %640 = vmatpush1.msra.mxu0 0.0
      %641 = vmatprep.subr.mxu0 0.0
      %642 = vmatpush1.msra.mxu0 0.0
      %643 = vmatprep.subr.mxu0 0.0
      %644 = vmatpush1.msra.mxu0 0.0
      %645 = vmatprep.subr.mxu0 0.0
      %646 = vmatpush1.msra.mxu0 0.0
      %647 = vmatprep.subr.mxu0 0.0
      %648 = vmatpush1.msra.mxu0 0.0
      %649 = vmatprep.subr.mxu0 0.0
      %650 = vmatpush1.msra.mxu0 0.0
      %651 = vmatprep.subr.mxu0 0.0
      %652 = vmatpush1.msra.mxu0 0.0
      %653 = vmatprep.subr.mxu0 0.0
      %654 = vmatpush1.msra.mxu0 0.0
      %655 = vmatprep.subr.mxu0 0.0
      %656 = vmatpush1.msra.mxu0 0.0
      %657 = vmatprep.subr.mxu0 0.0
      %658 = vmatpush1.msra.mxu0 0.0
      %659 = vmatprep.subr.mxu0 0.0
      %660 = vmatpush1.msra.mxu0 0.0
      %661 = vmatprep.subr.mxu0 0.0
      %662 = vmatpush1.msra.mxu0 0.0
      %663 = vmatprep.subr.mxu0 0.0
      %664 = vmatpush1.msra.mxu0 0.0
      %665 = vmatprep.mubr.f32.mxu0 0.0
      %666 = vmatmul.mubr.f32.gmra.mrb[0].mxu0 %v599
      %v667 = vpop.f32.mrb[0].mxu0
      %v668 = vadd.f32 0.0, %v667
      %v669 = vpop.f32.mrb[0].mxu0
      %670 = vdwg.mxu0
      %v671 = vmax.f32 %v591, %v668
      %672 = vset.pattern.permute.xlu0 6
      %673 = vperm.xlu0 %672, %v189
      %v674 = vpop.permute.xlu0 %673
      %vm675 = vcmp.eq.s32.totalorder %v191, %v674
      %v676 = vsel %vm675, 1, 0
      %v677 = vcvt.s32.f32 %v676
      %v679 = vsel %vm198, %v677, 0
      %681 = vmatprep.subr.mxu0 0.0
      %682 = vmatpush1.msra.mxu0 %v188
      %683 = vmatprep.subr.mxu0 0.0
      %684 = vmatpush1.msra.mxu0 0.0
      %685 = vmatprep.subr.mxu0 0.0
      %686 = vmatpush1.msra.mxu0 0.0
      %687 = vmatprep.subr.mxu0 0.0
      %688 = vmatpush1.msra.mxu0 0.0
      %689 = vmatprep.subr.mxu0 0.0
      %690 = vmatpush1.msra.mxu0 0.0
      %691 = vmatprep.subr.mxu0 0.0
      %692 = vmatpush1.msra.mxu0 0.0
      %693 = vmatprep.subr.mxu0 0.0
      %694 = vmatpush1.msra.mxu0 0.0
      %695 = vmatprep.subr.mxu0 0.0
      %696 = vmatpush1.msra.mxu0 0.0
      %697 = vmatprep.subr.mxu0 0.0
      %698 = vmatpush1.msra.mxu0 0.0
      %699 = vmatprep.subr.mxu0 0.0
      %700 = vmatpush1.msra.mxu0 0.0
      %701 = vmatprep.subr.mxu0 0.0
      %702 = vmatpush1.msra.mxu0 0.0
      %703 = vmatprep.subr.mxu0 0.0
      %704 = vmatpush1.msra.mxu0 0.0
      %705 = vmatprep.subr.mxu0 0.0
      %706 = vmatpush1.msra.mxu0 0.0
      %707 = vmatprep.subr.mxu0 0.0
      %708 = vmatpush1.msra.mxu0 0.0
      %709 = vmatprep.subr.mxu0 0.0
      %710 = vmatpush1.msra.mxu0 0.0
      %711 = vmatprep.subr.mxu0 0.0
      %712 = vmatpush1.msra.mxu0 0.0
      %713 = vmatprep.subr.mxu0 0.0
      %714 = vmatpush1.msra.mxu0 0.0
      %715 = vmatprep.subr.mxu0 0.0
      %716 = vmatpush1.msra.mxu0 0.0
      %717 = vmatprep.subr.mxu0 0.0
      %718 = vmatpush1.msra.mxu0 0.0
      %719 = vmatprep.subr.mxu0 0.0
      %720 = vmatpush1.msra.mxu0 0.0
      %721 = vmatprep.subr.mxu0 0.0
      %722 = vmatpush1.msra.mxu0 0.0
      %723 = vmatprep.subr.mxu0 0.0
      %724 = vmatpush1.msra.mxu0 0.0
      %725 = vmatprep.subr.mxu0 0.0
      %726 = vmatpush1.msra.mxu0 0.0
      %727 = vmatprep.subr.mxu0 0.0
      %728 = vmatpush1.msra.mxu0 0.0
      %729 = vmatprep.subr.mxu0 0.0
      %730 = vmatpush1.msra.mxu0 0.0
      %731 = vmatprep.subr.mxu0 0.0
      %732 = vmatpush1.msra.mxu0 0.0
      %733 = vmatprep.subr.mxu0 0.0
      %734 = vmatpush1.msra.mxu0 0.0
      %735 = vmatprep.subr.mxu0 0.0
      %736 = vmatpush1.msra.mxu0 0.0
      %737 = vmatprep.subr.mxu0 0.0
      %738 = vmatpush1.msra.mxu0 0.0
      %739 = vmatprep.subr.mxu0 0.0
      %740 = vmatpush1.msra.mxu0 0.0
      %741 = vmatprep.subr.mxu0 0.0
      %742 = vmatpush1.msra.mxu0 0.0
      %743 = vmatprep.subr.mxu0 0.0
      %744 = vmatpush1.msra.mxu0 0.0
      %745 = vmatprep.mubr.f32.mxu0 0.0
      %746 = vmatmul.mubr.f32.gmra.mrb[0].mxu0 %v679
      %v747 = vpop.f32.mrb[0].mxu0
      %v748 = vadd.f32 0.0, %v747
      %v749 = vpop.f32.mrb[0].mxu0
      %750 = vdwg.mxu0
      %v751 = vmax.f32 %v671, %v748
      %752 = vset.pattern.permute.xlu0 7
      %753 = vperm.xlu0 %752, %v189
      %v754 = vpop.permute.xlu0 %753
      %vm755 = vcmp.eq.s32.totalorder %v191, %v754
      %v756 = vsel %vm755, 1, 0
      %v757 = vcvt.s32.f32 %v756
      %v759 = vsel %vm198, %v757, 0
      %761 = vmatprep.subr.mxu0 0.0
      %762 = vmatpush1.msra.mxu0 %v188
      %763 = vmatprep.subr.mxu0 0.0
      %764 = vmatpush1.msra.mxu0 0.0
      %765 = vmatprep.subr.mxu0 0.0
      %766 = vmatpush1.msra.mxu0 0.0
      %767 = vmatprep.subr.mxu0 0.0
      %768 = vmatpush1.msra.mxu0 0.0
      %769 = vmatprep.subr.mxu0 0.0
      %770 = vmatpush1.msra.mxu0 0.0
      %771 = vmatprep.subr.mxu0 0.0
      %772 = vmatpush1.msra.mxu0 0.0
      %773 = vmatprep.subr.mxu0 0.0
      %774 = vmatpush1.msra.mxu0 0.0
      %775 = vmatprep.subr.mxu0 0.0
      %776 = vmatpush1.msra.mxu0 0.0
      %777 = vmatprep.subr.mxu0 0.0
      %778 = vmatpush1.msra.mxu0 0.0
      %779 = vmatprep.subr.mxu0 0.0
      %780 = vmatpush1.msra.mxu0 0.0
      %781 = vmatprep.subr.mxu0 0.0
      %782 = vmatpush1.msra.mxu0 0.0
      %783 = vmatprep.subr.mxu0 0.0
      %784 = vmatpush1.msra.mxu0 0.0
      %785 = vmatprep.subr.mxu0 0.0
      %786 = vmatpush1.msra.mxu0 0.0
      %787 = vmatprep.subr.mxu0 0.0
      %788 = vmatpush1.msra.mxu0 0.0
      %789 = vmatprep.subr.mxu0 0.0
      %790 = vmatpush1.msra.mxu0 0.0
      %791 = vmatprep.subr.mxu0 0.0
      %792 = vmatpush1.msra.mxu0 0.0
      %793 = vmatprep.subr.mxu0 0.0
      %794 = vmatpush1.msra.mxu0 0.0
      %795 = vmatprep.subr.mxu0 0.0
      %796 = vmatpush1.msra.mxu0 0.0
      %797 = vmatprep.subr.mxu0 0.0
      %798 = vmatpush1.msra.mxu0 0.0
      %799 = vmatprep.subr.mxu0 0.0
      %800 = vmatpush1.msra.mxu0 0.0
      %801 = vmatprep.subr.mxu0 0.0
      %802 = vmatpush1.msra.mxu0 0.0
      %803 = vmatprep.subr.mxu0 0.0
      %804 = vmatpush1.msra.mxu0 0.0
      %805 = vmatprep.subr.mxu0 0.0
      %806 = vmatpush1.msra.mxu0 0.0
      %807 = vmatprep.subr.mxu0 0.0
      %808 = vmatpush1.msra.mxu0 0.0
      %809 = vmatprep.subr.mxu0 0.0
      %810 = vmatpush1.msra.mxu0 0.0
      %811 = vmatprep.subr.mxu0 0.0
      %812 = vmatpush1.msra.mxu0 0.0
      %813 = vmatprep.subr.mxu0 0.0
      %814 = vmatpush1.msra.mxu0 0.0
      %815 = vmatprep.subr.mxu0 0.0
      %816 = vmatpush1.msra.mxu0 0.0
      %817 = vmatprep.subr.mxu0 0.0
      %818 = vmatpush1.msra.mxu0 0.0
      %819 = vmatprep.subr.mxu0 0.0
      %820 = vmatpush1.msra.mxu0 0.0
      %821 = vmatprep.subr.mxu0 0.0
      %822 = vmatpush1.msra.mxu0 0.0
      %823 = vmatprep.subr.mxu0 0.0
      %824 = vmatpush1.msra.mxu0 0.0
      %825 = vmatprep.mubr.f32.mxu0 0.0
      %826 = vmatmul.mubr.f32.gmra.mrb[0].mxu0 %v759
      %v827 = vpop.f32.mrb[0].mxu0
      %v828 = vadd.f32 0.0, %v827
      %v829 = vpop.f32.mrb[0].mxu0
      %830 = vdwg.mxu0
      %v831 = vmax.f32 %v751, %v828
      %v832 = vpack.c.bf16 %v831, %v831
      %833 = vst [vmem:[%s186] sm:$0xf] %v832
      %p834 = scmp.lt.s32.totalorder %s17, 1
      %s835 = scalar_select %p834, %s17, 1
      %p836 = scmp.lt.s32.totalorder %s18, 0
      %s837 = scalar_select %p836, %s18, 0
      %s838 = sadd.s32 %s837, %s835
      %s839 = smul.addr %s838, 4
      %s840 = scalar_lea.vmem %s2, %s839
      // Predicated region
      $region29: #{assanet_encoder_forward.28} parent=27 // pred_check
        %p841 = pneg %p99
      $region30: #{assanet_encoder_forward.28} parent=27 // pred_check_branch
        %843 = sbr.rel (%p841) target = $region32
      $region31: #{assanet_encoder_forward.28} parent=27 // pred_region
        _
      $region32: #{assanet_encoder_forward.28} parent=27 // pred_fallthru
        _
    $region28: #{assanet_encoder_forward.28} parent=5 // pred_fallthru
      _
    %p844 = scmp.le.s32.totalorder 2, %s8
    // Predicated region
    $region33: #{assanet_encoder_forward.28} parent=5 // pred_check
      %p845 = pneg %p844
    $region34: #{assanet_encoder_forward.28} parent=5 // pred_check_branch
      %847 = sbr.rel (%p845) target = $region36
    $region35: #{assanet_encoder_forward.28} parent=5 // pred_region
      %s848 = ssub.s32 %s8, 2
      // Predicated region
      $region37: #{assanet_encoder_forward.28} parent=35 // pred_check
        %p849 = pneg %p105
      $region38: #{assanet_encoder_forward.28} parent=35 // pred_check_branch
        %851 = sbr.rel (%p849) target = $region40
      $region39: #{assanet_encoder_forward.28} parent=35 // pred_region
        %p852 = scmp.lt.s32.totalorder %s19, 1
        %s853 = scalar_select %p852, %s19, 1
        %p854 = scmp.lt.s32.totalorder %s20, 0
        %s855 = scalar_select %p854, %s20, 0
        %s856 = sadd.s32 %s855, %s853
        %s857 = smul.addr %s856, 4
        %s858 = scalar_lea.vmem %s2, %s857
      $region40: #{assanet_encoder_forward.28} parent=35 // pred_fallthru
        _
    $region36: #{assanet_encoder_forward.28} parent=5 // pred_fallthru
      _
  $region6: #{assanet_encoder_forward.28} parent=0 // loop_footer
    %s12 = sadd.s32 1, %s8
  $region7: #{assanet_encoder_forward.28} parent=0 // loop_footer_branch
    %7 = sbr.rel target = $region3
  $region8: #{assanet_encoder_forward.28} parent=0 // loop_exit
    _

</llo_original>
